<compile_context>
chip_gen: v7x
topology: tpu7x:2x2x1
jax: 0.10.0
libtpu: 0.0.40
codegen_flags: <defaults>
</compile_context>

<pallas_src>
import jax
import jax.numpy as jnp
from jax import lax
from jax.experimental import pallas as pl
from jax.experimental.pallas import tpu as pltpu


# ----------------------------- in-kernel helpers -----------------------------

def _pad_hw(x, ph, pw, fill):
    """Pad H (axis 1) and W (axis 2) of an (NB, H, W, C) value with `fill`."""
    NB, H, W, C = x.shape
    if pw > 0:
        wpad = jnp.full((NB, H, pw, C), fill, x.dtype)
        x = jnp.concatenate([wpad, x, wpad], axis=2)
    if ph > 0:
        hpad = jnp.full((NB, ph, x.shape[2], C), fill, x.dtype)
        x = jnp.concatenate([hpad, x, hpad], axis=1)
    return x


def _conv2d(x, w_ref, b_ref, kh, kw):
    """'same' conv, stride 1, as one im2col matmul.

    x:(NB,H,W,Cin)  w_ref:(kh*kw,Cin,Cout)  b_ref:(1,Cout)  -> (NB,H,W,Cout)
    """
    NB, H, W, Cin = x.shape
    Cout = w_ref.shape[-1]

    if kh == 1 and kw == 1:
        # 1x1 conv: plain matmul, no shifting / padding needed.
        y = jnp.dot(x.reshape(NB * H * W, Cin), w_ref[0],
                    preferred_element_type=jnp.float32)
        return (y + b_ref[...]).reshape(NB, H, W, Cout)

    ph, pw = (kh - 1) // 2, (kw - 1) // 2
    xp = _pad_hw(x, ph, pw, 0.0)

    # im2col: tap-major, channel-minor -- matches w.reshape(kh*kw*Cin, Cout).
    cols = [xp[:, i:i + H, j:j + W, :] for i in range(kh) for j in range(kw)]
    patches = jnp.concatenate(cols, axis=-1).reshape(NB * H * W, kh * kw * Cin)

    wmat = w_ref[...].reshape(kh * kw * Cin, Cout)
    y = jnp.dot(patches, wmat, preferred_element_type=jnp.float32)
    return (y + b_ref[...]).reshape(NB, H, W, Cout)


def _maxpool3x3(x):
    """3x3 max pool, stride 1, pad 1 (implicit -inf padding, like PyTorch)."""
    NB, H, W, C = x.shape
    xp = _pad_hw(x, 1, 1, -jnp.inf)
    out = xp[:, 0:H, 0:W, :]
    for i in range(3):
        for j in range(3):
            if i == 0 and j == 0:
                continue
            out = jnp.maximum(out, xp[:, i:i + H, j:j + W, :])
    return out


# --------------------------------- kernel ------------------------------------

def reduction_b_kernel(x_ref,
                       w1_ref, b1_ref,
                       w2a_ref, b2a_ref,
                       w2b_ref, b2b_ref,
                       w2c_ref, b2c_ref,
                       w2d_ref, b2d_ref,
                       o_ref):
    x = x_ref[...]                                   # (NB, H, W, C_in)

    # branch 1: maxpool 3x3 -> conv 3x3 (C_in -> C_in/2)
    pooled = _maxpool3x3(x)
    br1 = _conv2d(pooled, w1_ref, b1_ref, 3, 3)

    # branch 2: 1x1 -> 1x7 -> 7x1 -> 3x3
    t = _conv2d(x, w2a_ref, b2a_ref, 1, 1)
    t = _conv2d(t, w2b_ref, b2b_ref, 1, 7)
    t = _conv2d(t, w2c_ref, b2c_ref, 7, 1)
    br2 = _conv2d(t, w2d_ref, b2d_ref, 3, 3)

    # single fused channel-concat store
    o_ref[...] = jnp.concatenate([br1, br2], axis=-1).astype(o_ref.dtype)


# --------------------------------- wrapper -----------------------------------

def reduction_b_pallas(x_nhwc, params):
    N, H, W, C = x_nhwc.shape
    c_out = (C // 2) * 2        # branch1 (C/2) + branch2 (C/2)
    NB = N                      # whole batch per grid step (small problem)

    def const_spec(shape):
        return pl.BlockSpec(shape, lambda n, _r=len(shape): (0,) * _r)

    in_specs = [pl.BlockSpec((NB, H, W, C), lambda n: (n, 0, 0, 0))]
    args = [x_nhwc]
    for wk, bk in (("w1", "b1"), ("w2a", "b2a"), ("w2b", "b2b"),
                   ("w2c", "b2c"), ("w2d", "b2d")):
        in_specs.append(const_spec(params[wk].shape)); args.append(params[wk])
        in_specs.append(const_spec(params[bk].shape)); args.append(params[bk])

    return pl.pallas_call(
        reduction_b_kernel,
        out_shape=jax.ShapeDtypeStruct((N, H, W, c_out), jnp.float32),
        grid=(pl.cdiv(N, NB),),
        in_specs=in_specs,
        out_specs=pl.BlockSpec((NB, H, W, c_out), lambda n: (n, 0, 0, 0)),
        compiler_params=pltpu.CompilerParams(
            dimension_semantics=("parallel",)),
    )(*args)


# ------------------------------ pure-JAX reference ---------------------------

def reduction_b_ref(x_nhwc, params):
    def conv(x, w, b, kh, kw):
        w_hwio = w.reshape(kh, kw, w.shape[1], w.shape[2])
        y = lax.conv_general_dilated(
            x, w_hwio, (1, 1), "SAME",
            dimension_numbers=("NHWC", "HWIO", "NHWC"))
        return y + b.reshape(1, 1, 1, -1)

    pooled = lax.reduce_window(x_nhwc, -jnp.inf, lax.max,
                               (1, 3, 3, 1), (1, 1, 1, 1),
                               [(0, 0), (1, 1), (1, 1), (0, 0)])
    br1 = conv(pooled, params["w1"], params["b1"], 3, 3)
    t = conv(x_nhwc, params["w2a"], params["b2a"], 1, 1)
    t = conv(t, params["w2b"], params["b2b"], 1, 7)
    t = conv(t, params["w2c"], params["b2c"], 7, 1)
    br2 = conv(t, params["w2d"], params["b2d"], 3, 3)
    return jnp.concatenate([br1, br2], axis=-1)


# ----------------------------------- main -------------------------------------

if __name__ == "__main__":
    N, C, H, W = 2, 32, 16, 16          # in_channels must be >= 16 (C/16 branch)
    key = jax.random.PRNGKey(0)
    keys = jax.random.split(key, 11)

    # deterministic synthetic parameters (module __init__ shapes)
    def init_conv(k, kh, kw, cin, cout):
        kw_, kb_ = jax.random.split(k)
        w = 0.1 * jax.random.normal(kw_, (kh * kw, cin, cout), jnp.float32)
        b = 0.1 * jax.random.normal(kb_, (1, cout), jnp.float32)
        return w, b

    params = {}
    params["w1"],  params["b1"]  = init_conv(keys[0], 3, 3, C,       C // 2)
    params["w2a"], params["b2a"] = init_conv(keys[1], 1, 1, C,       C // 16)
    params["w2b"], params["b2b"] = init_conv(keys[2], 1, 7, C // 16, C // 8)
    params["w2c"], params["b2c"] = init_conv(keys[3], 7, 1, C // 8,  C // 4)
    params["w2d"], params["b2d"] = init_conv(keys[4], 3, 3, C // 4,  C // 2)

    # PyTorch-style NCHW input -> kernel layout NHWC
    x_nchw = jax.random.normal(keys[5], (N, C, H, W), jnp.float32)
    x_nhwc = jnp.transpose(x_nchw, (0, 2, 3, 1))

    out = reduction_b_pallas(x_nhwc, params)
    out = jax.block_until_ready(out)

    ref = reduction_b_ref(x_nhwc, params)
    assert out.shape == (N, H, W, C)
    assert jnp.allclose(out, ref, rtol=1e-4, atol=1e-4), \
        f"max abs err {jnp.max(jnp.abs(out - ref))}"

    # back to NCHW to match the PyTorch module's output convention
    out_nchw = jnp.transpose(out, (0, 3, 1, 2))
    jax.block_until_ready(out_nchw)
    print("KERNEL_OK")
</pallas_src>

<mosaic_0001>
module attributes {stable_mosaic.version = 11 : i64} {
  func.func @reduction_b_kernel(%arg0: i32, %arg1: memref<2x16x16x32xf32, #tpu.memory_space<vmem>>, %arg2: memref<9x32x16xf32, #tpu.memory_space<vmem>>, %arg3: memref<1x16xf32, #tpu.memory_space<vmem>>, %arg4: memref<1x32x2xf32, #tpu.memory_space<vmem>>, %arg5: memref<1x2xf32, #tpu.memory_space<vmem>>, %arg6: memref<7x2x4xf32, #tpu.memory_space<vmem>>, %arg7: memref<1x4xf32, #tpu.memory_space<vmem>>, %arg8: memref<7x4x8xf32, #tpu.memory_space<vmem>>, %arg9: memref<1x8xf32, #tpu.memory_space<vmem>>, %arg10: memref<9x8x16xf32, #tpu.memory_space<vmem>>, %arg11: memref<1x16xf32, #tpu.memory_space<vmem>>, %arg12: memref<2x16x16x32xf32, #tpu.memory_space<vmem>>) attributes {dimension_semantics = [#tpu.dimension_semantics<parallel>], iteration_bounds = array<i64: 1>, scalar_prefetch = 0 : i64, scratch_operands = 0 : i64, tpu.core_type = #tpu.core_type<tc>, window_params = [{transform_indices = @transform_0, window_bounds = array<i64: 2, 16, 16, 32>}, {pipeline_mode = #tpu.pipeline_mode<synchronous>, transform_indices = @transform_1, window_bounds = array<i64: 9, 32, 16>}, {pipeline_mode = #tpu.pipeline_mode<synchronous>, transform_indices = @transform_2, window_bounds = array<i64: 1, 16>}, {pipeline_mode = #tpu.pipeline_mode<synchronous>, transform_indices = @transform_3, window_bounds = array<i64: 1, 32, 2>}, {pipeline_mode = #tpu.pipeline_mode<synchronous>, transform_indices = @transform_4, window_bounds = array<i64: 1, 2>}, {pipeline_mode = #tpu.pipeline_mode<synchronous>, transform_indices = @transform_5, window_bounds = array<i64: 7, 2, 4>}, {pipeline_mode = #tpu.pipeline_mode<synchronous>, transform_indices = @transform_6, window_bounds = array<i64: 1, 4>}, {pipeline_mode = #tpu.pipeline_mode<synchronous>, transform_indices = @transform_7, window_bounds = array<i64: 7, 4, 8>}, {pipeline_mode = #tpu.pipeline_mode<synchronous>, transform_indices = @transform_8, window_bounds = array<i64: 1, 8>}, {pipeline_mode = #tpu.pipeline_mode<synchronous>, transform_indices = @transform_9, window_bounds = array<i64: 9, 8, 16>}, {pipeline_mode = #tpu.pipeline_mode<synchronous>, transform_indices = @transform_10, window_bounds = array<i64: 1, 16>}, {transform_indices = @transform_11, window_bounds = array<i64: 2, 16, 16, 32>}]} {
    %c0 = arith.constant 0 : index
    %c0_0 = arith.constant 0 : index
    %c0_1 = arith.constant 0 : index
    %c0_2 = arith.constant 0 : index
    %0 = vector.load %arg1[%c0, %c0_0, %c0_1, %c0_2] : memref<2x16x16x32xf32, #tpu.memory_space<vmem>>, vector<2x16x16x32xf32>
    %cst = arith.constant 0xFF800000 : f32
    %1 = vector.broadcast %cst : f32 to vector<2x16x1x32xf32>
    %2 = tpu.concatenate %1, %0, %1 in 2 : vector<2x16x1x32xf32>, vector<2x16x16x32xf32>, vector<2x16x1x32xf32> -> vector<2x16x18x32xf32>
    %cst_3 = arith.constant 0xFF800000 : f32
    %3 = vector.broadcast %cst_3 : f32 to vector<2x1x18x32xf32>
    %4 = tpu.concatenate %3, %2, %3 in 1 : vector<2x1x18x32xf32>, vector<2x16x18x32xf32>, vector<2x1x18x32xf32> -> vector<2x18x18x32xf32>
    %5 = vector.extract_strided_slice %4 {offsets = [0, 0, 0, 0], sizes = [2, 16, 16, 32], strides = [1, 1, 1, 1]} : vector<2x18x18x32xf32> to vector<2x16x16x32xf32>
    %6 = vector.extract_strided_slice %4 {offsets = [0, 0, 1, 0], sizes = [2, 16, 16, 32], strides = [1, 1, 1, 1]} : vector<2x18x18x32xf32> to vector<2x16x16x32xf32>
    %7 = arith.maximumf %5, %6 : vector<2x16x16x32xf32>
    %8 = vector.extract_strided_slice %4 {offsets = [0, 0, 2, 0], sizes = [2, 16, 16, 32], strides = [1, 1, 1, 1]} : vector<2x18x18x32xf32> to vector<2x16x16x32xf32>
    %9 = arith.maximumf %7, %8 : vector<2x16x16x32xf32>
    %10 = vector.extract_strided_slice %4 {offsets = [0, 1, 0, 0], sizes = [2, 16, 16, 32], strides = [1, 1, 1, 1]} : vector<2x18x18x32xf32> to vector<2x16x16x32xf32>
    %11 = arith.maximumf %9, %10 : vector<2x16x16x32xf32>
    %12 = vector.extract_strided_slice %4 {offsets = [0, 1, 1, 0], sizes = [2, 16, 16, 32], strides = [1, 1, 1, 1]} : vector<2x18x18x32xf32> to vector<2x16x16x32xf32>
    %13 = arith.maximumf %11, %12 : vector<2x16x16x32xf32>
    %14 = vector.extract_strided_slice %4 {offsets = [0, 1, 2, 0], sizes = [2, 16, 16, 32], strides = [1, 1, 1, 1]} : vector<2x18x18x32xf32> to vector<2x16x16x32xf32>
    %15 = arith.maximumf %13, %14 : vector<2x16x16x32xf32>
    %16 = vector.extract_strided_slice %4 {offsets = [0, 2, 0, 0], sizes = [2, 16, 16, 32], strides = [1, 1, 1, 1]} : vector<2x18x18x32xf32> to vector<2x16x16x32xf32>
    %17 = arith.maximumf %15, %16 : vector<2x16x16x32xf32>
    %18 = vector.extract_strided_slice %4 {offsets = [0, 2, 1, 0], sizes = [2, 16, 16, 32], strides = [1, 1, 1, 1]} : vector<2x18x18x32xf32> to vector<2x16x16x32xf32>
    %19 = arith.maximumf %17, %18 : vector<2x16x16x32xf32>
    %20 = vector.extract_strided_slice %4 {offsets = [0, 2, 2, 0], sizes = [2, 16, 16, 32], strides = [1, 1, 1, 1]} : vector<2x18x18x32xf32> to vector<2x16x16x32xf32>
    %21 = arith.maximumf %19, %20 : vector<2x16x16x32xf32>
    %cst_4 = arith.constant 0.000000e+00 : f32
    %22 = vector.broadcast %cst_4 : f32 to vector<2x16x1x32xf32>
    %23 = tpu.concatenate %22, %21, %22 in 2 : vector<2x16x1x32xf32>, vector<2x16x16x32xf32>, vector<2x16x1x32xf32> -> vector<2x16x18x32xf32>
    %cst_5 = arith.constant 0.000000e+00 : f32
    %24 = vector.broadcast %cst_5 : f32 to vector<2x1x18x32xf32>
    %25 = tpu.concatenate %24, %23, %24 in 1 : vector<2x1x18x32xf32>, vector<2x16x18x32xf32>, vector<2x1x18x32xf32> -> vector<2x18x18x32xf32>
    %26 = vector.extract_strided_slice %25 {offsets = [0, 0, 0, 0], sizes = [2, 16, 16, 32], strides = [1, 1, 1, 1]} : vector<2x18x18x32xf32> to vector<2x16x16x32xf32>
    %27 = vector.extract_strided_slice %25 {offsets = [0, 0, 1, 0], sizes = [2, 16, 16, 32], strides = [1, 1, 1, 1]} : vector<2x18x18x32xf32> to vector<2x16x16x32xf32>
    %28 = vector.extract_strided_slice %25 {offsets = [0, 0, 2, 0], sizes = [2, 16, 16, 32], strides = [1, 1, 1, 1]} : vector<2x18x18x32xf32> to vector<2x16x16x32xf32>
    %29 = vector.extract_strided_slice %25 {offsets = [0, 1, 0, 0], sizes = [2, 16, 16, 32], strides = [1, 1, 1, 1]} : vector<2x18x18x32xf32> to vector<2x16x16x32xf32>
    %30 = vector.extract_strided_slice %25 {offsets = [0, 1, 1, 0], sizes = [2, 16, 16, 32], strides = [1, 1, 1, 1]} : vector<2x18x18x32xf32> to vector<2x16x16x32xf32>
    %31 = vector.extract_strided_slice %25 {offsets = [0, 1, 2, 0], sizes = [2, 16, 16, 32], strides = [1, 1, 1, 1]} : vector<2x18x18x32xf32> to vector<2x16x16x32xf32>
    %32 = vector.extract_strided_slice %25 {offsets = [0, 2, 0, 0], sizes = [2, 16, 16, 32], strides = [1, 1, 1, 1]} : vector<2x18x18x32xf32> to vector<2x16x16x32xf32>
    %33 = vector.extract_strided_slice %25 {offsets = [0, 2, 1, 0], sizes = [2, 16, 16, 32], strides = [1, 1, 1, 1]} : vector<2x18x18x32xf32> to vector<2x16x16x32xf32>
    %34 = vector.extract_strided_slice %25 {offsets = [0, 2, 2, 0], sizes = [2, 16, 16, 32], strides = [1, 1, 1, 1]} : vector<2x18x18x32xf32> to vector<2x16x16x32xf32>
    %35 = tpu.concatenate %26, %27, %28, %29, %30, %31, %32, %33, %34 in 3 : vector<2x16x16x32xf32>, vector<2x16x16x32xf32>, vector<2x16x16x32xf32>, vector<2x16x16x32xf32>, vector<2x16x16x32xf32>, vector<2x16x16x32xf32>, vector<2x16x16x32xf32>, vector<2x16x16x32xf32>, vector<2x16x16x32xf32> -> vector<2x16x16x288xf32>
    %36 = vector.shape_cast %35 : vector<2x16x16x288xf32> to vector<512x288xf32>
    %c0_6 = arith.constant 0 : index
    %c0_7 = arith.constant 0 : index
    %c0_8 = arith.constant 0 : index
    %37 = vector.load %arg2[%c0_6, %c0_7, %c0_8] : memref<9x32x16xf32, #tpu.memory_space<vmem>>, vector<9x32x16xf32>
    %38 = vector.shape_cast %37 : vector<9x32x16xf32> to vector<288x16xf32>
    %cst_9 = arith.constant dense<0.000000e+00> : vector<512x16xf32>
    %39 = tpu.matmul %36, %38, %cst_9 {dimension_numbers = #tpu.dot_dimension_numbers<[1], [0], [0], [1], [0, 0, 1, 1], [], []>} : vector<512x288xf32>, vector<288x16xf32>, vector<512x16xf32> -> vector<512x16xf32>
    %c0_10 = arith.constant 0 : index
    %c0_11 = arith.constant 0 : index
    %40 = vector.load %arg3[%c0_10, %c0_11] : memref<1x16xf32, #tpu.memory_space<vmem>>, vector<1x16xf32>
    %41 = vector.broadcast %40 : vector<1x16xf32> to vector<512x16xf32>
    %42 = arith.addf %39, %41 : vector<512x16xf32>
    %43 = vector.shape_cast %42 : vector<512x16xf32> to vector<2x16x16x16xf32>
    %44 = vector.shape_cast %0 : vector<2x16x16x32xf32> to vector<512x32xf32>
    %c0_12 = arith.constant 0 : index
    %c0_13 = arith.constant 0 : index
    %c0_14 = arith.constant 0 : index
    %45 = vector.load %arg4[%c0_12, %c0_13, %c0_14] : memref<1x32x2xf32, #tpu.memory_space<vmem>>, vector<1x32x2xf32>
    %46 = vector.shape_cast %45 : vector<1x32x2xf32> to vector<32x2xf32>
    %cst_15 = arith.constant dense<0.000000e+00> : vector<512x2xf32>
    %47 = tpu.matmul %44, %46, %cst_15 {dimension_numbers = #tpu.dot_dimension_numbers<[1], [0], [0], [1], [0, 0, 1, 1], [], []>} : vector<512x32xf32>, vector<32x2xf32>, vector<512x2xf32> -> vector<512x2xf32>
    %c0_16 = arith.constant 0 : index
    %c0_17 = arith.constant 0 : index
    %48 = vector.load %arg5[%c0_16, %c0_17] : memref<1x2xf32, #tpu.memory_space<vmem>>, vector<1x2xf32>
    %49 = vector.broadcast %48 : vector<1x2xf32> to vector<512x2xf32>
    %50 = arith.addf %47, %49 : vector<512x2xf32>
    %51 = vector.shape_cast %50 : vector<512x2xf32> to vector<2x16x16x2xf32>
    %cst_18 = arith.constant 0.000000e+00 : f32
    %52 = vector.broadcast %cst_18 : f32 to vector<2x16x3x2xf32>
    %53 = tpu.concatenate %52, %51, %52 in 2 : vector<2x16x3x2xf32>, vector<2x16x16x2xf32>, vector<2x16x3x2xf32> -> vector<2x16x22x2xf32>
    %54 = vector.extract_strided_slice %53 {offsets = [0, 0, 0, 0], sizes = [2, 16, 16, 2], strides = [1, 1, 1, 1]} : vector<2x16x22x2xf32> to vector<2x16x16x2xf32>
    %55 = vector.extract_strided_slice %53 {offsets = [0, 0, 1, 0], sizes = [2, 16, 16, 2], strides = [1, 1, 1, 1]} : vector<2x16x22x2xf32> to vector<2x16x16x2xf32>
    %56 = vector.extract_strided_slice %53 {offsets = [0, 0, 2, 0], sizes = [2, 16, 16, 2], strides = [1, 1, 1, 1]} : vector<2x16x22x2xf32> to vector<2x16x16x2xf32>
    %57 = vector.extract_strided_slice %53 {offsets = [0, 0, 3, 0], sizes = [2, 16, 16, 2], strides = [1, 1, 1, 1]} : vector<2x16x22x2xf32> to vector<2x16x16x2xf32>
    %58 = vector.extract_strided_slice %53 {offsets = [0, 0, 4, 0], sizes = [2, 16, 16, 2], strides = [1, 1, 1, 1]} : vector<2x16x22x2xf32> to vector<2x16x16x2xf32>
    %59 = vector.extract_strided_slice %53 {offsets = [0, 0, 5, 0], sizes = [2, 16, 16, 2], strides = [1, 1, 1, 1]} : vector<2x16x22x2xf32> to vector<2x16x16x2xf32>
    %60 = vector.extract_strided_slice %53 {offsets = [0, 0, 6, 0], sizes = [2, 16, 16, 2], strides = [1, 1, 1, 1]} : vector<2x16x22x2xf32> to vector<2x16x16x2xf32>
    %61 = tpu.concatenate %54, %55, %56, %57, %58, %59, %60 in 3 : vector<2x16x16x2xf32>, vector<2x16x16x2xf32>, vector<2x16x16x2xf32>, vector<2x16x16x2xf32>, vector<2x16x16x2xf32>, vector<2x16x16x2xf32>, vector<2x16x16x2xf32> -> vector<2x16x16x14xf32>
    %62 = vector.shape_cast %61 : vector<2x16x16x14xf32> to vector<512x14xf32>
    %c0_19 = arith.constant 0 : index
    %c0_20 = arith.constant 0 : index
    %c0_21 = arith.constant 0 : index
    %63 = vector.load %arg6[%c0_19, %c0_20, %c0_21] : memref<7x2x4xf32, #tpu.memory_space<vmem>>, vector<7x2x4xf32>
    %64 = vector.shape_cast %63 : vector<7x2x4xf32> to vector<14x4xf32>
    %cst_22 = arith.constant dense<0.000000e+00> : vector<512x4xf32>
    %65 = tpu.matmul %62, %64, %cst_22 {dimension_numbers = #tpu.dot_dimension_numbers<[1], [0], [0], [1], [0, 0, 1, 1], [], []>} : vector<512x14xf32>, vector<14x4xf32>, vector<512x4xf32> -> vector<512x4xf32>
    %c0_23 = arith.constant 0 : index
    %c0_24 = arith.constant 0 : index
    %66 = vector.load %arg7[%c0_23, %c0_24] : memref<1x4xf32, #tpu.memory_space<vmem>>, vector<1x4xf32>
    %67 = vector.broadcast %66 : vector<1x4xf32> to vector<512x4xf32>
    %68 = arith.addf %65, %67 : vector<512x4xf32>
    %69 = vector.shape_cast %68 : vector<512x4xf32> to vector<2x16x16x4xf32>
    %cst_25 = arith.constant 0.000000e+00 : f32
    %70 = vector.broadcast %cst_25 : f32 to vector<2x3x16x4xf32>
    %71 = tpu.concatenate %70, %69, %70 in 1 : vector<2x3x16x4xf32>, vector<2x16x16x4xf32>, vector<2x3x16x4xf32> -> vector<2x22x16x4xf32>
    %72 = vector.extract_strided_slice %71 {offsets = [0, 0, 0, 0], sizes = [2, 16, 16, 4], strides = [1, 1, 1, 1]} : vector<2x22x16x4xf32> to vector<2x16x16x4xf32>
    %73 = vector.extract_strided_slice %71 {offsets = [0, 1, 0, 0], sizes = [2, 16, 16, 4], strides = [1, 1, 1, 1]} : vector<2x22x16x4xf32> to vector<2x16x16x4xf32>
    %74 = vector.extract_strided_slice %71 {offsets = [0, 2, 0, 0], sizes = [2, 16, 16, 4], strides = [1, 1, 1, 1]} : vector<2x22x16x4xf32> to vector<2x16x16x4xf32>
    %75 = vector.extract_strided_slice %71 {offsets = [0, 3, 0, 0], sizes = [2, 16, 16, 4], strides = [1, 1, 1, 1]} : vector<2x22x16x4xf32> to vector<2x16x16x4xf32>
    %76 = vector.extract_strided_slice %71 {offsets = [0, 4, 0, 0], sizes = [2, 16, 16, 4], strides = [1, 1, 1, 1]} : vector<2x22x16x4xf32> to vector<2x16x16x4xf32>
    %77 = vector.extract_strided_slice %71 {offsets = [0, 5, 0, 0], sizes = [2, 16, 16, 4], strides = [1, 1, 1, 1]} : vector<2x22x16x4xf32> to vector<2x16x16x4xf32>
    %78 = vector.extract_strided_slice %71 {offsets = [0, 6, 0, 0], sizes = [2, 16, 16, 4], strides = [1, 1, 1, 1]} : vector<2x22x16x4xf32> to vector<2x16x16x4xf32>
    %79 = tpu.concatenate %72, %73, %74, %75, %76, %77, %78 in 3 : vector<2x16x16x4xf32>, vector<2x16x16x4xf32>, vector<2x16x16x4xf32>, vector<2x16x16x4xf32>, vector<2x16x16x4xf32>, vector<2x16x16x4xf32>, vector<2x16x16x4xf32> -> vector<2x16x16x28xf32>
    %80 = vector.shape_cast %79 : vector<2x16x16x28xf32> to vector<512x28xf32>
    %c0_26 = arith.constant 0 : index
    %c0_27 = arith.constant 0 : index
    %c0_28 = arith.constant 0 : index
    %81 = vector.load %arg8[%c0_26, %c0_27, %c0_28] : memref<7x4x8xf32, #tpu.memory_space<vmem>>, vector<7x4x8xf32>
    %82 = vector.shape_cast %81 : vector<7x4x8xf32> to vector<28x8xf32>
    %cst_29 = arith.constant dense<0.000000e+00> : vector<512x8xf32>
    %83 = tpu.matmul %80, %82, %cst_29 {dimension_numbers = #tpu.dot_dimension_numbers<[1], [0], [0], [1], [0, 0, 1, 1], [], []>} : vector<512x28xf32>, vector<28x8xf32>, vector<512x8xf32> -> vector<512x8xf32>
    %c0_30 = arith.constant 0 : index
    %c0_31 = arith.constant 0 : index
    %84 = vector.load %arg9[%c0_30, %c0_31] : memref<1x8xf32, #tpu.memory_space<vmem>>, vector<1x8xf32>
    %85 = vector.broadcast %84 : vector<1x8xf32> to vector<512x8xf32>
    %86 = arith.addf %83, %85 : vector<512x8xf32>
    %87 = vector.shape_cast %86 : vector<512x8xf32> to vector<2x16x16x8xf32>
    %cst_32 = arith.constant 0.000000e+00 : f32
    %88 = vector.broadcast %cst_32 : f32 to vector<2x16x1x8xf32>
    %89 = tpu.concatenate %88, %87, %88 in 2 : vector<2x16x1x8xf32>, vector<2x16x16x8xf32>, vector<2x16x1x8xf32> -> vector<2x16x18x8xf32>
    %cst_33 = arith.constant 0.000000e+00 : f32
    %90 = vector.broadcast %cst_33 : f32 to vector<2x1x18x8xf32>
    %91 = tpu.concatenate %90, %89, %90 in 1 : vector<2x1x18x8xf32>, vector<2x16x18x8xf32>, vector<2x1x18x8xf32> -> vector<2x18x18x8xf32>
    %92 = vector.extract_strided_slice %91 {offsets = [0, 0, 0, 0], sizes = [2, 16, 16, 8], strides = [1, 1, 1, 1]} : vector<2x18x18x8xf32> to vector<2x16x16x8xf32>
    %93 = vector.extract_strided_slice %91 {offsets = [0, 0, 1, 0], sizes = [2, 16, 16, 8], strides = [1, 1, 1, 1]} : vector<2x18x18x8xf32> to vector<2x16x16x8xf32>
    %94 = vector.extract_strided_slice %91 {offsets = [0, 0, 2, 0], sizes = [2, 16, 16, 8], strides = [1, 1, 1, 1]} : vector<2x18x18x8xf32> to vector<2x16x16x8xf32>
    %95 = vector.extract_strided_slice %91 {offsets = [0, 1, 0, 0], sizes = [2, 16, 16, 8], strides = [1, 1, 1, 1]} : vector<2x18x18x8xf32> to vector<2x16x16x8xf32>
    %96 = vector.extract_strided_slice %91 {offsets = [0, 1, 1, 0], sizes = [2, 16, 16, 8], strides = [1, 1, 1, 1]} : vector<2x18x18x8xf32> to vector<2x16x16x8xf32>
    %97 = vector.extract_strided_slice %91 {offsets = [0, 1, 2, 0], sizes = [2, 16, 16, 8], strides = [1, 1, 1, 1]} : vector<2x18x18x8xf32> to vector<2x16x16x8xf32>
    %98 = vector.extract_strided_slice %91 {offsets = [0, 2, 0, 0], sizes = [2, 16, 16, 8], strides = [1, 1, 1, 1]} : vector<2x18x18x8xf32> to vector<2x16x16x8xf32>
    %99 = vector.extract_strided_slice %91 {offsets = [0, 2, 1, 0], sizes = [2, 16, 16, 8], strides = [1, 1, 1, 1]} : vector<2x18x18x8xf32> to vector<2x16x16x8xf32>
    %100 = vector.extract_strided_slice %91 {offsets = [0, 2, 2, 0], sizes = [2, 16, 16, 8], strides = [1, 1, 1, 1]} : vector<2x18x18x8xf32> to vector<2x16x16x8xf32>
    %101 = tpu.concatenate %92, %93, %94, %95, %96, %97, %98, %99, %100 in 3 : vector<2x16x16x8xf32>, vector<2x16x16x8xf32>, vector<2x16x16x8xf32>, vector<2x16x16x8xf32>, vector<2x16x16x8xf32>, vector<2x16x16x8xf32>, vector<2x16x16x8xf32>, vector<2x16x16x8xf32>, vector<2x16x16x8xf32> -> vector<2x16x16x72xf32>
    %102 = vector.shape_cast %101 : vector<2x16x16x72xf32> to vector<512x72xf32>
    %c0_34 = arith.constant 0 : index
    %c0_35 = arith.constant 0 : index
    %c0_36 = arith.constant 0 : index
    %103 = vector.load %arg10[%c0_34, %c0_35, %c0_36] : memref<9x8x16xf32, #tpu.memory_space<vmem>>, vector<9x8x16xf32>
    %104 = vector.shape_cast %103 : vector<9x8x16xf32> to vector<72x16xf32>
    %cst_37 = arith.constant dense<0.000000e+00> : vector<512x16xf32>
    %105 = tpu.matmul %102, %104, %cst_37 {dimension_numbers = #tpu.dot_dimension_numbers<[1], [0], [0], [1], [0, 0, 1, 1], [], []>} : vector<512x72xf32>, vector<72x16xf32>, vector<512x16xf32> -> vector<512x16xf32>
    %c0_38 = arith.constant 0 : index
    %c0_39 = arith.constant 0 : index
    %106 = vector.load %arg11[%c0_38, %c0_39] : memref<1x16xf32, #tpu.memory_space<vmem>>, vector<1x16xf32>
    %107 = vector.broadcast %106 : vector<1x16xf32> to vector<512x16xf32>
    %108 = arith.addf %105, %107 : vector<512x16xf32>
    %109 = vector.shape_cast %108 : vector<512x16xf32> to vector<2x16x16x16xf32>
    %110 = tpu.concatenate %43, %109 in 3 : vector<2x16x16x16xf32>, vector<2x16x16x16xf32> -> vector<2x16x16x32xf32>
    %c0_40 = arith.constant 0 : index
    %c0_41 = arith.constant 0 : index
    %c0_42 = arith.constant 0 : index
    %c0_43 = arith.constant 0 : index
    %111 = vector.load %arg12[%c0_40, %c0_41, %c0_42, %c0_43] : memref<2x16x16x32xf32, #tpu.memory_space<vmem>>, vector<2x16x16x32xf32>
    tpu.vector_store %arg12[%c0_40, %c0_41, %c0_42, %c0_43], %110 {strides = array<i32>} : memref<2x16x16x32xf32, #tpu.memory_space<vmem>>, vector<2x16x16x32xf32>,
    return
  }
  func.func @transform_0(%arg0: i32) -> (i32, i32, i32, i32) {
    %c0_i32 = arith.constant 0 : i32
    %c0_i32_0 = arith.constant 0 : i32
    %c0_i32_1 = arith.constant 0 : i32
    %c0_i32_2 = arith.constant 0 : i32
    return %arg0, %c0_i32, %c0_i32_0, %c0_i32_1 : i32, i32, i32, i32
  }
  func.func @transform_1(%arg0: i32) -> (i32, i32, i32) {
    %c0_i32 = arith.constant 0 : i32
    %c0_i32_0 = arith.constant 0 : i32
    %c0_i32_1 = arith.constant 0 : i32
    %c0_i32_2 = arith.constant 0 : i32
    return %c0_i32, %c0_i32_0, %c0_i32_1 : i32, i32, i32
  }
  func.func @transform_2(%arg0: i32) -> (i32, i32) {
    %c0_i32 = arith.constant 0 : i32
    %c0_i32_0 = arith.constant 0 : i32
    %c0_i32_1 = arith.constant 0 : i32
    return %c0_i32, %c0_i32_0 : i32, i32
  }
  func.func @transform_3(%arg0: i32) -> (i32, i32, i32) {
    %c0_i32 = arith.constant 0 : i32
    %c0_i32_0 = arith.constant 0 : i32
    %c0_i32_1 = arith.constant 0 : i32
    %c0_i32_2 = arith.constant 0 : i32
    return %c0_i32, %c0_i32_0, %c0_i32_1 : i32, i32, i32
  }
  func.func @transform_4(%arg0: i32) -> (i32, i32) {
    %c0_i32 = arith.constant 0 : i32
    %c0_i32_0 = arith.constant 0 : i32
    %c0_i32_1 = arith.constant 0 : i32
    return %c0_i32, %c0_i32_0 : i32, i32
  }
  func.func @transform_5(%arg0: i32) -> (i32, i32, i32) {
    %c0_i32 = arith.constant 0 : i32
    %c0_i32_0 = arith.constant 0 : i32
    %c0_i32_1 = arith.constant 0 : i32
    %c0_i32_2 = arith.constant 0 : i32
    return %c0_i32, %c0_i32_0, %c0_i32_1 : i32, i32, i32
  }
  func.func @transform_6(%arg0: i32) -> (i32, i32) {
    %c0_i32 = arith.constant 0 : i32
    %c0_i32_0 = arith.constant 0 : i32
    %c0_i32_1 = arith.constant 0 : i32
    return %c0_i32, %c0_i32_0 : i32, i32
  }
  func.func @transform_7(%arg0: i32) -> (i32, i32, i32) {
    %c0_i32 = arith.constant 0 : i32
    %c0_i32_0 = arith.constant 0 : i32
    %c0_i32_1 = arith.constant 0 : i32
    %c0_i32_2 = arith.constant 0 : i32
    return %c0_i32, %c0_i32_0, %c0_i32_1 : i32, i32, i32
  }
  func.func @transform_8(%arg0: i32) -> (i32, i32) {
    %c0_i32 = arith.constant 0 : i32
    %c0_i32_0 = arith.constant 0 : i32
    %c0_i32_1 = arith.constant 0 : i32
    return %c0_i32, %c0_i32_0 : i32, i32
  }
  func.func @transform_9(%arg0: i32) -> (i32, i32, i32) {
    %c0_i32 = arith.constant 0 : i32
    %c0_i32_0 = arith.constant 0 : i32
    %c0_i32_1 = arith.constant 0 : i32
    %c0_i32_2 = arith.constant 0 : i32
    return %c0_i32, %c0_i32_0, %c0_i32_1 : i32, i32, i32
  }
  func.func @transform_10(%arg0: i32) -> (i32, i32) {
    %c0_i32 = arith.constant 0 : i32
    %c0_i32_0 = arith.constant 0 : i32
    %c0_i32_1 = arith.constant 0 : i32
    return %c0_i32, %c0_i32_0 : i32, i32
  }
  func.func @transform_11(%arg0: i32) -> (i32, i32, i32, i32) {
    %c0_i32 = arith.constant 0 : i32
    %c0_i32_0 = arith.constant 0 : i32
    %c0_i32_1 = arith.constant 0 : i32
    %c0_i32_2 = arith.constant 0 : i32
    return %arg0, %c0_i32, %c0_i32_0, %c0_i32_1 : i32, i32, i32, i32
  }
}

</mosaic_0001>

<llo_original>
// kernel: tpu_custom_call.1
$region0: #{tpu_custom_call.1}
  #allocation0 [shape = 'u32[]', space=smem, size = 0x4, offset = 0x4, fixed_abs, tag = 'smem constant byte address 0x4 - core index']
  #allocation1 [shape = 'u32[144,128]{1,0:T(1,128)}', space=vmem, size = 0x12000, scoped, tag = 'internal scratch']
  %s0 = inlined_call_operand.hbm [shape: f32[2,16,16,32], index: 0, kind: input, shape index: {}]
  %s1 = inlined_call_operand.vmem [shape: f32[9,32,16], index: 1, kind: input, shape index: {}]
  %s2 = inlined_call_operand.vmem [shape: f32[1,16], index: 2, kind: input, shape index: {}]
  %s3 = inlined_call_operand.vmem [shape: f32[1,32,2], index: 3, kind: input, shape index: {}]
  %s4 = inlined_call_operand.vmem [shape: f32[1,2], index: 4, kind: input, shape index: {}]
  %s5 = inlined_call_operand.vmem [shape: f32[7,2,4], index: 5, kind: input, shape index: {}]
  %s6 = inlined_call_operand.vmem [shape: f32[1,4], index: 6, kind: input, shape index: {}]
  %s7 = inlined_call_operand.vmem [shape: f32[7,4,8], index: 7, kind: input, shape index: {}]
  %s8 = inlined_call_operand.vmem [shape: f32[1,8], index: 8, kind: input, shape index: {}]
  %s9 = inlined_call_operand.vmem [shape: f32[9,8,16], index: 9, kind: input, shape index: {}]
  %s10 = inlined_call_operand.vmem [shape: f32[1,16], index: 10, kind: input, shape index: {}]
  %s11 = inlined_call_operand.hbm [shape: f32[2,16,16,32], index: 11, kind: output, shape index: {}]
  %s12 = sld [smem:[#allocation0]]
  $region58: #{tpu_custom_call.1} parent=0
    _
  %s14 = ssub.s32 1, %s12
  %s15 = scalar_select 0, %s14, %s12
  $region1: #{tpu_custom_call.1} parent=0
    #allocation2 [shape = 'u8[262144]{0}', space=vmem, size = 0x40000, scoped, tag = 'input window, operand 0, single buffered']
    #allocation3 [shape = 's32[1]{0}', space=sflag, size = 0x4, scoped, tag = 'scoped memory for tpu_custom_call.1']
    #allocation4 [shape = 's32[1]{0}', space=sflag, size = 0x4, scoped, tag = 'scoped memory for tpu_custom_call.1']
    #allocation5 [shape = 'u8[262144]{0}', space=vmem, size = 0x40000, scoped, tag = 'output window, operand 0, single buffered']
    %16 = vsyncpa [#allocation3], 0
    %17 = vsyncpa [#allocation4], 0
    // Predicated region
    $region2: #{tpu_custom_call.1} parent=1 // pred_check
      _
    $region3: #{tpu_custom_call.1} parent=1 // pred_check_branch
      %19 = sbr.rel (0) target = $region5
    $region4: #{tpu_custom_call.1} parent=1 // pred_region
      %s21 = ssub.s32 8192, 8192
      %22 = vsyncadd [#allocation3], %s21
      %s23 = sshll.u32 [#allocation2], 4
      %s24 = int_to_ptr.vmem [resolvable:$true] %s23
      %29 = dma.hbm_to_vmem [thread:$0]  %s0, 8192, %s24, [#allocation3], 128, 128, 8
    $region5: #{tpu_custom_call.1} parent=1 // pred_fallthru
      _
    // Predicated region
    $region6: #{tpu_custom_call.1} parent=1 // pred_check
      _
    $region7: #{tpu_custom_call.1} parent=1 // pred_check_branch
      %31 = sbr.rel (0) target = $region9
    $region8: #{tpu_custom_call.1} parent=1 // pred_region
      _
    $region9: #{tpu_custom_call.1} parent=1 // pred_fallthru
      _
    // Predicated region
    $region10: #{tpu_custom_call.1} parent=1 // pred_check
      _
    $region11: #{tpu_custom_call.1} parent=1 // pred_check_branch
      %33 = sbr.rel (0) target = $region13
    $region12: #{tpu_custom_call.1} parent=1 // pred_region
      _
    $region13: #{tpu_custom_call.1} parent=1 // pred_fallthru
      _
    // Predicated region
    $region14: #{tpu_custom_call.1} parent=1 // pred_check
      _
    $region15: #{tpu_custom_call.1} parent=1 // pred_check_branch
      %35 = sbr.rel (0) target = $region17
    $region16: #{tpu_custom_call.1} parent=1 // pred_region
      _
    $region17: #{tpu_custom_call.1} parent=1 // pred_fallthru
      _
    // Predicated region
    $region18: #{tpu_custom_call.1} parent=1 // pred_check
      _
    $region19: #{tpu_custom_call.1} parent=1 // pred_check_branch
      %37 = sbr.rel (0) target = $region21
    $region20: #{tpu_custom_call.1} parent=1 // pred_region
      _
    $region21: #{tpu_custom_call.1} parent=1 // pred_fallthru
      _
    // Predicated region
    $region22: #{tpu_custom_call.1} parent=1 // pred_check
      _
    $region23: #{tpu_custom_call.1} parent=1 // pred_check_branch
      %39 = sbr.rel (0) target = $region25
    $region24: #{tpu_custom_call.1} parent=1 // pred_region
      _
    $region25: #{tpu_custom_call.1} parent=1 // pred_fallthru
      _
    // Predicated region
    $region26: #{tpu_custom_call.1} parent=1 // pred_check
      _
    $region27: #{tpu_custom_call.1} parent=1 // pred_check_branch
      %41 = sbr.rel (0) target = $region29
    $region28: #{tpu_custom_call.1} parent=1 // pred_region
      _
    $region29: #{tpu_custom_call.1} parent=1 // pred_fallthru
      _
    // Predicated region
    $region30: #{tpu_custom_call.1} parent=1 // pred_check
      _
    $region31: #{tpu_custom_call.1} parent=1 // pred_check_branch
      %43 = sbr.rel (0) target = $region33
    $region32: #{tpu_custom_call.1} parent=1 // pred_region
      _
    $region33: #{tpu_custom_call.1} parent=1 // pred_fallthru
      _
    // Predicated region
    $region34: #{tpu_custom_call.1} parent=1 // pred_check
      _
    $region35: #{tpu_custom_call.1} parent=1 // pred_check_branch
      %45 = sbr.rel (0) target = $region37
    $region36: #{tpu_custom_call.1} parent=1 // pred_region
      _
    $region37: #{tpu_custom_call.1} parent=1 // pred_fallthru
      _
    // Predicated region
    $region38: #{tpu_custom_call.1} parent=1 // pred_check
      _
    $region39: #{tpu_custom_call.1} parent=1 // pred_check_branch
      %47 = sbr.rel (0) target = $region41
    $region40: #{tpu_custom_call.1} parent=1 // pred_region
      _
    $region41: #{tpu_custom_call.1} parent=1 // pred_fallthru
      _
    // Predicated region
    $region42: #{tpu_custom_call.1} parent=1 // pred_check
      _
    $region43: #{tpu_custom_call.1} parent=1 // pred_check_branch
      %49 = sbr.rel (0) target = $region45
    $region44: #{tpu_custom_call.1} parent=1 // pred_region
      _
    $region45: #{tpu_custom_call.1} parent=1 // pred_fallthru
      _
    // Predicated region
    $region46: #{tpu_custom_call.1} parent=1 // pred_check
      _
    $region47: #{tpu_custom_call.1} parent=1 // pred_check_branch
      %51 = sbr.rel (0) target = $region49
    $region48: #{tpu_custom_call.1} parent=1 // pred_region
      %52 = dma.done [#allocation3], 8192
    $region49: #{tpu_custom_call.1} parent=1 // pred_fallthru
      _
    %v53 = vld [vmem:[#allocation2] sm:$0xff]
    %v54 = vld [vmem:[#allocation2 + $0x8] sm:$0xff]
    %v55 = vld [vmem:[#allocation2 + $0x10] sm:$0xff]
    %v56 = vld [vmem:[#allocation2 + $0x18] sm:$0xff]
    %v57 = vld [vmem:[#allocation2 + $0x20] sm:$0xff]
    %v58 = vld [vmem:[#allocation2 + $0x28] sm:$0xff]
    %v59 = vld [vmem:[#allocation2 + $0x30] sm:$0xff]
    %v60 = vld [vmem:[#allocation2 + $0x38] sm:$0xff]
    %v61 = vld [vmem:[#allocation2 + $0x40] sm:$0xff]
    %v62 = vld [vmem:[#allocation2 + $0x48] sm:$0xff]
    %v63 = vld [vmem:[#allocation2 + $0x50] sm:$0xff]
    %v64 = vld [vmem:[#allocation2 + $0x58] sm:$0xff]
    %v65 = vld [vmem:[#allocation2 + $0x60] sm:$0xff]
    %v66 = vld [vmem:[#allocation2 + $0x68] sm:$0xff]
    %v67 = vld [vmem:[#allocation2 + $0x70] sm:$0xff]
    %v68 = vld [vmem:[#allocation2 + $0x78] sm:$0xff]
    %v69 = vld [vmem:[#allocation2 + $0x80] sm:$0xff]
    %v70 = vld [vmem:[#allocation2 + $0x88] sm:$0xff]
    %v71 = vld [vmem:[#allocation2 + $0x90] sm:$0xff]
    %v72 = vld [vmem:[#allocation2 + $0x98] sm:$0xff]
    %v73 = vld [vmem:[#allocation2 + $0xa0] sm:$0xff]
    %v74 = vld [vmem:[#allocation2 + $0xa8] sm:$0xff]
    %v75 = vld [vmem:[#allocation2 + $0xb0] sm:$0xff]
    %v76 = vld [vmem:[#allocation2 + $0xb8] sm:$0xff]
    %v77 = vld [vmem:[#allocation2 + $0xc0] sm:$0xff]
    %v78 = vld [vmem:[#allocation2 + $0xc8] sm:$0xff]
    %v79 = vld [vmem:[#allocation2 + $0xd0] sm:$0xff]
    %v80 = vld [vmem:[#allocation2 + $0xd8] sm:$0xff]
    %v81 = vld [vmem:[#allocation2 + $0xe0] sm:$0xff]
    %v82 = vld [vmem:[#allocation2 + $0xe8] sm:$0xff]
    %v83 = vld [vmem:[#allocation2 + $0xf0] sm:$0xff]
    %v84 = vld [vmem:[#allocation2 + $0xf8] sm:$0xff]
    %v85 = vld [vmem:[#allocation2 + $0x100] sm:$0xff]
    %v86 = vld [vmem:[#allocation2 + $0x108] sm:$0xff]
    %v87 = vld [vmem:[#allocation2 + $0x110] sm:$0xff]
    %v88 = vld [vmem:[#allocation2 + $0x118] sm:$0xff]
    %v89 = vld [vmem:[#allocation2 + $0x120] sm:$0xff]
    %v90 = vld [vmem:[#allocation2 + $0x128] sm:$0xff]
    %v91 = vld [vmem:[#allocation2 + $0x130] sm:$0xff]
    %v92 = vld [vmem:[#allocation2 + $0x138] sm:$0xff]
    %v93 = vld [vmem:[#allocation2 + $0x140] sm:$0xff]
    %v94 = vld [vmem:[#allocation2 + $0x148] sm:$0xff]
    %v95 = vld [vmem:[#allocation2 + $0x150] sm:$0xff]
    %v96 = vld [vmem:[#allocation2 + $0x158] sm:$0xff]
    %v97 = vld [vmem:[#allocation2 + $0x160] sm:$0xff]
    %v98 = vld [vmem:[#allocation2 + $0x168] sm:$0xff]
    %v99 = vld [vmem:[#allocation2 + $0x170] sm:$0xff]
    %v100 = vld [vmem:[#allocation2 + $0x178] sm:$0xff]
    %v101 = vld [vmem:[#allocation2 + $0x180] sm:$0xff]
    %v102 = vld [vmem:[#allocation2 + $0x188] sm:$0xff]
    %v103 = vld [vmem:[#allocation2 + $0x190] sm:$0xff]
    %v104 = vld [vmem:[#allocation2 + $0x198] sm:$0xff]
    %v105 = vld [vmem:[#allocation2 + $0x1a0] sm:$0xff]
    %v106 = vld [vmem:[#allocation2 + $0x1a8] sm:$0xff]
    %v107 = vld [vmem:[#allocation2 + $0x1b0] sm:$0xff]
    %v108 = vld [vmem:[#allocation2 + $0x1b8] sm:$0xff]
    %v109 = vld [vmem:[#allocation2 + $0x1c0] sm:$0xff]
    %v110 = vld [vmem:[#allocation2 + $0x1c8] sm:$0xff]
    %v111 = vld [vmem:[#allocation2 + $0x1d0] sm:$0xff]
    %v112 = vld [vmem:[#allocation2 + $0x1d8] sm:$0xff]
    %v113 = vld [vmem:[#allocation2 + $0x1e0] sm:$0xff]
    %v114 = vld [vmem:[#allocation2 + $0x1e8] sm:$0xff]
    %v115 = vld [vmem:[#allocation2 + $0x1f0] sm:$0xff]
    %v116 = vld [vmem:[#allocation2 + $0x1f8] sm:$0xff]
    %vm181 = vcmask 1040384
    %v182 = vrot.slane %v53, 7
    %v183 = vrot.slane %v54, 7
    %v184 = vsel %vm181, %v182, %v183
    %v185 = vrot.slane %v55, 7
    %v186 = vrot.slane %v56, 7
    %v187 = vsel %vm181, %v185, %v186
    %v188 = vrot.slane %v57, 7
    %v189 = vrot.slane %v58, 7
    %v190 = vsel %vm181, %v188, %v189
    %v191 = vrot.slane %v59, 7
    %v192 = vrot.slane %v60, 7
    %v193 = vsel %vm181, %v191, %v192
    %v194 = vrot.slane %v61, 7
    %v195 = vrot.slane %v62, 7
    %v196 = vsel %vm181, %v194, %v195
    %v197 = vrot.slane %v63, 7
    %v198 = vrot.slane %v64, 7
    %v199 = vsel %vm181, %v197, %v198
    %v200 = vrot.slane %v65, 7
    %v201 = vrot.slane %v66, 7
    %v202 = vsel %vm181, %v200, %v201
    %v203 = vrot.slane %v67, 7
    %v204 = vrot.slane %v68, 7
    %v205 = vsel %vm181, %v203, %v204
    %v206 = vrot.slane %v69, 7
    %v207 = vrot.slane %v70, 7
    %v208 = vsel %vm181, %v206, %v207
    %v209 = vrot.slane %v71, 7
    %v210 = vrot.slane %v72, 7
    %v211 = vsel %vm181, %v209, %v210
    %v212 = vrot.slane %v73, 7
    %v213 = vrot.slane %v74, 7
    %v214 = vsel %vm181, %v212, %v213
    %v215 = vrot.slane %v75, 7
    %v216 = vrot.slane %v76, 7
    %v217 = vsel %vm181, %v215, %v216
    %v218 = vrot.slane %v77, 7
    %v219 = vrot.slane %v78, 7
    %v220 = vsel %vm181, %v218, %v219
    %v221 = vrot.slane %v79, 7
    %v222 = vrot.slane %v80, 7
    %v223 = vsel %vm181, %v221, %v222
    %v224 = vrot.slane %v81, 7
    %v225 = vrot.slane %v82, 7
    %v226 = vsel %vm181, %v224, %v225
    %v227 = vrot.slane %v83, 7
    %v228 = vrot.slane %v84, 7
    %v229 = vsel %vm181, %v227, %v228
    %v230 = vrot.slane %v85, 7
    %v231 = vrot.slane %v86, 7
    %v232 = vsel %vm181, %v230, %v231
    %v233 = vrot.slane %v87, 7
    %v234 = vrot.slane %v88, 7
    %v235 = vsel %vm181, %v233, %v234
    %v236 = vrot.slane %v89, 7
    %v237 = vrot.slane %v90, 7
    %v238 = vsel %vm181, %v236, %v237
    %v239 = vrot.slane %v91, 7
    %v240 = vrot.slane %v92, 7
    %v241 = vsel %vm181, %v239, %v240
    %v242 = vrot.slane %v93, 7
    %v243 = vrot.slane %v94, 7
    %v244 = vsel %vm181, %v242, %v243
    %v245 = vrot.slane %v95, 7
    %v246 = vrot.slane %v96, 7
    %v247 = vsel %vm181, %v245, %v246
    %v248 = vrot.slane %v97, 7
    %v249 = vrot.slane %v98, 7
    %v250 = vsel %vm181, %v248, %v249
    %v251 = vrot.slane %v99, 7
    %v252 = vrot.slane %v100, 7
    %v253 = vsel %vm181, %v251, %v252
    %v254 = vrot.slane %v101, 7
    %v255 = vrot.slane %v102, 7
    %v256 = vsel %vm181, %v254, %v255
    %v257 = vrot.slane %v103, 7
    %v258 = vrot.slane %v104, 7
    %v259 = vsel %vm181, %v257, %v258
    %v260 = vrot.slane %v105, 7
    %v261 = vrot.slane %v106, 7
    %v262 = vsel %vm181, %v260, %v261
    %v263 = vrot.slane %v107, 7
    %v264 = vrot.slane %v108, 7
    %v265 = vsel %vm181, %v263, %v264
    %v266 = vrot.slane %v109, 7
    %v267 = vrot.slane %v110, 7
    %v268 = vsel %vm181, %v266, %v267
    %v269 = vrot.slane %v111, 7
    %v270 = vrot.slane %v112, 7
    %v271 = vsel %vm181, %v269, %v270
    %v272 = vrot.slane %v113, 7
    %v273 = vrot.slane %v114, 7
    %v274 = vsel %vm181, %v272, %v273
    %v275 = vrot.slane %v115, 7
    %v276 = vrot.slane %v116, 7
    %v277 = vsel %vm181, %v275, %v276
    %v374 = vsel %vm181, -inf, %v182
    %v375 = vsel %vm181, -inf, %v185
    %v376 = vsel %vm181, -inf, %v188
    %v377 = vsel %vm181, -inf, %v191
    %v378 = vsel %vm181, -inf, %v194
    %v379 = vsel %vm181, -inf, %v197
    %v380 = vsel %vm181, -inf, %v200
    %v381 = vsel %vm181, -inf, %v203
    %v382 = vsel %vm181, -inf, %v206
    %v383 = vsel %vm181, -inf, %v209
    %v384 = vsel %vm181, -inf, %v212
    %v385 = vsel %vm181, -inf, %v215
    %v386 = vsel %vm181, -inf, %v218
    %v387 = vsel %vm181, -inf, %v221
    %v388 = vsel %vm181, -inf, %v224
    %v389 = vsel %vm181, -inf, %v227
    %v390 = vsel %vm181, -inf, %v230
    %v391 = vsel %vm181, -inf, %v233
    %v392 = vsel %vm181, -inf, %v236
    %v393 = vsel %vm181, -inf, %v239
    %v394 = vsel %vm181, -inf, %v242
    %v395 = vsel %vm181, -inf, %v245
    %v396 = vsel %vm181, -inf, %v248
    %v397 = vsel %vm181, -inf, %v251
    %v398 = vsel %vm181, -inf, %v254
    %v399 = vsel %vm181, -inf, %v257
    %v400 = vsel %vm181, -inf, %v260
    %v401 = vsel %vm181, -inf, %v263
    %v402 = vsel %vm181, -inf, %v266
    %v403 = vsel %vm181, -inf, %v269
    %v404 = vsel %vm181, -inf, %v272
    %v405 = vsel %vm181, -inf, %v275
    %v406 = vsel %vm181, %v183, -inf
    %v407 = vsel %vm181, %v186, -inf
    %v408 = vsel %vm181, %v189, -inf
    %v409 = vsel %vm181, %v192, -inf
    %v410 = vsel %vm181, %v195, -inf
    %v411 = vsel %vm181, %v198, -inf
    %v412 = vsel %vm181, %v201, -inf
    %v413 = vsel %vm181, %v204, -inf
    %v414 = vsel %vm181, %v207, -inf
    %v415 = vsel %vm181, %v210, -inf
    %v416 = vsel %vm181, %v213, -inf
    %v417 = vsel %vm181, %v216, -inf
    %v418 = vsel %vm181, %v219, -inf
    %v419 = vsel %vm181, %v222, -inf
    %v420 = vsel %vm181, %v225, -inf
    %v421 = vsel %vm181, %v228, -inf
    %v422 = vsel %vm181, %v231, -inf
    %v423 = vsel %vm181, %v234, -inf
    %v424 = vsel %vm181, %v237, -inf
    %v425 = vsel %vm181, %v240, -inf
    %v426 = vsel %vm181, %v243, -inf
    %v427 = vsel %vm181, %v246, -inf
    %v428 = vsel %vm181, %v249, -inf
    %v429 = vsel %vm181, %v252, -inf
    %v430 = vsel %vm181, %v255, -inf
    %v431 = vsel %vm181, %v258, -inf
    %v432 = vsel %vm181, %v261, -inf
    %v433 = vsel %vm181, %v264, -inf
    %v434 = vsel %vm181, %v267, -inf
    %v435 = vsel %vm181, %v270, -inf
    %v436 = vsel %vm181, %v273, -inf
    %v437 = vsel %vm181, %v276, -inf
    %vm499 = vcmask 1046528
    %v500 = vrot.slane -inf, 1
    %v501 = vsel %vm499, %v500, %v500
    %v502 = vrot.slane %v374, 1
    %v503 = vrot.slane %v184, 1
    %v504 = vsel %vm499, %v502, %v503
    %v505 = vrot.slane %v406, 1
    %v506 = vsel %vm499, %v503, %v505
    %v507 = vrot.slane %v375, 1
    %v508 = vrot.slane %v187, 1
    %v509 = vsel %vm499, %v507, %v508
    %v510 = vrot.slane %v407, 1
    %v511 = vsel %vm499, %v508, %v510
    %v512 = vrot.slane %v376, 1
    %v513 = vrot.slane %v190, 1
    %v514 = vsel %vm499, %v512, %v513
    %v515 = vrot.slane %v408, 1
    %v516 = vsel %vm499, %v513, %v515
    %v517 = vrot.slane %v377, 1
    %v518 = vrot.slane %v193, 1
    %v519 = vsel %vm499, %v517, %v518
    %v520 = vrot.slane %v409, 1
    %v521 = vsel %vm499, %v518, %v520
    %v522 = vrot.slane %v378, 1
    %v523 = vrot.slane %v196, 1
    %v524 = vsel %vm499, %v522, %v523
    %v525 = vrot.slane %v410, 1
    %v526 = vsel %vm499, %v523, %v525
    %v527 = vrot.slane %v379, 1
    %v528 = vrot.slane %v199, 1
    %v529 = vsel %vm499, %v527, %v528
    %v530 = vrot.slane %v411, 1
    %v531 = vsel %vm499, %v528, %v530
    %v532 = vrot.slane %v380, 1
    %v533 = vrot.slane %v202, 1
    %v534 = vsel %vm499, %v532, %v533
    %v535 = vrot.slane %v412, 1
    %v536 = vsel %vm499, %v533, %v535
    %v537 = vrot.slane %v381, 1
    %v538 = vrot.slane %v205, 1
    %v539 = vsel %vm499, %v537, %v538
    %v540 = vrot.slane %v413, 1
    %v541 = vsel %vm499, %v538, %v540
    %v542 = vrot.slane %v382, 1
    %v543 = vrot.slane %v208, 1
    %v544 = vsel %vm499, %v542, %v543
    %v545 = vrot.slane %v414, 1
    %v546 = vsel %vm499, %v543, %v545
    %v547 = vrot.slane %v383, 1
    %v548 = vrot.slane %v211, 1
    %v549 = vsel %vm499, %v547, %v548
    %v550 = vrot.slane %v415, 1
    %v551 = vsel %vm499, %v548, %v550
    %v552 = vrot.slane %v384, 1
    %v553 = vrot.slane %v214, 1
    %v554 = vsel %vm499, %v552, %v553
    %v555 = vrot.slane %v416, 1
    %v556 = vsel %vm499, %v553, %v555
    %v557 = vrot.slane %v385, 1
    %v558 = vrot.slane %v217, 1
    %v559 = vsel %vm499, %v557, %v558
    %v560 = vrot.slane %v417, 1
    %v561 = vsel %vm499, %v558, %v560
    %v562 = vrot.slane %v386, 1
    %v563 = vrot.slane %v220, 1
    %v564 = vsel %vm499, %v562, %v563
    %v565 = vrot.slane %v418, 1
    %v566 = vsel %vm499, %v563, %v565
    %v567 = vrot.slane %v387, 1
    %v568 = vrot.slane %v223, 1
    %v569 = vsel %vm499, %v567, %v568
    %v570 = vrot.slane %v419, 1
    %v571 = vsel %vm499, %v568, %v570
    %v572 = vrot.slane %v388, 1
    %v573 = vrot.slane %v226, 1
    %v574 = vsel %vm499, %v572, %v573
    %v575 = vrot.slane %v420, 1
    %v576 = vsel %vm499, %v573, %v575
    %v577 = vrot.slane %v390, 1
    %v578 = vrot.slane %v232, 1
    %v579 = vsel %vm499, %v577, %v578
    %v580 = vrot.slane %v422, 1
    %v581 = vsel %vm499, %v578, %v580
    %v582 = vrot.slane %v391, 1
    %v583 = vrot.slane %v235, 1
    %v584 = vsel %vm499, %v582, %v583
    %v585 = vrot.slane %v423, 1
    %v586 = vsel %vm499, %v583, %v585
    %v587 = vrot.slane %v392, 1
    %v588 = vrot.slane %v238, 1
    %v589 = vsel %vm499, %v587, %v588
    %v590 = vrot.slane %v424, 1
    %v591 = vsel %vm499, %v588, %v590
    %v592 = vrot.slane %v393, 1
    %v593 = vrot.slane %v241, 1
    %v594 = vsel %vm499, %v592, %v593
    %v595 = vrot.slane %v425, 1
    %v596 = vsel %vm499, %v593, %v595
    %v597 = vrot.slane %v394, 1
    %v598 = vrot.slane %v244, 1
    %v599 = vsel %vm499, %v597, %v598
    %v600 = vrot.slane %v426, 1
    %v601 = vsel %vm499, %v598, %v600
    %v602 = vrot.slane %v395, 1
    %v603 = vrot.slane %v247, 1
    %v604 = vsel %vm499, %v602, %v603
    %v605 = vrot.slane %v427, 1
    %v606 = vsel %vm499, %v603, %v605
    %v607 = vrot.slane %v396, 1
    %v608 = vrot.slane %v250, 1
    %v609 = vsel %vm499, %v607, %v608
    %v610 = vrot.slane %v428, 1
    %v611 = vsel %vm499, %v608, %v610
    %v612 = vrot.slane %v397, 1
    %v613 = vrot.slane %v253, 1
    %v614 = vsel %vm499, %v612, %v613
    %v615 = vrot.slane %v429, 1
    %v616 = vsel %vm499, %v613, %v615
    %v617 = vrot.slane %v398, 1
    %v618 = vrot.slane %v256, 1
    %v619 = vsel %vm499, %v617, %v618
    %v620 = vrot.slane %v430, 1
    %v621 = vsel %vm499, %v618, %v620
    %v622 = vrot.slane %v399, 1
    %v623 = vrot.slane %v259, 1
    %v624 = vsel %vm499, %v622, %v623
    %v625 = vrot.slane %v431, 1
    %v626 = vsel %vm499, %v623, %v625
    %v627 = vrot.slane %v400, 1
    %v628 = vrot.slane %v262, 1
    %v629 = vsel %vm499, %v627, %v628
    %v630 = vrot.slane %v432, 1
    %v631 = vsel %vm499, %v628, %v630
    %v632 = vrot.slane %v401, 1
    %v633 = vrot.slane %v265, 1
    %v634 = vsel %vm499, %v632, %v633
    %v635 = vrot.slane %v433, 1
    %v636 = vsel %vm499, %v633, %v635
    %v637 = vrot.slane %v402, 1
    %v638 = vrot.slane %v268, 1
    %v639 = vsel %vm499, %v637, %v638
    %v640 = vrot.slane %v434, 1
    %v641 = vsel %vm499, %v638, %v640
    %v642 = vrot.slane %v403, 1
    %v643 = vrot.slane %v271, 1
    %v644 = vsel %vm499, %v642, %v643
    %v645 = vrot.slane %v435, 1
    %v646 = vsel %vm499, %v643, %v645
    %v647 = vrot.slane %v404, 1
    %v648 = vrot.slane %v274, 1
    %v649 = vsel %vm499, %v647, %v648
    %v650 = vrot.slane %v436, 1
    %v651 = vsel %vm499, %v648, %v650
    %v713 = vmax.f32 %v374, %v504
    %v714 = vmax.f32 %v184, %v506
    %v715 = vmax.f32 %v375, %v509
    %v716 = vmax.f32 %v187, %v511
    %v717 = vmax.f32 %v376, %v514
    %v718 = vmax.f32 %v190, %v516
    %v719 = vmax.f32 %v377, %v519
    %v720 = vmax.f32 %v193, %v521
    %v721 = vmax.f32 %v378, %v524
    %v722 = vmax.f32 %v196, %v526
    %v723 = vmax.f32 %v379, %v529
    %v724 = vmax.f32 %v199, %v531
    %v725 = vmax.f32 %v380, %v534
    %v726 = vmax.f32 %v202, %v536
    %v727 = vmax.f32 %v381, %v539
    %v728 = vmax.f32 %v205, %v541
    %v729 = vmax.f32 %v382, %v544
    %v730 = vmax.f32 %v208, %v546
    %v731 = vmax.f32 %v383, %v549
    %v732 = vmax.f32 %v211, %v551
    %v733 = vmax.f32 %v384, %v554
    %v734 = vmax.f32 %v214, %v556
    %v735 = vmax.f32 %v385, %v559
    %v736 = vmax.f32 %v217, %v561
    %v737 = vmax.f32 %v386, %v564
    %v738 = vmax.f32 %v220, %v566
    %v739 = vmax.f32 %v387, %v569
    %v740 = vmax.f32 %v223, %v571
    %v741 = vmax.f32 %v388, %v574
    %v742 = vmax.f32 %v226, %v576
    %v743 = vmax.f32 %v390, %v579
    %v744 = vmax.f32 %v232, %v581
    %v745 = vmax.f32 %v391, %v584
    %v746 = vmax.f32 %v235, %v586
    %v747 = vmax.f32 %v392, %v589
    %v748 = vmax.f32 %v238, %v591
    %v749 = vmax.f32 %v393, %v594
    %v750 = vmax.f32 %v241, %v596
    %v751 = vmax.f32 %v394, %v599
    %v752 = vmax.f32 %v244, %v601
    %v753 = vmax.f32 %v395, %v604
    %v754 = vmax.f32 %v247, %v606
    %v755 = vmax.f32 %v396, %v609
    %v756 = vmax.f32 %v250, %v611
    %v757 = vmax.f32 %v397, %v614
    %v758 = vmax.f32 %v253, %v616
    %v759 = vmax.f32 %v398, %v619
    %v760 = vmax.f32 %v256, %v621
    %v761 = vmax.f32 %v399, %v624
    %v762 = vmax.f32 %v259, %v626
    %v763 = vmax.f32 %v400, %v629
    %v764 = vmax.f32 %v262, %v631
    %v765 = vmax.f32 %v401, %v634
    %v766 = vmax.f32 %v265, %v636
    %v767 = vmax.f32 %v402, %v639
    %v768 = vmax.f32 %v268, %v641
    %v769 = vmax.f32 %v403, %v644
    %v770 = vmax.f32 %v271, %v646
    %v771 = vmax.f32 %v404, %v649
    %v772 = vmax.f32 %v274, %v651
    %vm773 = vcmask 1045504
    %v774 = vrot.slane -inf, 2
    %v775 = vsel %vm773, %v774, %v774
    %v776 = vrot.slane %v374, 2
    %v777 = vrot.slane %v184, 2
    %v778 = vsel %vm773, %v776, %v777
    %v779 = vrot.slane %v406, 2
    %v780 = vsel %vm773, %v777, %v779
    %v781 = vrot.slane %v375, 2
    %v782 = vrot.slane %v187, 2
    %v783 = vsel %vm773, %v781, %v782
    %v784 = vrot.slane %v407, 2
    %v785 = vsel %vm773, %v782, %v784
    %v786 = vrot.slane %v376, 2
    %v787 = vrot.slane %v190, 2
    %v788 = vsel %vm773, %v786, %v787
    %v789 = vrot.slane %v408, 2
    %v790 = vsel %vm773, %v787, %v789
    %v791 = vrot.slane %v377, 2
    %v792 = vrot.slane %v193, 2
    %v793 = vsel %vm773, %v791, %v792
    %v794 = vrot.slane %v409, 2
    %v795 = vsel %vm773, %v792, %v794
    %v796 = vrot.slane %v378, 2
    %v797 = vrot.slane %v196, 2
    %v798 = vsel %vm773, %v796, %v797
    %v799 = vrot.slane %v410, 2
    %v800 = vsel %vm773, %v797, %v799
    %v801 = vrot.slane %v379, 2
    %v802 = vrot.slane %v199, 2
    %v803 = vsel %vm773, %v801, %v802
    %v804 = vrot.slane %v411, 2
    %v805 = vsel %vm773, %v802, %v804
    %v806 = vrot.slane %v380, 2
    %v807 = vrot.slane %v202, 2
    %v808 = vsel %vm773, %v806, %v807
    %v809 = vrot.slane %v412, 2
    %v810 = vsel %vm773, %v807, %v809
    %v811 = vrot.slane %v381, 2
    %v812 = vrot.slane %v205, 2
    %v813 = vsel %vm773, %v811, %v812
    %v814 = vrot.slane %v413, 2
    %v815 = vsel %vm773, %v812, %v814
    %v816 = vrot.slane %v382, 2
    %v817 = vrot.slane %v208, 2
    %v818 = vsel %vm773, %v816, %v817
    %v819 = vrot.slane %v414, 2
    %v820 = vsel %vm773, %v817, %v819
    %v821 = vrot.slane %v383, 2
    %v822 = vrot.slane %v211, 2
    %v823 = vsel %vm773, %v821, %v822
    %v824 = vrot.slane %v415, 2
    %v825 = vsel %vm773, %v822, %v824
    %v826 = vrot.slane %v384, 2
    %v827 = vrot.slane %v214, 2
    %v828 = vsel %vm773, %v826, %v827
    %v829 = vrot.slane %v416, 2
    %v830 = vsel %vm773, %v827, %v829
    %v831 = vrot.slane %v385, 2
    %v832 = vrot.slane %v217, 2
    %v833 = vsel %vm773, %v831, %v832
    %v834 = vrot.slane %v417, 2
    %v835 = vsel %vm773, %v832, %v834
    %v836 = vrot.slane %v386, 2
    %v837 = vrot.slane %v220, 2
    %v838 = vsel %vm773, %v836, %v837
    %v839 = vrot.slane %v418, 2
    %v840 = vsel %vm773, %v837, %v839
    %v841 = vrot.slane %v387, 2
    %v842 = vrot.slane %v223, 2
    %v843 = vsel %vm773, %v841, %v842
    %v844 = vrot.slane %v419, 2
    %v845 = vsel %vm773, %v842, %v844
    %v846 = vrot.slane %v388, 2
    %v847 = vrot.slane %v226, 2
    %v848 = vsel %vm773, %v846, %v847
    %v849 = vrot.slane %v420, 2
    %v850 = vsel %vm773, %v847, %v849
    %v851 = vrot.slane %v390, 2
    %v852 = vrot.slane %v232, 2
    %v853 = vsel %vm773, %v851, %v852
    %v854 = vrot.slane %v422, 2
    %v855 = vsel %vm773, %v852, %v854
    %v856 = vrot.slane %v391, 2
    %v857 = vrot.slane %v235, 2
    %v858 = vsel %vm773, %v856, %v857
    %v859 = vrot.slane %v423, 2
    %v860 = vsel %vm773, %v857, %v859
    %v861 = vrot.slane %v392, 2
    %v862 = vrot.slane %v238, 2
    %v863 = vsel %vm773, %v861, %v862
    %v864 = vrot.slane %v424, 2
    %v865 = vsel %vm773, %v862, %v864
    %v866 = vrot.slane %v393, 2
    %v867 = vrot.slane %v241, 2
    %v868 = vsel %vm773, %v866, %v867
    %v869 = vrot.slane %v425, 2
    %v870 = vsel %vm773, %v867, %v869
    %v871 = vrot.slane %v394, 2
    %v872 = vrot.slane %v244, 2
    %v873 = vsel %vm773, %v871, %v872
    %v874 = vrot.slane %v426, 2
    %v875 = vsel %vm773, %v872, %v874
    %v876 = vrot.slane %v395, 2
    %v877 = vrot.slane %v247, 2
    %v878 = vsel %vm773, %v876, %v877
    %v879 = vrot.slane %v427, 2
    %v880 = vsel %vm773, %v877, %v879
    %v881 = vrot.slane %v396, 2
    %v882 = vrot.slane %v250, 2
    %v883 = vsel %vm773, %v881, %v882
    %v884 = vrot.slane %v428, 2
    %v885 = vsel %vm773, %v882, %v884
    %v886 = vrot.slane %v397, 2
    %v887 = vrot.slane %v253, 2
    %v888 = vsel %vm773, %v886, %v887
    %v889 = vrot.slane %v429, 2
    %v890 = vsel %vm773, %v887, %v889
    %v891 = vrot.slane %v398, 2
    %v892 = vrot.slane %v256, 2
    %v893 = vsel %vm773, %v891, %v892
    %v894 = vrot.slane %v430, 2
    %v895 = vsel %vm773, %v892, %v894
    %v896 = vrot.slane %v399, 2
    %v897 = vrot.slane %v259, 2
    %v898 = vsel %vm773, %v896, %v897
    %v899 = vrot.slane %v431, 2
    %v900 = vsel %vm773, %v897, %v899
    %v901 = vrot.slane %v400, 2
    %v902 = vrot.slane %v262, 2
    %v903 = vsel %vm773, %v901, %v902
    %v904 = vrot.slane %v432, 2
    %v905 = vsel %vm773, %v902, %v904
    %v906 = vrot.slane %v401, 2
    %v907 = vrot.slane %v265, 2
    %v908 = vsel %vm773, %v906, %v907
    %v909 = vrot.slane %v433, 2
    %v910 = vsel %vm773, %v907, %v909
    %v911 = vrot.slane %v402, 2
    %v912 = vrot.slane %v268, 2
    %v913 = vsel %vm773, %v911, %v912
    %v914 = vrot.slane %v434, 2
    %v915 = vsel %vm773, %v912, %v914
    %v916 = vrot.slane %v403, 2
    %v917 = vrot.slane %v271, 2
    %v918 = vsel %vm773, %v916, %v917
    %v919 = vrot.slane %v435, 2
    %v920 = vsel %vm773, %v917, %v919
    %v921 = vrot.slane %v404, 2
    %v922 = vrot.slane %v274, 2
    %v923 = vsel %vm773, %v921, %v922
    %v924 = vrot.slane %v436, 2
    %v925 = vsel %vm773, %v922, %v924
    %v987 = vmax.f32 %v501, %v775
    %v988 = vmax.f32 %v713, %v778
    %v989 = vmax.f32 %v714, %v780
    %v990 = vmax.f32 %v715, %v783
    %v991 = vmax.f32 %v716, %v785
    %v992 = vmax.f32 %v717, %v788
    %v993 = vmax.f32 %v718, %v790
    %v994 = vmax.f32 %v719, %v793
    %v995 = vmax.f32 %v720, %v795
    %v996 = vmax.f32 %v721, %v798
    %v997 = vmax.f32 %v722, %v800
    %v998 = vmax.f32 %v723, %v803
    %v999 = vmax.f32 %v724, %v805
    %v1000 = vmax.f32 %v725, %v808
    %v1001 = vmax.f32 %v726, %v810
    %v1002 = vmax.f32 %v727, %v813
    %v1003 = vmax.f32 %v728, %v815
    %v1004 = vmax.f32 %v729, %v818
    %v1005 = vmax.f32 %v730, %v820
    %v1006 = vmax.f32 %v731, %v823
    %v1007 = vmax.f32 %v732, %v825
    %v1008 = vmax.f32 %v733, %v828
    %v1009 = vmax.f32 %v734, %v830
    %v1010 = vmax.f32 %v735, %v833
    %v1011 = vmax.f32 %v736, %v835
    %v1012 = vmax.f32 %v737, %v838
    %v1013 = vmax.f32 %v738, %v840
    %v1014 = vmax.f32 %v739, %v843
    %v1015 = vmax.f32 %v740, %v845
    %v1016 = vmax.f32 %v741, %v848
    %v1017 = vmax.f32 %v742, %v850
    %v1018 = vmax.f32 %v743, %v853
    %v1019 = vmax.f32 %v744, %v855
    %v1020 = vmax.f32 %v745, %v858
    %v1021 = vmax.f32 %v746, %v860
    %v1022 = vmax.f32 %v747, %v863
    %v1023 = vmax.f32 %v748, %v865
    %v1024 = vmax.f32 %v749, %v868
    %v1025 = vmax.f32 %v750, %v870
    %v1026 = vmax.f32 %v751, %v873
    %v1027 = vmax.f32 %v752, %v875
    %v1028 = vmax.f32 %v753, %v878
    %v1029 = vmax.f32 %v754, %v880
    %v1030 = vmax.f32 %v755, %v883
    %v1031 = vmax.f32 %v756, %v885
    %v1032 = vmax.f32 %v757, %v888
    %v1033 = vmax.f32 %v758, %v890
    %v1034 = vmax.f32 %v759, %v893
    %v1035 = vmax.f32 %v760, %v895
    %v1036 = vmax.f32 %v761, %v898
    %v1037 = vmax.f32 %v762, %v900
    %v1038 = vmax.f32 %v763, %v903
    %v1039 = vmax.f32 %v764, %v905
    %v1040 = vmax.f32 %v765, %v908
    %v1041 = vmax.f32 %v766, %v910
    %v1042 = vmax.f32 %v767, %v913
    %v1043 = vmax.f32 %v768, %v915
    %v1044 = vmax.f32 %v769, %v918
    %v1045 = vmax.f32 %v770, %v920
    %v1046 = vmax.f32 %v771, %v923
    %v1047 = vmax.f32 %v772, %v925
    %v1048 = vmax.f32 %v987, %v374
    %v1049 = vmax.f32 %v987, %v184
    %v1050 = vmax.f32 %v988, %v375
    %v1051 = vmax.f32 %v989, %v187
    %v1052 = vmax.f32 %v990, %v376
    %v1053 = vmax.f32 %v991, %v190
    %v1054 = vmax.f32 %v992, %v377
    %v1055 = vmax.f32 %v993, %v193
    %v1056 = vmax.f32 %v994, %v378
    %v1057 = vmax.f32 %v995, %v196
    %v1058 = vmax.f32 %v996, %v379
    %v1059 = vmax.f32 %v997, %v199
    %v1060 = vmax.f32 %v998, %v380
    %v1061 = vmax.f32 %v999, %v202
    %v1062 = vmax.f32 %v1000, %v381
    %v1063 = vmax.f32 %v1001, %v205
    %v1064 = vmax.f32 %v1002, %v382
    %v1065 = vmax.f32 %v1003, %v208
    %v1066 = vmax.f32 %v1004, %v383
    %v1067 = vmax.f32 %v1005, %v211
    %v1068 = vmax.f32 %v1006, %v384
    %v1069 = vmax.f32 %v1007, %v214
    %v1070 = vmax.f32 %v1008, %v385
    %v1071 = vmax.f32 %v1009, %v217
    %v1072 = vmax.f32 %v1010, %v386
    %v1073 = vmax.f32 %v1011, %v220
    %v1074 = vmax.f32 %v1012, %v387
    %v1075 = vmax.f32 %v1013, %v223
    %v1076 = vmax.f32 %v1014, %v388
    %v1077 = vmax.f32 %v1015, %v226
    %v1078 = vmax.f32 %v1016, %v389
    %v1079 = vmax.f32 %v1017, %v229
    %v1080 = vmax.f32 %v987, %v390
    %v1081 = vmax.f32 %v987, %v232
    %v1082 = vmax.f32 %v1018, %v391
    %v1083 = vmax.f32 %v1019, %v235
    %v1084 = vmax.f32 %v1020, %v392
    %v1085 = vmax.f32 %v1021, %v238
    %v1086 = vmax.f32 %v1022, %v393
    %v1087 = vmax.f32 %v1023, %v241
    %v1088 = vmax.f32 %v1024, %v394
    %v1089 = vmax.f32 %v1025, %v244
    %v1090 = vmax.f32 %v1026, %v395
    %v1091 = vmax.f32 %v1027, %v247
    %v1092 = vmax.f32 %v1028, %v396
    %v1093 = vmax.f32 %v1029, %v250
    %v1094 = vmax.f32 %v1030, %v397
    %v1095 = vmax.f32 %v1031, %v253
    %v1096 = vmax.f32 %v1032, %v398
    %v1097 = vmax.f32 %v1033, %v256
    %v1098 = vmax.f32 %v1034, %v399
    %v1099 = vmax.f32 %v1035, %v259
    %v1100 = vmax.f32 %v1036, %v400
    %v1101 = vmax.f32 %v1037, %v262
    %v1102 = vmax.f32 %v1038, %v401
    %v1103 = vmax.f32 %v1039, %v265
    %v1104 = vmax.f32 %v1040, %v402
    %v1105 = vmax.f32 %v1041, %v268
    %v1106 = vmax.f32 %v1042, %v403
    %v1107 = vmax.f32 %v1043, %v271
    %v1108 = vmax.f32 %v1044, %v404
    %v1109 = vmax.f32 %v1045, %v274
    %v1110 = vmax.f32 %v1046, %v405
    %v1111 = vmax.f32 %v1047, %v277
    %v1116 = vrot.slane %v389, 1
    %v1117 = vrot.slane %v229, 1
    %v1118 = vsel %vm499, %v1116, %v1117
    %v1119 = vrot.slane %v421, 1
    %v1120 = vsel %vm499, %v1117, %v1119
    %v1121 = vrot.slane %v405, 1
    %v1122 = vrot.slane %v277, 1
    %v1123 = vsel %vm499, %v1121, %v1122
    %v1124 = vrot.slane %v437, 1
    %v1125 = vsel %vm499, %v1122, %v1124
    %v1130 = vmax.f32 %v1048, %v504
    %v1131 = vmax.f32 %v1049, %v506
    %v1132 = vmax.f32 %v1050, %v509
    %v1133 = vmax.f32 %v1051, %v511
    %v1134 = vmax.f32 %v1052, %v514
    %v1135 = vmax.f32 %v1053, %v516
    %v1136 = vmax.f32 %v1054, %v519
    %v1137 = vmax.f32 %v1055, %v521
    %v1138 = vmax.f32 %v1056, %v524
    %v1139 = vmax.f32 %v1057, %v526
    %v1140 = vmax.f32 %v1058, %v529
    %v1141 = vmax.f32 %v1059, %v531
    %v1142 = vmax.f32 %v1060, %v534
    %v1143 = vmax.f32 %v1061, %v536
    %v1144 = vmax.f32 %v1062, %v539
    %v1145 = vmax.f32 %v1063, %v541
    %v1146 = vmax.f32 %v1064, %v544
    %v1147 = vmax.f32 %v1065, %v546
    %v1148 = vmax.f32 %v1066, %v549
    %v1149 = vmax.f32 %v1067, %v551
    %v1150 = vmax.f32 %v1068, %v554
    %v1151 = vmax.f32 %v1069, %v556
    %v1152 = vmax.f32 %v1070, %v559
    %v1153 = vmax.f32 %v1071, %v561
    %v1154 = vmax.f32 %v1072, %v564
    %v1155 = vmax.f32 %v1073, %v566
    %v1156 = vmax.f32 %v1074, %v569
    %v1157 = vmax.f32 %v1075, %v571
    %v1158 = vmax.f32 %v1076, %v574
    %v1159 = vmax.f32 %v1077, %v576
    %v1160 = vmax.f32 %v1078, %v1118
    %v1161 = vmax.f32 %v1079, %v1120
    %v1162 = vmax.f32 %v1080, %v579
    %v1163 = vmax.f32 %v1081, %v581
    %v1164 = vmax.f32 %v1082, %v584
    %v1165 = vmax.f32 %v1083, %v586
    %v1166 = vmax.f32 %v1084, %v589
    %v1167 = vmax.f32 %v1085, %v591
    %v1168 = vmax.f32 %v1086, %v594
    %v1169 = vmax.f32 %v1087, %v596
    %v1170 = vmax.f32 %v1088, %v599
    %v1171 = vmax.f32 %v1089, %v601
    %v1172 = vmax.f32 %v1090, %v604
    %v1173 = vmax.f32 %v1091, %v606
    %v1174 = vmax.f32 %v1092, %v609
    %v1175 = vmax.f32 %v1093, %v611
    %v1176 = vmax.f32 %v1094, %v614
    %v1177 = vmax.f32 %v1095, %v616
    %v1178 = vmax.f32 %v1096, %v619
    %v1179 = vmax.f32 %v1097, %v621
    %v1180 = vmax.f32 %v1098, %v624
    %v1181 = vmax.f32 %v1099, %v626
    %v1182 = vmax.f32 %v1100, %v629
    %v1183 = vmax.f32 %v1101, %v631
    %v1184 = vmax.f32 %v1102, %v634
    %v1185 = vmax.f32 %v1103, %v636
    %v1186 = vmax.f32 %v1104, %v639
    %v1187 = vmax.f32 %v1105, %v641
    %v1188 = vmax.f32 %v1106, %v644
    %v1189 = vmax.f32 %v1107, %v646
    %v1190 = vmax.f32 %v1108, %v649
    %v1191 = vmax.f32 %v1109, %v651
    %v1192 = vmax.f32 %v1110, %v1123
    %v1193 = vmax.f32 %v1111, %v1125
    %v1194 = vrot.slane %v389, 2
    %v1195 = vrot.slane %v229, 2
    %v1196 = vsel %vm773, %v1194, %v1195
    %v1197 = vrot.slane %v421, 2
    %v1198 = vsel %vm773, %v1195, %v1197
    %v1199 = vrot.slane %v405, 2
    %v1200 = vrot.slane %v277, 2
    %v1201 = vsel %vm773, %v1199, %v1200
    %v1202 = vrot.slane %v437, 2
    %v1203 = vsel %vm773, %v1200, %v1202
    %v1208 = vmax.f32 %v1130, %v778
    %v1209 = vmax.f32 %v1131, %v780
    %v1210 = vmax.f32 %v1132, %v783
    %v1211 = vmax.f32 %v1133, %v785
    %v1212 = vmax.f32 %v1134, %v788
    %v1213 = vmax.f32 %v1135, %v790
    %v1214 = vmax.f32 %v1136, %v793
    %v1215 = vmax.f32 %v1137, %v795
    %v1216 = vmax.f32 %v1138, %v798
    %v1217 = vmax.f32 %v1139, %v800
    %v1218 = vmax.f32 %v1140, %v803
    %v1219 = vmax.f32 %v1141, %v805
    %v1220 = vmax.f32 %v1142, %v808
    %v1221 = vmax.f32 %v1143, %v810
    %v1222 = vmax.f32 %v1144, %v813
    %v1223 = vmax.f32 %v1145, %v815
    %v1224 = vmax.f32 %v1146, %v818
    %v1225 = vmax.f32 %v1147, %v820
    %v1226 = vmax.f32 %v1148, %v823
    %v1227 = vmax.f32 %v1149, %v825
    %v1228 = vmax.f32 %v1150, %v828
    %v1229 = vmax.f32 %v1151, %v830
    %v1230 = vmax.f32 %v1152, %v833
    %v1231 = vmax.f32 %v1153, %v835
    %v1232 = vmax.f32 %v1154, %v838
    %v1233 = vmax.f32 %v1155, %v840
    %v1234 = vmax.f32 %v1156, %v843
    %v1235 = vmax.f32 %v1157, %v845
    %v1236 = vmax.f32 %v1158, %v848
    %v1237 = vmax.f32 %v1159, %v850
    %v1238 = vmax.f32 %v1160, %v1196
    %v1239 = vmax.f32 %v1161, %v1198
    %v1240 = vmax.f32 %v1162, %v853
    %v1241 = vmax.f32 %v1163, %v855
    %v1242 = vmax.f32 %v1164, %v858
    %v1243 = vmax.f32 %v1165, %v860
    %v1244 = vmax.f32 %v1166, %v863
    %v1245 = vmax.f32 %v1167, %v865
    %v1246 = vmax.f32 %v1168, %v868
    %v1247 = vmax.f32 %v1169, %v870
    %v1248 = vmax.f32 %v1170, %v873
    %v1249 = vmax.f32 %v1171, %v875
    %v1250 = vmax.f32 %v1172, %v878
    %v1251 = vmax.f32 %v1173, %v880
    %v1252 = vmax.f32 %v1174, %v883
    %v1253 = vmax.f32 %v1175, %v885
    %v1254 = vmax.f32 %v1176, %v888
    %v1255 = vmax.f32 %v1177, %v890
    %v1256 = vmax.f32 %v1178, %v893
    %v1257 = vmax.f32 %v1179, %v895
    %v1258 = vmax.f32 %v1180, %v898
    %v1259 = vmax.f32 %v1181, %v900
    %v1260 = vmax.f32 %v1182, %v903
    %v1261 = vmax.f32 %v1183, %v905
    %v1262 = vmax.f32 %v1184, %v908
    %v1263 = vmax.f32 %v1185, %v910
    %v1264 = vmax.f32 %v1186, %v913
    %v1265 = vmax.f32 %v1187, %v915
    %v1266 = vmax.f32 %v1188, %v918
    %v1267 = vmax.f32 %v1189, %v920
    %v1268 = vmax.f32 %v1190, %v923
    %v1269 = vmax.f32 %v1191, %v925
    %v1270 = vmax.f32 %v1192, %v1201
    %v1271 = vmax.f32 %v1193, %v1203
    %v1272 = vmax.f32 %v1208, %v375
    %v1273 = vmax.f32 %v1209, %v187
    %v1274 = vmax.f32 %v1210, %v376
    %v1275 = vmax.f32 %v1211, %v190
    %v1276 = vmax.f32 %v1212, %v377
    %v1277 = vmax.f32 %v1213, %v193
    %v1278 = vmax.f32 %v1214, %v378
    %v1279 = vmax.f32 %v1215, %v196
    %v1280 = vmax.f32 %v1216, %v379
    %v1281 = vmax.f32 %v1217, %v199
    %v1282 = vmax.f32 %v1218, %v380
    %v1283 = vmax.f32 %v1219, %v202
    %v1284 = vmax.f32 %v1220, %v381
    %v1285 = vmax.f32 %v1221, %v205
    %v1286 = vmax.f32 %v1222, %v382
    %v1287 = vmax.f32 %v1223, %v208
    %v1288 = vmax.f32 %v1224, %v383
    %v1289 = vmax.f32 %v1225, %v211
    %v1290 = vmax.f32 %v1226, %v384
    %v1291 = vmax.f32 %v1227, %v214
    %v1292 = vmax.f32 %v1228, %v385
    %v1293 = vmax.f32 %v1229, %v217
    %v1294 = vmax.f32 %v1230, %v386
    %v1295 = vmax.f32 %v1231, %v220
    %v1296 = vmax.f32 %v1232, %v387
    %v1297 = vmax.f32 %v1233, %v223
    %v1298 = vmax.f32 %v1234, %v388
    %v1299 = vmax.f32 %v1235, %v226
    %v1300 = vmax.f32 %v1236, %v389
    %v1301 = vmax.f32 %v1237, %v229
    %v1302 = vmax.f32 %v1240, %v391
    %v1303 = vmax.f32 %v1241, %v235
    %v1304 = vmax.f32 %v1242, %v392
    %v1305 = vmax.f32 %v1243, %v238
    %v1306 = vmax.f32 %v1244, %v393
    %v1307 = vmax.f32 %v1245, %v241
    %v1308 = vmax.f32 %v1246, %v394
    %v1309 = vmax.f32 %v1247, %v244
    %v1310 = vmax.f32 %v1248, %v395
    %v1311 = vmax.f32 %v1249, %v247
    %v1312 = vmax.f32 %v1250, %v396
    %v1313 = vmax.f32 %v1251, %v250
    %v1314 = vmax.f32 %v1252, %v397
    %v1315 = vmax.f32 %v1253, %v253
    %v1316 = vmax.f32 %v1254, %v398
    %v1317 = vmax.f32 %v1255, %v256
    %v1318 = vmax.f32 %v1256, %v399
    %v1319 = vmax.f32 %v1257, %v259
    %v1320 = vmax.f32 %v1258, %v400
    %v1321 = vmax.f32 %v1259, %v262
    %v1322 = vmax.f32 %v1260, %v401
    %v1323 = vmax.f32 %v1261, %v265
    %v1324 = vmax.f32 %v1262, %v402
    %v1325 = vmax.f32 %v1263, %v268
    %v1326 = vmax.f32 %v1264, %v403
    %v1327 = vmax.f32 %v1265, %v271
    %v1328 = vmax.f32 %v1266, %v404
    %v1329 = vmax.f32 %v1267, %v274
    %v1330 = vmax.f32 %v1268, %v405
    %v1331 = vmax.f32 %v1269, %v277
    %v1332 = vmax.f32 %v1272, %v509
    %v1333 = vmax.f32 %v1273, %v511
    %v1334 = vmax.f32 %v1274, %v514
    %v1335 = vmax.f32 %v1275, %v516
    %v1336 = vmax.f32 %v1276, %v519
    %v1337 = vmax.f32 %v1277, %v521
    %v1338 = vmax.f32 %v1278, %v524
    %v1339 = vmax.f32 %v1279, %v526
    %v1340 = vmax.f32 %v1280, %v529
    %v1341 = vmax.f32 %v1281, %v531
    %v1342 = vmax.f32 %v1282, %v534
    %v1343 = vmax.f32 %v1283, %v536
    %v1344 = vmax.f32 %v1284, %v539
    %v1345 = vmax.f32 %v1285, %v541
    %v1346 = vmax.f32 %v1286, %v544
    %v1347 = vmax.f32 %v1287, %v546
    %v1348 = vmax.f32 %v1288, %v549
    %v1349 = vmax.f32 %v1289, %v551
    %v1350 = vmax.f32 %v1290, %v554
    %v1351 = vmax.f32 %v1291, %v556
    %v1352 = vmax.f32 %v1292, %v559
    %v1353 = vmax.f32 %v1293, %v561
    %v1354 = vmax.f32 %v1294, %v564
    %v1355 = vmax.f32 %v1295, %v566
    %v1356 = vmax.f32 %v1296, %v569
    %v1357 = vmax.f32 %v1297, %v571
    %v1358 = vmax.f32 %v1298, %v574
    %v1359 = vmax.f32 %v1299, %v576
    %v1360 = vmax.f32 %v1300, %v1118
    %v1361 = vmax.f32 %v1301, %v1120
    %v1362 = vmax.f32 %v1238, %v501
    %v1363 = vmax.f32 %v1239, %v501
    %v1364 = vmax.f32 %v1302, %v584
    %v1365 = vmax.f32 %v1303, %v586
    %v1366 = vmax.f32 %v1304, %v589
    %v1367 = vmax.f32 %v1305, %v591
    %v1368 = vmax.f32 %v1306, %v594
    %v1369 = vmax.f32 %v1307, %v596
    %v1370 = vmax.f32 %v1308, %v599
    %v1371 = vmax.f32 %v1309, %v601
    %v1372 = vmax.f32 %v1310, %v604
    %v1373 = vmax.f32 %v1311, %v606
    %v1374 = vmax.f32 %v1312, %v609
    %v1375 = vmax.f32 %v1313, %v611
    %v1376 = vmax.f32 %v1314, %v614
    %v1377 = vmax.f32 %v1315, %v616
    %v1378 = vmax.f32 %v1316, %v619
    %v1379 = vmax.f32 %v1317, %v621
    %v1380 = vmax.f32 %v1318, %v624
    %v1381 = vmax.f32 %v1319, %v626
    %v1382 = vmax.f32 %v1320, %v629
    %v1383 = vmax.f32 %v1321, %v631
    %v1384 = vmax.f32 %v1322, %v634
    %v1385 = vmax.f32 %v1323, %v636
    %v1386 = vmax.f32 %v1324, %v639
    %v1387 = vmax.f32 %v1325, %v641
    %v1388 = vmax.f32 %v1326, %v644
    %v1389 = vmax.f32 %v1327, %v646
    %v1390 = vmax.f32 %v1328, %v649
    %v1391 = vmax.f32 %v1329, %v651
    %v1392 = vmax.f32 %v1330, %v1123
    %v1393 = vmax.f32 %v1331, %v1125
    %v1394 = vmax.f32 %v1270, %v501
    %v1395 = vmax.f32 %v1271, %v501
    %v1396 = vmax.f32 %v1332, %v783
    %v1397 = vmax.f32 %v1333, %v785
    %v1398 = vmax.f32 %v1334, %v788
    %v1399 = vmax.f32 %v1335, %v790
    %v1400 = vmax.f32 %v1336, %v793
    %v1401 = vmax.f32 %v1337, %v795
    %v1402 = vmax.f32 %v1338, %v798
    %v1403 = vmax.f32 %v1339, %v800
    %v1404 = vmax.f32 %v1340, %v803
    %v1405 = vmax.f32 %v1341, %v805
    %v1406 = vmax.f32 %v1342, %v808
    %v1407 = vmax.f32 %v1343, %v810
    %v1408 = vmax.f32 %v1344, %v813
    %v1409 = vmax.f32 %v1345, %v815
    %v1410 = vmax.f32 %v1346, %v818
    %v1411 = vmax.f32 %v1347, %v820
    %v1412 = vmax.f32 %v1348, %v823
    %v1413 = vmax.f32 %v1349, %v825
    %v1414 = vmax.f32 %v1350, %v828
    %v1415 = vmax.f32 %v1351, %v830
    %v1416 = vmax.f32 %v1352, %v833
    %v1417 = vmax.f32 %v1353, %v835
    %v1418 = vmax.f32 %v1354, %v838
    %v1419 = vmax.f32 %v1355, %v840
    %v1420 = vmax.f32 %v1356, %v843
    %v1421 = vmax.f32 %v1357, %v845
    %v1422 = vmax.f32 %v1358, %v848
    %v1423 = vmax.f32 %v1359, %v850
    %v1424 = vmax.f32 %v1360, %v1196
    %v1425 = vmax.f32 %v1361, %v1198
    %v1426 = vmax.f32 %v1362, %v775
    %v1427 = vmax.f32 %v1363, %v775
    %v1428 = vmax.f32 %v1364, %v858
    %v1429 = vmax.f32 %v1365, %v860
    %v1430 = vmax.f32 %v1366, %v863
    %v1431 = vmax.f32 %v1367, %v865
    %v1432 = vmax.f32 %v1368, %v868
    %v1433 = vmax.f32 %v1369, %v870
    %v1434 = vmax.f32 %v1370, %v873
    %v1435 = vmax.f32 %v1371, %v875
    %v1436 = vmax.f32 %v1372, %v878
    %v1437 = vmax.f32 %v1373, %v880
    %v1438 = vmax.f32 %v1374, %v883
    %v1439 = vmax.f32 %v1375, %v885
    %v1440 = vmax.f32 %v1376, %v888
    %v1441 = vmax.f32 %v1377, %v890
    %v1442 = vmax.f32 %v1378, %v893
    %v1443 = vmax.f32 %v1379, %v895
    %v1444 = vmax.f32 %v1380, %v898
    %v1445 = vmax.f32 %v1381, %v900
    %v1446 = vmax.f32 %v1382, %v903
    %v1447 = vmax.f32 %v1383, %v905
    %v1448 = vmax.f32 %v1384, %v908
    %v1449 = vmax.f32 %v1385, %v910
    %v1450 = vmax.f32 %v1386, %v913
    %v1451 = vmax.f32 %v1387, %v915
    %v1452 = vmax.f32 %v1388, %v918
    %v1453 = vmax.f32 %v1389, %v920
    %v1454 = vmax.f32 %v1390, %v923
    %v1455 = vmax.f32 %v1391, %v925
    %v1456 = vmax.f32 %v1392, %v1201
    %v1457 = vmax.f32 %v1393, %v1203
    %v1458 = vmax.f32 %v1394, %v775
    %v1459 = vmax.f32 %v1395, %v775
    %v1524 = vrot.slane %v1396, 7
    %v1525 = vrot.slane %v1397, 7
    %v1526 = vsel %vm181, %v1524, %v1525
    %v1527 = vrot.slane %v1398, 7
    %v1528 = vrot.slane %v1399, 7
    %v1529 = vsel %vm181, %v1527, %v1528
    %v1530 = vrot.slane %v1400, 7
    %v1531 = vrot.slane %v1401, 7
    %v1532 = vsel %vm181, %v1530, %v1531
    %v1533 = vrot.slane %v1402, 7
    %v1534 = vrot.slane %v1403, 7
    %v1535 = vsel %vm181, %v1533, %v1534
    %v1536 = vrot.slane %v1404, 7
    %v1537 = vrot.slane %v1405, 7
    %v1538 = vsel %vm181, %v1536, %v1537
    %v1539 = vrot.slane %v1406, 7
    %v1540 = vrot.slane %v1407, 7
    %v1541 = vsel %vm181, %v1539, %v1540
    %v1542 = vrot.slane %v1408, 7
    %v1543 = vrot.slane %v1409, 7
    %v1544 = vsel %vm181, %v1542, %v1543
    %v1545 = vrot.slane %v1410, 7
    %v1546 = vrot.slane %v1411, 7
    %v1547 = vsel %vm181, %v1545, %v1546
    %v1548 = vrot.slane %v1412, 7
    %v1549 = vrot.slane %v1413, 7
    %v1550 = vsel %vm181, %v1548, %v1549
    %v1551 = vrot.slane %v1414, 7
    %v1552 = vrot.slane %v1415, 7
    %v1553 = vsel %vm181, %v1551, %v1552
    %v1554 = vrot.slane %v1416, 7
    %v1555 = vrot.slane %v1417, 7
    %v1556 = vsel %vm181, %v1554, %v1555
    %v1557 = vrot.slane %v1418, 7
    %v1558 = vrot.slane %v1419, 7
    %v1559 = vsel %vm181, %v1557, %v1558
    %v1560 = vrot.slane %v1420, 7
    %v1561 = vrot.slane %v1421, 7
    %v1562 = vsel %vm181, %v1560, %v1561
    %v1563 = vrot.slane %v1422, 7
    %v1564 = vrot.slane %v1423, 7
    %v1565 = vsel %vm181, %v1563, %v1564
    %v1566 = vrot.slane %v1424, 7
    %v1567 = vrot.slane %v1425, 7
    %v1568 = vsel %vm181, %v1566, %v1567
    %v1569 = vrot.slane %v1426, 7
    %v1570 = vrot.slane %v1427, 7
    %v1571 = vsel %vm181, %v1569, %v1570
    %v1572 = vrot.slane %v1428, 7
    %v1573 = vrot.slane %v1429, 7
    %v1574 = vsel %vm181, %v1572, %v1573
    %v1575 = vrot.slane %v1430, 7
    %v1576 = vrot.slane %v1431, 7
    %v1577 = vsel %vm181, %v1575, %v1576
    %v1578 = vrot.slane %v1432, 7
    %v1579 = vrot.slane %v1433, 7
    %v1580 = vsel %vm181, %v1578, %v1579
    %v1581 = vrot.slane %v1434, 7
    %v1582 = vrot.slane %v1435, 7
    %v1583 = vsel %vm181, %v1581, %v1582
    %v1584 = vrot.slane %v1436, 7
    %v1585 = vrot.slane %v1437, 7
    %v1586 = vsel %vm181, %v1584, %v1585
    %v1587 = vrot.slane %v1438, 7
    %v1588 = vrot.slane %v1439, 7
    %v1589 = vsel %vm181, %v1587, %v1588
    %v1590 = vrot.slane %v1440, 7
    %v1591 = vrot.slane %v1441, 7
    %v1592 = vsel %vm181, %v1590, %v1591
    %v1593 = vrot.slane %v1442, 7
    %v1594 = vrot.slane %v1443, 7
    %v1595 = vsel %vm181, %v1593, %v1594
    %v1596 = vrot.slane %v1444, 7
    %v1597 = vrot.slane %v1445, 7
    %v1598 = vsel %vm181, %v1596, %v1597
    %v1599 = vrot.slane %v1446, 7
    %v1600 = vrot.slane %v1447, 7
    %v1601 = vsel %vm181, %v1599, %v1600
    %v1602 = vrot.slane %v1448, 7
    %v1603 = vrot.slane %v1449, 7
    %v1604 = vsel %vm181, %v1602, %v1603
    %v1605 = vrot.slane %v1450, 7
    %v1606 = vrot.slane %v1451, 7
    %v1607 = vsel %vm181, %v1605, %v1606
    %v1608 = vrot.slane %v1452, 7
    %v1609 = vrot.slane %v1453, 7
    %v1610 = vsel %vm181, %v1608, %v1609
    %v1611 = vrot.slane %v1454, 7
    %v1612 = vrot.slane %v1455, 7
    %v1613 = vsel %vm181, %v1611, %v1612
    %v1614 = vrot.slane %v1456, 7
    %v1615 = vrot.slane %v1457, 7
    %v1616 = vsel %vm181, %v1614, %v1615
    %v1617 = vrot.slane %v1458, 7
    %v1618 = vrot.slane %v1459, 7
    %v1619 = vsel %vm181, %v1617, %v1618
    %v1714 = vsel %vm181, 0.0, %v1524
    %v1715 = vsel %vm181, 0.0, %v1527
    %v1716 = vsel %vm181, 0.0, %v1530
    %v1717 = vsel %vm181, 0.0, %v1533
    %v1718 = vsel %vm181, 0.0, %v1536
    %v1719 = vsel %vm181, 0.0, %v1539
    %v1720 = vsel %vm181, 0.0, %v1542
    %v1721 = vsel %vm181, 0.0, %v1545
    %v1722 = vsel %vm181, 0.0, %v1548
    %v1723 = vsel %vm181, 0.0, %v1551
    %v1724 = vsel %vm181, 0.0, %v1554
    %v1725 = vsel %vm181, 0.0, %v1557
    %v1726 = vsel %vm181, 0.0, %v1560
    %v1727 = vsel %vm181, 0.0, %v1563
    %v1728 = vsel %vm181, 0.0, %v1566
    %v1729 = vsel %vm181, 0.0, %v1569
    %v1730 = vsel %vm181, 0.0, %v1572
    %v1731 = vsel %vm181, 0.0, %v1575
    %v1732 = vsel %vm181, 0.0, %v1578
    %v1733 = vsel %vm181, 0.0, %v1581
    %v1734 = vsel %vm181, 0.0, %v1584
    %v1735 = vsel %vm181, 0.0, %v1587
    %v1736 = vsel %vm181, 0.0, %v1590
    %v1737 = vsel %vm181, 0.0, %v1593
    %v1738 = vsel %vm181, 0.0, %v1596
    %v1739 = vsel %vm181, 0.0, %v1599
    %v1740 = vsel %vm181, 0.0, %v1602
    %v1741 = vsel %vm181, 0.0, %v1605
    %v1742 = vsel %vm181, 0.0, %v1608
    %v1743 = vsel %vm181, 0.0, %v1611
    %v1744 = vsel %vm181, 0.0, %v1614
    %v1745 = vsel %vm181, 0.0, %v1617
    %v1746 = vsel %vm181, %v1525, 0.0
    %v1747 = vsel %vm181, %v1528, 0.0
    %v1748 = vsel %vm181, %v1531, 0.0
    %v1749 = vsel %vm181, %v1534, 0.0
    %v1750 = vsel %vm181, %v1537, 0.0
    %v1751 = vsel %vm181, %v1540, 0.0
    %v1752 = vsel %vm181, %v1543, 0.0
    %v1753 = vsel %vm181, %v1546, 0.0
    %v1754 = vsel %vm181, %v1549, 0.0
    %v1755 = vsel %vm181, %v1552, 0.0
    %v1756 = vsel %vm181, %v1555, 0.0
    %v1757 = vsel %vm181, %v1558, 0.0
    %v1758 = vsel %vm181, %v1561, 0.0
    %v1759 = vsel %vm181, %v1564, 0.0
    %v1760 = vsel %vm181, %v1567, 0.0
    %v1761 = vsel %vm181, %v1570, 0.0
    %v1762 = vsel %vm181, %v1573, 0.0
    %v1763 = vsel %vm181, %v1576, 0.0
    %v1764 = vsel %vm181, %v1579, 0.0
    %v1765 = vsel %vm181, %v1582, 0.0
    %v1766 = vsel %vm181, %v1585, 0.0
    %v1767 = vsel %vm181, %v1588, 0.0
    %v1768 = vsel %vm181, %v1591, 0.0
    %v1769 = vsel %vm181, %v1594, 0.0
    %v1770 = vsel %vm181, %v1597, 0.0
    %v1771 = vsel %vm181, %v1600, 0.0
    %v1772 = vsel %vm181, %v1603, 0.0
    %v1773 = vsel %vm181, %v1606, 0.0
    %v1774 = vsel %vm181, %v1609, 0.0
    %v1775 = vsel %vm181, %v1612, 0.0
    %v1776 = vsel %vm181, %v1615, 0.0
    %v1777 = vsel %vm181, %v1618, 0.0
    %v1839 = vrot.slane 0.0, 1
    %v1840 = vsel %vm499, %v1839, %v1839
    %v1841 = vrot.slane %v1714, 1
    %v1842 = vrot.slane %v1526, 1
    %v1843 = vsel %vm499, %v1841, %v1842
    %v1844 = vrot.slane %v1746, 1
    %v1845 = vsel %vm499, %v1842, %v1844
    %v1846 = vrot.slane %v1715, 1
    %v1847 = vrot.slane %v1529, 1
    %v1848 = vsel %vm499, %v1846, %v1847
    %v1849 = vrot.slane %v1747, 1
    %v1850 = vsel %vm499, %v1847, %v1849
    %v1851 = vrot.slane %v1716, 1
    %v1852 = vrot.slane %v1532, 1
    %v1853 = vsel %vm499, %v1851, %v1852
    %v1854 = vrot.slane %v1748, 1
    %v1855 = vsel %vm499, %v1852, %v1854
    %v1856 = vrot.slane %v1717, 1
    %v1857 = vrot.slane %v1535, 1
    %v1858 = vsel %vm499, %v1856, %v1857
    %v1859 = vrot.slane %v1749, 1
    %v1860 = vsel %vm499, %v1857, %v1859
    %v1861 = vrot.slane %v1718, 1
    %v1862 = vrot.slane %v1538, 1
    %v1863 = vsel %vm499, %v1861, %v1862
    %v1864 = vrot.slane %v1750, 1
    %v1865 = vsel %vm499, %v1862, %v1864
    %v1866 = vrot.slane %v1719, 1
    %v1867 = vrot.slane %v1541, 1
    %v1868 = vsel %vm499, %v1866, %v1867
    %v1869 = vrot.slane %v1751, 1
    %v1870 = vsel %vm499, %v1867, %v1869
    %v1871 = vrot.slane %v1720, 1
    %v1872 = vrot.slane %v1544, 1
    %v1873 = vsel %vm499, %v1871, %v1872
    %v1874 = vrot.slane %v1752, 1
    %v1875 = vsel %vm499, %v1872, %v1874
    %v1876 = vrot.slane %v1721, 1
    %v1877 = vrot.slane %v1547, 1
    %v1878 = vsel %vm499, %v1876, %v1877
    %v1879 = vrot.slane %v1753, 1
    %v1880 = vsel %vm499, %v1877, %v1879
    %v1881 = vrot.slane %v1722, 1
    %v1882 = vrot.slane %v1550, 1
    %v1883 = vsel %vm499, %v1881, %v1882
    %v1884 = vrot.slane %v1754, 1
    %v1885 = vsel %vm499, %v1882, %v1884
    %v1886 = vrot.slane %v1723, 1
    %v1887 = vrot.slane %v1553, 1
    %v1888 = vsel %vm499, %v1886, %v1887
    %v1889 = vrot.slane %v1755, 1
    %v1890 = vsel %vm499, %v1887, %v1889
    %v1891 = vrot.slane %v1724, 1
    %v1892 = vrot.slane %v1556, 1
    %v1893 = vsel %vm499, %v1891, %v1892
    %v1894 = vrot.slane %v1756, 1
    %v1895 = vsel %vm499, %v1892, %v1894
    %v1896 = vrot.slane %v1725, 1
    %v1897 = vrot.slane %v1559, 1
    %v1898 = vsel %vm499, %v1896, %v1897
    %v1899 = vrot.slane %v1757, 1
    %v1900 = vsel %vm499, %v1897, %v1899
    %v1901 = vrot.slane %v1726, 1
    %v1902 = vrot.slane %v1562, 1
    %v1903 = vsel %vm499, %v1901, %v1902
    %v1904 = vrot.slane %v1758, 1
    %v1905 = vsel %vm499, %v1902, %v1904
    %v1906 = vrot.slane %v1727, 1
    %v1907 = vrot.slane %v1565, 1
    %v1908 = vsel %vm499, %v1906, %v1907
    %v1909 = vrot.slane %v1759, 1
    %v1910 = vsel %vm499, %v1907, %v1909
    %v1911 = vrot.slane %v1728, 1
    %v1912 = vrot.slane %v1568, 1
    %v1913 = vsel %vm499, %v1911, %v1912
    %v1914 = vrot.slane %v1760, 1
    %v1915 = vsel %vm499, %v1912, %v1914
    %v1916 = vrot.slane %v1730, 1
    %v1917 = vrot.slane %v1574, 1
    %v1918 = vsel %vm499, %v1916, %v1917
    %v1919 = vrot.slane %v1762, 1
    %v1920 = vsel %vm499, %v1917, %v1919
    %v1921 = vrot.slane %v1731, 1
    %v1922 = vrot.slane %v1577, 1
    %v1923 = vsel %vm499, %v1921, %v1922
    %v1924 = vrot.slane %v1763, 1
    %v1925 = vsel %vm499, %v1922, %v1924
    %v1926 = vrot.slane %v1732, 1
    %v1927 = vrot.slane %v1580, 1
    %v1928 = vsel %vm499, %v1926, %v1927
    %v1929 = vrot.slane %v1764, 1
    %v1930 = vsel %vm499, %v1927, %v1929
    %v1931 = vrot.slane %v1733, 1
    %v1932 = vrot.slane %v1583, 1
    %v1933 = vsel %vm499, %v1931, %v1932
    %v1934 = vrot.slane %v1765, 1
    %v1935 = vsel %vm499, %v1932, %v1934
    %v1936 = vrot.slane %v1734, 1
    %v1937 = vrot.slane %v1586, 1
    %v1938 = vsel %vm499, %v1936, %v1937
    %v1939 = vrot.slane %v1766, 1
    %v1940 = vsel %vm499, %v1937, %v1939
    %v1941 = vrot.slane %v1735, 1
    %v1942 = vrot.slane %v1589, 1
    %v1943 = vsel %vm499, %v1941, %v1942
    %v1944 = vrot.slane %v1767, 1
    %v1945 = vsel %vm499, %v1942, %v1944
    %v1946 = vrot.slane %v1736, 1
    %v1947 = vrot.slane %v1592, 1
    %v1948 = vsel %vm499, %v1946, %v1947
    %v1949 = vrot.slane %v1768, 1
    %v1950 = vsel %vm499, %v1947, %v1949
    %v1951 = vrot.slane %v1737, 1
    %v1952 = vrot.slane %v1595, 1
    %v1953 = vsel %vm499, %v1951, %v1952
    %v1954 = vrot.slane %v1769, 1
    %v1955 = vsel %vm499, %v1952, %v1954
    %v1956 = vrot.slane %v1738, 1
    %v1957 = vrot.slane %v1598, 1
    %v1958 = vsel %vm499, %v1956, %v1957
    %v1959 = vrot.slane %v1770, 1
    %v1960 = vsel %vm499, %v1957, %v1959
    %v1961 = vrot.slane %v1739, 1
    %v1962 = vrot.slane %v1601, 1
    %v1963 = vsel %vm499, %v1961, %v1962
    %v1964 = vrot.slane %v1771, 1
    %v1965 = vsel %vm499, %v1962, %v1964
    %v1966 = vrot.slane %v1740, 1
    %v1967 = vrot.slane %v1604, 1
    %v1968 = vsel %vm499, %v1966, %v1967
    %v1969 = vrot.slane %v1772, 1
    %v1970 = vsel %vm499, %v1967, %v1969
    %v1971 = vrot.slane %v1741, 1
    %v1972 = vrot.slane %v1607, 1
    %v1973 = vsel %vm499, %v1971, %v1972
    %v1974 = vrot.slane %v1773, 1
    %v1975 = vsel %vm499, %v1972, %v1974
    %v1976 = vrot.slane %v1742, 1
    %v1977 = vrot.slane %v1610, 1
    %v1978 = vsel %vm499, %v1976, %v1977
    %v1979 = vrot.slane %v1774, 1
    %v1980 = vsel %vm499, %v1977, %v1979
    %v1981 = vrot.slane %v1743, 1
    %v1982 = vrot.slane %v1613, 1
    %v1983 = vsel %vm499, %v1981, %v1982
    %v1984 = vrot.slane %v1775, 1
    %v1985 = vsel %vm499, %v1982, %v1984
    %v1986 = vrot.slane %v1744, 1
    %v1987 = vrot.slane %v1616, 1
    %v1988 = vsel %vm499, %v1986, %v1987
    %v1989 = vrot.slane %v1776, 1
    %v1990 = vsel %vm499, %v1987, %v1989
    %1991 = vrot.lane.b32.xlu0 %v1840, 32
    %v1992 = vpop.permute.xlu0 %1991
    %1993 = vrot.lane.b32.xlu0 %v1843, 32
    %v1994 = vpop.permute.xlu0 %1993
    %1995 = vrot.lane.b32.xlu0 %v1845, 32
    %v1996 = vpop.permute.xlu0 %1995
    %1997 = vrot.lane.b32.xlu0 %v1848, 32
    %v1998 = vpop.permute.xlu0 %1997
    %1999 = vrot.lane.b32.xlu0 %v1850, 32
    %v2000 = vpop.permute.xlu0 %1999
    %2001 = vrot.lane.b32.xlu0 %v1853, 32
    %v2002 = vpop.permute.xlu0 %2001
    %2003 = vrot.lane.b32.xlu0 %v1855, 32
    %v2004 = vpop.permute.xlu0 %2003
    %2005 = vrot.lane.b32.xlu0 %v1858, 32
    %v2006 = vpop.permute.xlu0 %2005
    %2007 = vrot.lane.b32.xlu0 %v1860, 32
    %v2008 = vpop.permute.xlu0 %2007
    %2009 = vrot.lane.b32.xlu0 %v1863, 32
    %v2010 = vpop.permute.xlu0 %2009
    %2011 = vrot.lane.b32.xlu0 %v1865, 32
    %v2012 = vpop.permute.xlu0 %2011
    %2013 = vrot.lane.b32.xlu0 %v1868, 32
    %v2014 = vpop.permute.xlu0 %2013
    %2015 = vrot.lane.b32.xlu0 %v1870, 32
    %v2016 = vpop.permute.xlu0 %2015
    %2017 = vrot.lane.b32.xlu0 %v1873, 32
    %v2018 = vpop.permute.xlu0 %2017
    %2019 = vrot.lane.b32.xlu0 %v1875, 32
    %v2020 = vpop.permute.xlu0 %2019
    %2021 = vrot.lane.b32.xlu0 %v1878, 32
    %v2022 = vpop.permute.xlu0 %2021
    %2023 = vrot.lane.b32.xlu0 %v1880, 32
    %v2024 = vpop.permute.xlu0 %2023
    %2025 = vrot.lane.b32.xlu0 %v1883, 32
    %v2026 = vpop.permute.xlu0 %2025
    %2027 = vrot.lane.b32.xlu0 %v1885, 32
    %v2028 = vpop.permute.xlu0 %2027
    %2029 = vrot.lane.b32.xlu0 %v1888, 32
    %v2030 = vpop.permute.xlu0 %2029
    %2031 = vrot.lane.b32.xlu0 %v1890, 32
    %v2032 = vpop.permute.xlu0 %2031
    %2033 = vrot.lane.b32.xlu0 %v1893, 32
    %v2034 = vpop.permute.xlu0 %2033
    %2035 = vrot.lane.b32.xlu0 %v1895, 32
    %v2036 = vpop.permute.xlu0 %2035
    %2037 = vrot.lane.b32.xlu0 %v1898, 32
    %v2038 = vpop.permute.xlu0 %2037
    %2039 = vrot.lane.b32.xlu0 %v1900, 32
    %v2040 = vpop.permute.xlu0 %2039
    %2041 = vrot.lane.b32.xlu0 %v1903, 32
    %v2042 = vpop.permute.xlu0 %2041
    %2043 = vrot.lane.b32.xlu0 %v1905, 32
    %v2044 = vpop.permute.xlu0 %2043
    %2045 = vrot.lane.b32.xlu0 %v1908, 32
    %v2046 = vpop.permute.xlu0 %2045
    %2047 = vrot.lane.b32.xlu0 %v1910, 32
    %v2048 = vpop.permute.xlu0 %2047
    %2049 = vrot.lane.b32.xlu0 %v1913, 32
    %v2050 = vpop.permute.xlu0 %2049
    %2051 = vrot.lane.b32.xlu0 %v1915, 32
    %v2052 = vpop.permute.xlu0 %2051
    %2053 = vrot.lane.b32.xlu0 %v1918, 32
    %v2054 = vpop.permute.xlu0 %2053
    %2055 = vrot.lane.b32.xlu0 %v1920, 32
    %v2056 = vpop.permute.xlu0 %2055
    %2057 = vrot.lane.b32.xlu0 %v1923, 32
    %v2058 = vpop.permute.xlu0 %2057
    %2059 = vrot.lane.b32.xlu0 %v1925, 32
    %v2060 = vpop.permute.xlu0 %2059
    %2061 = vrot.lane.b32.xlu0 %v1928, 32
    %v2062 = vpop.permute.xlu0 %2061
    %2063 = vrot.lane.b32.xlu0 %v1930, 32
    %v2064 = vpop.permute.xlu0 %2063
    %2065 = vrot.lane.b32.xlu0 %v1933, 32
    %v2066 = vpop.permute.xlu0 %2065
    %2067 = vrot.lane.b32.xlu0 %v1935, 32
    %v2068 = vpop.permute.xlu0 %2067
    %2069 = vrot.lane.b32.xlu0 %v1938, 32
    %v2070 = vpop.permute.xlu0 %2069
    %2071 = vrot.lane.b32.xlu0 %v1940, 32
    %v2072 = vpop.permute.xlu0 %2071
    %2073 = vrot.lane.b32.xlu0 %v1943, 32
    %v2074 = vpop.permute.xlu0 %2073
    %2075 = vrot.lane.b32.xlu0 %v1945, 32
    %v2076 = vpop.permute.xlu0 %2075
    %2077 = vrot.lane.b32.xlu0 %v1948, 32
    %v2078 = vpop.permute.xlu0 %2077
    %2079 = vrot.lane.b32.xlu0 %v1950, 32
    %v2080 = vpop.permute.xlu0 %2079
    %2081 = vrot.lane.b32.xlu0 %v1953, 32
    %v2082 = vpop.permute.xlu0 %2081
    %2083 = vrot.lane.b32.xlu0 %v1955, 32
    %v2084 = vpop.permute.xlu0 %2083
    %2085 = vrot.lane.b32.xlu0 %v1958, 32
    %v2086 = vpop.permute.xlu0 %2085
    %2087 = vrot.lane.b32.xlu0 %v1960, 32
    %v2088 = vpop.permute.xlu0 %2087
    %2089 = vrot.lane.b32.xlu0 %v1963, 32
    %v2090 = vpop.permute.xlu0 %2089
    %2091 = vrot.lane.b32.xlu0 %v1965, 32
    %v2092 = vpop.permute.xlu0 %2091
    %2093 = vrot.lane.b32.xlu0 %v1968, 32
    %v2094 = vpop.permute.xlu0 %2093
    %2095 = vrot.lane.b32.xlu0 %v1970, 32
    %v2096 = vpop.permute.xlu0 %2095
    %2097 = vrot.lane.b32.xlu0 %v1973, 32
    %v2098 = vpop.permute.xlu0 %2097
    %2099 = vrot.lane.b32.xlu0 %v1975, 32
    %v2100 = vpop.permute.xlu0 %2099
    %2101 = vrot.lane.b32.xlu0 %v1978, 32
    %v2102 = vpop.permute.xlu0 %2101
    %2103 = vrot.lane.b32.xlu0 %v1980, 32
    %v2104 = vpop.permute.xlu0 %2103
    %2105 = vrot.lane.b32.xlu0 %v1983, 32
    %v2106 = vpop.permute.xlu0 %2105
    %2107 = vrot.lane.b32.xlu0 %v1985, 32
    %v2108 = vpop.permute.xlu0 %2107
    %2109 = vrot.lane.b32.xlu0 %v1988, 32
    %v2110 = vpop.permute.xlu0 %2109
    %2111 = vrot.lane.b32.xlu0 %v1990, 32
    %v2112 = vpop.permute.xlu0 %2111
    %v2174 = vrot.slane 0.0, 2
    %v2175 = vsel %vm773, %v2174, %v2174
    %v2176 = vrot.slane %v1714, 2
    %v2177 = vrot.slane %v1526, 2
    %v2178 = vsel %vm773, %v2176, %v2177
    %v2179 = vrot.slane %v1746, 2
    %v2180 = vsel %vm773, %v2177, %v2179
    %v2181 = vrot.slane %v1715, 2
    %v2182 = vrot.slane %v1529, 2
    %v2183 = vsel %vm773, %v2181, %v2182
    %v2184 = vrot.slane %v1747, 2
    %v2185 = vsel %vm773, %v2182, %v2184
    %v2186 = vrot.slane %v1716, 2
    %v2187 = vrot.slane %v1532, 2
    %v2188 = vsel %vm773, %v2186, %v2187
    %v2189 = vrot.slane %v1748, 2
    %v2190 = vsel %vm773, %v2187, %v2189
    %v2191 = vrot.slane %v1717, 2
    %v2192 = vrot.slane %v1535, 2
    %v2193 = vsel %vm773, %v2191, %v2192
    %v2194 = vrot.slane %v1749, 2
    %v2195 = vsel %vm773, %v2192, %v2194
    %v2196 = vrot.slane %v1718, 2
    %v2197 = vrot.slane %v1538, 2
    %v2198 = vsel %vm773, %v2196, %v2197
    %v2199 = vrot.slane %v1750, 2
    %v2200 = vsel %vm773, %v2197, %v2199
    %v2201 = vrot.slane %v1719, 2
    %v2202 = vrot.slane %v1541, 2
    %v2203 = vsel %vm773, %v2201, %v2202
    %v2204 = vrot.slane %v1751, 2
    %v2205 = vsel %vm773, %v2202, %v2204
    %v2206 = vrot.slane %v1720, 2
    %v2207 = vrot.slane %v1544, 2
    %v2208 = vsel %vm773, %v2206, %v2207
    %v2209 = vrot.slane %v1752, 2
    %v2210 = vsel %vm773, %v2207, %v2209
    %v2211 = vrot.slane %v1721, 2
    %v2212 = vrot.slane %v1547, 2
    %v2213 = vsel %vm773, %v2211, %v2212
    %v2214 = vrot.slane %v1753, 2
    %v2215 = vsel %vm773, %v2212, %v2214
    %v2216 = vrot.slane %v1722, 2
    %v2217 = vrot.slane %v1550, 2
    %v2218 = vsel %vm773, %v2216, %v2217
    %v2219 = vrot.slane %v1754, 2
    %v2220 = vsel %vm773, %v2217, %v2219
    %v2221 = vrot.slane %v1723, 2
    %v2222 = vrot.slane %v1553, 2
    %v2223 = vsel %vm773, %v2221, %v2222
    %v2224 = vrot.slane %v1755, 2
    %v2225 = vsel %vm773, %v2222, %v2224
    %v2226 = vrot.slane %v1724, 2
    %v2227 = vrot.slane %v1556, 2
    %v2228 = vsel %vm773, %v2226, %v2227
    %v2229 = vrot.slane %v1756, 2
    %v2230 = vsel %vm773, %v2227, %v2229
    %v2231 = vrot.slane %v1725, 2
    %v2232 = vrot.slane %v1559, 2
    %v2233 = vsel %vm773, %v2231, %v2232
    %v2234 = vrot.slane %v1757, 2
    %v2235 = vsel %vm773, %v2232, %v2234
    %v2236 = vrot.slane %v1726, 2
    %v2237 = vrot.slane %v1562, 2
    %v2238 = vsel %vm773, %v2236, %v2237
    %v2239 = vrot.slane %v1758, 2
    %v2240 = vsel %vm773, %v2237, %v2239
    %v2241 = vrot.slane %v1727, 2
    %v2242 = vrot.slane %v1565, 2
    %v2243 = vsel %vm773, %v2241, %v2242
    %v2244 = vrot.slane %v1759, 2
    %v2245 = vsel %vm773, %v2242, %v2244
    %v2246 = vrot.slane %v1728, 2
    %v2247 = vrot.slane %v1568, 2
    %v2248 = vsel %vm773, %v2246, %v2247
    %v2249 = vrot.slane %v1760, 2
    %v2250 = vsel %vm773, %v2247, %v2249
    %v2251 = vrot.slane %v1730, 2
    %v2252 = vrot.slane %v1574, 2
    %v2253 = vsel %vm773, %v2251, %v2252
    %v2254 = vrot.slane %v1762, 2
    %v2255 = vsel %vm773, %v2252, %v2254
    %v2256 = vrot.slane %v1731, 2
    %v2257 = vrot.slane %v1577, 2
    %v2258 = vsel %vm773, %v2256, %v2257
    %v2259 = vrot.slane %v1763, 2
    %v2260 = vsel %vm773, %v2257, %v2259
    %v2261 = vrot.slane %v1732, 2
    %v2262 = vrot.slane %v1580, 2
    %v2263 = vsel %vm773, %v2261, %v2262
    %v2264 = vrot.slane %v1764, 2
    %v2265 = vsel %vm773, %v2262, %v2264
    %v2266 = vrot.slane %v1733, 2
    %v2267 = vrot.slane %v1583, 2
    %v2268 = vsel %vm773, %v2266, %v2267
    %v2269 = vrot.slane %v1765, 2
    %v2270 = vsel %vm773, %v2267, %v2269
    %v2271 = vrot.slane %v1734, 2
    %v2272 = vrot.slane %v1586, 2
    %v2273 = vsel %vm773, %v2271, %v2272
    %v2274 = vrot.slane %v1766, 2
    %v2275 = vsel %vm773, %v2272, %v2274
    %v2276 = vrot.slane %v1735, 2
    %v2277 = vrot.slane %v1589, 2
    %v2278 = vsel %vm773, %v2276, %v2277
    %v2279 = vrot.slane %v1767, 2
    %v2280 = vsel %vm773, %v2277, %v2279
    %v2281 = vrot.slane %v1736, 2
    %v2282 = vrot.slane %v1592, 2
    %v2283 = vsel %vm773, %v2281, %v2282
    %v2284 = vrot.slane %v1768, 2
    %v2285 = vsel %vm773, %v2282, %v2284
    %v2286 = vrot.slane %v1737, 2
    %v2287 = vrot.slane %v1595, 2
    %v2288 = vsel %vm773, %v2286, %v2287
    %v2289 = vrot.slane %v1769, 2
    %v2290 = vsel %vm773, %v2287, %v2289
    %v2291 = vrot.slane %v1738, 2
    %v2292 = vrot.slane %v1598, 2
    %v2293 = vsel %vm773, %v2291, %v2292
    %v2294 = vrot.slane %v1770, 2
    %v2295 = vsel %vm773, %v2292, %v2294
    %v2296 = vrot.slane %v1739, 2
    %v2297 = vrot.slane %v1601, 2
    %v2298 = vsel %vm773, %v2296, %v2297
    %v2299 = vrot.slane %v1771, 2
    %v2300 = vsel %vm773, %v2297, %v2299
    %v2301 = vrot.slane %v1740, 2
    %v2302 = vrot.slane %v1604, 2
    %v2303 = vsel %vm773, %v2301, %v2302
    %v2304 = vrot.slane %v1772, 2
    %v2305 = vsel %vm773, %v2302, %v2304
    %v2306 = vrot.slane %v1741, 2
    %v2307 = vrot.slane %v1607, 2
    %v2308 = vsel %vm773, %v2306, %v2307
    %v2309 = vrot.slane %v1773, 2
    %v2310 = vsel %vm773, %v2307, %v2309
    %v2311 = vrot.slane %v1742, 2
    %v2312 = vrot.slane %v1610, 2
    %v2313 = vsel %vm773, %v2311, %v2312
    %v2314 = vrot.slane %v1774, 2
    %v2315 = vsel %vm773, %v2312, %v2314
    %v2316 = vrot.slane %v1743, 2
    %v2317 = vrot.slane %v1613, 2
    %v2318 = vsel %vm773, %v2316, %v2317
    %v2319 = vrot.slane %v1775, 2
    %v2320 = vsel %vm773, %v2317, %v2319
    %v2321 = vrot.slane %v1744, 2
    %v2322 = vrot.slane %v1616, 2
    %v2323 = vsel %vm773, %v2321, %v2322
    %v2324 = vrot.slane %v1776, 2
    %v2325 = vsel %vm773, %v2322, %v2324
    %2326 = vrot.lane.b32.xlu0 %v2175, 64
    %v2327 = vpop.permute.xlu0 %2326
    %2328 = vrot.lane.b32.xlu0 %v2178, 64
    %v2329 = vpop.permute.xlu0 %2328
    %2330 = vrot.lane.b32.xlu0 %v2180, 64
    %v2331 = vpop.permute.xlu0 %2330
    %2332 = vrot.lane.b32.xlu0 %v2183, 64
    %v2333 = vpop.permute.xlu0 %2332
    %2334 = vrot.lane.b32.xlu0 %v2185, 64
    %v2335 = vpop.permute.xlu0 %2334
    %2336 = vrot.lane.b32.xlu0 %v2188, 64
    %v2337 = vpop.permute.xlu0 %2336
    %2338 = vrot.lane.b32.xlu0 %v2190, 64
    %v2339 = vpop.permute.xlu0 %2338
    %2340 = vrot.lane.b32.xlu0 %v2193, 64
    %v2341 = vpop.permute.xlu0 %2340
    %2342 = vrot.lane.b32.xlu0 %v2195, 64
    %v2343 = vpop.permute.xlu0 %2342
    %2344 = vrot.lane.b32.xlu0 %v2198, 64
    %v2345 = vpop.permute.xlu0 %2344
    %2346 = vrot.lane.b32.xlu0 %v2200, 64
    %v2347 = vpop.permute.xlu0 %2346
    %2348 = vrot.lane.b32.xlu0 %v2203, 64
    %v2349 = vpop.permute.xlu0 %2348
    %2350 = vrot.lane.b32.xlu0 %v2205, 64
    %v2351 = vpop.permute.xlu0 %2350
    %2352 = vrot.lane.b32.xlu0 %v2208, 64
    %v2353 = vpop.permute.xlu0 %2352
    %2354 = vrot.lane.b32.xlu0 %v2210, 64
    %v2355 = vpop.permute.xlu0 %2354
    %2356 = vrot.lane.b32.xlu0 %v2213, 64
    %v2357 = vpop.permute.xlu0 %2356
    %2358 = vrot.lane.b32.xlu0 %v2215, 64
    %v2359 = vpop.permute.xlu0 %2358
    %2360 = vrot.lane.b32.xlu0 %v2218, 64
    %v2361 = vpop.permute.xlu0 %2360
    %2362 = vrot.lane.b32.xlu0 %v2220, 64
    %v2363 = vpop.permute.xlu0 %2362
    %2364 = vrot.lane.b32.xlu0 %v2223, 64
    %v2365 = vpop.permute.xlu0 %2364
    %2366 = vrot.lane.b32.xlu0 %v2225, 64
    %v2367 = vpop.permute.xlu0 %2366
    %2368 = vrot.lane.b32.xlu0 %v2228, 64
    %v2369 = vpop.permute.xlu0 %2368
    %2370 = vrot.lane.b32.xlu0 %v2230, 64
    %v2371 = vpop.permute.xlu0 %2370
    %2372 = vrot.lane.b32.xlu0 %v2233, 64
    %v2373 = vpop.permute.xlu0 %2372
    %2374 = vrot.lane.b32.xlu0 %v2235, 64
    %v2375 = vpop.permute.xlu0 %2374
    %2376 = vrot.lane.b32.xlu0 %v2238, 64
    %v2377 = vpop.permute.xlu0 %2376
    %2378 = vrot.lane.b32.xlu0 %v2240, 64
    %v2379 = vpop.permute.xlu0 %2378
    %2380 = vrot.lane.b32.xlu0 %v2243, 64
    %v2381 = vpop.permute.xlu0 %2380
    %2382 = vrot.lane.b32.xlu0 %v2245, 64
    %v2383 = vpop.permute.xlu0 %2382
    %2384 = vrot.lane.b32.xlu0 %v2248, 64
    %v2385 = vpop.permute.xlu0 %2384
    %2386 = vrot.lane.b32.xlu0 %v2250, 64
    %v2387 = vpop.permute.xlu0 %2386
    %2388 = vrot.lane.b32.xlu0 %v2253, 64
    %v2389 = vpop.permute.xlu0 %2388
    %2390 = vrot.lane.b32.xlu0 %v2255, 64
    %v2391 = vpop.permute.xlu0 %2390
    %2392 = vrot.lane.b32.xlu0 %v2258, 64
    %v2393 = vpop.permute.xlu0 %2392
    %2394 = vrot.lane.b32.xlu0 %v2260, 64
    %v2395 = vpop.permute.xlu0 %2394
    %2396 = vrot.lane.b32.xlu0 %v2263, 64
    %v2397 = vpop.permute.xlu0 %2396
    %2398 = vrot.lane.b32.xlu0 %v2265, 64
    %v2399 = vpop.permute.xlu0 %2398
    %2400 = vrot.lane.b32.xlu0 %v2268, 64
    %v2401 = vpop.permute.xlu0 %2400
    %2402 = vrot.lane.b32.xlu0 %v2270, 64
    %v2403 = vpop.permute.xlu0 %2402
    %2404 = vrot.lane.b32.xlu0 %v2273, 64
    %v2405 = vpop.permute.xlu0 %2404
    %2406 = vrot.lane.b32.xlu0 %v2275, 64
    %v2407 = vpop.permute.xlu0 %2406
    %2408 = vrot.lane.b32.xlu0 %v2278, 64
    %v2409 = vpop.permute.xlu0 %2408
    %2410 = vrot.lane.b32.xlu0 %v2280, 64
    %v2411 = vpop.permute.xlu0 %2410
    %2412 = vrot.lane.b32.xlu0 %v2283, 64
    %v2413 = vpop.permute.xlu0 %2412
    %2414 = vrot.lane.b32.xlu0 %v2285, 64
    %v2415 = vpop.permute.xlu0 %2414
    %2416 = vrot.lane.b32.xlu0 %v2288, 64
    %v2417 = vpop.permute.xlu0 %2416
    %2418 = vrot.lane.b32.xlu0 %v2290, 64
    %v2419 = vpop.permute.xlu0 %2418
    %2420 = vrot.lane.b32.xlu0 %v2293, 64
    %v2421 = vpop.permute.xlu0 %2420
    %2422 = vrot.lane.b32.xlu0 %v2295, 64
    %v2423 = vpop.permute.xlu0 %2422
    %2424 = vrot.lane.b32.xlu0 %v2298, 64
    %v2425 = vpop.permute.xlu0 %2424
    %2426 = vrot.lane.b32.xlu0 %v2300, 64
    %v2427 = vpop.permute.xlu0 %2426
    %2428 = vrot.lane.b32.xlu0 %v2303, 64
    %v2429 = vpop.permute.xlu0 %2428
    %2430 = vrot.lane.b32.xlu0 %v2305, 64
    %v2431 = vpop.permute.xlu0 %2430
    %2432 = vrot.lane.b32.xlu0 %v2308, 64
    %v2433 = vpop.permute.xlu0 %2432
    %2434 = vrot.lane.b32.xlu0 %v2310, 64
    %v2435 = vpop.permute.xlu0 %2434
    %2436 = vrot.lane.b32.xlu0 %v2313, 64
    %v2437 = vpop.permute.xlu0 %2436
    %2438 = vrot.lane.b32.xlu0 %v2315, 64
    %v2439 = vpop.permute.xlu0 %2438
    %2440 = vrot.lane.b32.xlu0 %v2318, 64
    %v2441 = vpop.permute.xlu0 %2440
    %2442 = vrot.lane.b32.xlu0 %v2320, 64
    %v2443 = vpop.permute.xlu0 %2442
    %2444 = vrot.lane.b32.xlu0 %v2323, 64
    %v2445 = vpop.permute.xlu0 %2444
    %2446 = vrot.lane.b32.xlu0 %v2325, 64
    %v2447 = vpop.permute.xlu0 %2446
    %2511 = vrot.lane.b32.xlu0 %v1714, 96
    %v2512 = vpop.permute.xlu0 %2511
    %2513 = vrot.lane.b32.xlu0 %v1526, 96
    %v2514 = vpop.permute.xlu0 %2513
    %2515 = vrot.lane.b32.xlu0 %v1715, 96
    %v2516 = vpop.permute.xlu0 %2515
    %2517 = vrot.lane.b32.xlu0 %v1529, 96
    %v2518 = vpop.permute.xlu0 %2517
    %2519 = vrot.lane.b32.xlu0 %v1716, 96
    %v2520 = vpop.permute.xlu0 %2519
    %2521 = vrot.lane.b32.xlu0 %v1532, 96
    %v2522 = vpop.permute.xlu0 %2521
    %2523 = vrot.lane.b32.xlu0 %v1717, 96
    %v2524 = vpop.permute.xlu0 %2523
    %2525 = vrot.lane.b32.xlu0 %v1535, 96
    %v2526 = vpop.permute.xlu0 %2525
    %2527 = vrot.lane.b32.xlu0 %v1718, 96
    %v2528 = vpop.permute.xlu0 %2527
    %2529 = vrot.lane.b32.xlu0 %v1538, 96
    %v2530 = vpop.permute.xlu0 %2529
    %2531 = vrot.lane.b32.xlu0 %v1719, 96
    %v2532 = vpop.permute.xlu0 %2531
    %2533 = vrot.lane.b32.xlu0 %v1541, 96
    %v2534 = vpop.permute.xlu0 %2533
    %2535 = vrot.lane.b32.xlu0 %v1720, 96
    %v2536 = vpop.permute.xlu0 %2535
    %2537 = vrot.lane.b32.xlu0 %v1544, 96
    %v2538 = vpop.permute.xlu0 %2537
    %2539 = vrot.lane.b32.xlu0 %v1721, 96
    %v2540 = vpop.permute.xlu0 %2539
    %2541 = vrot.lane.b32.xlu0 %v1547, 96
    %v2542 = vpop.permute.xlu0 %2541
    %2543 = vrot.lane.b32.xlu0 %v1722, 96
    %v2544 = vpop.permute.xlu0 %2543
    %2545 = vrot.lane.b32.xlu0 %v1550, 96
    %v2546 = vpop.permute.xlu0 %2545
    %2547 = vrot.lane.b32.xlu0 %v1723, 96
    %v2548 = vpop.permute.xlu0 %2547
    %2549 = vrot.lane.b32.xlu0 %v1553, 96
    %v2550 = vpop.permute.xlu0 %2549
    %2551 = vrot.lane.b32.xlu0 %v1724, 96
    %v2552 = vpop.permute.xlu0 %2551
    %2553 = vrot.lane.b32.xlu0 %v1556, 96
    %v2554 = vpop.permute.xlu0 %2553
    %2555 = vrot.lane.b32.xlu0 %v1725, 96
    %v2556 = vpop.permute.xlu0 %2555
    %2557 = vrot.lane.b32.xlu0 %v1559, 96
    %v2558 = vpop.permute.xlu0 %2557
    %2559 = vrot.lane.b32.xlu0 %v1726, 96
    %v2560 = vpop.permute.xlu0 %2559
    %2561 = vrot.lane.b32.xlu0 %v1562, 96
    %v2562 = vpop.permute.xlu0 %2561
    %2563 = vrot.lane.b32.xlu0 %v1727, 96
    %v2564 = vpop.permute.xlu0 %2563
    %2565 = vrot.lane.b32.xlu0 %v1565, 96
    %v2566 = vpop.permute.xlu0 %2565
    %2567 = vrot.lane.b32.xlu0 %v1728, 96
    %v2568 = vpop.permute.xlu0 %2567
    %2569 = vrot.lane.b32.xlu0 %v1568, 96
    %v2570 = vpop.permute.xlu0 %2569
    %2571 = vrot.lane.b32.xlu0 %v1729, 96
    %v2572 = vpop.permute.xlu0 %2571
    %2573 = vrot.lane.b32.xlu0 %v1571, 96
    %v2574 = vpop.permute.xlu0 %2573
    %2575 = vrot.lane.b32.xlu0 %v1730, 96
    %v2576 = vpop.permute.xlu0 %2575
    %2577 = vrot.lane.b32.xlu0 %v1574, 96
    %v2578 = vpop.permute.xlu0 %2577
    %2579 = vrot.lane.b32.xlu0 %v1731, 96
    %v2580 = vpop.permute.xlu0 %2579
    %2581 = vrot.lane.b32.xlu0 %v1577, 96
    %v2582 = vpop.permute.xlu0 %2581
    %2583 = vrot.lane.b32.xlu0 %v1732, 96
    %v2584 = vpop.permute.xlu0 %2583
    %2585 = vrot.lane.b32.xlu0 %v1580, 96
    %v2586 = vpop.permute.xlu0 %2585
    %2587 = vrot.lane.b32.xlu0 %v1733, 96
    %v2588 = vpop.permute.xlu0 %2587
    %2589 = vrot.lane.b32.xlu0 %v1583, 96
    %v2590 = vpop.permute.xlu0 %2589
    %2591 = vrot.lane.b32.xlu0 %v1734, 96
    %v2592 = vpop.permute.xlu0 %2591
    %2593 = vrot.lane.b32.xlu0 %v1586, 96
    %v2594 = vpop.permute.xlu0 %2593
    %2595 = vrot.lane.b32.xlu0 %v1735, 96
    %v2596 = vpop.permute.xlu0 %2595
    %2597 = vrot.lane.b32.xlu0 %v1589, 96
    %v2598 = vpop.permute.xlu0 %2597
    %2599 = vrot.lane.b32.xlu0 %v1736, 96
    %v2600 = vpop.permute.xlu0 %2599
    %2601 = vrot.lane.b32.xlu0 %v1592, 96
    %v2602 = vpop.permute.xlu0 %2601
    %2603 = vrot.lane.b32.xlu0 %v1737, 96
    %v2604 = vpop.permute.xlu0 %2603
    %2605 = vrot.lane.b32.xlu0 %v1595, 96
    %v2606 = vpop.permute.xlu0 %2605
    %2607 = vrot.lane.b32.xlu0 %v1738, 96
    %v2608 = vpop.permute.xlu0 %2607
    %2609 = vrot.lane.b32.xlu0 %v1598, 96
    %v2610 = vpop.permute.xlu0 %2609
    %2611 = vrot.lane.b32.xlu0 %v1739, 96
    %v2612 = vpop.permute.xlu0 %2611
    %2613 = vrot.lane.b32.xlu0 %v1601, 96
    %v2614 = vpop.permute.xlu0 %2613
    %2615 = vrot.lane.b32.xlu0 %v1740, 96
    %v2616 = vpop.permute.xlu0 %2615
    %2617 = vrot.lane.b32.xlu0 %v1604, 96
    %v2618 = vpop.permute.xlu0 %2617
    %2619 = vrot.lane.b32.xlu0 %v1741, 96
    %v2620 = vpop.permute.xlu0 %2619
    %2621 = vrot.lane.b32.xlu0 %v1607, 96
    %v2622 = vpop.permute.xlu0 %2621
    %2623 = vrot.lane.b32.xlu0 %v1742, 96
    %v2624 = vpop.permute.xlu0 %2623
    %2625 = vrot.lane.b32.xlu0 %v1610, 96
    %v2626 = vpop.permute.xlu0 %2625
    %2627 = vrot.lane.b32.xlu0 %v1743, 96
    %v2628 = vpop.permute.xlu0 %2627
    %2629 = vrot.lane.b32.xlu0 %v1613, 96
    %v2630 = vpop.permute.xlu0 %2629
    %2631 = vrot.lane.b32.xlu0 %v1744, 96
    %v2632 = vpop.permute.xlu0 %2631
    %2633 = vrot.lane.b32.xlu0 %v1616, 96
    %v2634 = vpop.permute.xlu0 %2633
    %2635 = vrot.lane.b32.xlu0 %v1745, 96
    %v2636 = vpop.permute.xlu0 %2635
    %2637 = vrot.lane.b32.xlu0 %v1619, 96
    %v2638 = vpop.permute.xlu0 %2637
    %v2705 = vrot.slane %v1729, 1
    %v2706 = vrot.slane %v1571, 1
    %v2707 = vsel %vm499, %v2705, %v2706
    %v2708 = vrot.slane %v1761, 1
    %v2709 = vsel %vm499, %v2706, %v2708
    %v2710 = vrot.slane %v1745, 1
    %v2711 = vrot.slane %v1619, 1
    %v2712 = vsel %vm499, %v2710, %v2711
    %v2713 = vrot.slane %v1777, 1
    %v2714 = vsel %vm499, %v2711, %v2713
    %v2779 = vrot.slane %v1729, 2
    %v2780 = vrot.slane %v1571, 2
    %v2781 = vsel %vm773, %v2779, %v2780
    %v2782 = vrot.slane %v1761, 2
    %v2783 = vsel %vm773, %v2780, %v2782
    %v2784 = vrot.slane %v1745, 2
    %v2785 = vrot.slane %v1619, 2
    %v2786 = vsel %vm773, %v2784, %v2785
    %v2787 = vrot.slane %v1777, 2
    %v2788 = vsel %vm773, %v2785, %v2787
    %2789 = vrot.lane.b32.xlu0 %v2178, 32
    %v2790 = vpop.permute.xlu0 %2789
    %2791 = vrot.lane.b32.xlu0 %v2180, 32
    %v2792 = vpop.permute.xlu0 %2791
    %2793 = vrot.lane.b32.xlu0 %v2183, 32
    %v2794 = vpop.permute.xlu0 %2793
    %2795 = vrot.lane.b32.xlu0 %v2185, 32
    %v2796 = vpop.permute.xlu0 %2795
    %2797 = vrot.lane.b32.xlu0 %v2188, 32
    %v2798 = vpop.permute.xlu0 %2797
    %2799 = vrot.lane.b32.xlu0 %v2190, 32
    %v2800 = vpop.permute.xlu0 %2799
    %2801 = vrot.lane.b32.xlu0 %v2193, 32
    %v2802 = vpop.permute.xlu0 %2801
    %2803 = vrot.lane.b32.xlu0 %v2195, 32
    %v2804 = vpop.permute.xlu0 %2803
    %2805 = vrot.lane.b32.xlu0 %v2198, 32
    %v2806 = vpop.permute.xlu0 %2805
    %2807 = vrot.lane.b32.xlu0 %v2200, 32
    %v2808 = vpop.permute.xlu0 %2807
    %2809 = vrot.lane.b32.xlu0 %v2203, 32
    %v2810 = vpop.permute.xlu0 %2809
    %2811 = vrot.lane.b32.xlu0 %v2205, 32
    %v2812 = vpop.permute.xlu0 %2811
    %2813 = vrot.lane.b32.xlu0 %v2208, 32
    %v2814 = vpop.permute.xlu0 %2813
    %2815 = vrot.lane.b32.xlu0 %v2210, 32
    %v2816 = vpop.permute.xlu0 %2815
    %2817 = vrot.lane.b32.xlu0 %v2213, 32
    %v2818 = vpop.permute.xlu0 %2817
    %2819 = vrot.lane.b32.xlu0 %v2215, 32
    %v2820 = vpop.permute.xlu0 %2819
    %2821 = vrot.lane.b32.xlu0 %v2218, 32
    %v2822 = vpop.permute.xlu0 %2821
    %2823 = vrot.lane.b32.xlu0 %v2220, 32
    %v2824 = vpop.permute.xlu0 %2823
    %2825 = vrot.lane.b32.xlu0 %v2223, 32
    %v2826 = vpop.permute.xlu0 %2825
    %2827 = vrot.lane.b32.xlu0 %v2225, 32
    %v2828 = vpop.permute.xlu0 %2827
    %2829 = vrot.lane.b32.xlu0 %v2228, 32
    %v2830 = vpop.permute.xlu0 %2829
    %2831 = vrot.lane.b32.xlu0 %v2230, 32
    %v2832 = vpop.permute.xlu0 %2831
    %2833 = vrot.lane.b32.xlu0 %v2233, 32
    %v2834 = vpop.permute.xlu0 %2833
    %2835 = vrot.lane.b32.xlu0 %v2235, 32
    %v2836 = vpop.permute.xlu0 %2835
    %2837 = vrot.lane.b32.xlu0 %v2238, 32
    %v2838 = vpop.permute.xlu0 %2837
    %2839 = vrot.lane.b32.xlu0 %v2240, 32
    %v2840 = vpop.permute.xlu0 %2839
    %2841 = vrot.lane.b32.xlu0 %v2243, 32
    %v2842 = vpop.permute.xlu0 %2841
    %2843 = vrot.lane.b32.xlu0 %v2245, 32
    %v2844 = vpop.permute.xlu0 %2843
    %2845 = vrot.lane.b32.xlu0 %v2248, 32
    %v2846 = vpop.permute.xlu0 %2845
    %2847 = vrot.lane.b32.xlu0 %v2250, 32
    %v2848 = vpop.permute.xlu0 %2847
    %2849 = vrot.lane.b32.xlu0 %v2781, 32
    %v2850 = vpop.permute.xlu0 %2849
    %2851 = vrot.lane.b32.xlu0 %v2783, 32
    %v2852 = vpop.permute.xlu0 %2851
    %2853 = vrot.lane.b32.xlu0 %v2253, 32
    %v2854 = vpop.permute.xlu0 %2853
    %2855 = vrot.lane.b32.xlu0 %v2255, 32
    %v2856 = vpop.permute.xlu0 %2855
    %2857 = vrot.lane.b32.xlu0 %v2258, 32
    %v2858 = vpop.permute.xlu0 %2857
    %2859 = vrot.lane.b32.xlu0 %v2260, 32
    %v2860 = vpop.permute.xlu0 %2859
    %2861 = vrot.lane.b32.xlu0 %v2263, 32
    %v2862 = vpop.permute.xlu0 %2861
    %2863 = vrot.lane.b32.xlu0 %v2265, 32
    %v2864 = vpop.permute.xlu0 %2863
    %2865 = vrot.lane.b32.xlu0 %v2268, 32
    %v2866 = vpop.permute.xlu0 %2865
    %2867 = vrot.lane.b32.xlu0 %v2270, 32
    %v2868 = vpop.permute.xlu0 %2867
    %2869 = vrot.lane.b32.xlu0 %v2273, 32
    %v2870 = vpop.permute.xlu0 %2869
    %2871 = vrot.lane.b32.xlu0 %v2275, 32
    %v2872 = vpop.permute.xlu0 %2871
    %2873 = vrot.lane.b32.xlu0 %v2278, 32
    %v2874 = vpop.permute.xlu0 %2873
    %2875 = vrot.lane.b32.xlu0 %v2280, 32
    %v2876 = vpop.permute.xlu0 %2875
    %2877 = vrot.lane.b32.xlu0 %v2283, 32
    %v2878 = vpop.permute.xlu0 %2877
    %2879 = vrot.lane.b32.xlu0 %v2285, 32
    %v2880 = vpop.permute.xlu0 %2879
    %2881 = vrot.lane.b32.xlu0 %v2288, 32
    %v2882 = vpop.permute.xlu0 %2881
    %2883 = vrot.lane.b32.xlu0 %v2290, 32
    %v2884 = vpop.permute.xlu0 %2883
    %2885 = vrot.lane.b32.xlu0 %v2293, 32
    %v2886 = vpop.permute.xlu0 %2885
    %2887 = vrot.lane.b32.xlu0 %v2295, 32
    %v2888 = vpop.permute.xlu0 %2887
    %2889 = vrot.lane.b32.xlu0 %v2298, 32
    %v2890 = vpop.permute.xlu0 %2889
    %2891 = vrot.lane.b32.xlu0 %v2300, 32
    %v2892 = vpop.permute.xlu0 %2891
    %2893 = vrot.lane.b32.xlu0 %v2303, 32
    %v2894 = vpop.permute.xlu0 %2893
    %2895 = vrot.lane.b32.xlu0 %v2305, 32
    %v2896 = vpop.permute.xlu0 %2895
    %2897 = vrot.lane.b32.xlu0 %v2308, 32
    %v2898 = vpop.permute.xlu0 %2897
    %2899 = vrot.lane.b32.xlu0 %v2310, 32
    %v2900 = vpop.permute.xlu0 %2899
    %2901 = vrot.lane.b32.xlu0 %v2313, 32
    %v2902 = vpop.permute.xlu0 %2901
    %2903 = vrot.lane.b32.xlu0 %v2315, 32
    %v2904 = vpop.permute.xlu0 %2903
    %2905 = vrot.lane.b32.xlu0 %v2318, 32
    %v2906 = vpop.permute.xlu0 %2905
    %2907 = vrot.lane.b32.xlu0 %v2320, 32
    %v2908 = vpop.permute.xlu0 %2907
    %2909 = vrot.lane.b32.xlu0 %v2323, 32
    %v2910 = vpop.permute.xlu0 %2909
    %2911 = vrot.lane.b32.xlu0 %v2325, 32
    %v2912 = vpop.permute.xlu0 %2911
    %2913 = vrot.lane.b32.xlu0 %v2786, 32
    %v2914 = vpop.permute.xlu0 %2913
    %2915 = vrot.lane.b32.xlu0 %v2788, 32
    %v2916 = vpop.permute.xlu0 %2915
    %2981 = vrot.lane.b32.xlu0 %v1715, 64
    %v2982 = vpop.permute.xlu0 %2981
    %2983 = vrot.lane.b32.xlu0 %v1529, 64
    %v2984 = vpop.permute.xlu0 %2983
    %2985 = vrot.lane.b32.xlu0 %v1716, 64
    %v2986 = vpop.permute.xlu0 %2985
    %2987 = vrot.lane.b32.xlu0 %v1532, 64
    %v2988 = vpop.permute.xlu0 %2987
    %2989 = vrot.lane.b32.xlu0 %v1717, 64
    %v2990 = vpop.permute.xlu0 %2989
    %2991 = vrot.lane.b32.xlu0 %v1535, 64
    %v2992 = vpop.permute.xlu0 %2991
    %2993 = vrot.lane.b32.xlu0 %v1718, 64
    %v2994 = vpop.permute.xlu0 %2993
    %2995 = vrot.lane.b32.xlu0 %v1538, 64
    %v2996 = vpop.permute.xlu0 %2995
    %2997 = vrot.lane.b32.xlu0 %v1719, 64
    %v2998 = vpop.permute.xlu0 %2997
    %2999 = vrot.lane.b32.xlu0 %v1541, 64
    %v3000 = vpop.permute.xlu0 %2999
    %3001 = vrot.lane.b32.xlu0 %v1720, 64
    %v3002 = vpop.permute.xlu0 %3001
    %3003 = vrot.lane.b32.xlu0 %v1544, 64
    %v3004 = vpop.permute.xlu0 %3003
    %3005 = vrot.lane.b32.xlu0 %v1721, 64
    %v3006 = vpop.permute.xlu0 %3005
    %3007 = vrot.lane.b32.xlu0 %v1547, 64
    %v3008 = vpop.permute.xlu0 %3007
    %3009 = vrot.lane.b32.xlu0 %v1722, 64
    %v3010 = vpop.permute.xlu0 %3009
    %3011 = vrot.lane.b32.xlu0 %v1550, 64
    %v3012 = vpop.permute.xlu0 %3011
    %3013 = vrot.lane.b32.xlu0 %v1723, 64
    %v3014 = vpop.permute.xlu0 %3013
    %3015 = vrot.lane.b32.xlu0 %v1553, 64
    %v3016 = vpop.permute.xlu0 %3015
    %3017 = vrot.lane.b32.xlu0 %v1724, 64
    %v3018 = vpop.permute.xlu0 %3017
    %3019 = vrot.lane.b32.xlu0 %v1556, 64
    %v3020 = vpop.permute.xlu0 %3019
    %3021 = vrot.lane.b32.xlu0 %v1725, 64
    %v3022 = vpop.permute.xlu0 %3021
    %3023 = vrot.lane.b32.xlu0 %v1559, 64
    %v3024 = vpop.permute.xlu0 %3023
    %3025 = vrot.lane.b32.xlu0 %v1726, 64
    %v3026 = vpop.permute.xlu0 %3025
    %3027 = vrot.lane.b32.xlu0 %v1562, 64
    %v3028 = vpop.permute.xlu0 %3027
    %3029 = vrot.lane.b32.xlu0 %v1727, 64
    %v3030 = vpop.permute.xlu0 %3029
    %3031 = vrot.lane.b32.xlu0 %v1565, 64
    %v3032 = vpop.permute.xlu0 %3031
    %3033 = vrot.lane.b32.xlu0 %v1728, 64
    %v3034 = vpop.permute.xlu0 %3033
    %3035 = vrot.lane.b32.xlu0 %v1568, 64
    %v3036 = vpop.permute.xlu0 %3035
    %3037 = vrot.lane.b32.xlu0 %v1729, 64
    %v3038 = vpop.permute.xlu0 %3037
    %3039 = vrot.lane.b32.xlu0 %v1571, 64
    %v3040 = vpop.permute.xlu0 %3039
    %3041 = vrot.lane.b32.xlu0 0.0, 64
    %v3042 = vpop.permute.xlu0 %3041
    %3043 = vrot.lane.b32.xlu0 %v1731, 64
    %v3044 = vpop.permute.xlu0 %3043
    %3045 = vrot.lane.b32.xlu0 %v1577, 64
    %v3046 = vpop.permute.xlu0 %3045
    %3047 = vrot.lane.b32.xlu0 %v1732, 64
    %v3048 = vpop.permute.xlu0 %3047
    %3049 = vrot.lane.b32.xlu0 %v1580, 64
    %v3050 = vpop.permute.xlu0 %3049
    %3051 = vrot.lane.b32.xlu0 %v1733, 64
    %v3052 = vpop.permute.xlu0 %3051
    %3053 = vrot.lane.b32.xlu0 %v1583, 64
    %v3054 = vpop.permute.xlu0 %3053
    %3055 = vrot.lane.b32.xlu0 %v1734, 64
    %v3056 = vpop.permute.xlu0 %3055
    %3057 = vrot.lane.b32.xlu0 %v1586, 64
    %v3058 = vpop.permute.xlu0 %3057
    %3059 = vrot.lane.b32.xlu0 %v1735, 64
    %v3060 = vpop.permute.xlu0 %3059
    %3061 = vrot.lane.b32.xlu0 %v1589, 64
    %v3062 = vpop.permute.xlu0 %3061
    %3063 = vrot.lane.b32.xlu0 %v1736, 64
    %v3064 = vpop.permute.xlu0 %3063
    %3065 = vrot.lane.b32.xlu0 %v1592, 64
    %v3066 = vpop.permute.xlu0 %3065
    %3067 = vrot.lane.b32.xlu0 %v1737, 64
    %v3068 = vpop.permute.xlu0 %3067
    %3069 = vrot.lane.b32.xlu0 %v1595, 64
    %v3070 = vpop.permute.xlu0 %3069
    %3071 = vrot.lane.b32.xlu0 %v1738, 64
    %v3072 = vpop.permute.xlu0 %3071
    %3073 = vrot.lane.b32.xlu0 %v1598, 64
    %v3074 = vpop.permute.xlu0 %3073
    %3075 = vrot.lane.b32.xlu0 %v1739, 64
    %v3076 = vpop.permute.xlu0 %3075
    %3077 = vrot.lane.b32.xlu0 %v1601, 64
    %v3078 = vpop.permute.xlu0 %3077
    %3079 = vrot.lane.b32.xlu0 %v1740, 64
    %v3080 = vpop.permute.xlu0 %3079
    %3081 = vrot.lane.b32.xlu0 %v1604, 64
    %v3082 = vpop.permute.xlu0 %3081
    %3083 = vrot.lane.b32.xlu0 %v1741, 64
    %v3084 = vpop.permute.xlu0 %3083
    %3085 = vrot.lane.b32.xlu0 %v1607, 64
    %v3086 = vpop.permute.xlu0 %3085
    %3087 = vrot.lane.b32.xlu0 %v1742, 64
    %v3088 = vpop.permute.xlu0 %3087
    %3089 = vrot.lane.b32.xlu0 %v1610, 64
    %v3090 = vpop.permute.xlu0 %3089
    %3091 = vrot.lane.b32.xlu0 %v1743, 64
    %v3092 = vpop.permute.xlu0 %3091
    %3093 = vrot.lane.b32.xlu0 %v1613, 64
    %v3094 = vpop.permute.xlu0 %3093
    %3095 = vrot.lane.b32.xlu0 %v1744, 64
    %v3096 = vpop.permute.xlu0 %3095
    %3097 = vrot.lane.b32.xlu0 %v1616, 64
    %v3098 = vpop.permute.xlu0 %3097
    %3099 = vrot.lane.b32.xlu0 %v1745, 64
    %v3100 = vpop.permute.xlu0 %3099
    %3101 = vrot.lane.b32.xlu0 %v1619, 64
    %v3102 = vpop.permute.xlu0 %3101
    %3164 = vrot.lane.b32.xlu0 %v1848, 96
    %v3165 = vpop.permute.xlu0 %3164
    %3166 = vrot.lane.b32.xlu0 %v1850, 96
    %v3167 = vpop.permute.xlu0 %3166
    %3168 = vrot.lane.b32.xlu0 %v1853, 96
    %v3169 = vpop.permute.xlu0 %3168
    %3170 = vrot.lane.b32.xlu0 %v1855, 96
    %v3171 = vpop.permute.xlu0 %3170
    %3172 = vrot.lane.b32.xlu0 %v1858, 96
    %v3173 = vpop.permute.xlu0 %3172
    %3174 = vrot.lane.b32.xlu0 %v1860, 96
    %v3175 = vpop.permute.xlu0 %3174
    %3176 = vrot.lane.b32.xlu0 %v1863, 96
    %v3177 = vpop.permute.xlu0 %3176
    %3178 = vrot.lane.b32.xlu0 %v1865, 96
    %v3179 = vpop.permute.xlu0 %3178
    %3180 = vrot.lane.b32.xlu0 %v1868, 96
    %v3181 = vpop.permute.xlu0 %3180
    %3182 = vrot.lane.b32.xlu0 %v1870, 96
    %v3183 = vpop.permute.xlu0 %3182
    %3184 = vrot.lane.b32.xlu0 %v1873, 96
    %v3185 = vpop.permute.xlu0 %3184
    %3186 = vrot.lane.b32.xlu0 %v1875, 96
    %v3187 = vpop.permute.xlu0 %3186
    %3188 = vrot.lane.b32.xlu0 %v1878, 96
    %v3189 = vpop.permute.xlu0 %3188
    %3190 = vrot.lane.b32.xlu0 %v1880, 96
    %v3191 = vpop.permute.xlu0 %3190
    %3192 = vrot.lane.b32.xlu0 %v1883, 96
    %v3193 = vpop.permute.xlu0 %3192
    %3194 = vrot.lane.b32.xlu0 %v1885, 96
    %v3195 = vpop.permute.xlu0 %3194
    %3196 = vrot.lane.b32.xlu0 %v1888, 96
    %v3197 = vpop.permute.xlu0 %3196
    %3198 = vrot.lane.b32.xlu0 %v1890, 96
    %v3199 = vpop.permute.xlu0 %3198
    %3200 = vrot.lane.b32.xlu0 %v1893, 96
    %v3201 = vpop.permute.xlu0 %3200
    %3202 = vrot.lane.b32.xlu0 %v1895, 96
    %v3203 = vpop.permute.xlu0 %3202
    %3204 = vrot.lane.b32.xlu0 %v1898, 96
    %v3205 = vpop.permute.xlu0 %3204
    %3206 = vrot.lane.b32.xlu0 %v1900, 96
    %v3207 = vpop.permute.xlu0 %3206
    %3208 = vrot.lane.b32.xlu0 %v1903, 96
    %v3209 = vpop.permute.xlu0 %3208
    %3210 = vrot.lane.b32.xlu0 %v1905, 96
    %v3211 = vpop.permute.xlu0 %3210
    %3212 = vrot.lane.b32.xlu0 %v1908, 96
    %v3213 = vpop.permute.xlu0 %3212
    %3214 = vrot.lane.b32.xlu0 %v1910, 96
    %v3215 = vpop.permute.xlu0 %3214
    %3216 = vrot.lane.b32.xlu0 %v1913, 96
    %v3217 = vpop.permute.xlu0 %3216
    %3218 = vrot.lane.b32.xlu0 %v1915, 96
    %v3219 = vpop.permute.xlu0 %3218
    %3220 = vrot.lane.b32.xlu0 %v2707, 96
    %v3221 = vpop.permute.xlu0 %3220
    %3222 = vrot.lane.b32.xlu0 %v2709, 96
    %v3223 = vpop.permute.xlu0 %3222
    %3224 = vrot.lane.b32.xlu0 %v1840, 96
    %v3225 = vpop.permute.xlu0 %3224
    %3226 = vrot.lane.b32.xlu0 %v1923, 96
    %v3227 = vpop.permute.xlu0 %3226
    %3228 = vrot.lane.b32.xlu0 %v1925, 96
    %v3229 = vpop.permute.xlu0 %3228
    %3230 = vrot.lane.b32.xlu0 %v1928, 96
    %v3231 = vpop.permute.xlu0 %3230
    %3232 = vrot.lane.b32.xlu0 %v1930, 96
    %v3233 = vpop.permute.xlu0 %3232
    %3234 = vrot.lane.b32.xlu0 %v1933, 96
    %v3235 = vpop.permute.xlu0 %3234
    %3236 = vrot.lane.b32.xlu0 %v1935, 96
    %v3237 = vpop.permute.xlu0 %3236
    %3238 = vrot.lane.b32.xlu0 %v1938, 96
    %v3239 = vpop.permute.xlu0 %3238
    %3240 = vrot.lane.b32.xlu0 %v1940, 96
    %v3241 = vpop.permute.xlu0 %3240
    %3242 = vrot.lane.b32.xlu0 %v1943, 96
    %v3243 = vpop.permute.xlu0 %3242
    %3244 = vrot.lane.b32.xlu0 %v1945, 96
    %v3245 = vpop.permute.xlu0 %3244
    %3246 = vrot.lane.b32.xlu0 %v1948, 96
    %v3247 = vpop.permute.xlu0 %3246
    %3248 = vrot.lane.b32.xlu0 %v1950, 96
    %v3249 = vpop.permute.xlu0 %3248
    %3250 = vrot.lane.b32.xlu0 %v1953, 96
    %v3251 = vpop.permute.xlu0 %3250
    %3252 = vrot.lane.b32.xlu0 %v1955, 96
    %v3253 = vpop.permute.xlu0 %3252
    %3254 = vrot.lane.b32.xlu0 %v1958, 96
    %v3255 = vpop.permute.xlu0 %3254
    %3256 = vrot.lane.b32.xlu0 %v1960, 96
    %v3257 = vpop.permute.xlu0 %3256
    %3258 = vrot.lane.b32.xlu0 %v1963, 96
    %v3259 = vpop.permute.xlu0 %3258
    %3260 = vrot.lane.b32.xlu0 %v1965, 96
    %v3261 = vpop.permute.xlu0 %3260
    %3262 = vrot.lane.b32.xlu0 %v1968, 96
    %v3263 = vpop.permute.xlu0 %3262
    %3264 = vrot.lane.b32.xlu0 %v1970, 96
    %v3265 = vpop.permute.xlu0 %3264
    %3266 = vrot.lane.b32.xlu0 %v1973, 96
    %v3267 = vpop.permute.xlu0 %3266
    %3268 = vrot.lane.b32.xlu0 %v1975, 96
    %v3269 = vpop.permute.xlu0 %3268
    %3270 = vrot.lane.b32.xlu0 %v1978, 96
    %v3271 = vpop.permute.xlu0 %3270
    %3272 = vrot.lane.b32.xlu0 %v1980, 96
    %v3273 = vpop.permute.xlu0 %3272
    %3274 = vrot.lane.b32.xlu0 %v1983, 96
    %v3275 = vpop.permute.xlu0 %3274
    %3276 = vrot.lane.b32.xlu0 %v1985, 96
    %v3277 = vpop.permute.xlu0 %3276
    %3278 = vrot.lane.b32.xlu0 %v1988, 96
    %v3279 = vpop.permute.xlu0 %3278
    %3280 = vrot.lane.b32.xlu0 %v1990, 96
    %v3281 = vpop.permute.xlu0 %3280
    %3282 = vrot.lane.b32.xlu0 %v2712, 96
    %v3283 = vpop.permute.xlu0 %3282
    %3284 = vrot.lane.b32.xlu0 %v2714, 96
    %v3285 = vpop.permute.xlu0 %3284
    %vm3347 = vcmask 261120
    %v3348 = vsel %vm3347, 0.0, %v1992
    %v3349 = vsel %vm3347, %v1714, %v1994
    %v3350 = vsel %vm3347, %v1526, %v1996
    %v3351 = vsel %vm3347, %v1715, %v1998
    %v3352 = vsel %vm3347, %v1529, %v2000
    %v3353 = vsel %vm3347, %v1716, %v2002
    %v3354 = vsel %vm3347, %v1532, %v2004
    %v3355 = vsel %vm3347, %v1717, %v2006
    %v3356 = vsel %vm3347, %v1535, %v2008
    %v3357 = vsel %vm3347, %v1718, %v2010
    %v3358 = vsel %vm3347, %v1538, %v2012
    %v3359 = vsel %vm3347, %v1719, %v2014
    %v3360 = vsel %vm3347, %v1541, %v2016
    %v3361 = vsel %vm3347, %v1720, %v2018
    %v3362 = vsel %vm3347, %v1544, %v2020
    %v3363 = vsel %vm3347, %v1721, %v2022
    %v3364 = vsel %vm3347, %v1547, %v2024
    %v3365 = vsel %vm3347, %v1722, %v2026
    %v3366 = vsel %vm3347, %v1550, %v2028
    %v3367 = vsel %vm3347, %v1723, %v2030
    %v3368 = vsel %vm3347, %v1553, %v2032
    %v3369 = vsel %vm3347, %v1724, %v2034
    %v3370 = vsel %vm3347, %v1556, %v2036
    %v3371 = vsel %vm3347, %v1725, %v2038
    %v3372 = vsel %vm3347, %v1559, %v2040
    %v3373 = vsel %vm3347, %v1726, %v2042
    %v3374 = vsel %vm3347, %v1562, %v2044
    %v3375 = vsel %vm3347, %v1727, %v2046
    %v3376 = vsel %vm3347, %v1565, %v2048
    %v3377 = vsel %vm3347, %v1728, %v2050
    %v3378 = vsel %vm3347, %v1568, %v2052
    %v3379 = vsel %vm3347, %v1730, %v2054
    %v3380 = vsel %vm3347, %v1574, %v2056
    %v3381 = vsel %vm3347, %v1731, %v2058
    %v3382 = vsel %vm3347, %v1577, %v2060
    %v3383 = vsel %vm3347, %v1732, %v2062
    %v3384 = vsel %vm3347, %v1580, %v2064
    %v3385 = vsel %vm3347, %v1733, %v2066
    %v3386 = vsel %vm3347, %v1583, %v2068
    %v3387 = vsel %vm3347, %v1734, %v2070
    %v3388 = vsel %vm3347, %v1586, %v2072
    %v3389 = vsel %vm3347, %v1735, %v2074
    %v3390 = vsel %vm3347, %v1589, %v2076
    %v3391 = vsel %vm3347, %v1736, %v2078
    %v3392 = vsel %vm3347, %v1592, %v2080
    %v3393 = vsel %vm3347, %v1737, %v2082
    %v3394 = vsel %vm3347, %v1595, %v2084
    %v3395 = vsel %vm3347, %v1738, %v2086
    %v3396 = vsel %vm3347, %v1598, %v2088
    %v3397 = vsel %vm3347, %v1739, %v2090
    %v3398 = vsel %vm3347, %v1601, %v2092
    %v3399 = vsel %vm3347, %v1740, %v2094
    %v3400 = vsel %vm3347, %v1604, %v2096
    %v3401 = vsel %vm3347, %v1741, %v2098
    %v3402 = vsel %vm3347, %v1607, %v2100
    %v3403 = vsel %vm3347, %v1742, %v2102
    %v3404 = vsel %vm3347, %v1610, %v2104
    %v3405 = vsel %vm3347, %v1743, %v2106
    %v3406 = vsel %vm3347, %v1613, %v2108
    %v3407 = vsel %vm3347, %v1744, %v2110
    %v3408 = vsel %vm3347, %v1616, %v2112
    %vm3409 = vcmask 523264
    %v3410 = vsel %vm3409, %v3348, %v2327
    %v3411 = vsel %vm3409, %v3349, %v2329
    %v3412 = vsel %vm3409, %v3350, %v2331
    %v3413 = vsel %vm3409, %v3351, %v2333
    %v3414 = vsel %vm3409, %v3352, %v2335
    %v3415 = vsel %vm3409, %v3353, %v2337
    %v3416 = vsel %vm3409, %v3354, %v2339
    %v3417 = vsel %vm3409, %v3355, %v2341
    %v3418 = vsel %vm3409, %v3356, %v2343
    %v3419 = vsel %vm3409, %v3357, %v2345
    %v3420 = vsel %vm3409, %v3358, %v2347
    %v3421 = vsel %vm3409, %v3359, %v2349
    %v3422 = vsel %vm3409, %v3360, %v2351
    %v3423 = vsel %vm3409, %v3361, %v2353
    %v3424 = vsel %vm3409, %v3362, %v2355
    %v3425 = vsel %vm3409, %v3363, %v2357
    %v3426 = vsel %vm3409, %v3364, %v2359
    %v3427 = vsel %vm3409, %v3365, %v2361
    %v3428 = vsel %vm3409, %v3366, %v2363
    %v3429 = vsel %vm3409, %v3367, %v2365
    %v3430 = vsel %vm3409, %v3368, %v2367
    %v3431 = vsel %vm3409, %v3369, %v2369
    %v3432 = vsel %vm3409, %v3370, %v2371
    %v3433 = vsel %vm3409, %v3371, %v2373
    %v3434 = vsel %vm3409, %v3372, %v2375
    %v3435 = vsel %vm3409, %v3373, %v2377
    %v3436 = vsel %vm3409, %v3374, %v2379
    %v3437 = vsel %vm3409, %v3375, %v2381
    %v3438 = vsel %vm3409, %v3376, %v2383
    %v3439 = vsel %vm3409, %v3377, %v2385
    %v3440 = vsel %vm3409, %v3378, %v2387
    %v3441 = vsel %vm3409, %v3379, %v2389
    %v3442 = vsel %vm3409, %v3380, %v2391
    %v3443 = vsel %vm3409, %v3381, %v2393
    %v3444 = vsel %vm3409, %v3382, %v2395
    %v3445 = vsel %vm3409, %v3383, %v2397
    %v3446 = vsel %vm3409, %v3384, %v2399
    %v3447 = vsel %vm3409, %v3385, %v2401
    %v3448 = vsel %vm3409, %v3386, %v2403
    %v3449 = vsel %vm3409, %v3387, %v2405
    %v3450 = vsel %vm3409, %v3388, %v2407
    %v3451 = vsel %vm3409, %v3389, %v2409
    %v3452 = vsel %vm3409, %v3390, %v2411
    %v3453 = vsel %vm3409, %v3391, %v2413
    %v3454 = vsel %vm3409, %v3392, %v2415
    %v3455 = vsel %vm3409, %v3393, %v2417
    %v3456 = vsel %vm3409, %v3394, %v2419
    %v3457 = vsel %vm3409, %v3395, %v2421
    %v3458 = vsel %vm3409, %v3396, %v2423
    %v3459 = vsel %vm3409, %v3397, %v2425
    %v3460 = vsel %vm3409, %v3398, %v2427
    %v3461 = vsel %vm3409, %v3399, %v2429
    %v3462 = vsel %vm3409, %v3400, %v2431
    %v3463 = vsel %vm3409, %v3401, %v2433
    %v3464 = vsel %vm3409, %v3402, %v2435
    %v3465 = vsel %vm3409, %v3403, %v2437
    %v3466 = vsel %vm3409, %v3404, %v2439
    %v3467 = vsel %vm3409, %v3405, %v2441
    %v3468 = vsel %vm3409, %v3406, %v2443
    %v3469 = vsel %vm3409, %v3407, %v2445
    %v3470 = vsel %vm3409, %v3408, %v2447
    %vm3471 = vcmask 785408
    %v3472 = vsel %vm3471, %v3410, %v2512
    %v3473 = vsel %vm3471, %v3410, %v2514
    %v3474 = vsel %vm3471, %v3411, %v2516
    %v3475 = vsel %vm3471, %v3412, %v2518
    %v3476 = vsel %vm3471, %v3413, %v2520
    %v3477 = vsel %vm3471, %v3414, %v2522
    %v3478 = vsel %vm3471, %v3415, %v2524
    %v3479 = vsel %vm3471, %v3416, %v2526
    %v3480 = vsel %vm3471, %v3417, %v2528
    %v3481 = vsel %vm3471, %v3418, %v2530
    %v3482 = vsel %vm3471, %v3419, %v2532
    %v3483 = vsel %vm3471, %v3420, %v2534
    %v3484 = vsel %vm3471, %v3421, %v2536
    %v3485 = vsel %vm3471, %v3422, %v2538
    %v3486 = vsel %vm3471, %v3423, %v2540
    %v3487 = vsel %vm3471, %v3424, %v2542
    %v3488 = vsel %vm3471, %v3425, %v2544
    %v3489 = vsel %vm3471, %v3426, %v2546
    %v3490 = vsel %vm3471, %v3427, %v2548
    %v3491 = vsel %vm3471, %v3428, %v2550
    %v3492 = vsel %vm3471, %v3429, %v2552
    %v3493 = vsel %vm3471, %v3430, %v2554
    %v3494 = vsel %vm3471, %v3431, %v2556
    %v3495 = vsel %vm3471, %v3432, %v2558
    %v3496 = vsel %vm3471, %v3433, %v2560
    %v3497 = vsel %vm3471, %v3434, %v2562
    %v3498 = vsel %vm3471, %v3435, %v2564
    %v3499 = vsel %vm3471, %v3436, %v2566
    %v3500 = vsel %vm3471, %v3437, %v2568
    %v3501 = vsel %vm3471, %v3438, %v2570
    %v3502 = vsel %vm3471, %v3439, %v2572
    %v3503 = vsel %vm3471, %v3440, %v2574
    %v3504 = vsel %vm3471, %v3410, %v2576
    %v3505 = vsel %vm3471, %v3410, %v2578
    %v3506 = vsel %vm3471, %v3441, %v2580
    %v3507 = vsel %vm3471, %v3442, %v2582
    %v3508 = vsel %vm3471, %v3443, %v2584
    %v3509 = vsel %vm3471, %v3444, %v2586
    %v3510 = vsel %vm3471, %v3445, %v2588
    %v3511 = vsel %vm3471, %v3446, %v2590
    %v3512 = vsel %vm3471, %v3447, %v2592
    %v3513 = vsel %vm3471, %v3448, %v2594
    %v3514 = vsel %vm3471, %v3449, %v2596
    %v3515 = vsel %vm3471, %v3450, %v2598
    %v3516 = vsel %vm3471, %v3451, %v2600
    %v3517 = vsel %vm3471, %v3452, %v2602
    %v3518 = vsel %vm3471, %v3453, %v2604
    %v3519 = vsel %vm3471, %v3454, %v2606
    %v3520 = vsel %vm3471, %v3455, %v2608
    %v3521 = vsel %vm3471, %v3456, %v2610
    %v3522 = vsel %vm3471, %v3457, %v2612
    %v3523 = vsel %vm3471, %v3458, %v2614
    %v3524 = vsel %vm3471, %v3459, %v2616
    %v3525 = vsel %vm3471, %v3460, %v2618
    %v3526 = vsel %vm3471, %v3461, %v2620
    %v3527 = vsel %vm3471, %v3462, %v2622
    %v3528 = vsel %vm3471, %v3463, %v2624
    %v3529 = vsel %vm3471, %v3464, %v2626
    %v3530 = vsel %vm3471, %v3465, %v2628
    %v3531 = vsel %vm3471, %v3466, %v2630
    %v3532 = vsel %vm3471, %v3467, %v2632
    %v3533 = vsel %vm3471, %v3468, %v2634
    %v3534 = vsel %vm3471, %v3469, %v2636
    %v3535 = vsel %vm3471, %v3470, %v2638
    %v3536 = vsel %vm3347, %v1843, %v2790
    %v3537 = vsel %vm3347, %v1845, %v2792
    %v3538 = vsel %vm3347, %v1848, %v2794
    %v3539 = vsel %vm3347, %v1850, %v2796
    %v3540 = vsel %vm3347, %v1853, %v2798
    %v3541 = vsel %vm3347, %v1855, %v2800
    %v3542 = vsel %vm3347, %v1858, %v2802
    %v3543 = vsel %vm3347, %v1860, %v2804
    %v3544 = vsel %vm3347, %v1863, %v2806
    %v3545 = vsel %vm3347, %v1865, %v2808
    %v3546 = vsel %vm3347, %v1868, %v2810
    %v3547 = vsel %vm3347, %v1870, %v2812
    %v3548 = vsel %vm3347, %v1873, %v2814
    %v3549 = vsel %vm3347, %v1875, %v2816
    %v3550 = vsel %vm3347, %v1878, %v2818
    %v3551 = vsel %vm3347, %v1880, %v2820
    %v3552 = vsel %vm3347, %v1883, %v2822
    %v3553 = vsel %vm3347, %v1885, %v2824
    %v3554 = vsel %vm3347, %v1888, %v2826
    %v3555 = vsel %vm3347, %v1890, %v2828
    %v3556 = vsel %vm3347, %v1893, %v2830
    %v3557 = vsel %vm3347, %v1895, %v2832
    %v3558 = vsel %vm3347, %v1898, %v2834
    %v3559 = vsel %vm3347, %v1900, %v2836
    %v3560 = vsel %vm3347, %v1903, %v2838
    %v3561 = vsel %vm3347, %v1905, %v2840
    %v3562 = vsel %vm3347, %v1908, %v2842
    %v3563 = vsel %vm3347, %v1910, %v2844
    %v3564 = vsel %vm3347, %v1913, %v2846
    %v3565 = vsel %vm3347, %v1915, %v2848
    %v3566 = vsel %vm3347, %v2707, %v2850
    %v3567 = vsel %vm3347, %v2709, %v2852
    %v3568 = vsel %vm3347, %v1918, %v2854
    %v3569 = vsel %vm3347, %v1920, %v2856
    %v3570 = vsel %vm3347, %v1923, %v2858
    %v3571 = vsel %vm3347, %v1925, %v2860
    %v3572 = vsel %vm3347, %v1928, %v2862
    %v3573 = vsel %vm3347, %v1930, %v2864
    %v3574 = vsel %vm3347, %v1933, %v2866
    %v3575 = vsel %vm3347, %v1935, %v2868
    %v3576 = vsel %vm3347, %v1938, %v2870
    %v3577 = vsel %vm3347, %v1940, %v2872
    %v3578 = vsel %vm3347, %v1943, %v2874
    %v3579 = vsel %vm3347, %v1945, %v2876
    %v3580 = vsel %vm3347, %v1948, %v2878
    %v3581 = vsel %vm3347, %v1950, %v2880
    %v3582 = vsel %vm3347, %v1953, %v2882
    %v3583 = vsel %vm3347, %v1955, %v2884
    %v3584 = vsel %vm3347, %v1958, %v2886
    %v3585 = vsel %vm3347, %v1960, %v2888
    %v3586 = vsel %vm3347, %v1963, %v2890
    %v3587 = vsel %vm3347, %v1965, %v2892
    %v3588 = vsel %vm3347, %v1968, %v2894
    %v3589 = vsel %vm3347, %v1970, %v2896
    %v3590 = vsel %vm3347, %v1973, %v2898
    %v3591 = vsel %vm3347, %v1975, %v2900
    %v3592 = vsel %vm3347, %v1978, %v2902
    %v3593 = vsel %vm3347, %v1980, %v2904
    %v3594 = vsel %vm3347, %v1983, %v2906
    %v3595 = vsel %vm3347, %v1985, %v2908
    %v3596 = vsel %vm3347, %v1988, %v2910
    %v3597 = vsel %vm3347, %v1990, %v2912
    %v3598 = vsel %vm3347, %v2712, %v2914
    %v3599 = vsel %vm3347, %v2714, %v2916
    %v3600 = vsel %vm3409, %v3536, %v2982
    %v3601 = vsel %vm3409, %v3537, %v2984
    %v3602 = vsel %vm3409, %v3538, %v2986
    %v3603 = vsel %vm3409, %v3539, %v2988
    %v3604 = vsel %vm3409, %v3540, %v2990
    %v3605 = vsel %vm3409, %v3541, %v2992
    %v3606 = vsel %vm3409, %v3542, %v2994
    %v3607 = vsel %vm3409, %v3543, %v2996
    %v3608 = vsel %vm3409, %v3544, %v2998
    %v3609 = vsel %vm3409, %v3545, %v3000
    %v3610 = vsel %vm3409, %v3546, %v3002
    %v3611 = vsel %vm3409, %v3547, %v3004
    %v3612 = vsel %vm3409, %v3548, %v3006
    %v3613 = vsel %vm3409, %v3549, %v3008
    %v3614 = vsel %vm3409, %v3550, %v3010
    %v3615 = vsel %vm3409, %v3551, %v3012
    %v3616 = vsel %vm3409, %v3552, %v3014
    %v3617 = vsel %vm3409, %v3553, %v3016
    %v3618 = vsel %vm3409, %v3554, %v3018
    %v3619 = vsel %vm3409, %v3555, %v3020
    %v3620 = vsel %vm3409, %v3556, %v3022
    %v3621 = vsel %vm3409, %v3557, %v3024
    %v3622 = vsel %vm3409, %v3558, %v3026
    %v3623 = vsel %vm3409, %v3559, %v3028
    %v3624 = vsel %vm3409, %v3560, %v3030
    %v3625 = vsel %vm3409, %v3561, %v3032
    %v3626 = vsel %vm3409, %v3562, %v3034
    %v3627 = vsel %vm3409, %v3563, %v3036
    %v3628 = vsel %vm3409, %v3564, %v3038
    %v3629 = vsel %vm3409, %v3565, %v3040
    %v3630 = vsel %vm3409, %v3566, %v3042
    %v3631 = vsel %vm3409, %v3567, %v3042
    %v3632 = vsel %vm3409, %v3568, %v3044
    %v3633 = vsel %vm3409, %v3569, %v3046
    %v3634 = vsel %vm3409, %v3570, %v3048
    %v3635 = vsel %vm3409, %v3571, %v3050
    %v3636 = vsel %vm3409, %v3572, %v3052
    %v3637 = vsel %vm3409, %v3573, %v3054
    %v3638 = vsel %vm3409, %v3574, %v3056
    %v3639 = vsel %vm3409, %v3575, %v3058
    %v3640 = vsel %vm3409, %v3576, %v3060
    %v3641 = vsel %vm3409, %v3577, %v3062
    %v3642 = vsel %vm3409, %v3578, %v3064
    %v3643 = vsel %vm3409, %v3579, %v3066
    %v3644 = vsel %vm3409, %v3580, %v3068
    %v3645 = vsel %vm3409, %v3581, %v3070
    %v3646 = vsel %vm3409, %v3582, %v3072
    %v3647 = vsel %vm3409, %v3583, %v3074
    %v3648 = vsel %vm3409, %v3584, %v3076
    %v3649 = vsel %vm3409, %v3585, %v3078
    %v3650 = vsel %vm3409, %v3586, %v3080
    %v3651 = vsel %vm3409, %v3587, %v3082
    %v3652 = vsel %vm3409, %v3588, %v3084
    %v3653 = vsel %vm3409, %v3589, %v3086
    %v3654 = vsel %vm3409, %v3590, %v3088
    %v3655 = vsel %vm3409, %v3591, %v3090
    %v3656 = vsel %vm3409, %v3592, %v3092
    %v3657 = vsel %vm3409, %v3593, %v3094
    %v3658 = vsel %vm3409, %v3594, %v3096
    %v3659 = vsel %vm3409, %v3595, %v3098
    %v3660 = vsel %vm3409, %v3596, %v3100
    %v3661 = vsel %vm3409, %v3597, %v3102
    %v3662 = vsel %vm3409, %v3598, %v3042
    %v3663 = vsel %vm3409, %v3599, %v3042
    %v3664 = vsel %vm3471, %v3600, %v3165
    %v3665 = vsel %vm3471, %v3601, %v3167
    %v3666 = vsel %vm3471, %v3602, %v3169
    %v3667 = vsel %vm3471, %v3603, %v3171
    %v3668 = vsel %vm3471, %v3604, %v3173
    %v3669 = vsel %vm3471, %v3605, %v3175
    %v3670 = vsel %vm3471, %v3606, %v3177
    %v3671 = vsel %vm3471, %v3607, %v3179
    %v3672 = vsel %vm3471, %v3608, %v3181
    %v3673 = vsel %vm3471, %v3609, %v3183
    %v3674 = vsel %vm3471, %v3610, %v3185
    %v3675 = vsel %vm3471, %v3611, %v3187
    %v3676 = vsel %vm3471, %v3612, %v3189
    %v3677 = vsel %vm3471, %v3613, %v3191
    %v3678 = vsel %vm3471, %v3614, %v3193
    %v3679 = vsel %vm3471, %v3615, %v3195
    %v3680 = vsel %vm3471, %v3616, %v3197
    %v3681 = vsel %vm3471, %v3617, %v3199
    %v3682 = vsel %vm3471, %v3618, %v3201
    %v3683 = vsel %vm3471, %v3619, %v3203
    %v3684 = vsel %vm3471, %v3620, %v3205
    %v3685 = vsel %vm3471, %v3621, %v3207
    %v3686 = vsel %vm3471, %v3622, %v3209
    %v3687 = vsel %vm3471, %v3623, %v3211
    %v3688 = vsel %vm3471, %v3624, %v3213
    %v3689 = vsel %vm3471, %v3625, %v3215
    %v3690 = vsel %vm3471, %v3626, %v3217
    %v3691 = vsel %vm3471, %v3627, %v3219
    %v3692 = vsel %vm3471, %v3628, %v3221
    %v3693 = vsel %vm3471, %v3629, %v3223
    %v3694 = vsel %vm3471, %v3630, %v3225
    %v3695 = vsel %vm3471, %v3631, %v3225
    %v3696 = vsel %vm3471, %v3632, %v3227
    %v3697 = vsel %vm3471, %v3633, %v3229
    %v3698 = vsel %vm3471, %v3634, %v3231
    %v3699 = vsel %vm3471, %v3635, %v3233
    %v3700 = vsel %vm3471, %v3636, %v3235
    %v3701 = vsel %vm3471, %v3637, %v3237
    %v3702 = vsel %vm3471, %v3638, %v3239
    %v3703 = vsel %vm3471, %v3639, %v3241
    %v3704 = vsel %vm3471, %v3640, %v3243
    %v3705 = vsel %vm3471, %v3641, %v3245
    %v3706 = vsel %vm3471, %v3642, %v3247
    %v3707 = vsel %vm3471, %v3643, %v3249
    %v3708 = vsel %vm3471, %v3644, %v3251
    %v3709 = vsel %vm3471, %v3645, %v3253
    %v3710 = vsel %vm3471, %v3646, %v3255
    %v3711 = vsel %vm3471, %v3647, %v3257
    %v3712 = vsel %vm3471, %v3648, %v3259
    %v3713 = vsel %vm3471, %v3649, %v3261
    %v3714 = vsel %vm3471, %v3650, %v3263
    %v3715 = vsel %vm3471, %v3651, %v3265
    %v3716 = vsel %vm3471, %v3652, %v3267
    %v3717 = vsel %vm3471, %v3653, %v3269
    %v3718 = vsel %vm3471, %v3654, %v3271
    %v3719 = vsel %vm3471, %v3655, %v3273
    %v3720 = vsel %vm3471, %v3656, %v3275
    %v3721 = vsel %vm3471, %v3657, %v3277
    %v3722 = vsel %vm3471, %v3658, %v3279
    %v3723 = vsel %vm3471, %v3659, %v3281
    %v3724 = vsel %vm3471, %v3660, %v3283
    %v3725 = vsel %vm3471, %v3661, %v3285
    %v3726 = vsel %vm3471, %v3662, %v3225
    %v3727 = vsel %vm3471, %v3663, %v3225
    %v3728 = vld [vmem:[%s1] sm:$0xff]
    %v3729 = vld [vmem:[%s1 + $0x8] sm:$0xff]
    %v3730 = vld [vmem:[%s1 + $0x10] sm:$0xff]
    %v3731 = vld [vmem:[%s1 + $0x18] sm:$0xff]
    %v3732 = vld [vmem:[%s1 + $0x20] sm:$0xff]
    %v3733 = vld [vmem:[%s1 + $0x28] sm:$0xff]
    %v3734 = vld [vmem:[%s1 + $0x30] sm:$0xff]
    %v3735 = vld [vmem:[%s1 + $0x38] sm:$0xff]
    %v3736 = vld [vmem:[%s1 + $0x40] sm:$0xff]
    %v3737 = vld [vmem:[%s1 + $0x48] sm:$0xff]
    %v3738 = vld [vmem:[%s1 + $0x50] sm:$0xff]
    %v3739 = vld [vmem:[%s1 + $0x58] sm:$0xff]
    %v3740 = vld [vmem:[%s1 + $0x60] sm:$0xff]
    %v3741 = vld [vmem:[%s1 + $0x68] sm:$0xff]
    %v3742 = vld [vmem:[%s1 + $0x70] sm:$0xff]
    %v3743 = vld [vmem:[%s1 + $0x78] sm:$0xff]
    %v3744 = vld [vmem:[%s1 + $0x80] sm:$0xff]
    %v3745 = vld [vmem:[%s1 + $0x88] sm:$0xff]
    %v3746 = vld [vmem:[%s1 + $0x90] sm:$0xff]
    %v3747 = vld [vmem:[%s1 + $0x98] sm:$0xff]
    %v3748 = vld [vmem:[%s1 + $0xa0] sm:$0xff]
    %v3749 = vld [vmem:[%s1 + $0xa8] sm:$0xff]
    %v3750 = vld [vmem:[%s1 + $0xb0] sm:$0xff]
    %v3751 = vld [vmem:[%s1 + $0xb8] sm:$0xff]
    %v3752 = vld [vmem:[%s1 + $0xc0] sm:$0xff]
    %v3753 = vld [vmem:[%s1 + $0xc8] sm:$0xff]
    %v3754 = vld [vmem:[%s1 + $0xd0] sm:$0xff]
    %v3755 = vld [vmem:[%s1 + $0xd8] sm:$0xff]
    %v3756 = vld [vmem:[%s1 + $0xe0] sm:$0xff]
    %v3757 = vld [vmem:[%s1 + $0xe8] sm:$0xff]
    %v3758 = vld [vmem:[%s1 + $0xf0] sm:$0xff]
    %v3759 = vld [vmem:[%s1 + $0xf8] sm:$0xff]
    %v3760 = vld [vmem:[%s1 + $0x100] sm:$0xff]
    %v3761 = vld [vmem:[%s1 + $0x108] sm:$0xff]
    %v3762 = vld [vmem:[%s1 + $0x110] sm:$0xff]
    %v3763 = vld [vmem:[%s1 + $0x118] sm:$0xff]
    %v3764 = vld [vmem:[%s2] sm:$0x1]
    %v3766 = vlaneseq
    %v3767 = vshrl.u32 %v3766, 7
    %v3768 = vsub.s32 0, %v3767
    %v3769 = vrot.slane %v3764, %v3768
    %v3771 = vsel %vm3347, %v2183, 0
    %v3773 = vsel %vm3347, %v2185, 0
    %v3775 = vsel %vm3347, %v2188, 0
    %v3777 = vsel %vm3347, %v2190, 0
    %v3779 = vsel %vm3347, %v2193, 0
    %v3781 = vsel %vm3347, %v2195, 0
    %v3783 = vsel %vm3347, %v2198, 0
    %v3785 = vsel %vm3347, %v2200, 0
    %v3787 = vsel %vm3347, %v2203, 0
    %v3789 = vsel %vm3347, %v2205, 0
    %v3791 = vsel %vm3347, %v2208, 0
    %v3793 = vsel %vm3347, %v2210, 0
    %v3795 = vsel %vm3347, %v2213, 0
    %v3797 = vsel %vm3347, %v2215, 0
    %v3799 = vsel %vm3347, %v2218, 0
    %v3801 = vsel %vm3347, %v2220, 0
    %v3803 = vsel %vm3347, %v2223, 0
    %v3805 = vsel %vm3347, %v2225, 0
    %v3807 = vsel %vm3347, %v2228, 0
    %v3809 = vsel %vm3347, %v2230, 0
    %v3811 = vsel %vm3347, %v2233, 0
    %v3813 = vsel %vm3347, %v2235, 0
    %v3815 = vsel %vm3347, %v2238, 0
    %v3817 = vsel %vm3347, %v2240, 0
    %v3819 = vsel %vm3347, %v2243, 0
    %v3821 = vsel %vm3347, %v2245, 0
    %v3823 = vsel %vm3347, %v2248, 0
    %v3825 = vsel %vm3347, %v2250, 0
    %v3827 = vsel %vm3347, %v2781, 0
    %v3829 = vsel %vm3347, %v2783, 0
    %v3831 = vsel %vm3347, %v2175, 0
    %v3833 = vsel %vm3347, %v2258, 0
    %v3835 = vsel %vm3347, %v2260, 0
    %v3837 = vsel %vm3347, %v2263, 0
    %v3839 = vsel %vm3347, %v2265, 0
    %v3841 = vsel %vm3347, %v2268, 0
    %v3843 = vsel %vm3347, %v2270, 0
    %v3845 = vsel %vm3347, %v2273, 0
    %v3847 = vsel %vm3347, %v2275, 0
    %v3849 = vsel %vm3347, %v2278, 0
    %v3851 = vsel %vm3347, %v2280, 0
    %v3853 = vsel %vm3347, %v2283, 0
    %v3855 = vsel %vm3347, %v2285, 0
    %v3857 = vsel %vm3347, %v2288, 0
    %v3859 = vsel %vm3347, %v2290, 0
    %v3861 = vsel %vm3347, %v2293, 0
    %v3863 = vsel %vm3347, %v2295, 0
    %v3865 = vsel %vm3347, %v2298, 0
    %v3867 = vsel %vm3347, %v2300, 0
    %v3869 = vsel %vm3347, %v2303, 0
    %v3871 = vsel %vm3347, %v2305, 0
    %v3873 = vsel %vm3347, %v2308, 0
    %v3875 = vsel %vm3347, %v2310, 0
    %v3877 = vsel %vm3347, %v2313, 0
    %v3879 = vsel %vm3347, %v2315, 0
    %v3881 = vsel %vm3347, %v2318, 0
    %v3883 = vsel %vm3347, %v2320, 0
    %v3885 = vsel %vm3347, %v2323, 0
    %v3887 = vsel %vm3347, %v2325, 0
    %v3889 = vsel %vm3347, %v2786, 0
    %v3891 = vsel %vm3347, %v2788, 0
    %3893 = vmatprep.subr.mxu0 0.0
    %3894 = vmatpush1.msra.mxu0 %v3728
    %3895 = vmatprep.subr.mxu0 0.0
    %3896 = vmatpush1.msra.mxu0 %v3729
    %3897 = vmatprep.subr.mxu0 0.0
    %3898 = vmatpush1.msra.mxu0 %v3730
    %3899 = vmatprep.subr.mxu0 0.0
    %3900 = vmatpush1.msra.mxu0 %v3731
    %3901 = vmatprep.subr.mxu0 0.0
    %3902 = vmatpush1.msra.mxu0 %v3732
    %3903 = vmatprep.subr.mxu0 0.0
    %3904 = vmatpush1.msra.mxu0 %v3733
    %3905 = vmatprep.subr.mxu0 0.0
    %3906 = vmatpush1.msra.mxu0 %v3734
    %3907 = vmatprep.subr.mxu0 0.0
    %3908 = vmatpush1.msra.mxu0 %v3735
    %3909 = vmatprep.subr.mxu0 0.0
    %3910 = vmatpush1.msra.mxu0 %v3736
    %3911 = vmatprep.subr.mxu0 0.0
    %3912 = vmatpush1.msra.mxu0 %v3737
    %3913 = vmatprep.subr.mxu0 0.0
    %3914 = vmatpush1.msra.mxu0 %v3738
    %3915 = vmatprep.subr.mxu0 0.0
    %3916 = vmatpush1.msra.mxu0 %v3739
    %3917 = vmatprep.subr.mxu0 0.0
    %3918 = vmatpush1.msra.mxu0 %v3740
    %3919 = vmatprep.subr.mxu0 0.0
    %3920 = vmatpush1.msra.mxu0 %v3741
    %3921 = vmatprep.subr.mxu0 0.0
    %3922 = vmatpush1.msra.mxu0 %v3742
    %3923 = vmatprep.subr.mxu0 0.0
    %3924 = vmatpush1.msra.mxu0 %v3743
    %3925 = vmatprep.subr.mxu0 0.0
    %3926 = vmatpush1.msra.mxu0 %v3744
    %3927 = vmatprep.subr.mxu0 0.0
    %3928 = vmatpush1.msra.mxu0 %v3745
    %3929 = vmatprep.subr.mxu0 0.0
    %3930 = vmatpush1.msra.mxu0 %v3746
    %3931 = vmatprep.subr.mxu0 0.0
    %3932 = vmatpush1.msra.mxu0 %v3747
    %3933 = vmatprep.subr.mxu0 0.0
    %3934 = vmatpush1.msra.mxu0 %v3748
    %3935 = vmatprep.subr.mxu0 0.0
    %3936 = vmatpush1.msra.mxu0 %v3749
    %3937 = vmatprep.subr.mxu0 0.0
    %3938 = vmatpush1.msra.mxu0 %v3750
    %3939 = vmatprep.subr.mxu0 0.0
    %3940 = vmatpush1.msra.mxu0 %v3751
    %3941 = vmatprep.subr.mxu0 0.0
    %3942 = vmatpush1.msra.mxu0 %v3752
    %3943 = vmatprep.subr.mxu0 0.0
    %3944 = vmatpush1.msra.mxu0 %v3753
    %3945 = vmatprep.subr.mxu0 0.0
    %3946 = vmatpush1.msra.mxu0 %v3754
    %3947 = vmatprep.subr.mxu0 0.0
    %3948 = vmatpush1.msra.mxu0 %v3755
    %3949 = vmatprep.subr.mxu0 0.0
    %3950 = vmatpush1.msra.mxu0 %v3756
    %3951 = vmatprep.subr.mxu0 0.0
    %3952 = vmatpush1.msra.mxu0 %v3757
    %3953 = vmatprep.subr.mxu0 0.0
    %3954 = vmatpush1.msra.mxu0 %v3758
    %3955 = vmatprep.subr.mxu0 0.0
    %3956 = vmatpush1.msra.mxu0 %v3759
    %3957 = vmatprep.mubr.f32.mxu0 %v3664
    %3958 = vmatmul.mubr.f32.gmra.mrb[0].mxu0 %v3472
    %v3959 = vpop.f32.mrb[0].mxu0
    %v3960 = vadd.f32 %v3769, %v3959
    %v3961 = vpop.f32.mrb[0].mxu0
    %3962 = vmatprep.mubr.f32.mxu0 %v3665
    %3963 = vmatmul.mubr.f32.gmra.mrb[0].mxu0 %v3473
    %v3964 = vpop.f32.mrb[0].mxu0
    %v3965 = vadd.f32 %v3769, %v3964
    %v3966 = vpop.f32.mrb[0].mxu0
    %3967 = vmatprep.mubr.f32.mxu0 %v3666
    %3968 = vmatmul.mubr.f32.gmra.mrb[0].mxu0 %v3474
    %v3969 = vpop.f32.mrb[0].mxu0
    %v3970 = vadd.f32 %v3769, %v3969
    %v3971 = vpop.f32.mrb[0].mxu0
    %3972 = vmatprep.mubr.f32.mxu0 %v3667
    %3973 = vmatmul.mubr.f32.gmra.mrb[0].mxu0 %v3475
    %v3974 = vpop.f32.mrb[0].mxu0
    %v3975 = vadd.f32 %v3769, %v3974
    %v3976 = vpop.f32.mrb[0].mxu0
    %3977 = vmatprep.mubr.f32.mxu0 %v3668
    %3978 = vmatmul.mubr.f32.gmra.mrb[0].mxu0 %v3476
    %v3979 = vpop.f32.mrb[0].mxu0
    %v3980 = vadd.f32 %v3769, %v3979
    %v3981 = vpop.f32.mrb[0].mxu0
    %3982 = vmatprep.mubr.f32.mxu0 %v3669
    %3983 = vmatmul.mubr.f32.gmra.mrb[0].mxu0 %v3477
    %v3984 = vpop.f32.mrb[0].mxu0
    %v3985 = vadd.f32 %v3769, %v3984
    %v3986 = vpop.f32.mrb[0].mxu0
    %3987 = vmatprep.mubr.f32.mxu0 %v3670
    %3988 = vmatmul.mubr.f32.gmra.mrb[0].mxu0 %v3478
    %v3989 = vpop.f32.mrb[0].mxu0
    %v3990 = vadd.f32 %v3769, %v3989
    %v3991 = vpop.f32.mrb[0].mxu0
    %3992 = vmatprep.mubr.f32.mxu0 %v3671
    %3993 = vmatmul.mubr.f32.gmra.mrb[0].mxu0 %v3479
    %v3994 = vpop.f32.mrb[0].mxu0
    %v3995 = vadd.f32 %v3769, %v3994
    %v3996 = vpop.f32.mrb[0].mxu0
    %3997 = vmatprep.mubr.f32.mxu0 %v3672
    %3998 = vmatmul.mubr.f32.gmra.mrb[0].mxu0 %v3480
    %v3999 = vpop.f32.mrb[0].mxu0
    %v4000 = vadd.f32 %v3769, %v3999
    %v4001 = vpop.f32.mrb[0].mxu0
    %4002 = vmatprep.mubr.f32.mxu0 %v3673
    %4003 = vmatmul.mubr.f32.gmra.mrb[0].mxu0 %v3481
    %v4004 = vpop.f32.mrb[0].mxu0
    %v4005 = vadd.f32 %v3769, %v4004
    %v4006 = vpop.f32.mrb[0].mxu0
    %4007 = vmatprep.mubr.f32.mxu0 %v3674
    %4008 = vmatmul.mubr.f32.gmra.mrb[0].mxu0 %v3482
    %v4009 = vpop.f32.mrb[0].mxu0
    %v4010 = vadd.f32 %v3769, %v4009
    %v4011 = vpop.f32.mrb[0].mxu0
    %4012 = vmatprep.mubr.f32.mxu0 %v3675
    %4013 = vmatmul.mubr.f32.gmra.mrb[0].mxu0 %v3483
    %v4014 = vpop.f32.mrb[0].mxu0
    %v4015 = vadd.f32 %v3769, %v4014
    %v4016 = vpop.f32.mrb[0].mxu0
    %4017 = vmatprep.mubr.f32.mxu0 %v3676
    %4018 = vmatmul.mubr.f32.gmra.mrb[0].mxu0 %v3484
    %v4019 = vpop.f32.mrb[0].mxu0
    %v4020 = vadd.f32 %v3769, %v4019
    %v4021 = vpop.f32.mrb[0].mxu0
    %4022 = vmatprep.mubr.f32.mxu0 %v3677
    %4023 = vmatmul.mubr.f32.gmra.mrb[0].mxu0 %v3485
    %v4024 = vpop.f32.mrb[0].mxu0
    %v4025 = vadd.f32 %v3769, %v4024
    %v4026 = vpop.f32.mrb[0].mxu0
    %4027 = vmatprep.mubr.f32.mxu0 %v3678
    %4028 = vmatmul.mubr.f32.gmra.mrb[0].mxu0 %v3486
    %v4029 = vpop.f32.mrb[0].mxu0
    %v4030 = vadd.f32 %v3769, %v4029
    %v4031 = vpop.f32.mrb[0].mxu0
    %4032 = vmatprep.mubr.f32.mxu0 %v3679
    %4033 = vmatmul.mubr.f32.gmra.mrb[0].mxu0 %v3487
    %v4034 = vpop.f32.mrb[0].mxu0
    %v4035 = vadd.f32 %v3769, %v4034
    %v4036 = vpop.f32.mrb[0].mxu0
    %4037 = vmatprep.mubr.f32.mxu0 %v3680
    %4038 = vmatmul.mubr.f32.gmra.mrb[0].mxu0 %v3488
    %v4039 = vpop.f32.mrb[0].mxu0
    %v4040 = vadd.f32 %v3769, %v4039
    %v4041 = vpop.f32.mrb[0].mxu0
    %4042 = vmatprep.mubr.f32.mxu0 %v3681
    %4043 = vmatmul.mubr.f32.gmra.mrb[0].mxu0 %v3489
    %v4044 = vpop.f32.mrb[0].mxu0
    %v4045 = vadd.f32 %v3769, %v4044
    %v4046 = vpop.f32.mrb[0].mxu0
    %4047 = vmatprep.mubr.f32.mxu0 %v3682
    %4048 = vmatmul.mubr.f32.gmra.mrb[0].mxu0 %v3490
    %v4049 = vpop.f32.mrb[0].mxu0
    %v4050 = vadd.f32 %v3769, %v4049
    %v4051 = vpop.f32.mrb[0].mxu0
    %4052 = vmatprep.mubr.f32.mxu0 %v3683
    %4053 = vmatmul.mubr.f32.gmra.mrb[0].mxu0 %v3491
    %v4054 = vpop.f32.mrb[0].mxu0
    %v4055 = vadd.f32 %v3769, %v4054
    %v4056 = vpop.f32.mrb[0].mxu0
    %4057 = vmatprep.mubr.f32.mxu0 %v3684
    %4058 = vmatmul.mubr.f32.gmra.mrb[0].mxu0 %v3492
    %v4059 = vpop.f32.mrb[0].mxu0
    %v4060 = vadd.f32 %v3769, %v4059
    %v4061 = vpop.f32.mrb[0].mxu0
    %4062 = vmatprep.mubr.f32.mxu0 %v3685
    %4063 = vmatmul.mubr.f32.gmra.mrb[0].mxu0 %v3493
    %v4064 = vpop.f32.mrb[0].mxu0
    %v4065 = vadd.f32 %v3769, %v4064
    %v4066 = vpop.f32.mrb[0].mxu0
    %4067 = vmatprep.mubr.f32.mxu0 %v3686
    %4068 = vmatmul.mubr.f32.gmra.mrb[0].mxu0 %v3494
    %v4069 = vpop.f32.mrb[0].mxu0
    %v4070 = vadd.f32 %v3769, %v4069
    %v4071 = vpop.f32.mrb[0].mxu0
    %4072 = vmatprep.mubr.f32.mxu0 %v3687
    %4073 = vmatmul.mubr.f32.gmra.mrb[0].mxu0 %v3495
    %v4074 = vpop.f32.mrb[0].mxu0
    %v4075 = vadd.f32 %v3769, %v4074
    %v4076 = vpop.f32.mrb[0].mxu0
    %4077 = vmatprep.mubr.f32.mxu0 %v3688
    %4078 = vmatmul.mubr.f32.gmra.mrb[0].mxu0 %v3496
    %v4079 = vpop.f32.mrb[0].mxu0
    %v4080 = vadd.f32 %v3769, %v4079
    %v4081 = vpop.f32.mrb[0].mxu0
    %4082 = vmatprep.mubr.f32.mxu0 %v3689
    %4083 = vmatmul.mubr.f32.gmra.mrb[0].mxu0 %v3497
    %v4084 = vpop.f32.mrb[0].mxu0
    %v4085 = vadd.f32 %v3769, %v4084
    %v4086 = vpop.f32.mrb[0].mxu0
    %4087 = vmatprep.mubr.f32.mxu0 %v3690
    %4088 = vmatmul.mubr.f32.gmra.mrb[0].mxu0 %v3498
    %v4089 = vpop.f32.mrb[0].mxu0
    %v4090 = vadd.f32 %v3769, %v4089
    %v4091 = vpop.f32.mrb[0].mxu0
    %4092 = vmatprep.mubr.f32.mxu0 %v3691
    %4093 = vmatmul.mubr.f32.gmra.mrb[0].mxu0 %v3499
    %v4094 = vpop.f32.mrb[0].mxu0
    %v4095 = vadd.f32 %v3769, %v4094
    %v4096 = vpop.f32.mrb[0].mxu0
    %4097 = vmatprep.mubr.f32.mxu0 %v3692
    %4098 = vmatmul.mubr.f32.gmra.mrb[0].mxu0 %v3500
    %v4099 = vpop.f32.mrb[0].mxu0
    %v4100 = vadd.f32 %v3769, %v4099
    %v4101 = vpop.f32.mrb[0].mxu0
    %4102 = vmatprep.mubr.f32.mxu0 %v3693
    %4103 = vmatmul.mubr.f32.gmra.mrb[0].mxu0 %v3501
    %v4104 = vpop.f32.mrb[0].mxu0
    %v4105 = vadd.f32 %v3769, %v4104
    %v4106 = vpop.f32.mrb[0].mxu0
    %4107 = vmatprep.mubr.f32.mxu0 %v3694
    %4108 = vmatmul.mubr.f32.gmra.mrb[0].mxu0 %v3502
    %v4109 = vpop.f32.mrb[0].mxu0
    %v4110 = vadd.f32 %v3769, %v4109
    %v4111 = vpop.f32.mrb[0].mxu0
    %4112 = vmatprep.mubr.f32.mxu0 %v3695
    %4113 = vmatmul.mubr.f32.gmra.mrb[0].mxu0 %v3503
    %v4114 = vpop.f32.mrb[0].mxu0
    %v4115 = vadd.f32 %v3769, %v4114
    %v4116 = vpop.f32.mrb[0].mxu0
    %4117 = vmatprep.mubr.f32.mxu0 %v3696
    %4118 = vmatmul.mubr.f32.gmra.mrb[0].mxu0 %v3504
    %v4119 = vpop.f32.mrb[0].mxu0
    %v4120 = vadd.f32 %v3769, %v4119
    %v4121 = vpop.f32.mrb[0].mxu0
    %4122 = vmatprep.mubr.f32.mxu0 %v3697
    %4123 = vmatmul.mubr.f32.gmra.mrb[0].mxu0 %v3505
    %v4124 = vpop.f32.mrb[0].mxu0
    %v4125 = vadd.f32 %v3769, %v4124
    %v4126 = vpop.f32.mrb[0].mxu0
    %4127 = vmatprep.mubr.f32.mxu0 %v3698
    %4128 = vmatmul.mubr.f32.gmra.mrb[0].mxu0 %v3506
    %v4129 = vpop.f32.mrb[0].mxu0
    %v4130 = vadd.f32 %v3769, %v4129
    %v4131 = vpop.f32.mrb[0].mxu0
    %4132 = vmatprep.mubr.f32.mxu0 %v3699
    %4133 = vmatmul.mubr.f32.gmra.mrb[0].mxu0 %v3507
    %v4134 = vpop.f32.mrb[0].mxu0
    %v4135 = vadd.f32 %v3769, %v4134
    %v4136 = vpop.f32.mrb[0].mxu0
    %4137 = vmatprep.mubr.f32.mxu0 %v3700
    %4138 = vmatmul.mubr.f32.gmra.mrb[0].mxu0 %v3508
    %v4139 = vpop.f32.mrb[0].mxu0
    %v4140 = vadd.f32 %v3769, %v4139
    %v4141 = vpop.f32.mrb[0].mxu0
    %4142 = vmatprep.mubr.f32.mxu0 %v3701
    %4143 = vmatmul.mubr.f32.gmra.mrb[0].mxu0 %v3509
    %v4144 = vpop.f32.mrb[0].mxu0
    %v4145 = vadd.f32 %v3769, %v4144
    %v4146 = vpop.f32.mrb[0].mxu0
    %4147 = vmatprep.mubr.f32.mxu0 %v3702
    %4148 = vmatmul.mubr.f32.gmra.mrb[0].mxu0 %v3510
    %v4149 = vpop.f32.mrb[0].mxu0
    %v4150 = vadd.f32 %v3769, %v4149
    %v4151 = vpop.f32.mrb[0].mxu0
    %4152 = vmatprep.mubr.f32.mxu0 %v3703
    %4153 = vmatmul.mubr.f32.gmra.mrb[0].mxu0 %v3511
    %v4154 = vpop.f32.mrb[0].mxu0
    %v4155 = vadd.f32 %v3769, %v4154
    %v4156 = vpop.f32.mrb[0].mxu0
    %4157 = vmatprep.mubr.f32.mxu0 %v3704
    %4158 = vmatmul.mubr.f32.gmra.mrb[0].mxu0 %v3512
    %v4159 = vpop.f32.mrb[0].mxu0
    %v4160 = vadd.f32 %v3769, %v4159
    %v4161 = vpop.f32.mrb[0].mxu0
    %4162 = vmatprep.mubr.f32.mxu0 %v3705
    %4163 = vmatmul.mubr.f32.gmra.mrb[0].mxu0 %v3513
    %v4164 = vpop.f32.mrb[0].mxu0
    %v4165 = vadd.f32 %v3769, %v4164
    %v4166 = vpop.f32.mrb[0].mxu0
    %4167 = vmatprep.mubr.f32.mxu0 %v3706
    %4168 = vmatmul.mubr.f32.gmra.mrb[0].mxu0 %v3514
    %v4169 = vpop.f32.mrb[0].mxu0
    %v4170 = vadd.f32 %v3769, %v4169
    %v4171 = vpop.f32.mrb[0].mxu0
    %4172 = vmatprep.mubr.f32.mxu0 %v3707
    %4173 = vmatmul.mubr.f32.gmra.mrb[0].mxu0 %v3515
    %v4174 = vpop.f32.mrb[0].mxu0
    %v4175 = vadd.f32 %v3769, %v4174
    %v4176 = vpop.f32.mrb[0].mxu0
    %4177 = vmatprep.mubr.f32.mxu0 %v3708
    %4178 = vmatmul.mubr.f32.gmra.mrb[0].mxu0 %v3516
    %v4179 = vpop.f32.mrb[0].mxu0
    %v4180 = vadd.f32 %v3769, %v4179
    %v4181 = vpop.f32.mrb[0].mxu0
    %4182 = vmatprep.mubr.f32.mxu0 %v3709
    %4183 = vmatmul.mubr.f32.gmra.mrb[0].mxu0 %v3517
    %v4184 = vpop.f32.mrb[0].mxu0
    %v4185 = vadd.f32 %v3769, %v4184
    %v4186 = vpop.f32.mrb[0].mxu0
    %4187 = vmatprep.mubr.f32.mxu0 %v3710
    %4188 = vmatmul.mubr.f32.gmra.mrb[0].mxu0 %v3518
    %v4189 = vpop.f32.mrb[0].mxu0
    %v4190 = vadd.f32 %v3769, %v4189
    %v4191 = vpop.f32.mrb[0].mxu0
    %4192 = vmatprep.mubr.f32.mxu0 %v3711
    %4193 = vmatmul.mubr.f32.gmra.mrb[0].mxu0 %v3519
    %v4194 = vpop.f32.mrb[0].mxu0
    %v4195 = vadd.f32 %v3769, %v4194
    %v4196 = vpop.f32.mrb[0].mxu0
    %4197 = vmatprep.mubr.f32.mxu0 %v3712
    %4198 = vmatmul.mubr.f32.gmra.mrb[0].mxu0 %v3520
    %v4199 = vpop.f32.mrb[0].mxu0
    %v4200 = vadd.f32 %v3769, %v4199
    %v4201 = vpop.f32.mrb[0].mxu0
    %4202 = vmatprep.mubr.f32.mxu0 %v3713
    %4203 = vmatmul.mubr.f32.gmra.mrb[0].mxu0 %v3521
    %v4204 = vpop.f32.mrb[0].mxu0
    %v4205 = vadd.f32 %v3769, %v4204
    %v4206 = vpop.f32.mrb[0].mxu0
    %4207 = vmatprep.mubr.f32.mxu0 %v3714
    %4208 = vmatmul.mubr.f32.gmra.mrb[0].mxu0 %v3522
    %v4209 = vpop.f32.mrb[0].mxu0
    %v4210 = vadd.f32 %v3769, %v4209
    %v4211 = vpop.f32.mrb[0].mxu0
    %4212 = vmatprep.mubr.f32.mxu0 %v3715
    %4213 = vmatmul.mubr.f32.gmra.mrb[0].mxu0 %v3523
    %v4214 = vpop.f32.mrb[0].mxu0
    %v4215 = vadd.f32 %v3769, %v4214
    %v4216 = vpop.f32.mrb[0].mxu0
    %4217 = vmatprep.mubr.f32.mxu0 %v3716
    %4218 = vmatmul.mubr.f32.gmra.mrb[0].mxu0 %v3524
    %v4219 = vpop.f32.mrb[0].mxu0
    %v4220 = vadd.f32 %v3769, %v4219
    %v4221 = vpop.f32.mrb[0].mxu0
    %4222 = vmatprep.mubr.f32.mxu0 %v3717
    %4223 = vmatmul.mubr.f32.gmra.mrb[0].mxu0 %v3525
    %v4224 = vpop.f32.mrb[0].mxu0
    %v4225 = vadd.f32 %v3769, %v4224
    %v4226 = vpop.f32.mrb[0].mxu0
    %4227 = vmatprep.mubr.f32.mxu0 %v3718
    %4228 = vmatmul.mubr.f32.gmra.mrb[0].mxu0 %v3526
    %v4229 = vpop.f32.mrb[0].mxu0
    %v4230 = vadd.f32 %v3769, %v4229
    %v4231 = vpop.f32.mrb[0].mxu0
    %4232 = vmatprep.mubr.f32.mxu0 %v3719
    %4233 = vmatmul.mubr.f32.gmra.mrb[0].mxu0 %v3527
    %v4234 = vpop.f32.mrb[0].mxu0
    %v4235 = vadd.f32 %v3769, %v4234
    %v4236 = vpop.f32.mrb[0].mxu0
    %4237 = vmatprep.mubr.f32.mxu0 %v3720
    %4238 = vmatmul.mubr.f32.gmra.mrb[0].mxu0 %v3528
    %v4239 = vpop.f32.mrb[0].mxu0
    %v4240 = vadd.f32 %v3769, %v4239
    %v4241 = vpop.f32.mrb[0].mxu0
    %4242 = vmatprep.mubr.f32.mxu0 %v3721
    %4243 = vmatmul.mubr.f32.gmra.mrb[0].mxu0 %v3529
    %v4244 = vpop.f32.mrb[0].mxu0
    %v4245 = vadd.f32 %v3769, %v4244
    %v4246 = vpop.f32.mrb[0].mxu0
    %4247 = vmatprep.mubr.f32.mxu0 %v3722
    %4248 = vmatmul.mubr.f32.gmra.mrb[0].mxu0 %v3530
    %v4249 = vpop.f32.mrb[0].mxu0
    %v4250 = vadd.f32 %v3769, %v4249
    %v4251 = vpop.f32.mrb[0].mxu0
    %4252 = vmatprep.mubr.f32.mxu0 %v3723
    %4253 = vmatmul.mubr.f32.gmra.mrb[0].mxu0 %v3531
    %v4254 = vpop.f32.mrb[0].mxu0
    %v4255 = vadd.f32 %v3769, %v4254
    %v4256 = vpop.f32.mrb[0].mxu0
    %4257 = vmatprep.mubr.f32.mxu0 %v3724
    %4258 = vmatmul.mubr.f32.gmra.mrb[0].mxu0 %v3532
    %v4259 = vpop.f32.mrb[0].mxu0
    %v4260 = vadd.f32 %v3769, %v4259
    %v4261 = vpop.f32.mrb[0].mxu0
    %4262 = vmatprep.mubr.f32.mxu0 %v3725
    %4263 = vmatmul.mubr.f32.gmra.mrb[0].mxu0 %v3533
    %v4264 = vpop.f32.mrb[0].mxu0
    %v4265 = vadd.f32 %v3769, %v4264
    %v4266 = vpop.f32.mrb[0].mxu0
    %4267 = vmatprep.mubr.f32.mxu0 %v3726
    %4268 = vmatmul.mubr.f32.gmra.mrb[0].mxu0 %v3534
    %v4269 = vpop.f32.mrb[0].mxu0
    %v4270 = vadd.f32 %v3769, %v4269
    %v4271 = vpop.f32.mrb[0].mxu0
    %4272 = vmatprep.mubr.f32.mxu0 %v3727
    %4273 = vmatmul.mubr.f32.gmra.mrb[0].mxu0 %v3535
    %v4274 = vpop.f32.mrb[0].mxu0
    %v4275 = vadd.f32 %v3769, %v4274
    %v4276 = vpop.f32.mrb[0].mxu0
    %4277 = vdwg.mxu0
    %4278 = vmatprep.subr.mxu0 0.0
    %4279 = vmatpush1.msra.mxu0 %v3760
    %4280 = vmatprep.subr.mxu0 0.0
    %4281 = vmatpush1.msra.mxu0 %v3761
    %4282 = vmatprep.subr.mxu0 0.0
    %4283 = vmatpush1.msra.mxu0 %v3762
    %4284 = vmatprep.subr.mxu0 0.0
    %4285 = vmatpush1.msra.mxu0 %v3763
    %4286 = vmatprep.subr.mxu0 0.0
    %4287 = vmatpush1.msra.mxu0 0.0
    %4288 = vmatprep.subr.mxu0 0.0
    %4289 = vmatpush1.msra.mxu0 0.0
    %4290 = vmatprep.subr.mxu0 0.0
    %4291 = vmatpush1.msra.mxu0 0.0
    %4292 = vmatprep.subr.mxu0 0.0
    %4293 = vmatpush1.msra.mxu0 0.0
    %4294 = vmatprep.subr.mxu0 0.0
    %4295 = vmatpush1.msra.mxu0 0.0
    %4296 = vmatprep.subr.mxu0 0.0
    %4297 = vmatpush1.msra.mxu0 0.0
    %4298 = vmatprep.subr.mxu0 0.0
    %4299 = vmatpush1.msra.mxu0 0.0
    %4300 = vmatprep.subr.mxu0 0.0
    %4301 = vmatpush1.msra.mxu0 0.0
    %4302 = vmatprep.subr.mxu0 0.0
    %4303 = vmatpush1.msra.mxu0 0.0
    %4304 = vmatprep.subr.mxu0 0.0
    %4305 = vmatpush1.msra.mxu0 0.0
    %4306 = vmatprep.subr.mxu0 0.0
    %4307 = vmatpush1.msra.mxu0 0.0
    %4308 = vmatprep.subr.mxu0 0.0
    %4309 = vmatpush1.msra.mxu0 0.0
    %4310 = vmatprep.subr.mxu0 0.0
    %4311 = vmatpush1.msra.mxu0 0.0
    %4312 = vmatprep.subr.mxu0 0.0
    %4313 = vmatpush1.msra.mxu0 0.0
    %4314 = vmatprep.subr.mxu0 0.0
    %4315 = vmatpush1.msra.mxu0 0.0
    %4316 = vmatprep.subr.mxu0 0.0
    %4317 = vmatpush1.msra.mxu0 0.0
    %4318 = vmatprep.subr.mxu0 0.0
    %4319 = vmatpush1.msra.mxu0 0.0
    %4320 = vmatprep.subr.mxu0 0.0
    %4321 = vmatpush1.msra.mxu0 0.0
    %4322 = vmatprep.subr.mxu0 0.0
    %4323 = vmatpush1.msra.mxu0 0.0
    %4324 = vmatprep.subr.mxu0 0.0
    %4325 = vmatpush1.msra.mxu0 0.0
    %4326 = vmatprep.subr.mxu0 0.0
    %4327 = vmatpush1.msra.mxu0 0.0
    %4328 = vmatprep.subr.mxu0 0.0
    %4329 = vmatpush1.msra.mxu0 0.0
    %4330 = vmatprep.subr.mxu0 0.0
    %4331 = vmatpush1.msra.mxu0 0.0
    %4332 = vmatprep.subr.mxu0 0.0
    %4333 = vmatpush1.msra.mxu0 0.0
    %4334 = vmatprep.subr.mxu0 0.0
    %4335 = vmatpush1.msra.mxu0 0.0
    %4336 = vmatprep.subr.mxu0 0.0
    %4337 = vmatpush1.msra.mxu0 0.0
    %4338 = vmatprep.subr.mxu0 0.0
    %4339 = vmatpush1.msra.mxu0 0.0
    %4340 = vmatprep.subr.mxu0 0.0
    %4341 = vmatpush1.msra.mxu0 0.0
    %4342 = vmatprep.mubr.f32.mxu0 0.0
    %4343 = vmatmul.mubr.f32.gmra.mrb[0].mxu0 %v3771
    %v4344 = vpop.f32.mrb[0].mxu0
    %v4345 = vadd.f32 %v3960, %v4344
    %v4346 = vpop.f32.mrb[0].mxu0
    %4347 = vmatprep.mubr.f32.mxu0 0.0
    %4348 = vmatmul.mubr.f32.gmra.mrb[0].mxu0 %v3773
    %v4349 = vpop.f32.mrb[0].mxu0
    %v4350 = vadd.f32 %v3965, %v4349
    %v4351 = vpop.f32.mrb[0].mxu0
    %4352 = vmatprep.mubr.f32.mxu0 0.0
    %4353 = vmatmul.mubr.f32.gmra.mrb[0].mxu0 %v3775
    %v4354 = vpop.f32.mrb[0].mxu0
    %v4355 = vadd.f32 %v3970, %v4354
    %v4356 = vpop.f32.mrb[0].mxu0
    %4357 = vmatprep.mubr.f32.mxu0 0.0
    %4358 = vmatmul.mubr.f32.gmra.mrb[0].mxu0 %v3777
    %v4359 = vpop.f32.mrb[0].mxu0
    %v4360 = vadd.f32 %v3975, %v4359
    %v4361 = vpop.f32.mrb[0].mxu0
    %4362 = vmatprep.mubr.f32.mxu0 0.0
    %4363 = vmatmul.mubr.f32.gmra.mrb[0].mxu0 %v3779
    %v4364 = vpop.f32.mrb[0].mxu0
    %v4365 = vadd.f32 %v3980, %v4364
    %v4366 = vpop.f32.mrb[0].mxu0
    %4367 = vmatprep.mubr.f32.mxu0 0.0
    %4368 = vmatmul.mubr.f32.gmra.mrb[0].mxu0 %v3781
    %v4369 = vpop.f32.mrb[0].mxu0
    %v4370 = vadd.f32 %v3985, %v4369
    %v4371 = vpop.f32.mrb[0].mxu0
    %4372 = vmatprep.mubr.f32.mxu0 0.0
    %4373 = vmatmul.mubr.f32.gmra.mrb[0].mxu0 %v3783
    %v4374 = vpop.f32.mrb[0].mxu0
    %v4375 = vadd.f32 %v3990, %v4374
    %v4376 = vpop.f32.mrb[0].mxu0
    %4377 = vmatprep.mubr.f32.mxu0 0.0
    %4378 = vmatmul.mubr.f32.gmra.mrb[0].mxu0 %v3785
    %v4379 = vpop.f32.mrb[0].mxu0
    %v4380 = vadd.f32 %v3995, %v4379
    %v4381 = vpop.f32.mrb[0].mxu0
    %4382 = vmatprep.mubr.f32.mxu0 0.0
    %4383 = vmatmul.mubr.f32.gmra.mrb[0].mxu0 %v3787
    %v4384 = vpop.f32.mrb[0].mxu0
    %v4385 = vadd.f32 %v4000, %v4384
    %v4386 = vpop.f32.mrb[0].mxu0
    %4387 = vmatprep.mubr.f32.mxu0 0.0
    %4388 = vmatmul.mubr.f32.gmra.mrb[0].mxu0 %v3789
    %v4389 = vpop.f32.mrb[0].mxu0
    %v4390 = vadd.f32 %v4005, %v4389
    %v4391 = vpop.f32.mrb[0].mxu0
    %4392 = vmatprep.mubr.f32.mxu0 0.0
    %4393 = vmatmul.mubr.f32.gmra.mrb[0].mxu0 %v3791
    %v4394 = vpop.f32.mrb[0].mxu0
    %v4395 = vadd.f32 %v4010, %v4394
    %v4396 = vpop.f32.mrb[0].mxu0
    %4397 = vmatprep.mubr.f32.mxu0 0.0
    %4398 = vmatmul.mubr.f32.gmra.mrb[0].mxu0 %v3793
    %v4399 = vpop.f32.mrb[0].mxu0
    %v4400 = vadd.f32 %v4015, %v4399
    %v4401 = vpop.f32.mrb[0].mxu0
    %4402 = vmatprep.mubr.f32.mxu0 0.0
    %4403 = vmatmul.mubr.f32.gmra.mrb[0].mxu0 %v3795
    %v4404 = vpop.f32.mrb[0].mxu0
    %v4405 = vadd.f32 %v4020, %v4404
    %v4406 = vpop.f32.mrb[0].mxu0
    %4407 = vmatprep.mubr.f32.mxu0 0.0
    %4408 = vmatmul.mubr.f32.gmra.mrb[0].mxu0 %v3797
    %v4409 = vpop.f32.mrb[0].mxu0
    %v4410 = vadd.f32 %v4025, %v4409
    %v4411 = vpop.f32.mrb[0].mxu0
    %4412 = vmatprep.mubr.f32.mxu0 0.0
    %4413 = vmatmul.mubr.f32.gmra.mrb[0].mxu0 %v3799
    %v4414 = vpop.f32.mrb[0].mxu0
    %v4415 = vadd.f32 %v4030, %v4414
    %v4416 = vpop.f32.mrb[0].mxu0
    %4417 = vmatprep.mubr.f32.mxu0 0.0
    %4418 = vmatmul.mubr.f32.gmra.mrb[0].mxu0 %v3801
    %v4419 = vpop.f32.mrb[0].mxu0
    %v4420 = vadd.f32 %v4035, %v4419
    %v4421 = vpop.f32.mrb[0].mxu0
    %4422 = vmatprep.mubr.f32.mxu0 0.0
    %4423 = vmatmul.mubr.f32.gmra.mrb[0].mxu0 %v3803
    %v4424 = vpop.f32.mrb[0].mxu0
    %v4425 = vadd.f32 %v4040, %v4424
    %v4426 = vpop.f32.mrb[0].mxu0
    %4427 = vmatprep.mubr.f32.mxu0 0.0
    %4428 = vmatmul.mubr.f32.gmra.mrb[0].mxu0 %v3805
    %v4429 = vpop.f32.mrb[0].mxu0
    %v4430 = vadd.f32 %v4045, %v4429
    %v4431 = vpop.f32.mrb[0].mxu0
    %4432 = vmatprep.mubr.f32.mxu0 0.0
    %4433 = vmatmul.mubr.f32.gmra.mrb[0].mxu0 %v3807
    %v4434 = vpop.f32.mrb[0].mxu0
    %v4435 = vadd.f32 %v4050, %v4434
    %v4436 = vpop.f32.mrb[0].mxu0
    %4437 = vmatprep.mubr.f32.mxu0 0.0
    %4438 = vmatmul.mubr.f32.gmra.mrb[0].mxu0 %v3809
    %v4439 = vpop.f32.mrb[0].mxu0
    %v4440 = vadd.f32 %v4055, %v4439
    %v4441 = vpop.f32.mrb[0].mxu0
    %4442 = vmatprep.mubr.f32.mxu0 0.0
    %4443 = vmatmul.mubr.f32.gmra.mrb[0].mxu0 %v3811
    %v4444 = vpop.f32.mrb[0].mxu0
    %v4445 = vadd.f32 %v4060, %v4444
    %v4446 = vpop.f32.mrb[0].mxu0
    %4447 = vmatprep.mubr.f32.mxu0 0.0
    %4448 = vmatmul.mubr.f32.gmra.mrb[0].mxu0 %v3813
    %v4449 = vpop.f32.mrb[0].mxu0
    %v4450 = vadd.f32 %v4065, %v4449
    %v4451 = vpop.f32.mrb[0].mxu0
    %4452 = vmatprep.mubr.f32.mxu0 0.0
    %4453 = vmatmul.mubr.f32.gmra.mrb[0].mxu0 %v3815
    %v4454 = vpop.f32.mrb[0].mxu0
    %v4455 = vadd.f32 %v4070, %v4454
    %v4456 = vpop.f32.mrb[0].mxu0
    %4457 = vmatprep.mubr.f32.mxu0 0.0
    %4458 = vmatmul.mubr.f32.gmra.mrb[0].mxu0 %v3817
    %v4459 = vpop.f32.mrb[0].mxu0
    %v4460 = vadd.f32 %v4075, %v4459
    %v4461 = vpop.f32.mrb[0].mxu0
    %4462 = vmatprep.mubr.f32.mxu0 0.0
    %4463 = vmatmul.mubr.f32.gmra.mrb[0].mxu0 %v3819
    %v4464 = vpop.f32.mrb[0].mxu0
    %v4465 = vadd.f32 %v4080, %v4464
    %v4466 = vpop.f32.mrb[0].mxu0
    %4467 = vmatprep.mubr.f32.mxu0 0.0
    %4468 = vmatmul.mubr.f32.gmra.mrb[0].mxu0 %v3821
    %v4469 = vpop.f32.mrb[0].mxu0
    %v4470 = vadd.f32 %v4085, %v4469
    %v4471 = vpop.f32.mrb[0].mxu0
    %4472 = vmatprep.mubr.f32.mxu0 0.0
    %4473 = vmatmul.mubr.f32.gmra.mrb[0].mxu0 %v3823
    %v4474 = vpop.f32.mrb[0].mxu0
    %v4475 = vadd.f32 %v4090, %v4474
    %v4476 = vpop.f32.mrb[0].mxu0
    %4477 = vmatprep.mubr.f32.mxu0 0.0
    %4478 = vmatmul.mubr.f32.gmra.mrb[0].mxu0 %v3825
    %v4479 = vpop.f32.mrb[0].mxu0
    %v4480 = vadd.f32 %v4095, %v4479
    %v4481 = vpop.f32.mrb[0].mxu0
    %4482 = vmatprep.mubr.f32.mxu0 0.0
    %4483 = vmatmul.mubr.f32.gmra.mrb[0].mxu0 %v3827
    %v4484 = vpop.f32.mrb[0].mxu0
    %v4485 = vadd.f32 %v4100, %v4484
    %v4486 = vpop.f32.mrb[0].mxu0
    %4487 = vmatprep.mubr.f32.mxu0 0.0
    %4488 = vmatmul.mubr.f32.gmra.mrb[0].mxu0 %v3829
    %v4489 = vpop.f32.mrb[0].mxu0
    %v4490 = vadd.f32 %v4105, %v4489
    %v4491 = vpop.f32.mrb[0].mxu0
    %4492 = vmatprep.mubr.f32.mxu0 0.0
    %4493 = vmatmul.mubr.f32.gmra.mrb[0].mxu0 %v3831
    %v4494 = vpop.f32.mrb[0].mxu0
    %v4495 = vadd.f32 %v4110, %v4494
    %v4496 = vpop.f32.mrb[0].mxu0
    %4497 = vmatprep.mubr.f32.mxu0 0.0
    %4498 = vmatmul.mubr.f32.gmra.mrb[0].mxu0 %v3831
    %v4499 = vpop.f32.mrb[0].mxu0
    %v4500 = vadd.f32 %v4115, %v4499
    %v4501 = vpop.f32.mrb[0].mxu0
    %4502 = vmatprep.mubr.f32.mxu0 0.0
    %4503 = vmatmul.mubr.f32.gmra.mrb[0].mxu0 %v3833
    %v4504 = vpop.f32.mrb[0].mxu0
    %v4505 = vadd.f32 %v4120, %v4504
    %v4506 = vpop.f32.mrb[0].mxu0
    %4507 = vmatprep.mubr.f32.mxu0 0.0
    %4508 = vmatmul.mubr.f32.gmra.mrb[0].mxu0 %v3835
    %v4509 = vpop.f32.mrb[0].mxu0
    %v4510 = vadd.f32 %v4125, %v4509
    %v4511 = vpop.f32.mrb[0].mxu0
    %4512 = vmatprep.mubr.f32.mxu0 0.0
    %4513 = vmatmul.mubr.f32.gmra.mrb[0].mxu0 %v3837
    %v4514 = vpop.f32.mrb[0].mxu0
    %v4515 = vadd.f32 %v4130, %v4514
    %v4516 = vpop.f32.mrb[0].mxu0
    %4517 = vmatprep.mubr.f32.mxu0 0.0
    %4518 = vmatmul.mubr.f32.gmra.mrb[0].mxu0 %v3839
    %v4519 = vpop.f32.mrb[0].mxu0
    %v4520 = vadd.f32 %v4135, %v4519
    %v4521 = vpop.f32.mrb[0].mxu0
    %4522 = vmatprep.mubr.f32.mxu0 0.0
    %4523 = vmatmul.mubr.f32.gmra.mrb[0].mxu0 %v3841
    %v4524 = vpop.f32.mrb[0].mxu0
    %v4525 = vadd.f32 %v4140, %v4524
    %v4526 = vpop.f32.mrb[0].mxu0
    %4527 = vmatprep.mubr.f32.mxu0 0.0
    %4528 = vmatmul.mubr.f32.gmra.mrb[0].mxu0 %v3843
    %v4529 = vpop.f32.mrb[0].mxu0
    %v4530 = vadd.f32 %v4145, %v4529
    %v4531 = vpop.f32.mrb[0].mxu0
    %4532 = vmatprep.mubr.f32.mxu0 0.0
    %4533 = vmatmul.mubr.f32.gmra.mrb[0].mxu0 %v3845
    %v4534 = vpop.f32.mrb[0].mxu0
    %v4535 = vadd.f32 %v4150, %v4534
    %v4536 = vpop.f32.mrb[0].mxu0
    %4537 = vmatprep.mubr.f32.mxu0 0.0
    %4538 = vmatmul.mubr.f32.gmra.mrb[0].mxu0 %v3847
    %v4539 = vpop.f32.mrb[0].mxu0
    %v4540 = vadd.f32 %v4155, %v4539
    %v4541 = vpop.f32.mrb[0].mxu0
    %4542 = vmatprep.mubr.f32.mxu0 0.0
    %4543 = vmatmul.mubr.f32.gmra.mrb[0].mxu0 %v3849
    %v4544 = vpop.f32.mrb[0].mxu0
    %v4545 = vadd.f32 %v4160, %v4544
    %v4546 = vpop.f32.mrb[0].mxu0
    %4547 = vmatprep.mubr.f32.mxu0 0.0
    %4548 = vmatmul.mubr.f32.gmra.mrb[0].mxu0 %v3851
    %v4549 = vpop.f32.mrb[0].mxu0
    %v4550 = vadd.f32 %v4165, %v4549
    %v4551 = vpop.f32.mrb[0].mxu0
    %4552 = vmatprep.mubr.f32.mxu0 0.0
    %4553 = vmatmul.mubr.f32.gmra.mrb[0].mxu0 %v3853
    %v4554 = vpop.f32.mrb[0].mxu0
    %v4555 = vadd.f32 %v4170, %v4554
    %v4556 = vpop.f32.mrb[0].mxu0
    %4557 = vmatprep.mubr.f32.mxu0 0.0
    %4558 = vmatmul.mubr.f32.gmra.mrb[0].mxu0 %v3855
    %v4559 = vpop.f32.mrb[0].mxu0
    %v4560 = vadd.f32 %v4175, %v4559
    %v4561 = vpop.f32.mrb[0].mxu0
    %4562 = vmatprep.mubr.f32.mxu0 0.0
    %4563 = vmatmul.mubr.f32.gmra.mrb[0].mxu0 %v3857
    %v4564 = vpop.f32.mrb[0].mxu0
    %v4565 = vadd.f32 %v4180, %v4564
    %v4566 = vpop.f32.mrb[0].mxu0
    %4567 = vmatprep.mubr.f32.mxu0 0.0
    %4568 = vmatmul.mubr.f32.gmra.mrb[0].mxu0 %v3859
    %v4569 = vpop.f32.mrb[0].mxu0
    %v4570 = vadd.f32 %v4185, %v4569
    %v4571 = vpop.f32.mrb[0].mxu0
    %4572 = vmatprep.mubr.f32.mxu0 0.0
    %4573 = vmatmul.mubr.f32.gmra.mrb[0].mxu0 %v3861
    %v4574 = vpop.f32.mrb[0].mxu0
    %v4575 = vadd.f32 %v4190, %v4574
    %v4576 = vpop.f32.mrb[0].mxu0
    %4577 = vmatprep.mubr.f32.mxu0 0.0
    %4578 = vmatmul.mubr.f32.gmra.mrb[0].mxu0 %v3863
    %v4579 = vpop.f32.mrb[0].mxu0
    %v4580 = vadd.f32 %v4195, %v4579
    %v4581 = vpop.f32.mrb[0].mxu0
    %4582 = vmatprep.mubr.f32.mxu0 0.0
    %4583 = vmatmul.mubr.f32.gmra.mrb[0].mxu0 %v3865
    %v4584 = vpop.f32.mrb[0].mxu0
    %v4585 = vadd.f32 %v4200, %v4584
    %v4586 = vpop.f32.mrb[0].mxu0
    %4587 = vmatprep.mubr.f32.mxu0 0.0
    %4588 = vmatmul.mubr.f32.gmra.mrb[0].mxu0 %v3867
    %v4589 = vpop.f32.mrb[0].mxu0
    %v4590 = vadd.f32 %v4205, %v4589
    %v4591 = vpop.f32.mrb[0].mxu0
    %4592 = vmatprep.mubr.f32.mxu0 0.0
    %4593 = vmatmul.mubr.f32.gmra.mrb[0].mxu0 %v3869
    %v4594 = vpop.f32.mrb[0].mxu0
    %v4595 = vadd.f32 %v4210, %v4594
    %v4596 = vpop.f32.mrb[0].mxu0
    %4597 = vmatprep.mubr.f32.mxu0 0.0
    %4598 = vmatmul.mubr.f32.gmra.mrb[0].mxu0 %v3871
    %v4599 = vpop.f32.mrb[0].mxu0
    %v4600 = vadd.f32 %v4215, %v4599
    %v4601 = vpop.f32.mrb[0].mxu0
    %4602 = vmatprep.mubr.f32.mxu0 0.0
    %4603 = vmatmul.mubr.f32.gmra.mrb[0].mxu0 %v3873
    %v4604 = vpop.f32.mrb[0].mxu0
    %v4605 = vadd.f32 %v4220, %v4604
    %v4606 = vpop.f32.mrb[0].mxu0
    %4607 = vmatprep.mubr.f32.mxu0 0.0
    %4608 = vmatmul.mubr.f32.gmra.mrb[0].mxu0 %v3875
    %v4609 = vpop.f32.mrb[0].mxu0
    %v4610 = vadd.f32 %v4225, %v4609
    %v4611 = vpop.f32.mrb[0].mxu0
    %4612 = vmatprep.mubr.f32.mxu0 0.0
    %4613 = vmatmul.mubr.f32.gmra.mrb[0].mxu0 %v3877
    %v4614 = vpop.f32.mrb[0].mxu0
    %v4615 = vadd.f32 %v4230, %v4614
    %v4616 = vpop.f32.mrb[0].mxu0
    %4617 = vmatprep.mubr.f32.mxu0 0.0
    %4618 = vmatmul.mubr.f32.gmra.mrb[0].mxu0 %v3879
    %v4619 = vpop.f32.mrb[0].mxu0
    %v4620 = vadd.f32 %v4235, %v4619
    %v4621 = vpop.f32.mrb[0].mxu0
    %4622 = vmatprep.mubr.f32.mxu0 0.0
    %4623 = vmatmul.mubr.f32.gmra.mrb[0].mxu0 %v3881
    %v4624 = vpop.f32.mrb[0].mxu0
    %v4625 = vadd.f32 %v4240, %v4624
    %v4626 = vpop.f32.mrb[0].mxu0
    %4627 = vmatprep.mubr.f32.mxu0 0.0
    %4628 = vmatmul.mubr.f32.gmra.mrb[0].mxu0 %v3883
    %v4629 = vpop.f32.mrb[0].mxu0
    %v4630 = vadd.f32 %v4245, %v4629
    %v4631 = vpop.f32.mrb[0].mxu0
    %4632 = vmatprep.mubr.f32.mxu0 0.0
    %4633 = vmatmul.mubr.f32.gmra.mrb[0].mxu0 %v3885
    %v4634 = vpop.f32.mrb[0].mxu0
    %v4635 = vadd.f32 %v4250, %v4634
    %v4636 = vpop.f32.mrb[0].mxu0
    %4637 = vmatprep.mubr.f32.mxu0 0.0
    %4638 = vmatmul.mubr.f32.gmra.mrb[0].mxu0 %v3887
    %v4639 = vpop.f32.mrb[0].mxu0
    %v4640 = vadd.f32 %v4255, %v4639
    %v4641 = vpop.f32.mrb[0].mxu0
    %4642 = vmatprep.mubr.f32.mxu0 0.0
    %4643 = vmatmul.mubr.f32.gmra.mrb[0].mxu0 %v3889
    %v4644 = vpop.f32.mrb[0].mxu0
    %v4645 = vadd.f32 %v4260, %v4644
    %v4646 = vpop.f32.mrb[0].mxu0
    %4647 = vmatprep.mubr.f32.mxu0 0.0
    %4648 = vmatmul.mubr.f32.gmra.mrb[0].mxu0 %v3891
    %v4649 = vpop.f32.mrb[0].mxu0
    %v4650 = vadd.f32 %v4265, %v4649
    %v4651 = vpop.f32.mrb[0].mxu0
    %4652 = vmatprep.mubr.f32.mxu0 0.0
    %4653 = vmatmul.mubr.f32.gmra.mrb[0].mxu0 %v3831
    %v4654 = vpop.f32.mrb[0].mxu0
    %v4655 = vadd.f32 %v4270, %v4654
    %v4656 = vpop.f32.mrb[0].mxu0
    %4657 = vmatprep.mubr.f32.mxu0 0.0
    %4658 = vmatmul.mubr.f32.gmra.mrb[0].mxu0 %v3831
    %v4659 = vpop.f32.mrb[0].mxu0
    %v4660 = vadd.f32 %v4275, %v4659
    %v4661 = vpop.f32.mrb[0].mxu0
    %4662 = vdwg.mxu0
    %v4663 = vld [vmem:[%s3] sm:$0xff]
    %v4664 = vld [vmem:[%s3 + $0x8] sm:$0xff]
    %v4665 = vld [vmem:[%s3 + $0x10] sm:$0xff]
    %v4666 = vld [vmem:[%s3 + $0x18] sm:$0xff]
    %v4667 = vld [vmem:[%s4] sm:$0x1]
    %v4669 = vlaneseq
    %v4670 = vshrl.u32 %v4669, 7
    %v4671 = vsub.s32 0, %v4670
    %v4672 = vrot.slane %v4667, %v4671
    %v4674 = vsel %vm3347, %v53, 0
    %v4676 = vsel %vm3347, %v54, 0
    %v4678 = vsel %vm3347, %v55, 0
    %v4680 = vsel %vm3347, %v56, 0
    %v4682 = vsel %vm3347, %v57, 0
    %v4684 = vsel %vm3347, %v58, 0
    %v4686 = vsel %vm3347, %v59, 0
    %v4688 = vsel %vm3347, %v60, 0
    %v4690 = vsel %vm3347, %v61, 0
    %v4692 = vsel %vm3347, %v62, 0
    %v4694 = vsel %vm3347, %v63, 0
    %v4696 = vsel %vm3347, %v64, 0
    %v4698 = vsel %vm3347, %v65, 0
    %v4700 = vsel %vm3347, %v66, 0
    %v4702 = vsel %vm3347, %v67, 0
    %v4704 = vsel %vm3347, %v68, 0
    %v4706 = vsel %vm3347, %v69, 0
    %v4708 = vsel %vm3347, %v70, 0
    %v4710 = vsel %vm3347, %v71, 0
    %v4712 = vsel %vm3347, %v72, 0
    %v4714 = vsel %vm3347, %v73, 0
    %v4716 = vsel %vm3347, %v74, 0
    %v4718 = vsel %vm3347, %v75, 0
    %v4720 = vsel %vm3347, %v76, 0
    %v4722 = vsel %vm3347, %v77, 0
    %v4724 = vsel %vm3347, %v78, 0
    %v4726 = vsel %vm3347, %v79, 0
    %v4728 = vsel %vm3347, %v80, 0
    %v4730 = vsel %vm3347, %v81, 0
    %v4732 = vsel %vm3347, %v82, 0
    %v4734 = vsel %vm3347, %v83, 0
    %v4736 = vsel %vm3347, %v84, 0
    %v4738 = vsel %vm3347, %v85, 0
    %v4740 = vsel %vm3347, %v86, 0
    %v4742 = vsel %vm3347, %v87, 0
    %v4744 = vsel %vm3347, %v88, 0
    %v4746 = vsel %vm3347, %v89, 0
    %v4748 = vsel %vm3347, %v90, 0
    %v4750 = vsel %vm3347, %v91, 0
    %v4752 = vsel %vm3347, %v92, 0
    %v4754 = vsel %vm3347, %v93, 0
    %v4756 = vsel %vm3347, %v94, 0
    %v4758 = vsel %vm3347, %v95, 0
    %v4760 = vsel %vm3347, %v96, 0
    %v4762 = vsel %vm3347, %v97, 0
    %v4764 = vsel %vm3347, %v98, 0
    %v4766 = vsel %vm3347, %v99, 0
    %v4768 = vsel %vm3347, %v100, 0
    %v4770 = vsel %vm3347, %v101, 0
    %v4772 = vsel %vm3347, %v102, 0
    %v4774 = vsel %vm3347, %v103, 0
    %v4776 = vsel %vm3347, %v104, 0
    %v4778 = vsel %vm3347, %v105, 0
    %v4780 = vsel %vm3347, %v106, 0
    %v4782 = vsel %vm3347, %v107, 0
    %v4784 = vsel %vm3347, %v108, 0
    %v4786 = vsel %vm3347, %v109, 0
    %v4788 = vsel %vm3347, %v110, 0
    %v4790 = vsel %vm3347, %v111, 0
    %v4792 = vsel %vm3347, %v112, 0
    %v4794 = vsel %vm3347, %v113, 0
    %v4796 = vsel %vm3347, %v114, 0
    %v4798 = vsel %vm3347, %v115, 0
    %v4800 = vsel %vm3347, %v116, 0
    %4802 = vmatprep.subr.mxu0 0.0
    %4803 = vmatpush1.msra.mxu0 %v4663
    %4804 = vmatprep.subr.mxu0 0.0
    %4805 = vmatpush1.msra.mxu0 %v4664
    %4806 = vmatprep.subr.mxu0 0.0
    %4807 = vmatpush1.msra.mxu0 %v4665
    %4808 = vmatprep.subr.mxu0 0.0
    %4809 = vmatpush1.msra.mxu0 %v4666
    %4810 = vmatprep.subr.mxu0 0.0
    %4811 = vmatpush1.msra.mxu0 0.0
    %4812 = vmatprep.subr.mxu0 0.0
    %4813 = vmatpush1.msra.mxu0 0.0
    %4814 = vmatprep.subr.mxu0 0.0
    %4815 = vmatpush1.msra.mxu0 0.0
    %4816 = vmatprep.subr.mxu0 0.0
    %4817 = vmatpush1.msra.mxu0 0.0
    %4818 = vmatprep.subr.mxu0 0.0
    %4819 = vmatpush1.msra.mxu0 0.0
    %4820 = vmatprep.subr.mxu0 0.0
    %4821 = vmatpush1.msra.mxu0 0.0
    %4822 = vmatprep.subr.mxu0 0.0
    %4823 = vmatpush1.msra.mxu0 0.0
    %4824 = vmatprep.subr.mxu0 0.0
    %4825 = vmatpush1.msra.mxu0 0.0
    %4826 = vmatprep.subr.mxu0 0.0
    %4827 = vmatpush1.msra.mxu0 0.0
    %4828 = vmatprep.subr.mxu0 0.0
    %4829 = vmatpush1.msra.mxu0 0.0
    %4830 = vmatprep.subr.mxu0 0.0
    %4831 = vmatpush1.msra.mxu0 0.0
    %4832 = vmatprep.subr.mxu0 0.0
    %4833 = vmatpush1.msra.mxu0 0.0
    %4834 = vmatprep.subr.mxu0 0.0
    %4835 = vmatpush1.msra.mxu0 0.0
    %4836 = vmatprep.subr.mxu0 0.0
    %4837 = vmatpush1.msra.mxu0 0.0
    %4838 = vmatprep.subr.mxu0 0.0
    %4839 = vmatpush1.msra.mxu0 0.0
    %4840 = vmatprep.subr.mxu0 0.0
    %4841 = vmatpush1.msra.mxu0 0.0
    %4842 = vmatprep.subr.mxu0 0.0
    %4843 = vmatpush1.msra.mxu0 0.0
    %4844 = vmatprep.subr.mxu0 0.0
    %4845 = vmatpush1.msra.mxu0 0.0
    %4846 = vmatprep.subr.mxu0 0.0
    %4847 = vmatpush1.msra.mxu0 0.0
    %4848 = vmatprep.subr.mxu0 0.0
    %4849 = vmatpush1.msra.mxu0 0.0
    %4850 = vmatprep.subr.mxu0 0.0
    %4851 = vmatpush1.msra.mxu0 0.0
    %4852 = vmatprep.subr.mxu0 0.0
    %4853 = vmatpush1.msra.mxu0 0.0
    %4854 = vmatprep.subr.mxu0 0.0
    %4855 = vmatpush1.msra.mxu0 0.0
    %4856 = vmatprep.subr.mxu0 0.0
    %4857 = vmatpush1.msra.mxu0 0.0
    %4858 = vmatprep.subr.mxu0 0.0
    %4859 = vmatpush1.msra.mxu0 0.0
    %4860 = vmatprep.subr.mxu0 0.0
    %4861 = vmatpush1.msra.mxu0 0.0
    %4862 = vmatprep.subr.mxu0 0.0
    %4863 = vmatpush1.msra.mxu0 0.0
    %4864 = vmatprep.subr.mxu0 0.0
    %4865 = vmatpush1.msra.mxu0 0.0
    %4866 = vmatprep.mubr.f32.mxu0 0.0
    %4867 = vmatmul.mubr.f32.gmra.mrb[0].mxu0 %v4674
    %v4868 = vpop.f32.mrb[0].mxu0
    %v4869 = vadd.f32 %v4672, %v4868
    %v4870 = vpop.f32.mrb[0].mxu0
    %4871 = vmatprep.mubr.f32.mxu0 0.0
    %4872 = vmatmul.mubr.f32.gmra.mrb[0].mxu0 %v4676
    %v4873 = vpop.f32.mrb[0].mxu0
    %v4874 = vadd.f32 %v4672, %v4873
    %v4875 = vpop.f32.mrb[0].mxu0
    %4876 = vmatprep.mubr.f32.mxu0 0.0
    %4877 = vmatmul.mubr.f32.gmra.mrb[0].mxu0 %v4678
    %v4878 = vpop.f32.mrb[0].mxu0
    %v4879 = vadd.f32 %v4672, %v4878
    %v4880 = vpop.f32.mrb[0].mxu0
    %4881 = vmatprep.mubr.f32.mxu0 0.0
    %4882 = vmatmul.mubr.f32.gmra.mrb[0].mxu0 %v4680
    %v4883 = vpop.f32.mrb[0].mxu0
    %v4884 = vadd.f32 %v4672, %v4883
    %v4885 = vpop.f32.mrb[0].mxu0
    %4886 = vmatprep.mubr.f32.mxu0 0.0
    %4887 = vmatmul.mubr.f32.gmra.mrb[0].mxu0 %v4682
    %v4888 = vpop.f32.mrb[0].mxu0
    %v4889 = vadd.f32 %v4672, %v4888
    %v4890 = vpop.f32.mrb[0].mxu0
    %4891 = vmatprep.mubr.f32.mxu0 0.0
    %4892 = vmatmul.mubr.f32.gmra.mrb[0].mxu0 %v4684
    %v4893 = vpop.f32.mrb[0].mxu0
    %v4894 = vadd.f32 %v4672, %v4893
    %v4895 = vpop.f32.mrb[0].mxu0
    %4896 = vmatprep.mubr.f32.mxu0 0.0
    %4897 = vmatmul.mubr.f32.gmra.mrb[0].mxu0 %v4686
    %v4898 = vpop.f32.mrb[0].mxu0
    %v4899 = vadd.f32 %v4672, %v4898
    %v4900 = vpop.f32.mrb[0].mxu0
    %4901 = vmatprep.mubr.f32.mxu0 0.0
    %4902 = vmatmul.mubr.f32.gmra.mrb[0].mxu0 %v4688
    %v4903 = vpop.f32.mrb[0].mxu0
    %v4904 = vadd.f32 %v4672, %v4903
    %v4905 = vpop.f32.mrb[0].mxu0
    %4906 = vmatprep.mubr.f32.mxu0 0.0
    %4907 = vmatmul.mubr.f32.gmra.mrb[0].mxu0 %v4690
    %v4908 = vpop.f32.mrb[0].mxu0
    %v4909 = vadd.f32 %v4672, %v4908
    %v4910 = vpop.f32.mrb[0].mxu0
    %4911 = vmatprep.mubr.f32.mxu0 0.0
    %4912 = vmatmul.mubr.f32.gmra.mrb[0].mxu0 %v4692
    %v4913 = vpop.f32.mrb[0].mxu0
    %v4914 = vadd.f32 %v4672, %v4913
    %v4915 = vpop.f32.mrb[0].mxu0
    %4916 = vmatprep.mubr.f32.mxu0 0.0
    %4917 = vmatmul.mubr.f32.gmra.mrb[0].mxu0 %v4694
    %v4918 = vpop.f32.mrb[0].mxu0
    %v4919 = vadd.f32 %v4672, %v4918
    %v4920 = vpop.f32.mrb[0].mxu0
    %4921 = vmatprep.mubr.f32.mxu0 0.0
    %4922 = vmatmul.mubr.f32.gmra.mrb[0].mxu0 %v4696
    %v4923 = vpop.f32.mrb[0].mxu0
    %v4924 = vadd.f32 %v4672, %v4923
    %v4925 = vpop.f32.mrb[0].mxu0
    %4926 = vmatprep.mubr.f32.mxu0 0.0
    %4927 = vmatmul.mubr.f32.gmra.mrb[0].mxu0 %v4698
    %v4928 = vpop.f32.mrb[0].mxu0
    %v4929 = vadd.f32 %v4672, %v4928
    %v4930 = vpop.f32.mrb[0].mxu0
    %4931 = vmatprep.mubr.f32.mxu0 0.0
    %4932 = vmatmul.mubr.f32.gmra.mrb[0].mxu0 %v4700
    %v4933 = vpop.f32.mrb[0].mxu0
    %v4934 = vadd.f32 %v4672, %v4933
    %v4935 = vpop.f32.mrb[0].mxu0
    %4936 = vmatprep.mubr.f32.mxu0 0.0
    %4937 = vmatmul.mubr.f32.gmra.mrb[0].mxu0 %v4702
    %v4938 = vpop.f32.mrb[0].mxu0
    %v4939 = vadd.f32 %v4672, %v4938
    %v4940 = vpop.f32.mrb[0].mxu0
    %4941 = vmatprep.mubr.f32.mxu0 0.0
    %4942 = vmatmul.mubr.f32.gmra.mrb[0].mxu0 %v4704
    %v4943 = vpop.f32.mrb[0].mxu0
    %v4944 = vadd.f32 %v4672, %v4943
    %v4945 = vpop.f32.mrb[0].mxu0
    %4946 = vmatprep.mubr.f32.mxu0 0.0
    %4947 = vmatmul.mubr.f32.gmra.mrb[0].mxu0 %v4706
    %v4948 = vpop.f32.mrb[0].mxu0
    %v4949 = vadd.f32 %v4672, %v4948
    %v4950 = vpop.f32.mrb[0].mxu0
    %4951 = vmatprep.mubr.f32.mxu0 0.0
    %4952 = vmatmul.mubr.f32.gmra.mrb[0].mxu0 %v4708
    %v4953 = vpop.f32.mrb[0].mxu0
    %v4954 = vadd.f32 %v4672, %v4953
    %v4955 = vpop.f32.mrb[0].mxu0
    %4956 = vmatprep.mubr.f32.mxu0 0.0
    %4957 = vmatmul.mubr.f32.gmra.mrb[0].mxu0 %v4710
    %v4958 = vpop.f32.mrb[0].mxu0
    %v4959 = vadd.f32 %v4672, %v4958
    %v4960 = vpop.f32.mrb[0].mxu0
    %4961 = vmatprep.mubr.f32.mxu0 0.0
    %4962 = vmatmul.mubr.f32.gmra.mrb[0].mxu0 %v4712
    %v4963 = vpop.f32.mrb[0].mxu0
    %v4964 = vadd.f32 %v4672, %v4963
    %v4965 = vpop.f32.mrb[0].mxu0
    %4966 = vmatprep.mubr.f32.mxu0 0.0
    %4967 = vmatmul.mubr.f32.gmra.mrb[0].mxu0 %v4714
    %v4968 = vpop.f32.mrb[0].mxu0
    %v4969 = vadd.f32 %v4672, %v4968
    %v4970 = vpop.f32.mrb[0].mxu0
    %4971 = vmatprep.mubr.f32.mxu0 0.0
    %4972 = vmatmul.mubr.f32.gmra.mrb[0].mxu0 %v4716
    %v4973 = vpop.f32.mrb[0].mxu0
    %v4974 = vadd.f32 %v4672, %v4973
    %v4975 = vpop.f32.mrb[0].mxu0
    %4976 = vmatprep.mubr.f32.mxu0 0.0
    %4977 = vmatmul.mubr.f32.gmra.mrb[0].mxu0 %v4718
    %v4978 = vpop.f32.mrb[0].mxu0
    %v4979 = vadd.f32 %v4672, %v4978
    %v4980 = vpop.f32.mrb[0].mxu0
    %4981 = vmatprep.mubr.f32.mxu0 0.0
    %4982 = vmatmul.mubr.f32.gmra.mrb[0].mxu0 %v4720
    %v4983 = vpop.f32.mrb[0].mxu0
    %v4984 = vadd.f32 %v4672, %v4983
    %v4985 = vpop.f32.mrb[0].mxu0
    %4986 = vmatprep.mubr.f32.mxu0 0.0
    %4987 = vmatmul.mubr.f32.gmra.mrb[0].mxu0 %v4722
    %v4988 = vpop.f32.mrb[0].mxu0
    %v4989 = vadd.f32 %v4672, %v4988
    %v4990 = vpop.f32.mrb[0].mxu0
    %4991 = vmatprep.mubr.f32.mxu0 0.0
    %4992 = vmatmul.mubr.f32.gmra.mrb[0].mxu0 %v4724
    %v4993 = vpop.f32.mrb[0].mxu0
    %v4994 = vadd.f32 %v4672, %v4993
    %v4995 = vpop.f32.mrb[0].mxu0
    %4996 = vmatprep.mubr.f32.mxu0 0.0
    %4997 = vmatmul.mubr.f32.gmra.mrb[0].mxu0 %v4726
    %v4998 = vpop.f32.mrb[0].mxu0
    %v4999 = vadd.f32 %v4672, %v4998
    %v5000 = vpop.f32.mrb[0].mxu0
    %5001 = vmatprep.mubr.f32.mxu0 0.0
    %5002 = vmatmul.mubr.f32.gmra.mrb[0].mxu0 %v4728
    %v5003 = vpop.f32.mrb[0].mxu0
    %v5004 = vadd.f32 %v4672, %v5003
    %v5005 = vpop.f32.mrb[0].mxu0
    %5006 = vmatprep.mubr.f32.mxu0 0.0
    %5007 = vmatmul.mubr.f32.gmra.mrb[0].mxu0 %v4730
    %v5008 = vpop.f32.mrb[0].mxu0
    %v5009 = vadd.f32 %v4672, %v5008
    %v5010 = vpop.f32.mrb[0].mxu0
    %5011 = vmatprep.mubr.f32.mxu0 0.0
    %5012 = vmatmul.mubr.f32.gmra.mrb[0].mxu0 %v4732
    %v5013 = vpop.f32.mrb[0].mxu0
    %v5014 = vadd.f32 %v4672, %v5013
    %v5015 = vpop.f32.mrb[0].mxu0
    %5016 = vmatprep.mubr.f32.mxu0 0.0
    %5017 = vmatmul.mubr.f32.gmra.mrb[0].mxu0 %v4734
    %v5018 = vpop.f32.mrb[0].mxu0
    %v5019 = vadd.f32 %v4672, %v5018
    %v5020 = vpop.f32.mrb[0].mxu0
    %5021 = vmatprep.mubr.f32.mxu0 0.0
    %5022 = vmatmul.mubr.f32.gmra.mrb[0].mxu0 %v4736
    %v5023 = vpop.f32.mrb[0].mxu0
    %v5024 = vadd.f32 %v4672, %v5023
    %v5025 = vpop.f32.mrb[0].mxu0
    %5026 = vmatprep.mubr.f32.mxu0 0.0
    %5027 = vmatmul.mubr.f32.gmra.mrb[0].mxu0 %v4738
    %v5028 = vpop.f32.mrb[0].mxu0
    %v5029 = vadd.f32 %v4672, %v5028
    %v5030 = vpop.f32.mrb[0].mxu0
    %5031 = vmatprep.mubr.f32.mxu0 0.0
    %5032 = vmatmul.mubr.f32.gmra.mrb[0].mxu0 %v4740
    %v5033 = vpop.f32.mrb[0].mxu0
    %v5034 = vadd.f32 %v4672, %v5033
    %v5035 = vpop.f32.mrb[0].mxu0
    %5036 = vmatprep.mubr.f32.mxu0 0.0
    %5037 = vmatmul.mubr.f32.gmra.mrb[0].mxu0 %v4742
    %v5038 = vpop.f32.mrb[0].mxu0
    %v5039 = vadd.f32 %v4672, %v5038
    %v5040 = vpop.f32.mrb[0].mxu0
    %5041 = vmatprep.mubr.f32.mxu0 0.0
    %5042 = vmatmul.mubr.f32.gmra.mrb[0].mxu0 %v4744
    %v5043 = vpop.f32.mrb[0].mxu0
    %v5044 = vadd.f32 %v4672, %v5043
    %v5045 = vpop.f32.mrb[0].mxu0
    %5046 = vmatprep.mubr.f32.mxu0 0.0
    %5047 = vmatmul.mubr.f32.gmra.mrb[0].mxu0 %v4746
    %v5048 = vpop.f32.mrb[0].mxu0
    %v5049 = vadd.f32 %v4672, %v5048
    %v5050 = vpop.f32.mrb[0].mxu0
    %5051 = vmatprep.mubr.f32.mxu0 0.0
    %5052 = vmatmul.mubr.f32.gmra.mrb[0].mxu0 %v4748
    %v5053 = vpop.f32.mrb[0].mxu0
    %v5054 = vadd.f32 %v4672, %v5053
    %v5055 = vpop.f32.mrb[0].mxu0
    %5056 = vmatprep.mubr.f32.mxu0 0.0
    %5057 = vmatmul.mubr.f32.gmra.mrb[0].mxu0 %v4750
    %v5058 = vpop.f32.mrb[0].mxu0
    %v5059 = vadd.f32 %v4672, %v5058
    %v5060 = vpop.f32.mrb[0].mxu0
    %5061 = vmatprep.mubr.f32.mxu0 0.0
    %5062 = vmatmul.mubr.f32.gmra.mrb[0].mxu0 %v4752
    %v5063 = vpop.f32.mrb[0].mxu0
    %v5064 = vadd.f32 %v4672, %v5063
    %v5065 = vpop.f32.mrb[0].mxu0
    %5066 = vmatprep.mubr.f32.mxu0 0.0
    %5067 = vmatmul.mubr.f32.gmra.mrb[0].mxu0 %v4754
    %v5068 = vpop.f32.mrb[0].mxu0
    %v5069 = vadd.f32 %v4672, %v5068
    %v5070 = vpop.f32.mrb[0].mxu0
    %5071 = vmatprep.mubr.f32.mxu0 0.0
    %5072 = vmatmul.mubr.f32.gmra.mrb[0].mxu0 %v4756
    %v5073 = vpop.f32.mrb[0].mxu0
    %v5074 = vadd.f32 %v4672, %v5073
    %v5075 = vpop.f32.mrb[0].mxu0
    %5076 = vmatprep.mubr.f32.mxu0 0.0
    %5077 = vmatmul.mubr.f32.gmra.mrb[0].mxu0 %v4758
    %v5078 = vpop.f32.mrb[0].mxu0
    %v5079 = vadd.f32 %v4672, %v5078
    %v5080 = vpop.f32.mrb[0].mxu0
    %5081 = vmatprep.mubr.f32.mxu0 0.0
    %5082 = vmatmul.mubr.f32.gmra.mrb[0].mxu0 %v4760
    %v5083 = vpop.f32.mrb[0].mxu0
    %v5084 = vadd.f32 %v4672, %v5083
    %v5085 = vpop.f32.mrb[0].mxu0
    %5086 = vmatprep.mubr.f32.mxu0 0.0
    %5087 = vmatmul.mubr.f32.gmra.mrb[0].mxu0 %v4762
    %v5088 = vpop.f32.mrb[0].mxu0
    %v5089 = vadd.f32 %v4672, %v5088
    %v5090 = vpop.f32.mrb[0].mxu0
    %5091 = vmatprep.mubr.f32.mxu0 0.0
    %5092 = vmatmul.mubr.f32.gmra.mrb[0].mxu0 %v4764
    %v5093 = vpop.f32.mrb[0].mxu0
    %v5094 = vadd.f32 %v4672, %v5093
    %v5095 = vpop.f32.mrb[0].mxu0
    %5096 = vmatprep.mubr.f32.mxu0 0.0
    %5097 = vmatmul.mubr.f32.gmra.mrb[0].mxu0 %v4766
    %v5098 = vpop.f32.mrb[0].mxu0
    %v5099 = vadd.f32 %v4672, %v5098
    %v5100 = vpop.f32.mrb[0].mxu0
    %5101 = vmatprep.mubr.f32.mxu0 0.0
    %5102 = vmatmul.mubr.f32.gmra.mrb[0].mxu0 %v4768
    %v5103 = vpop.f32.mrb[0].mxu0
    %v5104 = vadd.f32 %v4672, %v5103
    %v5105 = vpop.f32.mrb[0].mxu0
    %5106 = vmatprep.mubr.f32.mxu0 0.0
    %5107 = vmatmul.mubr.f32.gmra.mrb[0].mxu0 %v4770
    %v5108 = vpop.f32.mrb[0].mxu0
    %v5109 = vadd.f32 %v4672, %v5108
    %v5110 = vpop.f32.mrb[0].mxu0
    %5111 = vmatprep.mubr.f32.mxu0 0.0
    %5112 = vmatmul.mubr.f32.gmra.mrb[0].mxu0 %v4772
    %v5113 = vpop.f32.mrb[0].mxu0
    %v5114 = vadd.f32 %v4672, %v5113
    %v5115 = vpop.f32.mrb[0].mxu0
    %5116 = vmatprep.mubr.f32.mxu0 0.0
    %5117 = vmatmul.mubr.f32.gmra.mrb[0].mxu0 %v4774
    %v5118 = vpop.f32.mrb[0].mxu0
    %v5119 = vadd.f32 %v4672, %v5118
    %v5120 = vpop.f32.mrb[0].mxu0
    %5121 = vmatprep.mubr.f32.mxu0 0.0
    %5122 = vmatmul.mubr.f32.gmra.mrb[0].mxu0 %v4776
    %v5123 = vpop.f32.mrb[0].mxu0
    %v5124 = vadd.f32 %v4672, %v5123
    %v5125 = vpop.f32.mrb[0].mxu0
    %5126 = vmatprep.mubr.f32.mxu0 0.0
    %5127 = vmatmul.mubr.f32.gmra.mrb[0].mxu0 %v4778
    %v5128 = vpop.f32.mrb[0].mxu0
    %v5129 = vadd.f32 %v4672, %v5128
    %v5130 = vpop.f32.mrb[0].mxu0
    %5131 = vmatprep.mubr.f32.mxu0 0.0
    %5132 = vmatmul.mubr.f32.gmra.mrb[0].mxu0 %v4780
    %v5133 = vpop.f32.mrb[0].mxu0
    %v5134 = vadd.f32 %v4672, %v5133
    %v5135 = vpop.f32.mrb[0].mxu0
    %5136 = vmatprep.mubr.f32.mxu0 0.0
    %5137 = vmatmul.mubr.f32.gmra.mrb[0].mxu0 %v4782
    %v5138 = vpop.f32.mrb[0].mxu0
    %v5139 = vadd.f32 %v4672, %v5138
    %v5140 = vpop.f32.mrb[0].mxu0
    %5141 = vmatprep.mubr.f32.mxu0 0.0
    %5142 = vmatmul.mubr.f32.gmra.mrb[0].mxu0 %v4784
    %v5143 = vpop.f32.mrb[0].mxu0
    %v5144 = vadd.f32 %v4672, %v5143
    %v5145 = vpop.f32.mrb[0].mxu0
    %5146 = vmatprep.mubr.f32.mxu0 0.0
    %5147 = vmatmul.mubr.f32.gmra.mrb[0].mxu0 %v4786
    %v5148 = vpop.f32.mrb[0].mxu0
    %v5149 = vadd.f32 %v4672, %v5148
    %v5150 = vpop.f32.mrb[0].mxu0
    %5151 = vmatprep.mubr.f32.mxu0 0.0
    %5152 = vmatmul.mubr.f32.gmra.mrb[0].mxu0 %v4788
    %v5153 = vpop.f32.mrb[0].mxu0
    %v5154 = vadd.f32 %v4672, %v5153
    %v5155 = vpop.f32.mrb[0].mxu0
    %5156 = vmatprep.mubr.f32.mxu0 0.0
    %5157 = vmatmul.mubr.f32.gmra.mrb[0].mxu0 %v4790
    %v5158 = vpop.f32.mrb[0].mxu0
    %v5159 = vadd.f32 %v4672, %v5158
    %v5160 = vpop.f32.mrb[0].mxu0
    %5161 = vmatprep.mubr.f32.mxu0 0.0
    %5162 = vmatmul.mubr.f32.gmra.mrb[0].mxu0 %v4792
    %v5163 = vpop.f32.mrb[0].mxu0
    %v5164 = vadd.f32 %v4672, %v5163
    %v5165 = vpop.f32.mrb[0].mxu0
    %5166 = vmatprep.mubr.f32.mxu0 0.0
    %5167 = vmatmul.mubr.f32.gmra.mrb[0].mxu0 %v4794
    %v5168 = vpop.f32.mrb[0].mxu0
    %v5169 = vadd.f32 %v4672, %v5168
    %v5170 = vpop.f32.mrb[0].mxu0
    %5171 = vmatprep.mubr.f32.mxu0 0.0
    %5172 = vmatmul.mubr.f32.gmra.mrb[0].mxu0 %v4796
    %v5173 = vpop.f32.mrb[0].mxu0
    %v5174 = vadd.f32 %v4672, %v5173
    %v5175 = vpop.f32.mrb[0].mxu0
    %5176 = vmatprep.mubr.f32.mxu0 0.0
    %5177 = vmatmul.mubr.f32.gmra.mrb[0].mxu0 %v4798
    %v5178 = vpop.f32.mrb[0].mxu0
    %v5179 = vadd.f32 %v4672, %v5178
    %v5180 = vpop.f32.mrb[0].mxu0
    %5181 = vmatprep.mubr.f32.mxu0 0.0
    %5182 = vmatmul.mubr.f32.gmra.mrb[0].mxu0 %v4800
    %v5183 = vpop.f32.mrb[0].mxu0
    %v5184 = vadd.f32 %v4672, %v5183
    %v5185 = vpop.f32.mrb[0].mxu0
    %5186 = vdwg.mxu0
    %vm5251 = vcmask 1042432
    %v5252 = vrot.slane %v4869, 5
    %v5253 = vrot.slane %v4874, 5
    %v5254 = vsel %vm5251, %v5252, %v5253
    %v5255 = vrot.slane %v4879, 5
    %v5256 = vrot.slane %v4884, 5
    %v5257 = vsel %vm5251, %v5255, %v5256
    %v5258 = vrot.slane %v4889, 5
    %v5259 = vrot.slane %v4894, 5
    %v5260 = vsel %vm5251, %v5258, %v5259
    %v5261 = vrot.slane %v4899, 5
    %v5262 = vrot.slane %v4904, 5
    %v5263 = vsel %vm5251, %v5261, %v5262
    %v5264 = vrot.slane %v4909, 5
    %v5265 = vrot.slane %v4914, 5
    %v5266 = vsel %vm5251, %v5264, %v5265
    %v5267 = vrot.slane %v4919, 5
    %v5268 = vrot.slane %v4924, 5
    %v5269 = vsel %vm5251, %v5267, %v5268
    %v5270 = vrot.slane %v4929, 5
    %v5271 = vrot.slane %v4934, 5
    %v5272 = vsel %vm5251, %v5270, %v5271
    %v5273 = vrot.slane %v4939, 5
    %v5274 = vrot.slane %v4944, 5
    %v5275 = vsel %vm5251, %v5273, %v5274
    %v5276 = vrot.slane %v4949, 5
    %v5277 = vrot.slane %v4954, 5
    %v5278 = vsel %vm5251, %v5276, %v5277
    %v5279 = vrot.slane %v4959, 5
    %v5280 = vrot.slane %v4964, 5
    %v5281 = vsel %vm5251, %v5279, %v5280
    %v5282 = vrot.slane %v4969, 5
    %v5283 = vrot.slane %v4974, 5
    %v5284 = vsel %vm5251, %v5282, %v5283
    %v5285 = vrot.slane %v4979, 5
    %v5286 = vrot.slane %v4984, 5
    %v5287 = vsel %vm5251, %v5285, %v5286
    %v5288 = vrot.slane %v4989, 5
    %v5289 = vrot.slane %v4994, 5
    %v5290 = vsel %vm5251, %v5288, %v5289
    %v5291 = vrot.slane %v4999, 5
    %v5292 = vrot.slane %v5004, 5
    %v5293 = vsel %vm5251, %v5291, %v5292
    %v5294 = vrot.slane %v5009, 5
    %v5295 = vrot.slane %v5014, 5
    %v5296 = vsel %vm5251, %v5294, %v5295
    %v5297 = vrot.slane %v5019, 5
    %v5298 = vrot.slane %v5024, 5
    %v5299 = vsel %vm5251, %v5297, %v5298
    %v5300 = vrot.slane %v5029, 5
    %v5301 = vrot.slane %v5034, 5
    %v5302 = vsel %vm5251, %v5300, %v5301
    %v5303 = vrot.slane %v5039, 5
    %v5304 = vrot.slane %v5044, 5
    %v5305 = vsel %vm5251, %v5303, %v5304
    %v5306 = vrot.slane %v5049, 5
    %v5307 = vrot.slane %v5054, 5
    %v5308 = vsel %vm5251, %v5306, %v5307
    %v5309 = vrot.slane %v5059, 5
    %v5310 = vrot.slane %v5064, 5
    %v5311 = vsel %vm5251, %v5309, %v5310
    %v5312 = vrot.slane %v5069, 5
    %v5313 = vrot.slane %v5074, 5
    %v5314 = vsel %vm5251, %v5312, %v5313
    %v5315 = vrot.slane %v5079, 5
    %v5316 = vrot.slane %v5084, 5
    %v5317 = vsel %vm5251, %v5315, %v5316
    %v5318 = vrot.slane %v5089, 5
    %v5319 = vrot.slane %v5094, 5
    %v5320 = vsel %vm5251, %v5318, %v5319
    %v5321 = vrot.slane %v5099, 5
    %v5322 = vrot.slane %v5104, 5
    %v5323 = vsel %vm5251, %v5321, %v5322
    %v5324 = vrot.slane %v5109, 5
    %v5325 = vrot.slane %v5114, 5
    %v5326 = vsel %vm5251, %v5324, %v5325
    %v5327 = vrot.slane %v5119, 5
    %v5328 = vrot.slane %v5124, 5
    %v5329 = vsel %vm5251, %v5327, %v5328
    %v5330 = vrot.slane %v5129, 5
    %v5331 = vrot.slane %v5134, 5
    %v5332 = vsel %vm5251, %v5330, %v5331
    %v5333 = vrot.slane %v5139, 5
    %v5334 = vrot.slane %v5144, 5
    %v5335 = vsel %vm5251, %v5333, %v5334
    %v5336 = vrot.slane %v5149, 5
    %v5337 = vrot.slane %v5154, 5
    %v5338 = vsel %vm5251, %v5336, %v5337
    %v5339 = vrot.slane %v5159, 5
    %v5340 = vrot.slane %v5164, 5
    %v5341 = vsel %vm5251, %v5339, %v5340
    %v5342 = vrot.slane %v5169, 5
    %v5343 = vrot.slane %v5174, 5
    %v5344 = vsel %vm5251, %v5342, %v5343
    %v5345 = vrot.slane %v5179, 5
    %v5346 = vrot.slane %v5184, 5
    %v5347 = vsel %vm5251, %v5345, %v5346
    %v5444 = vsel %vm5251, 0.0, %v5252
    %v5445 = vsel %vm5251, 0.0, %v5255
    %v5446 = vsel %vm5251, 0.0, %v5258
    %v5447 = vsel %vm5251, 0.0, %v5261
    %v5448 = vsel %vm5251, 0.0, %v5264
    %v5449 = vsel %vm5251, 0.0, %v5267
    %v5450 = vsel %vm5251, 0.0, %v5270
    %v5451 = vsel %vm5251, 0.0, %v5273
    %v5452 = vsel %vm5251, 0.0, %v5276
    %v5453 = vsel %vm5251, 0.0, %v5279
    %v5454 = vsel %vm5251, 0.0, %v5282
    %v5455 = vsel %vm5251, 0.0, %v5285
    %v5456 = vsel %vm5251, 0.0, %v5288
    %v5457 = vsel %vm5251, 0.0, %v5291
    %v5458 = vsel %vm5251, 0.0, %v5294
    %v5459 = vsel %vm5251, 0.0, %v5297
    %v5460 = vsel %vm5251, 0.0, %v5300
    %v5461 = vsel %vm5251, 0.0, %v5303
    %v5462 = vsel %vm5251, 0.0, %v5306
    %v5463 = vsel %vm5251, 0.0, %v5309
    %v5464 = vsel %vm5251, 0.0, %v5312
    %v5465 = vsel %vm5251, 0.0, %v5315
    %v5466 = vsel %vm5251, 0.0, %v5318
    %v5467 = vsel %vm5251, 0.0, %v5321
    %v5468 = vsel %vm5251, 0.0, %v5324
    %v5469 = vsel %vm5251, 0.0, %v5327
    %v5470 = vsel %vm5251, 0.0, %v5330
    %v5471 = vsel %vm5251, 0.0, %v5333
    %v5472 = vsel %vm5251, 0.0, %v5336
    %v5473 = vsel %vm5251, 0.0, %v5339
    %v5474 = vsel %vm5251, 0.0, %v5342
    %v5475 = vsel %vm5251, 0.0, %v5345
    %v5476 = vsel %vm5251, %v5253, 0.0
    %v5477 = vsel %vm5251, %v5256, 0.0
    %v5478 = vsel %vm5251, %v5259, 0.0
    %v5479 = vsel %vm5251, %v5262, 0.0
    %v5480 = vsel %vm5251, %v5265, 0.0
    %v5481 = vsel %vm5251, %v5268, 0.0
    %v5482 = vsel %vm5251, %v5271, 0.0
    %v5483 = vsel %vm5251, %v5274, 0.0
    %v5484 = vsel %vm5251, %v5277, 0.0
    %v5485 = vsel %vm5251, %v5280, 0.0
    %v5486 = vsel %vm5251, %v5283, 0.0
    %v5487 = vsel %vm5251, %v5286, 0.0
    %v5488 = vsel %vm5251, %v5289, 0.0
    %v5489 = vsel %vm5251, %v5292, 0.0
    %v5490 = vsel %vm5251, %v5295, 0.0
    %v5491 = vsel %vm5251, %v5298, 0.0
    %v5492 = vsel %vm5251, %v5301, 0.0
    %v5493 = vsel %vm5251, %v5304, 0.0
    %v5494 = vsel %vm5251, %v5307, 0.0
    %v5495 = vsel %vm5251, %v5310, 0.0
    %v5496 = vsel %vm5251, %v5313, 0.0
    %v5497 = vsel %vm5251, %v5316, 0.0
    %v5498 = vsel %vm5251, %v5319, 0.0
    %v5499 = vsel %vm5251, %v5322, 0.0
    %v5500 = vsel %vm5251, %v5325, 0.0
    %v5501 = vsel %vm5251, %v5328, 0.0
    %v5502 = vsel %vm5251, %v5331, 0.0
    %v5503 = vsel %vm5251, %v5334, 0.0
    %v5504 = vsel %vm5251, %v5337, 0.0
    %v5505 = vsel %vm5251, %v5340, 0.0
    %v5506 = vsel %vm5251, %v5343, 0.0
    %v5507 = vsel %vm5251, %v5346, 0.0
    %v5572 = vrot.slane %v5444, 1
    %v5573 = vrot.slane %v5254, 1
    %v5574 = vsel %vm499, %v5572, %v5573
    %v5575 = vrot.slane %v5476, 1
    %v5576 = vsel %vm499, %v5573, %v5575
    %v5577 = vrot.slane %v5445, 1
    %v5578 = vrot.slane %v5257, 1
    %v5579 = vsel %vm499, %v5577, %v5578
    %v5580 = vrot.slane %v5477, 1
    %v5581 = vsel %vm499, %v5578, %v5580
    %v5582 = vrot.slane %v5446, 1
    %v5583 = vrot.slane %v5260, 1
    %v5584 = vsel %vm499, %v5582, %v5583
    %v5585 = vrot.slane %v5478, 1
    %v5586 = vsel %vm499, %v5583, %v5585
    %v5587 = vrot.slane %v5447, 1
    %v5588 = vrot.slane %v5263, 1
    %v5589 = vsel %vm499, %v5587, %v5588
    %v5590 = vrot.slane %v5479, 1
    %v5591 = vsel %vm499, %v5588, %v5590
    %v5592 = vrot.slane %v5448, 1
    %v5593 = vrot.slane %v5266, 1
    %v5594 = vsel %vm499, %v5592, %v5593
    %v5595 = vrot.slane %v5480, 1
    %v5596 = vsel %vm499, %v5593, %v5595
    %v5597 = vrot.slane %v5449, 1
    %v5598 = vrot.slane %v5269, 1
    %v5599 = vsel %vm499, %v5597, %v5598
    %v5600 = vrot.slane %v5481, 1
    %v5601 = vsel %vm499, %v5598, %v5600
    %v5602 = vrot.slane %v5450, 1
    %v5603 = vrot.slane %v5272, 1
    %v5604 = vsel %vm499, %v5602, %v5603
    %v5605 = vrot.slane %v5482, 1
    %v5606 = vsel %vm499, %v5603, %v5605
    %v5607 = vrot.slane %v5451, 1
    %v5608 = vrot.slane %v5275, 1
    %v5609 = vsel %vm499, %v5607, %v5608
    %v5610 = vrot.slane %v5483, 1
    %v5611 = vsel %vm499, %v5608, %v5610
    %v5612 = vrot.slane %v5452, 1
    %v5613 = vrot.slane %v5278, 1
    %v5614 = vsel %vm499, %v5612, %v5613
    %v5615 = vrot.slane %v5484, 1
    %v5616 = vsel %vm499, %v5613, %v5615
    %v5617 = vrot.slane %v5453, 1
    %v5618 = vrot.slane %v5281, 1
    %v5619 = vsel %vm499, %v5617, %v5618
    %v5620 = vrot.slane %v5485, 1
    %v5621 = vsel %vm499, %v5618, %v5620
    %v5622 = vrot.slane %v5454, 1
    %v5623 = vrot.slane %v5284, 1
    %v5624 = vsel %vm499, %v5622, %v5623
    %v5625 = vrot.slane %v5486, 1
    %v5626 = vsel %vm499, %v5623, %v5625
    %v5627 = vrot.slane %v5455, 1
    %v5628 = vrot.slane %v5287, 1
    %v5629 = vsel %vm499, %v5627, %v5628
    %v5630 = vrot.slane %v5487, 1
    %v5631 = vsel %vm499, %v5628, %v5630
    %v5632 = vrot.slane %v5456, 1
    %v5633 = vrot.slane %v5290, 1
    %v5634 = vsel %vm499, %v5632, %v5633
    %v5635 = vrot.slane %v5488, 1
    %v5636 = vsel %vm499, %v5633, %v5635
    %v5637 = vrot.slane %v5457, 1
    %v5638 = vrot.slane %v5293, 1
    %v5639 = vsel %vm499, %v5637, %v5638
    %v5640 = vrot.slane %v5489, 1
    %v5641 = vsel %vm499, %v5638, %v5640
    %v5642 = vrot.slane %v5458, 1
    %v5643 = vrot.slane %v5296, 1
    %v5644 = vsel %vm499, %v5642, %v5643
    %v5645 = vrot.slane %v5490, 1
    %v5646 = vsel %vm499, %v5643, %v5645
    %v5647 = vrot.slane %v5459, 1
    %v5648 = vrot.slane %v5299, 1
    %v5649 = vsel %vm499, %v5647, %v5648
    %v5650 = vrot.slane %v5491, 1
    %v5651 = vsel %vm499, %v5648, %v5650
    %v5652 = vrot.slane %v5460, 1
    %v5653 = vrot.slane %v5302, 1
    %v5654 = vsel %vm499, %v5652, %v5653
    %v5655 = vrot.slane %v5492, 1
    %v5656 = vsel %vm499, %v5653, %v5655
    %v5657 = vrot.slane %v5461, 1
    %v5658 = vrot.slane %v5305, 1
    %v5659 = vsel %vm499, %v5657, %v5658
    %v5660 = vrot.slane %v5493, 1
    %v5661 = vsel %vm499, %v5658, %v5660
    %v5662 = vrot.slane %v5462, 1
    %v5663 = vrot.slane %v5308, 1
    %v5664 = vsel %vm499, %v5662, %v5663
    %v5665 = vrot.slane %v5494, 1
    %v5666 = vsel %vm499, %v5663, %v5665
    %v5667 = vrot.slane %v5463, 1
    %v5668 = vrot.slane %v5311, 1
    %v5669 = vsel %vm499, %v5667, %v5668
    %v5670 = vrot.slane %v5495, 1
    %v5671 = vsel %vm499, %v5668, %v5670
    %v5672 = vrot.slane %v5464, 1
    %v5673 = vrot.slane %v5314, 1
    %v5674 = vsel %vm499, %v5672, %v5673
    %v5675 = vrot.slane %v5496, 1
    %v5676 = vsel %vm499, %v5673, %v5675
    %v5677 = vrot.slane %v5465, 1
    %v5678 = vrot.slane %v5317, 1
    %v5679 = vsel %vm499, %v5677, %v5678
    %v5680 = vrot.slane %v5497, 1
    %v5681 = vsel %vm499, %v5678, %v5680
    %v5682 = vrot.slane %v5466, 1
    %v5683 = vrot.slane %v5320, 1
    %v5684 = vsel %vm499, %v5682, %v5683
    %v5685 = vrot.slane %v5498, 1
    %v5686 = vsel %vm499, %v5683, %v5685
    %v5687 = vrot.slane %v5467, 1
    %v5688 = vrot.slane %v5323, 1
    %v5689 = vsel %vm499, %v5687, %v5688
    %v5690 = vrot.slane %v5499, 1
    %v5691 = vsel %vm499, %v5688, %v5690
    %v5692 = vrot.slane %v5468, 1
    %v5693 = vrot.slane %v5326, 1
    %v5694 = vsel %vm499, %v5692, %v5693
    %v5695 = vrot.slane %v5500, 1
    %v5696 = vsel %vm499, %v5693, %v5695
    %v5697 = vrot.slane %v5469, 1
    %v5698 = vrot.slane %v5329, 1
    %v5699 = vsel %vm499, %v5697, %v5698
    %v5700 = vrot.slane %v5501, 1
    %v5701 = vsel %vm499, %v5698, %v5700
    %v5702 = vrot.slane %v5470, 1
    %v5703 = vrot.slane %v5332, 1
    %v5704 = vsel %vm499, %v5702, %v5703
    %v5705 = vrot.slane %v5502, 1
    %v5706 = vsel %vm499, %v5703, %v5705
    %v5707 = vrot.slane %v5471, 1
    %v5708 = vrot.slane %v5335, 1
    %v5709 = vsel %vm499, %v5707, %v5708
    %v5710 = vrot.slane %v5503, 1
    %v5711 = vsel %vm499, %v5708, %v5710
    %v5712 = vrot.slane %v5472, 1
    %v5713 = vrot.slane %v5338, 1
    %v5714 = vsel %vm499, %v5712, %v5713
    %v5715 = vrot.slane %v5504, 1
    %v5716 = vsel %vm499, %v5713, %v5715
    %v5717 = vrot.slane %v5473, 1
    %v5718 = vrot.slane %v5341, 1
    %v5719 = vsel %vm499, %v5717, %v5718
    %v5720 = vrot.slane %v5505, 1
    %v5721 = vsel %vm499, %v5718, %v5720
    %v5722 = vrot.slane %v5474, 1
    %v5723 = vrot.slane %v5344, 1
    %v5724 = vsel %vm499, %v5722, %v5723
    %v5725 = vrot.slane %v5506, 1
    %v5726 = vsel %vm499, %v5723, %v5725
    %v5727 = vrot.slane %v5475, 1
    %v5728 = vrot.slane %v5347, 1
    %v5729 = vsel %vm499, %v5727, %v5728
    %v5730 = vrot.slane %v5507, 1
    %v5731 = vsel %vm499, %v5728, %v5730
    %5732 = vrot.lane.b32.xlu0 %v5574, 2
    %v5733 = vpop.permute.xlu0 %5732
    %5734 = vrot.lane.b32.xlu0 %v5576, 2
    %v5735 = vpop.permute.xlu0 %5734
    %5736 = vrot.lane.b32.xlu0 %v5579, 2
    %v5737 = vpop.permute.xlu0 %5736
    %5738 = vrot.lane.b32.xlu0 %v5581, 2
    %v5739 = vpop.permute.xlu0 %5738
    %5740 = vrot.lane.b32.xlu0 %v5584, 2
    %v5741 = vpop.permute.xlu0 %5740
    %5742 = vrot.lane.b32.xlu0 %v5586, 2
    %v5743 = vpop.permute.xlu0 %5742
    %5744 = vrot.lane.b32.xlu0 %v5589, 2
    %v5745 = vpop.permute.xlu0 %5744
    %5746 = vrot.lane.b32.xlu0 %v5591, 2
    %v5747 = vpop.permute.xlu0 %5746
    %5748 = vrot.lane.b32.xlu0 %v5594, 2
    %v5749 = vpop.permute.xlu0 %5748
    %5750 = vrot.lane.b32.xlu0 %v5596, 2
    %v5751 = vpop.permute.xlu0 %5750
    %5752 = vrot.lane.b32.xlu0 %v5599, 2
    %v5753 = vpop.permute.xlu0 %5752
    %5754 = vrot.lane.b32.xlu0 %v5601, 2
    %v5755 = vpop.permute.xlu0 %5754
    %5756 = vrot.lane.b32.xlu0 %v5604, 2
    %v5757 = vpop.permute.xlu0 %5756
    %5758 = vrot.lane.b32.xlu0 %v5606, 2
    %v5759 = vpop.permute.xlu0 %5758
    %5760 = vrot.lane.b32.xlu0 %v5609, 2
    %v5761 = vpop.permute.xlu0 %5760
    %5762 = vrot.lane.b32.xlu0 %v5611, 2
    %v5763 = vpop.permute.xlu0 %5762
    %5764 = vrot.lane.b32.xlu0 %v5614, 2
    %v5765 = vpop.permute.xlu0 %5764
    %5766 = vrot.lane.b32.xlu0 %v5616, 2
    %v5767 = vpop.permute.xlu0 %5766
    %5768 = vrot.lane.b32.xlu0 %v5619, 2
    %v5769 = vpop.permute.xlu0 %5768
    %5770 = vrot.lane.b32.xlu0 %v5621, 2
    %v5771 = vpop.permute.xlu0 %5770
    %5772 = vrot.lane.b32.xlu0 %v5624, 2
    %v5773 = vpop.permute.xlu0 %5772
    %5774 = vrot.lane.b32.xlu0 %v5626, 2
    %v5775 = vpop.permute.xlu0 %5774
    %5776 = vrot.lane.b32.xlu0 %v5629, 2
    %v5777 = vpop.permute.xlu0 %5776
    %5778 = vrot.lane.b32.xlu0 %v5631, 2
    %v5779 = vpop.permute.xlu0 %5778
    %5780 = vrot.lane.b32.xlu0 %v5634, 2
    %v5781 = vpop.permute.xlu0 %5780
    %5782 = vrot.lane.b32.xlu0 %v5636, 2
    %v5783 = vpop.permute.xlu0 %5782
    %5784 = vrot.lane.b32.xlu0 %v5639, 2
    %v5785 = vpop.permute.xlu0 %5784
    %5786 = vrot.lane.b32.xlu0 %v5641, 2
    %v5787 = vpop.permute.xlu0 %5786
    %5788 = vrot.lane.b32.xlu0 %v5644, 2
    %v5789 = vpop.permute.xlu0 %5788
    %5790 = vrot.lane.b32.xlu0 %v5646, 2
    %v5791 = vpop.permute.xlu0 %5790
    %5792 = vrot.lane.b32.xlu0 %v5649, 2
    %v5793 = vpop.permute.xlu0 %5792
    %5794 = vrot.lane.b32.xlu0 %v5651, 2
    %v5795 = vpop.permute.xlu0 %5794
    %5796 = vrot.lane.b32.xlu0 %v5654, 2
    %v5797 = vpop.permute.xlu0 %5796
    %5798 = vrot.lane.b32.xlu0 %v5656, 2
    %v5799 = vpop.permute.xlu0 %5798
    %5800 = vrot.lane.b32.xlu0 %v5659, 2
    %v5801 = vpop.permute.xlu0 %5800
    %5802 = vrot.lane.b32.xlu0 %v5661, 2
    %v5803 = vpop.permute.xlu0 %5802
    %5804 = vrot.lane.b32.xlu0 %v5664, 2
    %v5805 = vpop.permute.xlu0 %5804
    %5806 = vrot.lane.b32.xlu0 %v5666, 2
    %v5807 = vpop.permute.xlu0 %5806
    %5808 = vrot.lane.b32.xlu0 %v5669, 2
    %v5809 = vpop.permute.xlu0 %5808
    %5810 = vrot.lane.b32.xlu0 %v5671, 2
    %v5811 = vpop.permute.xlu0 %5810
    %5812 = vrot.lane.b32.xlu0 %v5674, 2
    %v5813 = vpop.permute.xlu0 %5812
    %5814 = vrot.lane.b32.xlu0 %v5676, 2
    %v5815 = vpop.permute.xlu0 %5814
    %5816 = vrot.lane.b32.xlu0 %v5679, 2
    %v5817 = vpop.permute.xlu0 %5816
    %5818 = vrot.lane.b32.xlu0 %v5681, 2
    %v5819 = vpop.permute.xlu0 %5818
    %5820 = vrot.lane.b32.xlu0 %v5684, 2
    %v5821 = vpop.permute.xlu0 %5820
    %5822 = vrot.lane.b32.xlu0 %v5686, 2
    %v5823 = vpop.permute.xlu0 %5822
    %5824 = vrot.lane.b32.xlu0 %v5689, 2
    %v5825 = vpop.permute.xlu0 %5824
    %5826 = vrot.lane.b32.xlu0 %v5691, 2
    %v5827 = vpop.permute.xlu0 %5826
    %5828 = vrot.lane.b32.xlu0 %v5694, 2
    %v5829 = vpop.permute.xlu0 %5828
    %5830 = vrot.lane.b32.xlu0 %v5696, 2
    %v5831 = vpop.permute.xlu0 %5830
    %5832 = vrot.lane.b32.xlu0 %v5699, 2
    %v5833 = vpop.permute.xlu0 %5832
    %5834 = vrot.lane.b32.xlu0 %v5701, 2
    %v5835 = vpop.permute.xlu0 %5834
    %5836 = vrot.lane.b32.xlu0 %v5704, 2
    %v5837 = vpop.permute.xlu0 %5836
    %5838 = vrot.lane.b32.xlu0 %v5706, 2
    %v5839 = vpop.permute.xlu0 %5838
    %5840 = vrot.lane.b32.xlu0 %v5709, 2
    %v5841 = vpop.permute.xlu0 %5840
    %5842 = vrot.lane.b32.xlu0 %v5711, 2
    %v5843 = vpop.permute.xlu0 %5842
    %5844 = vrot.lane.b32.xlu0 %v5714, 2
    %v5845 = vpop.permute.xlu0 %5844
    %5846 = vrot.lane.b32.xlu0 %v5716, 2
    %v5847 = vpop.permute.xlu0 %5846
    %5848 = vrot.lane.b32.xlu0 %v5719, 2
    %v5849 = vpop.permute.xlu0 %5848
    %5850 = vrot.lane.b32.xlu0 %v5721, 2
    %v5851 = vpop.permute.xlu0 %5850
    %5852 = vrot.lane.b32.xlu0 %v5724, 2
    %v5853 = vpop.permute.xlu0 %5852
    %5854 = vrot.lane.b32.xlu0 %v5726, 2
    %v5855 = vpop.permute.xlu0 %5854
    %5856 = vrot.lane.b32.xlu0 %v5729, 2
    %v5857 = vpop.permute.xlu0 %5856
    %5858 = vrot.lane.b32.xlu0 %v5731, 2
    %v5859 = vpop.permute.xlu0 %5858
    %v5924 = vrot.slane %v5444, 2
    %v5925 = vrot.slane %v5254, 2
    %v5926 = vsel %vm773, %v5924, %v5925
    %v5927 = vrot.slane %v5476, 2
    %v5928 = vsel %vm773, %v5925, %v5927
    %v5929 = vrot.slane %v5445, 2
    %v5930 = vrot.slane %v5257, 2
    %v5931 = vsel %vm773, %v5929, %v5930
    %v5932 = vrot.slane %v5477, 2
    %v5933 = vsel %vm773, %v5930, %v5932
    %v5934 = vrot.slane %v5446, 2
    %v5935 = vrot.slane %v5260, 2
    %v5936 = vsel %vm773, %v5934, %v5935
    %v5937 = vrot.slane %v5478, 2
    %v5938 = vsel %vm773, %v5935, %v5937
    %v5939 = vrot.slane %v5447, 2
    %v5940 = vrot.slane %v5263, 2
    %v5941 = vsel %vm773, %v5939, %v5940
    %v5942 = vrot.slane %v5479, 2
    %v5943 = vsel %vm773, %v5940, %v5942
    %v5944 = vrot.slane %v5448, 2
    %v5945 = vrot.slane %v5266, 2
    %v5946 = vsel %vm773, %v5944, %v5945
    %v5947 = vrot.slane %v5480, 2
    %v5948 = vsel %vm773, %v5945, %v5947
    %v5949 = vrot.slane %v5449, 2
    %v5950 = vrot.slane %v5269, 2
    %v5951 = vsel %vm773, %v5949, %v5950
    %v5952 = vrot.slane %v5481, 2
    %v5953 = vsel %vm773, %v5950, %v5952
    %v5954 = vrot.slane %v5450, 2
    %v5955 = vrot.slane %v5272, 2
    %v5956 = vsel %vm773, %v5954, %v5955
    %v5957 = vrot.slane %v5482, 2
    %v5958 = vsel %vm773, %v5955, %v5957
    %v5959 = vrot.slane %v5451, 2
    %v5960 = vrot.slane %v5275, 2
    %v5961 = vsel %vm773, %v5959, %v5960
    %v5962 = vrot.slane %v5483, 2
    %v5963 = vsel %vm773, %v5960, %v5962
    %v5964 = vrot.slane %v5452, 2
    %v5965 = vrot.slane %v5278, 2
    %v5966 = vsel %vm773, %v5964, %v5965
    %v5967 = vrot.slane %v5484, 2
    %v5968 = vsel %vm773, %v5965, %v5967
    %v5969 = vrot.slane %v5453, 2
    %v5970 = vrot.slane %v5281, 2
    %v5971 = vsel %vm773, %v5969, %v5970
    %v5972 = vrot.slane %v5485, 2
    %v5973 = vsel %vm773, %v5970, %v5972
    %v5974 = vrot.slane %v5454, 2
    %v5975 = vrot.slane %v5284, 2
    %v5976 = vsel %vm773, %v5974, %v5975
    %v5977 = vrot.slane %v5486, 2
    %v5978 = vsel %vm773, %v5975, %v5977
    %v5979 = vrot.slane %v5455, 2
    %v5980 = vrot.slane %v5287, 2
    %v5981 = vsel %vm773, %v5979, %v5980
    %v5982 = vrot.slane %v5487, 2
    %v5983 = vsel %vm773, %v5980, %v5982
    %v5984 = vrot.slane %v5456, 2
    %v5985 = vrot.slane %v5290, 2
    %v5986 = vsel %vm773, %v5984, %v5985
    %v5987 = vrot.slane %v5488, 2
    %v5988 = vsel %vm773, %v5985, %v5987
    %v5989 = vrot.slane %v5457, 2
    %v5990 = vrot.slane %v5293, 2
    %v5991 = vsel %vm773, %v5989, %v5990
    %v5992 = vrot.slane %v5489, 2
    %v5993 = vsel %vm773, %v5990, %v5992
    %v5994 = vrot.slane %v5458, 2
    %v5995 = vrot.slane %v5296, 2
    %v5996 = vsel %vm773, %v5994, %v5995
    %v5997 = vrot.slane %v5490, 2
    %v5998 = vsel %vm773, %v5995, %v5997
    %v5999 = vrot.slane %v5459, 2
    %v6000 = vrot.slane %v5299, 2
    %v6001 = vsel %vm773, %v5999, %v6000
    %v6002 = vrot.slane %v5491, 2
    %v6003 = vsel %vm773, %v6000, %v6002
    %v6004 = vrot.slane %v5460, 2
    %v6005 = vrot.slane %v5302, 2
    %v6006 = vsel %vm773, %v6004, %v6005
    %v6007 = vrot.slane %v5492, 2
    %v6008 = vsel %vm773, %v6005, %v6007
    %v6009 = vrot.slane %v5461, 2
    %v6010 = vrot.slane %v5305, 2
    %v6011 = vsel %vm773, %v6009, %v6010
    %v6012 = vrot.slane %v5493, 2
    %v6013 = vsel %vm773, %v6010, %v6012
    %v6014 = vrot.slane %v5462, 2
    %v6015 = vrot.slane %v5308, 2
    %v6016 = vsel %vm773, %v6014, %v6015
    %v6017 = vrot.slane %v5494, 2
    %v6018 = vsel %vm773, %v6015, %v6017
    %v6019 = vrot.slane %v5463, 2
    %v6020 = vrot.slane %v5311, 2
    %v6021 = vsel %vm773, %v6019, %v6020
    %v6022 = vrot.slane %v5495, 2
    %v6023 = vsel %vm773, %v6020, %v6022
    %v6024 = vrot.slane %v5464, 2
    %v6025 = vrot.slane %v5314, 2
    %v6026 = vsel %vm773, %v6024, %v6025
    %v6027 = vrot.slane %v5496, 2
    %v6028 = vsel %vm773, %v6025, %v6027
    %v6029 = vrot.slane %v5465, 2
    %v6030 = vrot.slane %v5317, 2
    %v6031 = vsel %vm773, %v6029, %v6030
    %v6032 = vrot.slane %v5497, 2
    %v6033 = vsel %vm773, %v6030, %v6032
    %v6034 = vrot.slane %v5466, 2
    %v6035 = vrot.slane %v5320, 2
    %v6036 = vsel %vm773, %v6034, %v6035
    %v6037 = vrot.slane %v5498, 2
    %v6038 = vsel %vm773, %v6035, %v6037
    %v6039 = vrot.slane %v5467, 2
    %v6040 = vrot.slane %v5323, 2
    %v6041 = vsel %vm773, %v6039, %v6040
    %v6042 = vrot.slane %v5499, 2
    %v6043 = vsel %vm773, %v6040, %v6042
    %v6044 = vrot.slane %v5468, 2
    %v6045 = vrot.slane %v5326, 2
    %v6046 = vsel %vm773, %v6044, %v6045
    %v6047 = vrot.slane %v5500, 2
    %v6048 = vsel %vm773, %v6045, %v6047
    %v6049 = vrot.slane %v5469, 2
    %v6050 = vrot.slane %v5329, 2
    %v6051 = vsel %vm773, %v6049, %v6050
    %v6052 = vrot.slane %v5501, 2
    %v6053 = vsel %vm773, %v6050, %v6052
    %v6054 = vrot.slane %v5470, 2
    %v6055 = vrot.slane %v5332, 2
    %v6056 = vsel %vm773, %v6054, %v6055
    %v6057 = vrot.slane %v5502, 2
    %v6058 = vsel %vm773, %v6055, %v6057
    %v6059 = vrot.slane %v5471, 2
    %v6060 = vrot.slane %v5335, 2
    %v6061 = vsel %vm773, %v6059, %v6060
    %v6062 = vrot.slane %v5503, 2
    %v6063 = vsel %vm773, %v6060, %v6062
    %v6064 = vrot.slane %v5472, 2
    %v6065 = vrot.slane %v5338, 2
    %v6066 = vsel %vm773, %v6064, %v6065
    %v6067 = vrot.slane %v5504, 2
    %v6068 = vsel %vm773, %v6065, %v6067
    %v6069 = vrot.slane %v5473, 2
    %v6070 = vrot.slane %v5341, 2
    %v6071 = vsel %vm773, %v6069, %v6070
    %v6072 = vrot.slane %v5505, 2
    %v6073 = vsel %vm773, %v6070, %v6072
    %v6074 = vrot.slane %v5474, 2
    %v6075 = vrot.slane %v5344, 2
    %v6076 = vsel %vm773, %v6074, %v6075
    %v6077 = vrot.slane %v5506, 2
    %v6078 = vsel %vm773, %v6075, %v6077
    %v6079 = vrot.slane %v5475, 2
    %v6080 = vrot.slane %v5347, 2
    %v6081 = vsel %vm773, %v6079, %v6080
    %v6082 = vrot.slane %v5507, 2
    %v6083 = vsel %vm773, %v6080, %v6082
    %6084 = vrot.lane.b32.xlu0 %v5926, 4
    %v6085 = vpop.permute.xlu0 %6084
    %6086 = vrot.lane.b32.xlu0 %v5928, 4
    %v6087 = vpop.permute.xlu0 %6086
    %6088 = vrot.lane.b32.xlu0 %v5931, 4
    %v6089 = vpop.permute.xlu0 %6088
    %6090 = vrot.lane.b32.xlu0 %v5933, 4
    %v6091 = vpop.permute.xlu0 %6090
    %6092 = vrot.lane.b32.xlu0 %v5936, 4
    %v6093 = vpop.permute.xlu0 %6092
    %6094 = vrot.lane.b32.xlu0 %v5938, 4
    %v6095 = vpop.permute.xlu0 %6094
    %6096 = vrot.lane.b32.xlu0 %v5941, 4
    %v6097 = vpop.permute.xlu0 %6096
    %6098 = vrot.lane.b32.xlu0 %v5943, 4
    %v6099 = vpop.permute.xlu0 %6098
    %6100 = vrot.lane.b32.xlu0 %v5946, 4
    %v6101 = vpop.permute.xlu0 %6100
    %6102 = vrot.lane.b32.xlu0 %v5948, 4
    %v6103 = vpop.permute.xlu0 %6102
    %6104 = vrot.lane.b32.xlu0 %v5951, 4
    %v6105 = vpop.permute.xlu0 %6104
    %6106 = vrot.lane.b32.xlu0 %v5953, 4
    %v6107 = vpop.permute.xlu0 %6106
    %6108 = vrot.lane.b32.xlu0 %v5956, 4
    %v6109 = vpop.permute.xlu0 %6108
    %6110 = vrot.lane.b32.xlu0 %v5958, 4
    %v6111 = vpop.permute.xlu0 %6110
    %6112 = vrot.lane.b32.xlu0 %v5961, 4
    %v6113 = vpop.permute.xlu0 %6112
    %6114 = vrot.lane.b32.xlu0 %v5963, 4
    %v6115 = vpop.permute.xlu0 %6114
    %6116 = vrot.lane.b32.xlu0 %v5966, 4
    %v6117 = vpop.permute.xlu0 %6116
    %6118 = vrot.lane.b32.xlu0 %v5968, 4
    %v6119 = vpop.permute.xlu0 %6118
    %6120 = vrot.lane.b32.xlu0 %v5971, 4
    %v6121 = vpop.permute.xlu0 %6120
    %6122 = vrot.lane.b32.xlu0 %v5973, 4
    %v6123 = vpop.permute.xlu0 %6122
    %6124 = vrot.lane.b32.xlu0 %v5976, 4
    %v6125 = vpop.permute.xlu0 %6124
    %6126 = vrot.lane.b32.xlu0 %v5978, 4
    %v6127 = vpop.permute.xlu0 %6126
    %6128 = vrot.lane.b32.xlu0 %v5981, 4
    %v6129 = vpop.permute.xlu0 %6128
    %6130 = vrot.lane.b32.xlu0 %v5983, 4
    %v6131 = vpop.permute.xlu0 %6130
    %6132 = vrot.lane.b32.xlu0 %v5986, 4
    %v6133 = vpop.permute.xlu0 %6132
    %6134 = vrot.lane.b32.xlu0 %v5988, 4
    %v6135 = vpop.permute.xlu0 %6134
    %6136 = vrot.lane.b32.xlu0 %v5991, 4
    %v6137 = vpop.permute.xlu0 %6136
    %6138 = vrot.lane.b32.xlu0 %v5993, 4
    %v6139 = vpop.permute.xlu0 %6138
    %6140 = vrot.lane.b32.xlu0 %v5996, 4
    %v6141 = vpop.permute.xlu0 %6140
    %6142 = vrot.lane.b32.xlu0 %v5998, 4
    %v6143 = vpop.permute.xlu0 %6142
    %6144 = vrot.lane.b32.xlu0 %v6001, 4
    %v6145 = vpop.permute.xlu0 %6144
    %6146 = vrot.lane.b32.xlu0 %v6003, 4
    %v6147 = vpop.permute.xlu0 %6146
    %6148 = vrot.lane.b32.xlu0 %v6006, 4
    %v6149 = vpop.permute.xlu0 %6148
    %6150 = vrot.lane.b32.xlu0 %v6008, 4
    %v6151 = vpop.permute.xlu0 %6150
    %6152 = vrot.lane.b32.xlu0 %v6011, 4
    %v6153 = vpop.permute.xlu0 %6152
    %6154 = vrot.lane.b32.xlu0 %v6013, 4
    %v6155 = vpop.permute.xlu0 %6154
    %6156 = vrot.lane.b32.xlu0 %v6016, 4
    %v6157 = vpop.permute.xlu0 %6156
    %6158 = vrot.lane.b32.xlu0 %v6018, 4
    %v6159 = vpop.permute.xlu0 %6158
    %6160 = vrot.lane.b32.xlu0 %v6021, 4
    %v6161 = vpop.permute.xlu0 %6160
    %6162 = vrot.lane.b32.xlu0 %v6023, 4
    %v6163 = vpop.permute.xlu0 %6162
    %6164 = vrot.lane.b32.xlu0 %v6026, 4
    %v6165 = vpop.permute.xlu0 %6164
    %6166 = vrot.lane.b32.xlu0 %v6028, 4
    %v6167 = vpop.permute.xlu0 %6166
    %6168 = vrot.lane.b32.xlu0 %v6031, 4
    %v6169 = vpop.permute.xlu0 %6168
    %6170 = vrot.lane.b32.xlu0 %v6033, 4
    %v6171 = vpop.permute.xlu0 %6170
    %6172 = vrot.lane.b32.xlu0 %v6036, 4
    %v6173 = vpop.permute.xlu0 %6172
    %6174 = vrot.lane.b32.xlu0 %v6038, 4
    %v6175 = vpop.permute.xlu0 %6174
    %6176 = vrot.lane.b32.xlu0 %v6041, 4
    %v6177 = vpop.permute.xlu0 %6176
    %6178 = vrot.lane.b32.xlu0 %v6043, 4
    %v6179 = vpop.permute.xlu0 %6178
    %6180 = vrot.lane.b32.xlu0 %v6046, 4
    %v6181 = vpop.permute.xlu0 %6180
    %6182 = vrot.lane.b32.xlu0 %v6048, 4
    %v6183 = vpop.permute.xlu0 %6182
    %6184 = vrot.lane.b32.xlu0 %v6051, 4
    %v6185 = vpop.permute.xlu0 %6184
    %6186 = vrot.lane.b32.xlu0 %v6053, 4
    %v6187 = vpop.permute.xlu0 %6186
    %6188 = vrot.lane.b32.xlu0 %v6056, 4
    %v6189 = vpop.permute.xlu0 %6188
    %6190 = vrot.lane.b32.xlu0 %v6058, 4
    %v6191 = vpop.permute.xlu0 %6190
    %6192 = vrot.lane.b32.xlu0 %v6061, 4
    %v6193 = vpop.permute.xlu0 %6192
    %6194 = vrot.lane.b32.xlu0 %v6063, 4
    %v6195 = vpop.permute.xlu0 %6194
    %6196 = vrot.lane.b32.xlu0 %v6066, 4
    %v6197 = vpop.permute.xlu0 %6196
    %6198 = vrot.lane.b32.xlu0 %v6068, 4
    %v6199 = vpop.permute.xlu0 %6198
    %6200 = vrot.lane.b32.xlu0 %v6071, 4
    %v6201 = vpop.permute.xlu0 %6200
    %6202 = vrot.lane.b32.xlu0 %v6073, 4
    %v6203 = vpop.permute.xlu0 %6202
    %6204 = vrot.lane.b32.xlu0 %v6076, 4
    %v6205 = vpop.permute.xlu0 %6204
    %6206 = vrot.lane.b32.xlu0 %v6078, 4
    %v6207 = vpop.permute.xlu0 %6206
    %6208 = vrot.lane.b32.xlu0 %v6081, 4
    %v6209 = vpop.permute.xlu0 %6208
    %6210 = vrot.lane.b32.xlu0 %v6083, 4
    %v6211 = vpop.permute.xlu0 %6210
    %vm6276 = vcmask 1044480
    %v6277 = vrot.slane %v5444, 3
    %v6278 = vrot.slane %v5254, 3
    %v6279 = vsel %vm6276, %v6277, %v6278
    %v6280 = vrot.slane %v5476, 3
    %v6281 = vsel %vm6276, %v6278, %v6280
    %v6282 = vrot.slane %v5445, 3
    %v6283 = vrot.slane %v5257, 3
    %v6284 = vsel %vm6276, %v6282, %v6283
    %v6285 = vrot.slane %v5477, 3
    %v6286 = vsel %vm6276, %v6283, %v6285
    %v6287 = vrot.slane %v5446, 3
    %v6288 = vrot.slane %v5260, 3
    %v6289 = vsel %vm6276, %v6287, %v6288
    %v6290 = vrot.slane %v5478, 3
    %v6291 = vsel %vm6276, %v6288, %v6290
    %v6292 = vrot.slane %v5447, 3
    %v6293 = vrot.slane %v5263, 3
    %v6294 = vsel %vm6276, %v6292, %v6293
    %v6295 = vrot.slane %v5479, 3
    %v6296 = vsel %vm6276, %v6293, %v6295
    %v6297 = vrot.slane %v5448, 3
    %v6298 = vrot.slane %v5266, 3
    %v6299 = vsel %vm6276, %v6297, %v6298
    %v6300 = vrot.slane %v5480, 3
    %v6301 = vsel %vm6276, %v6298, %v6300
    %v6302 = vrot.slane %v5449, 3
    %v6303 = vrot.slane %v5269, 3
    %v6304 = vsel %vm6276, %v6302, %v6303
    %v6305 = vrot.slane %v5481, 3
    %v6306 = vsel %vm6276, %v6303, %v6305
    %v6307 = vrot.slane %v5450, 3
    %v6308 = vrot.slane %v5272, 3
    %v6309 = vsel %vm6276, %v6307, %v6308
    %v6310 = vrot.slane %v5482, 3
    %v6311 = vsel %vm6276, %v6308, %v6310
    %v6312 = vrot.slane %v5451, 3
    %v6313 = vrot.slane %v5275, 3
    %v6314 = vsel %vm6276, %v6312, %v6313
    %v6315 = vrot.slane %v5483, 3
    %v6316 = vsel %vm6276, %v6313, %v6315
    %v6317 = vrot.slane %v5452, 3
    %v6318 = vrot.slane %v5278, 3
    %v6319 = vsel %vm6276, %v6317, %v6318
    %v6320 = vrot.slane %v5484, 3
    %v6321 = vsel %vm6276, %v6318, %v6320
    %v6322 = vrot.slane %v5453, 3
    %v6323 = vrot.slane %v5281, 3
    %v6324 = vsel %vm6276, %v6322, %v6323
    %v6325 = vrot.slane %v5485, 3
    %v6326 = vsel %vm6276, %v6323, %v6325
    %v6327 = vrot.slane %v5454, 3
    %v6328 = vrot.slane %v5284, 3
    %v6329 = vsel %vm6276, %v6327, %v6328
    %v6330 = vrot.slane %v5486, 3
    %v6331 = vsel %vm6276, %v6328, %v6330
    %v6332 = vrot.slane %v5455, 3
    %v6333 = vrot.slane %v5287, 3
    %v6334 = vsel %vm6276, %v6332, %v6333
    %v6335 = vrot.slane %v5487, 3
    %v6336 = vsel %vm6276, %v6333, %v6335
    %v6337 = vrot.slane %v5456, 3
    %v6338 = vrot.slane %v5290, 3
    %v6339 = vsel %vm6276, %v6337, %v6338
    %v6340 = vrot.slane %v5488, 3
    %v6341 = vsel %vm6276, %v6338, %v6340
    %v6342 = vrot.slane %v5457, 3
    %v6343 = vrot.slane %v5293, 3
    %v6344 = vsel %vm6276, %v6342, %v6343
    %v6345 = vrot.slane %v5489, 3
    %v6346 = vsel %vm6276, %v6343, %v6345
    %v6347 = vrot.slane %v5458, 3
    %v6348 = vrot.slane %v5296, 3
    %v6349 = vsel %vm6276, %v6347, %v6348
    %v6350 = vrot.slane %v5490, 3
    %v6351 = vsel %vm6276, %v6348, %v6350
    %v6352 = vrot.slane %v5459, 3
    %v6353 = vrot.slane %v5299, 3
    %v6354 = vsel %vm6276, %v6352, %v6353
    %v6355 = vrot.slane %v5491, 3
    %v6356 = vsel %vm6276, %v6353, %v6355
    %v6357 = vrot.slane %v5460, 3
    %v6358 = vrot.slane %v5302, 3
    %v6359 = vsel %vm6276, %v6357, %v6358
    %v6360 = vrot.slane %v5492, 3
    %v6361 = vsel %vm6276, %v6358, %v6360
    %v6362 = vrot.slane %v5461, 3
    %v6363 = vrot.slane %v5305, 3
    %v6364 = vsel %vm6276, %v6362, %v6363
    %v6365 = vrot.slane %v5493, 3
    %v6366 = vsel %vm6276, %v6363, %v6365
    %v6367 = vrot.slane %v5462, 3
    %v6368 = vrot.slane %v5308, 3
    %v6369 = vsel %vm6276, %v6367, %v6368
    %v6370 = vrot.slane %v5494, 3
    %v6371 = vsel %vm6276, %v6368, %v6370
    %v6372 = vrot.slane %v5463, 3
    %v6373 = vrot.slane %v5311, 3
    %v6374 = vsel %vm6276, %v6372, %v6373
    %v6375 = vrot.slane %v5495, 3
    %v6376 = vsel %vm6276, %v6373, %v6375
    %v6377 = vrot.slane %v5464, 3
    %v6378 = vrot.slane %v5314, 3
    %v6379 = vsel %vm6276, %v6377, %v6378
    %v6380 = vrot.slane %v5496, 3
    %v6381 = vsel %vm6276, %v6378, %v6380
    %v6382 = vrot.slane %v5465, 3
    %v6383 = vrot.slane %v5317, 3
    %v6384 = vsel %vm6276, %v6382, %v6383
    %v6385 = vrot.slane %v5497, 3
    %v6386 = vsel %vm6276, %v6383, %v6385
    %v6387 = vrot.slane %v5466, 3
    %v6388 = vrot.slane %v5320, 3
    %v6389 = vsel %vm6276, %v6387, %v6388
    %v6390 = vrot.slane %v5498, 3
    %v6391 = vsel %vm6276, %v6388, %v6390
    %v6392 = vrot.slane %v5467, 3
    %v6393 = vrot.slane %v5323, 3
    %v6394 = vsel %vm6276, %v6392, %v6393
    %v6395 = vrot.slane %v5499, 3
    %v6396 = vsel %vm6276, %v6393, %v6395
    %v6397 = vrot.slane %v5468, 3
    %v6398 = vrot.slane %v5326, 3
    %v6399 = vsel %vm6276, %v6397, %v6398
    %v6400 = vrot.slane %v5500, 3
    %v6401 = vsel %vm6276, %v6398, %v6400
    %v6402 = vrot.slane %v5469, 3
    %v6403 = vrot.slane %v5329, 3
    %v6404 = vsel %vm6276, %v6402, %v6403
    %v6405 = vrot.slane %v5501, 3
    %v6406 = vsel %vm6276, %v6403, %v6405
    %v6407 = vrot.slane %v5470, 3
    %v6408 = vrot.slane %v5332, 3
    %v6409 = vsel %vm6276, %v6407, %v6408
    %v6410 = vrot.slane %v5502, 3
    %v6411 = vsel %vm6276, %v6408, %v6410
    %v6412 = vrot.slane %v5471, 3
    %v6413 = vrot.slane %v5335, 3
    %v6414 = vsel %vm6276, %v6412, %v6413
    %v6415 = vrot.slane %v5503, 3
    %v6416 = vsel %vm6276, %v6413, %v6415
    %v6417 = vrot.slane %v5472, 3
    %v6418 = vrot.slane %v5338, 3
    %v6419 = vsel %vm6276, %v6417, %v6418
    %v6420 = vrot.slane %v5504, 3
    %v6421 = vsel %vm6276, %v6418, %v6420
    %v6422 = vrot.slane %v5473, 3
    %v6423 = vrot.slane %v5341, 3
    %v6424 = vsel %vm6276, %v6422, %v6423
    %v6425 = vrot.slane %v5505, 3
    %v6426 = vsel %vm6276, %v6423, %v6425
    %v6427 = vrot.slane %v5474, 3
    %v6428 = vrot.slane %v5344, 3
    %v6429 = vsel %vm6276, %v6427, %v6428
    %v6430 = vrot.slane %v5506, 3
    %v6431 = vsel %vm6276, %v6428, %v6430
    %v6432 = vrot.slane %v5475, 3
    %v6433 = vrot.slane %v5347, 3
    %v6434 = vsel %vm6276, %v6432, %v6433
    %v6435 = vrot.slane %v5507, 3
    %v6436 = vsel %vm6276, %v6433, %v6435
    %6437 = vrot.lane.b32.xlu0 %v6279, 6
    %v6438 = vpop.permute.xlu0 %6437
    %6439 = vrot.lane.b32.xlu0 %v6281, 6
    %v6440 = vpop.permute.xlu0 %6439
    %6441 = vrot.lane.b32.xlu0 %v6284, 6
    %v6442 = vpop.permute.xlu0 %6441
    %6443 = vrot.lane.b32.xlu0 %v6286, 6
    %v6444 = vpop.permute.xlu0 %6443
    %6445 = vrot.lane.b32.xlu0 %v6289, 6
    %v6446 = vpop.permute.xlu0 %6445
    %6447 = vrot.lane.b32.xlu0 %v6291, 6
    %v6448 = vpop.permute.xlu0 %6447
    %6449 = vrot.lane.b32.xlu0 %v6294, 6
    %v6450 = vpop.permute.xlu0 %6449
    %6451 = vrot.lane.b32.xlu0 %v6296, 6
    %v6452 = vpop.permute.xlu0 %6451
    %6453 = vrot.lane.b32.xlu0 %v6299, 6
    %v6454 = vpop.permute.xlu0 %6453
    %6455 = vrot.lane.b32.xlu0 %v6301, 6
    %v6456 = vpop.permute.xlu0 %6455
    %6457 = vrot.lane.b32.xlu0 %v6304, 6
    %v6458 = vpop.permute.xlu0 %6457
    %6459 = vrot.lane.b32.xlu0 %v6306, 6
    %v6460 = vpop.permute.xlu0 %6459
    %6461 = vrot.lane.b32.xlu0 %v6309, 6
    %v6462 = vpop.permute.xlu0 %6461
    %6463 = vrot.lane.b32.xlu0 %v6311, 6
    %v6464 = vpop.permute.xlu0 %6463
    %6465 = vrot.lane.b32.xlu0 %v6314, 6
    %v6466 = vpop.permute.xlu0 %6465
    %6467 = vrot.lane.b32.xlu0 %v6316, 6
    %v6468 = vpop.permute.xlu0 %6467
    %6469 = vrot.lane.b32.xlu0 %v6319, 6
    %v6470 = vpop.permute.xlu0 %6469
    %6471 = vrot.lane.b32.xlu0 %v6321, 6
    %v6472 = vpop.permute.xlu0 %6471
    %6473 = vrot.lane.b32.xlu0 %v6324, 6
    %v6474 = vpop.permute.xlu0 %6473
    %6475 = vrot.lane.b32.xlu0 %v6326, 6
    %v6476 = vpop.permute.xlu0 %6475
    %6477 = vrot.lane.b32.xlu0 %v6329, 6
    %v6478 = vpop.permute.xlu0 %6477
    %6479 = vrot.lane.b32.xlu0 %v6331, 6
    %v6480 = vpop.permute.xlu0 %6479
    %6481 = vrot.lane.b32.xlu0 %v6334, 6
    %v6482 = vpop.permute.xlu0 %6481
    %6483 = vrot.lane.b32.xlu0 %v6336, 6
    %v6484 = vpop.permute.xlu0 %6483
    %6485 = vrot.lane.b32.xlu0 %v6339, 6
    %v6486 = vpop.permute.xlu0 %6485
    %6487 = vrot.lane.b32.xlu0 %v6341, 6
    %v6488 = vpop.permute.xlu0 %6487
    %6489 = vrot.lane.b32.xlu0 %v6344, 6
    %v6490 = vpop.permute.xlu0 %6489
    %6491 = vrot.lane.b32.xlu0 %v6346, 6
    %v6492 = vpop.permute.xlu0 %6491
    %6493 = vrot.lane.b32.xlu0 %v6349, 6
    %v6494 = vpop.permute.xlu0 %6493
    %6495 = vrot.lane.b32.xlu0 %v6351, 6
    %v6496 = vpop.permute.xlu0 %6495
    %6497 = vrot.lane.b32.xlu0 %v6354, 6
    %v6498 = vpop.permute.xlu0 %6497
    %6499 = vrot.lane.b32.xlu0 %v6356, 6
    %v6500 = vpop.permute.xlu0 %6499
    %6501 = vrot.lane.b32.xlu0 %v6359, 6
    %v6502 = vpop.permute.xlu0 %6501
    %6503 = vrot.lane.b32.xlu0 %v6361, 6
    %v6504 = vpop.permute.xlu0 %6503
    %6505 = vrot.lane.b32.xlu0 %v6364, 6
    %v6506 = vpop.permute.xlu0 %6505
    %6507 = vrot.lane.b32.xlu0 %v6366, 6
    %v6508 = vpop.permute.xlu0 %6507
    %6509 = vrot.lane.b32.xlu0 %v6369, 6
    %v6510 = vpop.permute.xlu0 %6509
    %6511 = vrot.lane.b32.xlu0 %v6371, 6
    %v6512 = vpop.permute.xlu0 %6511
    %6513 = vrot.lane.b32.xlu0 %v6374, 6
    %v6514 = vpop.permute.xlu0 %6513
    %6515 = vrot.lane.b32.xlu0 %v6376, 6
    %v6516 = vpop.permute.xlu0 %6515
    %6517 = vrot.lane.b32.xlu0 %v6379, 6
    %v6518 = vpop.permute.xlu0 %6517
    %6519 = vrot.lane.b32.xlu0 %v6381, 6
    %v6520 = vpop.permute.xlu0 %6519
    %6521 = vrot.lane.b32.xlu0 %v6384, 6
    %v6522 = vpop.permute.xlu0 %6521
    %6523 = vrot.lane.b32.xlu0 %v6386, 6
    %v6524 = vpop.permute.xlu0 %6523
    %6525 = vrot.lane.b32.xlu0 %v6389, 6
    %v6526 = vpop.permute.xlu0 %6525
    %6527 = vrot.lane.b32.xlu0 %v6391, 6
    %v6528 = vpop.permute.xlu0 %6527
    %6529 = vrot.lane.b32.xlu0 %v6394, 6
    %v6530 = vpop.permute.xlu0 %6529
    %6531 = vrot.lane.b32.xlu0 %v6396, 6
    %v6532 = vpop.permute.xlu0 %6531
    %6533 = vrot.lane.b32.xlu0 %v6399, 6
    %v6534 = vpop.permute.xlu0 %6533
    %6535 = vrot.lane.b32.xlu0 %v6401, 6
    %v6536 = vpop.permute.xlu0 %6535
    %6537 = vrot.lane.b32.xlu0 %v6404, 6
    %v6538 = vpop.permute.xlu0 %6537
    %6539 = vrot.lane.b32.xlu0 %v6406, 6
    %v6540 = vpop.permute.xlu0 %6539
    %6541 = vrot.lane.b32.xlu0 %v6409, 6
    %v6542 = vpop.permute.xlu0 %6541
    %6543 = vrot.lane.b32.xlu0 %v6411, 6
    %v6544 = vpop.permute.xlu0 %6543
    %6545 = vrot.lane.b32.xlu0 %v6414, 6
    %v6546 = vpop.permute.xlu0 %6545
    %6547 = vrot.lane.b32.xlu0 %v6416, 6
    %v6548 = vpop.permute.xlu0 %6547
    %6549 = vrot.lane.b32.xlu0 %v6419, 6
    %v6550 = vpop.permute.xlu0 %6549
    %6551 = vrot.lane.b32.xlu0 %v6421, 6
    %v6552 = vpop.permute.xlu0 %6551
    %6553 = vrot.lane.b32.xlu0 %v6424, 6
    %v6554 = vpop.permute.xlu0 %6553
    %6555 = vrot.lane.b32.xlu0 %v6426, 6
    %v6556 = vpop.permute.xlu0 %6555
    %6557 = vrot.lane.b32.xlu0 %v6429, 6
    %v6558 = vpop.permute.xlu0 %6557
    %6559 = vrot.lane.b32.xlu0 %v6431, 6
    %v6560 = vpop.permute.xlu0 %6559
    %6561 = vrot.lane.b32.xlu0 %v6434, 6
    %v6562 = vpop.permute.xlu0 %6561
    %6563 = vrot.lane.b32.xlu0 %v6436, 6
    %v6564 = vpop.permute.xlu0 %6563
    %vm6629 = vcmask 1043456
    %v6630 = vrot.slane %v5444, 4
    %v6631 = vrot.slane %v5254, 4
    %v6632 = vsel %vm6629, %v6630, %v6631
    %v6633 = vrot.slane %v5476, 4
    %v6634 = vsel %vm6629, %v6631, %v6633
    %v6635 = vrot.slane %v5445, 4
    %v6636 = vrot.slane %v5257, 4
    %v6637 = vsel %vm6629, %v6635, %v6636
    %v6638 = vrot.slane %v5477, 4
    %v6639 = vsel %vm6629, %v6636, %v6638
    %v6640 = vrot.slane %v5446, 4
    %v6641 = vrot.slane %v5260, 4
    %v6642 = vsel %vm6629, %v6640, %v6641
    %v6643 = vrot.slane %v5478, 4
    %v6644 = vsel %vm6629, %v6641, %v6643
    %v6645 = vrot.slane %v5447, 4
    %v6646 = vrot.slane %v5263, 4
    %v6647 = vsel %vm6629, %v6645, %v6646
    %v6648 = vrot.slane %v5479, 4
    %v6649 = vsel %vm6629, %v6646, %v6648
    %v6650 = vrot.slane %v5448, 4
    %v6651 = vrot.slane %v5266, 4
    %v6652 = vsel %vm6629, %v6650, %v6651
    %v6653 = vrot.slane %v5480, 4
    %v6654 = vsel %vm6629, %v6651, %v6653
    %v6655 = vrot.slane %v5449, 4
    %v6656 = vrot.slane %v5269, 4
    %v6657 = vsel %vm6629, %v6655, %v6656
    %v6658 = vrot.slane %v5481, 4
    %v6659 = vsel %vm6629, %v6656, %v6658
    %v6660 = vrot.slane %v5450, 4
    %v6661 = vrot.slane %v5272, 4
    %v6662 = vsel %vm6629, %v6660, %v6661
    %v6663 = vrot.slane %v5482, 4
    %v6664 = vsel %vm6629, %v6661, %v6663
    %v6665 = vrot.slane %v5451, 4
    %v6666 = vrot.slane %v5275, 4
    %v6667 = vsel %vm6629, %v6665, %v6666
    %v6668 = vrot.slane %v5483, 4
    %v6669 = vsel %vm6629, %v6666, %v6668
    %v6670 = vrot.slane %v5452, 4
    %v6671 = vrot.slane %v5278, 4
    %v6672 = vsel %vm6629, %v6670, %v6671
    %v6673 = vrot.slane %v5484, 4
    %v6674 = vsel %vm6629, %v6671, %v6673
    %v6675 = vrot.slane %v5453, 4
    %v6676 = vrot.slane %v5281, 4
    %v6677 = vsel %vm6629, %v6675, %v6676
    %v6678 = vrot.slane %v5485, 4
    %v6679 = vsel %vm6629, %v6676, %v6678
    %v6680 = vrot.slane %v5454, 4
    %v6681 = vrot.slane %v5284, 4
    %v6682 = vsel %vm6629, %v6680, %v6681
    %v6683 = vrot.slane %v5486, 4
    %v6684 = vsel %vm6629, %v6681, %v6683
    %v6685 = vrot.slane %v5455, 4
    %v6686 = vrot.slane %v5287, 4
    %v6687 = vsel %vm6629, %v6685, %v6686
    %v6688 = vrot.slane %v5487, 4
    %v6689 = vsel %vm6629, %v6686, %v6688
    %v6690 = vrot.slane %v5456, 4
    %v6691 = vrot.slane %v5290, 4
    %v6692 = vsel %vm6629, %v6690, %v6691
    %v6693 = vrot.slane %v5488, 4
    %v6694 = vsel %vm6629, %v6691, %v6693
    %v6695 = vrot.slane %v5457, 4
    %v6696 = vrot.slane %v5293, 4
    %v6697 = vsel %vm6629, %v6695, %v6696
    %v6698 = vrot.slane %v5489, 4
    %v6699 = vsel %vm6629, %v6696, %v6698
    %v6700 = vrot.slane %v5458, 4
    %v6701 = vrot.slane %v5296, 4
    %v6702 = vsel %vm6629, %v6700, %v6701
    %v6703 = vrot.slane %v5490, 4
    %v6704 = vsel %vm6629, %v6701, %v6703
    %v6705 = vrot.slane %v5459, 4
    %v6706 = vrot.slane %v5299, 4
    %v6707 = vsel %vm6629, %v6705, %v6706
    %v6708 = vrot.slane %v5491, 4
    %v6709 = vsel %vm6629, %v6706, %v6708
    %v6710 = vrot.slane %v5460, 4
    %v6711 = vrot.slane %v5302, 4
    %v6712 = vsel %vm6629, %v6710, %v6711
    %v6713 = vrot.slane %v5492, 4
    %v6714 = vsel %vm6629, %v6711, %v6713
    %v6715 = vrot.slane %v5461, 4
    %v6716 = vrot.slane %v5305, 4
    %v6717 = vsel %vm6629, %v6715, %v6716
    %v6718 = vrot.slane %v5493, 4
    %v6719 = vsel %vm6629, %v6716, %v6718
    %v6720 = vrot.slane %v5462, 4
    %v6721 = vrot.slane %v5308, 4
    %v6722 = vsel %vm6629, %v6720, %v6721
    %v6723 = vrot.slane %v5494, 4
    %v6724 = vsel %vm6629, %v6721, %v6723
    %v6725 = vrot.slane %v5463, 4
    %v6726 = vrot.slane %v5311, 4
    %v6727 = vsel %vm6629, %v6725, %v6726
    %v6728 = vrot.slane %v5495, 4
    %v6729 = vsel %vm6629, %v6726, %v6728
    %v6730 = vrot.slane %v5464, 4
    %v6731 = vrot.slane %v5314, 4
    %v6732 = vsel %vm6629, %v6730, %v6731
    %v6733 = vrot.slane %v5496, 4
    %v6734 = vsel %vm6629, %v6731, %v6733
    %v6735 = vrot.slane %v5465, 4
    %v6736 = vrot.slane %v5317, 4
    %v6737 = vsel %vm6629, %v6735, %v6736
    %v6738 = vrot.slane %v5497, 4
    %v6739 = vsel %vm6629, %v6736, %v6738
    %v6740 = vrot.slane %v5466, 4
    %v6741 = vrot.slane %v5320, 4
    %v6742 = vsel %vm6629, %v6740, %v6741
    %v6743 = vrot.slane %v5498, 4
    %v6744 = vsel %vm6629, %v6741, %v6743
    %v6745 = vrot.slane %v5467, 4
    %v6746 = vrot.slane %v5323, 4
    %v6747 = vsel %vm6629, %v6745, %v6746
    %v6748 = vrot.slane %v5499, 4
    %v6749 = vsel %vm6629, %v6746, %v6748
    %v6750 = vrot.slane %v5468, 4
    %v6751 = vrot.slane %v5326, 4
    %v6752 = vsel %vm6629, %v6750, %v6751
    %v6753 = vrot.slane %v5500, 4
    %v6754 = vsel %vm6629, %v6751, %v6753
    %v6755 = vrot.slane %v5469, 4
    %v6756 = vrot.slane %v5329, 4
    %v6757 = vsel %vm6629, %v6755, %v6756
    %v6758 = vrot.slane %v5501, 4
    %v6759 = vsel %vm6629, %v6756, %v6758
    %v6760 = vrot.slane %v5470, 4
    %v6761 = vrot.slane %v5332, 4
    %v6762 = vsel %vm6629, %v6760, %v6761
    %v6763 = vrot.slane %v5502, 4
    %v6764 = vsel %vm6629, %v6761, %v6763
    %v6765 = vrot.slane %v5471, 4
    %v6766 = vrot.slane %v5335, 4
    %v6767 = vsel %vm6629, %v6765, %v6766
    %v6768 = vrot.slane %v5503, 4
    %v6769 = vsel %vm6629, %v6766, %v6768
    %v6770 = vrot.slane %v5472, 4
    %v6771 = vrot.slane %v5338, 4
    %v6772 = vsel %vm6629, %v6770, %v6771
    %v6773 = vrot.slane %v5504, 4
    %v6774 = vsel %vm6629, %v6771, %v6773
    %v6775 = vrot.slane %v5473, 4
    %v6776 = vrot.slane %v5341, 4
    %v6777 = vsel %vm6629, %v6775, %v6776
    %v6778 = vrot.slane %v5505, 4
    %v6779 = vsel %vm6629, %v6776, %v6778
    %v6780 = vrot.slane %v5474, 4
    %v6781 = vrot.slane %v5344, 4
    %v6782 = vsel %vm6629, %v6780, %v6781
    %v6783 = vrot.slane %v5506, 4
    %v6784 = vsel %vm6629, %v6781, %v6783
    %v6785 = vrot.slane %v5475, 4
    %v6786 = vrot.slane %v5347, 4
    %v6787 = vsel %vm6629, %v6785, %v6786
    %v6788 = vrot.slane %v5507, 4
    %v6789 = vsel %vm6629, %v6786, %v6788
    %6790 = vrot.lane.b32.xlu0 %v6632, 8
    %v6791 = vpop.permute.xlu0 %6790
    %6792 = vrot.lane.b32.xlu0 %v6634, 8
    %v6793 = vpop.permute.xlu0 %6792
    %6794 = vrot.lane.b32.xlu0 %v6637, 8
    %v6795 = vpop.permute.xlu0 %6794
    %6796 = vrot.lane.b32.xlu0 %v6639, 8
    %v6797 = vpop.permute.xlu0 %6796
    %6798 = vrot.lane.b32.xlu0 %v6642, 8
    %v6799 = vpop.permute.xlu0 %6798
    %6800 = vrot.lane.b32.xlu0 %v6644, 8
    %v6801 = vpop.permute.xlu0 %6800
    %6802 = vrot.lane.b32.xlu0 %v6647, 8
    %v6803 = vpop.permute.xlu0 %6802
    %6804 = vrot.lane.b32.xlu0 %v6649, 8
    %v6805 = vpop.permute.xlu0 %6804
    %6806 = vrot.lane.b32.xlu0 %v6652, 8
    %v6807 = vpop.permute.xlu0 %6806
    %6808 = vrot.lane.b32.xlu0 %v6654, 8
    %v6809 = vpop.permute.xlu0 %6808
    %6810 = vrot.lane.b32.xlu0 %v6657, 8
    %v6811 = vpop.permute.xlu0 %6810
    %6812 = vrot.lane.b32.xlu0 %v6659, 8
    %v6813 = vpop.permute.xlu0 %6812
    %6814 = vrot.lane.b32.xlu0 %v6662, 8
    %v6815 = vpop.permute.xlu0 %6814
    %6816 = vrot.lane.b32.xlu0 %v6664, 8
    %v6817 = vpop.permute.xlu0 %6816
    %6818 = vrot.lane.b32.xlu0 %v6667, 8
    %v6819 = vpop.permute.xlu0 %6818
    %6820 = vrot.lane.b32.xlu0 %v6669, 8
    %v6821 = vpop.permute.xlu0 %6820
    %6822 = vrot.lane.b32.xlu0 %v6672, 8
    %v6823 = vpop.permute.xlu0 %6822
    %6824 = vrot.lane.b32.xlu0 %v6674, 8
    %v6825 = vpop.permute.xlu0 %6824
    %6826 = vrot.lane.b32.xlu0 %v6677, 8
    %v6827 = vpop.permute.xlu0 %6826
    %6828 = vrot.lane.b32.xlu0 %v6679, 8
    %v6829 = vpop.permute.xlu0 %6828
    %6830 = vrot.lane.b32.xlu0 %v6682, 8
    %v6831 = vpop.permute.xlu0 %6830
    %6832 = vrot.lane.b32.xlu0 %v6684, 8
    %v6833 = vpop.permute.xlu0 %6832
    %6834 = vrot.lane.b32.xlu0 %v6687, 8
    %v6835 = vpop.permute.xlu0 %6834
    %6836 = vrot.lane.b32.xlu0 %v6689, 8
    %v6837 = vpop.permute.xlu0 %6836
    %6838 = vrot.lane.b32.xlu0 %v6692, 8
    %v6839 = vpop.permute.xlu0 %6838
    %6840 = vrot.lane.b32.xlu0 %v6694, 8
    %v6841 = vpop.permute.xlu0 %6840
    %6842 = vrot.lane.b32.xlu0 %v6697, 8
    %v6843 = vpop.permute.xlu0 %6842
    %6844 = vrot.lane.b32.xlu0 %v6699, 8
    %v6845 = vpop.permute.xlu0 %6844
    %6846 = vrot.lane.b32.xlu0 %v6702, 8
    %v6847 = vpop.permute.xlu0 %6846
    %6848 = vrot.lane.b32.xlu0 %v6704, 8
    %v6849 = vpop.permute.xlu0 %6848
    %6850 = vrot.lane.b32.xlu0 %v6707, 8
    %v6851 = vpop.permute.xlu0 %6850
    %6852 = vrot.lane.b32.xlu0 %v6709, 8
    %v6853 = vpop.permute.xlu0 %6852
    %6854 = vrot.lane.b32.xlu0 %v6712, 8
    %v6855 = vpop.permute.xlu0 %6854
    %6856 = vrot.lane.b32.xlu0 %v6714, 8
    %v6857 = vpop.permute.xlu0 %6856
    %6858 = vrot.lane.b32.xlu0 %v6717, 8
    %v6859 = vpop.permute.xlu0 %6858
    %6860 = vrot.lane.b32.xlu0 %v6719, 8
    %v6861 = vpop.permute.xlu0 %6860
    %6862 = vrot.lane.b32.xlu0 %v6722, 8
    %v6863 = vpop.permute.xlu0 %6862
    %6864 = vrot.lane.b32.xlu0 %v6724, 8
    %v6865 = vpop.permute.xlu0 %6864
    %6866 = vrot.lane.b32.xlu0 %v6727, 8
    %v6867 = vpop.permute.xlu0 %6866
    %6868 = vrot.lane.b32.xlu0 %v6729, 8
    %v6869 = vpop.permute.xlu0 %6868
    %6870 = vrot.lane.b32.xlu0 %v6732, 8
    %v6871 = vpop.permute.xlu0 %6870
    %6872 = vrot.lane.b32.xlu0 %v6734, 8
    %v6873 = vpop.permute.xlu0 %6872
    %6874 = vrot.lane.b32.xlu0 %v6737, 8
    %v6875 = vpop.permute.xlu0 %6874
    %6876 = vrot.lane.b32.xlu0 %v6739, 8
    %v6877 = vpop.permute.xlu0 %6876
    %6878 = vrot.lane.b32.xlu0 %v6742, 8
    %v6879 = vpop.permute.xlu0 %6878
    %6880 = vrot.lane.b32.xlu0 %v6744, 8
    %v6881 = vpop.permute.xlu0 %6880
    %6882 = vrot.lane.b32.xlu0 %v6747, 8
    %v6883 = vpop.permute.xlu0 %6882
    %6884 = vrot.lane.b32.xlu0 %v6749, 8
    %v6885 = vpop.permute.xlu0 %6884
    %6886 = vrot.lane.b32.xlu0 %v6752, 8
    %v6887 = vpop.permute.xlu0 %6886
    %6888 = vrot.lane.b32.xlu0 %v6754, 8
    %v6889 = vpop.permute.xlu0 %6888
    %6890 = vrot.lane.b32.xlu0 %v6757, 8
    %v6891 = vpop.permute.xlu0 %6890
    %6892 = vrot.lane.b32.xlu0 %v6759, 8
    %v6893 = vpop.permute.xlu0 %6892
    %6894 = vrot.lane.b32.xlu0 %v6762, 8
    %v6895 = vpop.permute.xlu0 %6894
    %6896 = vrot.lane.b32.xlu0 %v6764, 8
    %v6897 = vpop.permute.xlu0 %6896
    %6898 = vrot.lane.b32.xlu0 %v6767, 8
    %v6899 = vpop.permute.xlu0 %6898
    %6900 = vrot.lane.b32.xlu0 %v6769, 8
    %v6901 = vpop.permute.xlu0 %6900
    %6902 = vrot.lane.b32.xlu0 %v6772, 8
    %v6903 = vpop.permute.xlu0 %6902
    %6904 = vrot.lane.b32.xlu0 %v6774, 8
    %v6905 = vpop.permute.xlu0 %6904
    %6906 = vrot.lane.b32.xlu0 %v6777, 8
    %v6907 = vpop.permute.xlu0 %6906
    %6908 = vrot.lane.b32.xlu0 %v6779, 8
    %v6909 = vpop.permute.xlu0 %6908
    %6910 = vrot.lane.b32.xlu0 %v6782, 8
    %v6911 = vpop.permute.xlu0 %6910
    %6912 = vrot.lane.b32.xlu0 %v6784, 8
    %v6913 = vpop.permute.xlu0 %6912
    %6914 = vrot.lane.b32.xlu0 %v6787, 8
    %v6915 = vpop.permute.xlu0 %6914
    %6916 = vrot.lane.b32.xlu0 %v6789, 8
    %v6917 = vpop.permute.xlu0 %6916
    %v6982 = vrot.slane %v5444, 5
    %v6983 = vrot.slane %v5254, 5
    %v6984 = vsel %vm5251, %v6982, %v6983
    %v6985 = vrot.slane %v5476, 5
    %v6986 = vsel %vm5251, %v6983, %v6985
    %v6987 = vrot.slane %v5445, 5
    %v6988 = vrot.slane %v5257, 5
    %v6989 = vsel %vm5251, %v6987, %v6988
    %v6990 = vrot.slane %v5477, 5
    %v6991 = vsel %vm5251, %v6988, %v6990
    %v6992 = vrot.slane %v5446, 5
    %v6993 = vrot.slane %v5260, 5
    %v6994 = vsel %vm5251, %v6992, %v6993
    %v6995 = vrot.slane %v5478, 5
    %v6996 = vsel %vm5251, %v6993, %v6995
    %v6997 = vrot.slane %v5447, 5
    %v6998 = vrot.slane %v5263, 5
    %v6999 = vsel %vm5251, %v6997, %v6998
    %v7000 = vrot.slane %v5479, 5
    %v7001 = vsel %vm5251, %v6998, %v7000
    %v7002 = vrot.slane %v5448, 5
    %v7003 = vrot.slane %v5266, 5
    %v7004 = vsel %vm5251, %v7002, %v7003
    %v7005 = vrot.slane %v5480, 5
    %v7006 = vsel %vm5251, %v7003, %v7005
    %v7007 = vrot.slane %v5449, 5
    %v7008 = vrot.slane %v5269, 5
    %v7009 = vsel %vm5251, %v7007, %v7008
    %v7010 = vrot.slane %v5481, 5
    %v7011 = vsel %vm5251, %v7008, %v7010
    %v7012 = vrot.slane %v5450, 5
    %v7013 = vrot.slane %v5272, 5
    %v7014 = vsel %vm5251, %v7012, %v7013
    %v7015 = vrot.slane %v5482, 5
    %v7016 = vsel %vm5251, %v7013, %v7015
    %v7017 = vrot.slane %v5451, 5
    %v7018 = vrot.slane %v5275, 5
    %v7019 = vsel %vm5251, %v7017, %v7018
    %v7020 = vrot.slane %v5483, 5
    %v7021 = vsel %vm5251, %v7018, %v7020
    %v7022 = vrot.slane %v5452, 5
    %v7023 = vrot.slane %v5278, 5
    %v7024 = vsel %vm5251, %v7022, %v7023
    %v7025 = vrot.slane %v5484, 5
    %v7026 = vsel %vm5251, %v7023, %v7025
    %v7027 = vrot.slane %v5453, 5
    %v7028 = vrot.slane %v5281, 5
    %v7029 = vsel %vm5251, %v7027, %v7028
    %v7030 = vrot.slane %v5485, 5
    %v7031 = vsel %vm5251, %v7028, %v7030
    %v7032 = vrot.slane %v5454, 5
    %v7033 = vrot.slane %v5284, 5
    %v7034 = vsel %vm5251, %v7032, %v7033
    %v7035 = vrot.slane %v5486, 5
    %v7036 = vsel %vm5251, %v7033, %v7035
    %v7037 = vrot.slane %v5455, 5
    %v7038 = vrot.slane %v5287, 5
    %v7039 = vsel %vm5251, %v7037, %v7038
    %v7040 = vrot.slane %v5487, 5
    %v7041 = vsel %vm5251, %v7038, %v7040
    %v7042 = vrot.slane %v5456, 5
    %v7043 = vrot.slane %v5290, 5
    %v7044 = vsel %vm5251, %v7042, %v7043
    %v7045 = vrot.slane %v5488, 5
    %v7046 = vsel %vm5251, %v7043, %v7045
    %v7047 = vrot.slane %v5457, 5
    %v7048 = vrot.slane %v5293, 5
    %v7049 = vsel %vm5251, %v7047, %v7048
    %v7050 = vrot.slane %v5489, 5
    %v7051 = vsel %vm5251, %v7048, %v7050
    %v7052 = vrot.slane %v5458, 5
    %v7053 = vrot.slane %v5296, 5
    %v7054 = vsel %vm5251, %v7052, %v7053
    %v7055 = vrot.slane %v5490, 5
    %v7056 = vsel %vm5251, %v7053, %v7055
    %v7057 = vrot.slane %v5459, 5
    %v7058 = vrot.slane %v5299, 5
    %v7059 = vsel %vm5251, %v7057, %v7058
    %v7060 = vrot.slane %v5491, 5
    %v7061 = vsel %vm5251, %v7058, %v7060
    %v7062 = vrot.slane %v5460, 5
    %v7063 = vrot.slane %v5302, 5
    %v7064 = vsel %vm5251, %v7062, %v7063
    %v7065 = vrot.slane %v5492, 5
    %v7066 = vsel %vm5251, %v7063, %v7065
    %v7067 = vrot.slane %v5461, 5
    %v7068 = vrot.slane %v5305, 5
    %v7069 = vsel %vm5251, %v7067, %v7068
    %v7070 = vrot.slane %v5493, 5
    %v7071 = vsel %vm5251, %v7068, %v7070
    %v7072 = vrot.slane %v5462, 5
    %v7073 = vrot.slane %v5308, 5
    %v7074 = vsel %vm5251, %v7072, %v7073
    %v7075 = vrot.slane %v5494, 5
    %v7076 = vsel %vm5251, %v7073, %v7075
    %v7077 = vrot.slane %v5463, 5
    %v7078 = vrot.slane %v5311, 5
    %v7079 = vsel %vm5251, %v7077, %v7078
    %v7080 = vrot.slane %v5495, 5
    %v7081 = vsel %vm5251, %v7078, %v7080
    %v7082 = vrot.slane %v5464, 5
    %v7083 = vrot.slane %v5314, 5
    %v7084 = vsel %vm5251, %v7082, %v7083
    %v7085 = vrot.slane %v5496, 5
    %v7086 = vsel %vm5251, %v7083, %v7085
    %v7087 = vrot.slane %v5465, 5
    %v7088 = vrot.slane %v5317, 5
    %v7089 = vsel %vm5251, %v7087, %v7088
    %v7090 = vrot.slane %v5497, 5
    %v7091 = vsel %vm5251, %v7088, %v7090
    %v7092 = vrot.slane %v5466, 5
    %v7093 = vrot.slane %v5320, 5
    %v7094 = vsel %vm5251, %v7092, %v7093
    %v7095 = vrot.slane %v5498, 5
    %v7096 = vsel %vm5251, %v7093, %v7095
    %v7097 = vrot.slane %v5467, 5
    %v7098 = vrot.slane %v5323, 5
    %v7099 = vsel %vm5251, %v7097, %v7098
    %v7100 = vrot.slane %v5499, 5
    %v7101 = vsel %vm5251, %v7098, %v7100
    %v7102 = vrot.slane %v5468, 5
    %v7103 = vrot.slane %v5326, 5
    %v7104 = vsel %vm5251, %v7102, %v7103
    %v7105 = vrot.slane %v5500, 5
    %v7106 = vsel %vm5251, %v7103, %v7105
    %v7107 = vrot.slane %v5469, 5
    %v7108 = vrot.slane %v5329, 5
    %v7109 = vsel %vm5251, %v7107, %v7108
    %v7110 = vrot.slane %v5501, 5
    %v7111 = vsel %vm5251, %v7108, %v7110
    %v7112 = vrot.slane %v5470, 5
    %v7113 = vrot.slane %v5332, 5
    %v7114 = vsel %vm5251, %v7112, %v7113
    %v7115 = vrot.slane %v5502, 5
    %v7116 = vsel %vm5251, %v7113, %v7115
    %v7117 = vrot.slane %v5471, 5
    %v7118 = vrot.slane %v5335, 5
    %v7119 = vsel %vm5251, %v7117, %v7118
    %v7120 = vrot.slane %v5503, 5
    %v7121 = vsel %vm5251, %v7118, %v7120
    %v7122 = vrot.slane %v5472, 5
    %v7123 = vrot.slane %v5338, 5
    %v7124 = vsel %vm5251, %v7122, %v7123
    %v7125 = vrot.slane %v5504, 5
    %v7126 = vsel %vm5251, %v7123, %v7125
    %v7127 = vrot.slane %v5473, 5
    %v7128 = vrot.slane %v5341, 5
    %v7129 = vsel %vm5251, %v7127, %v7128
    %v7130 = vrot.slane %v5505, 5
    %v7131 = vsel %vm5251, %v7128, %v7130
    %v7132 = vrot.slane %v5474, 5
    %v7133 = vrot.slane %v5344, 5
    %v7134 = vsel %vm5251, %v7132, %v7133
    %v7135 = vrot.slane %v5506, 5
    %v7136 = vsel %vm5251, %v7133, %v7135
    %v7137 = vrot.slane %v5475, 5
    %v7138 = vrot.slane %v5347, 5
    %v7139 = vsel %vm5251, %v7137, %v7138
    %v7140 = vrot.slane %v5507, 5
    %v7141 = vsel %vm5251, %v7138, %v7140
    %7142 = vrot.lane.b32.xlu0 %v6984, 10
    %v7143 = vpop.permute.xlu0 %7142
    %7144 = vrot.lane.b32.xlu0 %v6986, 10
    %v7145 = vpop.permute.xlu0 %7144
    %7146 = vrot.lane.b32.xlu0 %v6989, 10
    %v7147 = vpop.permute.xlu0 %7146
    %7148 = vrot.lane.b32.xlu0 %v6991, 10
    %v7149 = vpop.permute.xlu0 %7148
    %7150 = vrot.lane.b32.xlu0 %v6994, 10
    %v7151 = vpop.permute.xlu0 %7150
    %7152 = vrot.lane.b32.xlu0 %v6996, 10
    %v7153 = vpop.permute.xlu0 %7152
    %7154 = vrot.lane.b32.xlu0 %v6999, 10
    %v7155 = vpop.permute.xlu0 %7154
    %7156 = vrot.lane.b32.xlu0 %v7001, 10
    %v7157 = vpop.permute.xlu0 %7156
    %7158 = vrot.lane.b32.xlu0 %v7004, 10
    %v7159 = vpop.permute.xlu0 %7158
    %7160 = vrot.lane.b32.xlu0 %v7006, 10
    %v7161 = vpop.permute.xlu0 %7160
    %7162 = vrot.lane.b32.xlu0 %v7009, 10
    %v7163 = vpop.permute.xlu0 %7162
    %7164 = vrot.lane.b32.xlu0 %v7011, 10
    %v7165 = vpop.permute.xlu0 %7164
    %7166 = vrot.lane.b32.xlu0 %v7014, 10
    %v7167 = vpop.permute.xlu0 %7166
    %7168 = vrot.lane.b32.xlu0 %v7016, 10
    %v7169 = vpop.permute.xlu0 %7168
    %7170 = vrot.lane.b32.xlu0 %v7019, 10
    %v7171 = vpop.permute.xlu0 %7170
    %7172 = vrot.lane.b32.xlu0 %v7021, 10
    %v7173 = vpop.permute.xlu0 %7172
    %7174 = vrot.lane.b32.xlu0 %v7024, 10
    %v7175 = vpop.permute.xlu0 %7174
    %7176 = vrot.lane.b32.xlu0 %v7026, 10
    %v7177 = vpop.permute.xlu0 %7176
    %7178 = vrot.lane.b32.xlu0 %v7029, 10
    %v7179 = vpop.permute.xlu0 %7178
    %7180 = vrot.lane.b32.xlu0 %v7031, 10
    %v7181 = vpop.permute.xlu0 %7180
    %7182 = vrot.lane.b32.xlu0 %v7034, 10
    %v7183 = vpop.permute.xlu0 %7182
    %7184 = vrot.lane.b32.xlu0 %v7036, 10
    %v7185 = vpop.permute.xlu0 %7184
    %7186 = vrot.lane.b32.xlu0 %v7039, 10
    %v7187 = vpop.permute.xlu0 %7186
    %7188 = vrot.lane.b32.xlu0 %v7041, 10
    %v7189 = vpop.permute.xlu0 %7188
    %7190 = vrot.lane.b32.xlu0 %v7044, 10
    %v7191 = vpop.permute.xlu0 %7190
    %7192 = vrot.lane.b32.xlu0 %v7046, 10
    %v7193 = vpop.permute.xlu0 %7192
    %7194 = vrot.lane.b32.xlu0 %v7049, 10
    %v7195 = vpop.permute.xlu0 %7194
    %7196 = vrot.lane.b32.xlu0 %v7051, 10
    %v7197 = vpop.permute.xlu0 %7196
    %7198 = vrot.lane.b32.xlu0 %v7054, 10
    %v7199 = vpop.permute.xlu0 %7198
    %7200 = vrot.lane.b32.xlu0 %v7056, 10
    %v7201 = vpop.permute.xlu0 %7200
    %7202 = vrot.lane.b32.xlu0 %v7059, 10
    %v7203 = vpop.permute.xlu0 %7202
    %7204 = vrot.lane.b32.xlu0 %v7061, 10
    %v7205 = vpop.permute.xlu0 %7204
    %7206 = vrot.lane.b32.xlu0 %v7064, 10
    %v7207 = vpop.permute.xlu0 %7206
    %7208 = vrot.lane.b32.xlu0 %v7066, 10
    %v7209 = vpop.permute.xlu0 %7208
    %7210 = vrot.lane.b32.xlu0 %v7069, 10
    %v7211 = vpop.permute.xlu0 %7210
    %7212 = vrot.lane.b32.xlu0 %v7071, 10
    %v7213 = vpop.permute.xlu0 %7212
    %7214 = vrot.lane.b32.xlu0 %v7074, 10
    %v7215 = vpop.permute.xlu0 %7214
    %7216 = vrot.lane.b32.xlu0 %v7076, 10
    %v7217 = vpop.permute.xlu0 %7216
    %7218 = vrot.lane.b32.xlu0 %v7079, 10
    %v7219 = vpop.permute.xlu0 %7218
    %7220 = vrot.lane.b32.xlu0 %v7081, 10
    %v7221 = vpop.permute.xlu0 %7220
    %7222 = vrot.lane.b32.xlu0 %v7084, 10
    %v7223 = vpop.permute.xlu0 %7222
    %7224 = vrot.lane.b32.xlu0 %v7086, 10
    %v7225 = vpop.permute.xlu0 %7224
    %7226 = vrot.lane.b32.xlu0 %v7089, 10
    %v7227 = vpop.permute.xlu0 %7226
    %7228 = vrot.lane.b32.xlu0 %v7091, 10
    %v7229 = vpop.permute.xlu0 %7228
    %7230 = vrot.lane.b32.xlu0 %v7094, 10
    %v7231 = vpop.permute.xlu0 %7230
    %7232 = vrot.lane.b32.xlu0 %v7096, 10
    %v7233 = vpop.permute.xlu0 %7232
    %7234 = vrot.lane.b32.xlu0 %v7099, 10
    %v7235 = vpop.permute.xlu0 %7234
    %7236 = vrot.lane.b32.xlu0 %v7101, 10
    %v7237 = vpop.permute.xlu0 %7236
    %7238 = vrot.lane.b32.xlu0 %v7104, 10
    %v7239 = vpop.permute.xlu0 %7238
    %7240 = vrot.lane.b32.xlu0 %v7106, 10
    %v7241 = vpop.permute.xlu0 %7240
    %7242 = vrot.lane.b32.xlu0 %v7109, 10
    %v7243 = vpop.permute.xlu0 %7242
    %7244 = vrot.lane.b32.xlu0 %v7111, 10
    %v7245 = vpop.permute.xlu0 %7244
    %7246 = vrot.lane.b32.xlu0 %v7114, 10
    %v7247 = vpop.permute.xlu0 %7246
    %7248 = vrot.lane.b32.xlu0 %v7116, 10
    %v7249 = vpop.permute.xlu0 %7248
    %7250 = vrot.lane.b32.xlu0 %v7119, 10
    %v7251 = vpop.permute.xlu0 %7250
    %7252 = vrot.lane.b32.xlu0 %v7121, 10
    %v7253 = vpop.permute.xlu0 %7252
    %7254 = vrot.lane.b32.xlu0 %v7124, 10
    %v7255 = vpop.permute.xlu0 %7254
    %7256 = vrot.lane.b32.xlu0 %v7126, 10
    %v7257 = vpop.permute.xlu0 %7256
    %7258 = vrot.lane.b32.xlu0 %v7129, 10
    %v7259 = vpop.permute.xlu0 %7258
    %7260 = vrot.lane.b32.xlu0 %v7131, 10
    %v7261 = vpop.permute.xlu0 %7260
    %7262 = vrot.lane.b32.xlu0 %v7134, 10
    %v7263 = vpop.permute.xlu0 %7262
    %7264 = vrot.lane.b32.xlu0 %v7136, 10
    %v7265 = vpop.permute.xlu0 %7264
    %7266 = vrot.lane.b32.xlu0 %v7139, 10
    %v7267 = vpop.permute.xlu0 %7266
    %7268 = vrot.lane.b32.xlu0 %v7141, 10
    %v7269 = vpop.permute.xlu0 %7268
    %vm7334 = vcmask 1041408
    %v7335 = vrot.slane %v5444, 6
    %v7336 = vrot.slane %v5254, 6
    %v7337 = vsel %vm7334, %v7335, %v7336
    %v7338 = vrot.slane %v5476, 6
    %v7339 = vsel %vm7334, %v7336, %v7338
    %v7340 = vrot.slane %v5445, 6
    %v7341 = vrot.slane %v5257, 6
    %v7342 = vsel %vm7334, %v7340, %v7341
    %v7343 = vrot.slane %v5477, 6
    %v7344 = vsel %vm7334, %v7341, %v7343
    %v7345 = vrot.slane %v5446, 6
    %v7346 = vrot.slane %v5260, 6
    %v7347 = vsel %vm7334, %v7345, %v7346
    %v7348 = vrot.slane %v5478, 6
    %v7349 = vsel %vm7334, %v7346, %v7348
    %v7350 = vrot.slane %v5447, 6
    %v7351 = vrot.slane %v5263, 6
    %v7352 = vsel %vm7334, %v7350, %v7351
    %v7353 = vrot.slane %v5479, 6
    %v7354 = vsel %vm7334, %v7351, %v7353
    %v7355 = vrot.slane %v5448, 6
    %v7356 = vrot.slane %v5266, 6
    %v7357 = vsel %vm7334, %v7355, %v7356
    %v7358 = vrot.slane %v5480, 6
    %v7359 = vsel %vm7334, %v7356, %v7358
    %v7360 = vrot.slane %v5449, 6
    %v7361 = vrot.slane %v5269, 6
    %v7362 = vsel %vm7334, %v7360, %v7361
    %v7363 = vrot.slane %v5481, 6
    %v7364 = vsel %vm7334, %v7361, %v7363
    %v7365 = vrot.slane %v5450, 6
    %v7366 = vrot.slane %v5272, 6
    %v7367 = vsel %vm7334, %v7365, %v7366
    %v7368 = vrot.slane %v5482, 6
    %v7369 = vsel %vm7334, %v7366, %v7368
    %v7370 = vrot.slane %v5451, 6
    %v7371 = vrot.slane %v5275, 6
    %v7372 = vsel %vm7334, %v7370, %v7371
    %v7373 = vrot.slane %v5483, 6
    %v7374 = vsel %vm7334, %v7371, %v7373
    %v7375 = vrot.slane %v5452, 6
    %v7376 = vrot.slane %v5278, 6
    %v7377 = vsel %vm7334, %v7375, %v7376
    %v7378 = vrot.slane %v5484, 6
    %v7379 = vsel %vm7334, %v7376, %v7378
    %v7380 = vrot.slane %v5453, 6
    %v7381 = vrot.slane %v5281, 6
    %v7382 = vsel %vm7334, %v7380, %v7381
    %v7383 = vrot.slane %v5485, 6
    %v7384 = vsel %vm7334, %v7381, %v7383
    %v7385 = vrot.slane %v5454, 6
    %v7386 = vrot.slane %v5284, 6
    %v7387 = vsel %vm7334, %v7385, %v7386
    %v7388 = vrot.slane %v5486, 6
    %v7389 = vsel %vm7334, %v7386, %v7388
    %v7390 = vrot.slane %v5455, 6
    %v7391 = vrot.slane %v5287, 6
    %v7392 = vsel %vm7334, %v7390, %v7391
    %v7393 = vrot.slane %v5487, 6
    %v7394 = vsel %vm7334, %v7391, %v7393
    %v7395 = vrot.slane %v5456, 6
    %v7396 = vrot.slane %v5290, 6
    %v7397 = vsel %vm7334, %v7395, %v7396
    %v7398 = vrot.slane %v5488, 6
    %v7399 = vsel %vm7334, %v7396, %v7398
    %v7400 = vrot.slane %v5457, 6
    %v7401 = vrot.slane %v5293, 6
    %v7402 = vsel %vm7334, %v7400, %v7401
    %v7403 = vrot.slane %v5489, 6
    %v7404 = vsel %vm7334, %v7401, %v7403
    %v7405 = vrot.slane %v5458, 6
    %v7406 = vrot.slane %v5296, 6
    %v7407 = vsel %vm7334, %v7405, %v7406
    %v7408 = vrot.slane %v5490, 6
    %v7409 = vsel %vm7334, %v7406, %v7408
    %v7410 = vrot.slane %v5459, 6
    %v7411 = vrot.slane %v5299, 6
    %v7412 = vsel %vm7334, %v7410, %v7411
    %v7413 = vrot.slane %v5491, 6
    %v7414 = vsel %vm7334, %v7411, %v7413
    %v7415 = vrot.slane %v5460, 6
    %v7416 = vrot.slane %v5302, 6
    %v7417 = vsel %vm7334, %v7415, %v7416
    %v7418 = vrot.slane %v5492, 6
    %v7419 = vsel %vm7334, %v7416, %v7418
    %v7420 = vrot.slane %v5461, 6
    %v7421 = vrot.slane %v5305, 6
    %v7422 = vsel %vm7334, %v7420, %v7421
    %v7423 = vrot.slane %v5493, 6
    %v7424 = vsel %vm7334, %v7421, %v7423
    %v7425 = vrot.slane %v5462, 6
    %v7426 = vrot.slane %v5308, 6
    %v7427 = vsel %vm7334, %v7425, %v7426
    %v7428 = vrot.slane %v5494, 6
    %v7429 = vsel %vm7334, %v7426, %v7428
    %v7430 = vrot.slane %v5463, 6
    %v7431 = vrot.slane %v5311, 6
    %v7432 = vsel %vm7334, %v7430, %v7431
    %v7433 = vrot.slane %v5495, 6
    %v7434 = vsel %vm7334, %v7431, %v7433
    %v7435 = vrot.slane %v5464, 6
    %v7436 = vrot.slane %v5314, 6
    %v7437 = vsel %vm7334, %v7435, %v7436
    %v7438 = vrot.slane %v5496, 6
    %v7439 = vsel %vm7334, %v7436, %v7438
    %v7440 = vrot.slane %v5465, 6
    %v7441 = vrot.slane %v5317, 6
    %v7442 = vsel %vm7334, %v7440, %v7441
    %v7443 = vrot.slane %v5497, 6
    %v7444 = vsel %vm7334, %v7441, %v7443
    %v7445 = vrot.slane %v5466, 6
    %v7446 = vrot.slane %v5320, 6
    %v7447 = vsel %vm7334, %v7445, %v7446
    %v7448 = vrot.slane %v5498, 6
    %v7449 = vsel %vm7334, %v7446, %v7448
    %v7450 = vrot.slane %v5467, 6
    %v7451 = vrot.slane %v5323, 6
    %v7452 = vsel %vm7334, %v7450, %v7451
    %v7453 = vrot.slane %v5499, 6
    %v7454 = vsel %vm7334, %v7451, %v7453
    %v7455 = vrot.slane %v5468, 6
    %v7456 = vrot.slane %v5326, 6
    %v7457 = vsel %vm7334, %v7455, %v7456
    %v7458 = vrot.slane %v5500, 6
    %v7459 = vsel %vm7334, %v7456, %v7458
    %v7460 = vrot.slane %v5469, 6
    %v7461 = vrot.slane %v5329, 6
    %v7462 = vsel %vm7334, %v7460, %v7461
    %v7463 = vrot.slane %v5501, 6
    %v7464 = vsel %vm7334, %v7461, %v7463
    %v7465 = vrot.slane %v5470, 6
    %v7466 = vrot.slane %v5332, 6
    %v7467 = vsel %vm7334, %v7465, %v7466
    %v7468 = vrot.slane %v5502, 6
    %v7469 = vsel %vm7334, %v7466, %v7468
    %v7470 = vrot.slane %v5471, 6
    %v7471 = vrot.slane %v5335, 6
    %v7472 = vsel %vm7334, %v7470, %v7471
    %v7473 = vrot.slane %v5503, 6
    %v7474 = vsel %vm7334, %v7471, %v7473
    %v7475 = vrot.slane %v5472, 6
    %v7476 = vrot.slane %v5338, 6
    %v7477 = vsel %vm7334, %v7475, %v7476
    %v7478 = vrot.slane %v5504, 6
    %v7479 = vsel %vm7334, %v7476, %v7478
    %v7480 = vrot.slane %v5473, 6
    %v7481 = vrot.slane %v5341, 6
    %v7482 = vsel %vm7334, %v7480, %v7481
    %v7483 = vrot.slane %v5505, 6
    %v7484 = vsel %vm7334, %v7481, %v7483
    %v7485 = vrot.slane %v5474, 6
    %v7486 = vrot.slane %v5344, 6
    %v7487 = vsel %vm7334, %v7485, %v7486
    %v7488 = vrot.slane %v5506, 6
    %v7489 = vsel %vm7334, %v7486, %v7488
    %v7490 = vrot.slane %v5475, 6
    %v7491 = vrot.slane %v5347, 6
    %v7492 = vsel %vm7334, %v7490, %v7491
    %v7493 = vrot.slane %v5507, 6
    %v7494 = vsel %vm7334, %v7491, %v7493
    %7495 = vrot.lane.b32.xlu0 %v7337, 12
    %v7496 = vpop.permute.xlu0 %7495
    %7497 = vrot.lane.b32.xlu0 %v7339, 12
    %v7498 = vpop.permute.xlu0 %7497
    %7499 = vrot.lane.b32.xlu0 %v7342, 12
    %v7500 = vpop.permute.xlu0 %7499
    %7501 = vrot.lane.b32.xlu0 %v7344, 12
    %v7502 = vpop.permute.xlu0 %7501
    %7503 = vrot.lane.b32.xlu0 %v7347, 12
    %v7504 = vpop.permute.xlu0 %7503
    %7505 = vrot.lane.b32.xlu0 %v7349, 12
    %v7506 = vpop.permute.xlu0 %7505
    %7507 = vrot.lane.b32.xlu0 %v7352, 12
    %v7508 = vpop.permute.xlu0 %7507
    %7509 = vrot.lane.b32.xlu0 %v7354, 12
    %v7510 = vpop.permute.xlu0 %7509
    %7511 = vrot.lane.b32.xlu0 %v7357, 12
    %v7512 = vpop.permute.xlu0 %7511
    %7513 = vrot.lane.b32.xlu0 %v7359, 12
    %v7514 = vpop.permute.xlu0 %7513
    %7515 = vrot.lane.b32.xlu0 %v7362, 12
    %v7516 = vpop.permute.xlu0 %7515
    %7517 = vrot.lane.b32.xlu0 %v7364, 12
    %v7518 = vpop.permute.xlu0 %7517
    %7519 = vrot.lane.b32.xlu0 %v7367, 12
    %v7520 = vpop.permute.xlu0 %7519
    %7521 = vrot.lane.b32.xlu0 %v7369, 12
    %v7522 = vpop.permute.xlu0 %7521
    %7523 = vrot.lane.b32.xlu0 %v7372, 12
    %v7524 = vpop.permute.xlu0 %7523
    %7525 = vrot.lane.b32.xlu0 %v7374, 12
    %v7526 = vpop.permute.xlu0 %7525
    %7527 = vrot.lane.b32.xlu0 %v7377, 12
    %v7528 = vpop.permute.xlu0 %7527
    %7529 = vrot.lane.b32.xlu0 %v7379, 12
    %v7530 = vpop.permute.xlu0 %7529
    %7531 = vrot.lane.b32.xlu0 %v7382, 12
    %v7532 = vpop.permute.xlu0 %7531
    %7533 = vrot.lane.b32.xlu0 %v7384, 12
    %v7534 = vpop.permute.xlu0 %7533
    %7535 = vrot.lane.b32.xlu0 %v7387, 12
    %v7536 = vpop.permute.xlu0 %7535
    %7537 = vrot.lane.b32.xlu0 %v7389, 12
    %v7538 = vpop.permute.xlu0 %7537
    %7539 = vrot.lane.b32.xlu0 %v7392, 12
    %v7540 = vpop.permute.xlu0 %7539
    %7541 = vrot.lane.b32.xlu0 %v7394, 12
    %v7542 = vpop.permute.xlu0 %7541
    %7543 = vrot.lane.b32.xlu0 %v7397, 12
    %v7544 = vpop.permute.xlu0 %7543
    %7545 = vrot.lane.b32.xlu0 %v7399, 12
    %v7546 = vpop.permute.xlu0 %7545
    %7547 = vrot.lane.b32.xlu0 %v7402, 12
    %v7548 = vpop.permute.xlu0 %7547
    %7549 = vrot.lane.b32.xlu0 %v7404, 12
    %v7550 = vpop.permute.xlu0 %7549
    %7551 = vrot.lane.b32.xlu0 %v7407, 12
    %v7552 = vpop.permute.xlu0 %7551
    %7553 = vrot.lane.b32.xlu0 %v7409, 12
    %v7554 = vpop.permute.xlu0 %7553
    %7555 = vrot.lane.b32.xlu0 %v7412, 12
    %v7556 = vpop.permute.xlu0 %7555
    %7557 = vrot.lane.b32.xlu0 %v7414, 12
    %v7558 = vpop.permute.xlu0 %7557
    %7559 = vrot.lane.b32.xlu0 %v7417, 12
    %v7560 = vpop.permute.xlu0 %7559
    %7561 = vrot.lane.b32.xlu0 %v7419, 12
    %v7562 = vpop.permute.xlu0 %7561
    %7563 = vrot.lane.b32.xlu0 %v7422, 12
    %v7564 = vpop.permute.xlu0 %7563
    %7565 = vrot.lane.b32.xlu0 %v7424, 12
    %v7566 = vpop.permute.xlu0 %7565
    %7567 = vrot.lane.b32.xlu0 %v7427, 12
    %v7568 = vpop.permute.xlu0 %7567
    %7569 = vrot.lane.b32.xlu0 %v7429, 12
    %v7570 = vpop.permute.xlu0 %7569
    %7571 = vrot.lane.b32.xlu0 %v7432, 12
    %v7572 = vpop.permute.xlu0 %7571
    %7573 = vrot.lane.b32.xlu0 %v7434, 12
    %v7574 = vpop.permute.xlu0 %7573
    %7575 = vrot.lane.b32.xlu0 %v7437, 12
    %v7576 = vpop.permute.xlu0 %7575
    %7577 = vrot.lane.b32.xlu0 %v7439, 12
    %v7578 = vpop.permute.xlu0 %7577
    %7579 = vrot.lane.b32.xlu0 %v7442, 12
    %v7580 = vpop.permute.xlu0 %7579
    %7581 = vrot.lane.b32.xlu0 %v7444, 12
    %v7582 = vpop.permute.xlu0 %7581
    %7583 = vrot.lane.b32.xlu0 %v7447, 12
    %v7584 = vpop.permute.xlu0 %7583
    %7585 = vrot.lane.b32.xlu0 %v7449, 12
    %v7586 = vpop.permute.xlu0 %7585
    %7587 = vrot.lane.b32.xlu0 %v7452, 12
    %v7588 = vpop.permute.xlu0 %7587
    %7589 = vrot.lane.b32.xlu0 %v7454, 12
    %v7590 = vpop.permute.xlu0 %7589
    %7591 = vrot.lane.b32.xlu0 %v7457, 12
    %v7592 = vpop.permute.xlu0 %7591
    %7593 = vrot.lane.b32.xlu0 %v7459, 12
    %v7594 = vpop.permute.xlu0 %7593
    %7595 = vrot.lane.b32.xlu0 %v7462, 12
    %v7596 = vpop.permute.xlu0 %7595
    %7597 = vrot.lane.b32.xlu0 %v7464, 12
    %v7598 = vpop.permute.xlu0 %7597
    %7599 = vrot.lane.b32.xlu0 %v7467, 12
    %v7600 = vpop.permute.xlu0 %7599
    %7601 = vrot.lane.b32.xlu0 %v7469, 12
    %v7602 = vpop.permute.xlu0 %7601
    %7603 = vrot.lane.b32.xlu0 %v7472, 12
    %v7604 = vpop.permute.xlu0 %7603
    %7605 = vrot.lane.b32.xlu0 %v7474, 12
    %v7606 = vpop.permute.xlu0 %7605
    %7607 = vrot.lane.b32.xlu0 %v7477, 12
    %v7608 = vpop.permute.xlu0 %7607
    %7609 = vrot.lane.b32.xlu0 %v7479, 12
    %v7610 = vpop.permute.xlu0 %7609
    %7611 = vrot.lane.b32.xlu0 %v7482, 12
    %v7612 = vpop.permute.xlu0 %7611
    %7613 = vrot.lane.b32.xlu0 %v7484, 12
    %v7614 = vpop.permute.xlu0 %7613
    %7615 = vrot.lane.b32.xlu0 %v7487, 12
    %v7616 = vpop.permute.xlu0 %7615
    %7617 = vrot.lane.b32.xlu0 %v7489, 12
    %v7618 = vpop.permute.xlu0 %7617
    %7619 = vrot.lane.b32.xlu0 %v7492, 12
    %v7620 = vpop.permute.xlu0 %7619
    %7621 = vrot.lane.b32.xlu0 %v7494, 12
    %v7622 = vpop.permute.xlu0 %7621
    %vm7687 = vcmask 15360
    %v7688 = vsel %vm7687, %v5444, %v5733
    %v7689 = vsel %vm7687, %v5254, %v5735
    %v7690 = vsel %vm7687, %v5445, %v5737
    %v7691 = vsel %vm7687, %v5257, %v5739
    %v7692 = vsel %vm7687, %v5446, %v5741
    %v7693 = vsel %vm7687, %v5260, %v5743
    %v7694 = vsel %vm7687, %v5447, %v5745
    %v7695 = vsel %vm7687, %v5263, %v5747
    %v7696 = vsel %vm7687, %v5448, %v5749
    %v7697 = vsel %vm7687, %v5266, %v5751
    %v7698 = vsel %vm7687, %v5449, %v5753
    %v7699 = vsel %vm7687, %v5269, %v5755
    %v7700 = vsel %vm7687, %v5450, %v5757
    %v7701 = vsel %vm7687, %v5272, %v5759
    %v7702 = vsel %vm7687, %v5451, %v5761
    %v7703 = vsel %vm7687, %v5275, %v5763
    %v7704 = vsel %vm7687, %v5452, %v5765
    %v7705 = vsel %vm7687, %v5278, %v5767
    %v7706 = vsel %vm7687, %v5453, %v5769
    %v7707 = vsel %vm7687, %v5281, %v5771
    %v7708 = vsel %vm7687, %v5454, %v5773
    %v7709 = vsel %vm7687, %v5284, %v5775
    %v7710 = vsel %vm7687, %v5455, %v5777
    %v7711 = vsel %vm7687, %v5287, %v5779
    %v7712 = vsel %vm7687, %v5456, %v5781
    %v7713 = vsel %vm7687, %v5290, %v5783
    %v7714 = vsel %vm7687, %v5457, %v5785
    %v7715 = vsel %vm7687, %v5293, %v5787
    %v7716 = vsel %vm7687, %v5458, %v5789
    %v7717 = vsel %vm7687, %v5296, %v5791
    %v7718 = vsel %vm7687, %v5459, %v5793
    %v7719 = vsel %vm7687, %v5299, %v5795
    %v7720 = vsel %vm7687, %v5460, %v5797
    %v7721 = vsel %vm7687, %v5302, %v5799
    %v7722 = vsel %vm7687, %v5461, %v5801
    %v7723 = vsel %vm7687, %v5305, %v5803
    %v7724 = vsel %vm7687, %v5462, %v5805
    %v7725 = vsel %vm7687, %v5308, %v5807
    %v7726 = vsel %vm7687, %v5463, %v5809
    %v7727 = vsel %vm7687, %v5311, %v5811
    %v7728 = vsel %vm7687, %v5464, %v5813
    %v7729 = vsel %vm7687, %v5314, %v5815
    %v7730 = vsel %vm7687, %v5465, %v5817
    %v7731 = vsel %vm7687, %v5317, %v5819
    %v7732 = vsel %vm7687, %v5466, %v5821
    %v7733 = vsel %vm7687, %v5320, %v5823
    %v7734 = vsel %vm7687, %v5467, %v5825
    %v7735 = vsel %vm7687, %v5323, %v5827
    %v7736 = vsel %vm7687, %v5468, %v5829
    %v7737 = vsel %vm7687, %v5326, %v5831
    %v7738 = vsel %vm7687, %v5469, %v5833
    %v7739 = vsel %vm7687, %v5329, %v5835
    %v7740 = vsel %vm7687, %v5470, %v5837
    %v7741 = vsel %vm7687, %v5332, %v5839
    %v7742 = vsel %vm7687, %v5471, %v5841
    %v7743 = vsel %vm7687, %v5335, %v5843
    %v7744 = vsel %vm7687, %v5472, %v5845
    %v7745 = vsel %vm7687, %v5338, %v5847
    %v7746 = vsel %vm7687, %v5473, %v5849
    %v7747 = vsel %vm7687, %v5341, %v5851
    %v7748 = vsel %vm7687, %v5474, %v5853
    %v7749 = vsel %vm7687, %v5344, %v5855
    %v7750 = vsel %vm7687, %v5475, %v5857
    %v7751 = vsel %vm7687, %v5347, %v5859
    %vm7752 = vcmask 31744
    %v7753 = vsel %vm7752, %v7688, %v6085
    %v7754 = vsel %vm7752, %v7689, %v6087
    %v7755 = vsel %vm7752, %v7690, %v6089
    %v7756 = vsel %vm7752, %v7691, %v6091
    %v7757 = vsel %vm7752, %v7692, %v6093
    %v7758 = vsel %vm7752, %v7693, %v6095
    %v7759 = vsel %vm7752, %v7694, %v6097
    %v7760 = vsel %vm7752, %v7695, %v6099
    %v7761 = vsel %vm7752, %v7696, %v6101
    %v7762 = vsel %vm7752, %v7697, %v6103
    %v7763 = vsel %vm7752, %v7698, %v6105
    %v7764 = vsel %vm7752, %v7699, %v6107
    %v7765 = vsel %vm7752, %v7700, %v6109
    %v7766 = vsel %vm7752, %v7701, %v6111
    %v7767 = vsel %vm7752, %v7702, %v6113
    %v7768 = vsel %vm7752, %v7703, %v6115
    %v7769 = vsel %vm7752, %v7704, %v6117
    %v7770 = vsel %vm7752, %v7705, %v6119
    %v7771 = vsel %vm7752, %v7706, %v6121
    %v7772 = vsel %vm7752, %v7707, %v6123
    %v7773 = vsel %vm7752, %v7708, %v6125
    %v7774 = vsel %vm7752, %v7709, %v6127
    %v7775 = vsel %vm7752, %v7710, %v6129
    %v7776 = vsel %vm7752, %v7711, %v6131
    %v7777 = vsel %vm7752, %v7712, %v6133
    %v7778 = vsel %vm7752, %v7713, %v6135
    %v7779 = vsel %vm7752, %v7714, %v6137
    %v7780 = vsel %vm7752, %v7715, %v6139
    %v7781 = vsel %vm7752, %v7716, %v6141
    %v7782 = vsel %vm7752, %v7717, %v6143
    %v7783 = vsel %vm7752, %v7718, %v6145
    %v7784 = vsel %vm7752, %v7719, %v6147
    %v7785 = vsel %vm7752, %v7720, %v6149
    %v7786 = vsel %vm7752, %v7721, %v6151
    %v7787 = vsel %vm7752, %v7722, %v6153
    %v7788 = vsel %vm7752, %v7723, %v6155
    %v7789 = vsel %vm7752, %v7724, %v6157
    %v7790 = vsel %vm7752, %v7725, %v6159
    %v7791 = vsel %vm7752, %v7726, %v6161
    %v7792 = vsel %vm7752, %v7727, %v6163
    %v7793 = vsel %vm7752, %v7728, %v6165
    %v7794 = vsel %vm7752, %v7729, %v6167
    %v7795 = vsel %vm7752, %v7730, %v6169
    %v7796 = vsel %vm7752, %v7731, %v6171
    %v7797 = vsel %vm7752, %v7732, %v6173
    %v7798 = vsel %vm7752, %v7733, %v6175
    %v7799 = vsel %vm7752, %v7734, %v6177
    %v7800 = vsel %vm7752, %v7735, %v6179
    %v7801 = vsel %vm7752, %v7736, %v6181
    %v7802 = vsel %vm7752, %v7737, %v6183
    %v7803 = vsel %vm7752, %v7738, %v6185
    %v7804 = vsel %vm7752, %v7739, %v6187
    %v7805 = vsel %vm7752, %v7740, %v6189
    %v7806 = vsel %vm7752, %v7741, %v6191
    %v7807 = vsel %vm7752, %v7742, %v6193
    %v7808 = vsel %vm7752, %v7743, %v6195
    %v7809 = vsel %vm7752, %v7744, %v6197
    %v7810 = vsel %vm7752, %v7745, %v6199
    %v7811 = vsel %vm7752, %v7746, %v6201
    %v7812 = vsel %vm7752, %v7747, %v6203
    %v7813 = vsel %vm7752, %v7748, %v6205
    %v7814 = vsel %vm7752, %v7749, %v6207
    %v7815 = vsel %vm7752, %v7750, %v6209
    %v7816 = vsel %vm7752, %v7751, %v6211
    %vm7817 = vcmask 48128
    %v7818 = vsel %vm7817, %v7753, %v6438
    %v7819 = vsel %vm7817, %v7754, %v6440
    %v7820 = vsel %vm7817, %v7755, %v6442
    %v7821 = vsel %vm7817, %v7756, %v6444
    %v7822 = vsel %vm7817, %v7757, %v6446
    %v7823 = vsel %vm7817, %v7758, %v6448
    %v7824 = vsel %vm7817, %v7759, %v6450
    %v7825 = vsel %vm7817, %v7760, %v6452
    %v7826 = vsel %vm7817, %v7761, %v6454
    %v7827 = vsel %vm7817, %v7762, %v6456
    %v7828 = vsel %vm7817, %v7763, %v6458
    %v7829 = vsel %vm7817, %v7764, %v6460
    %v7830 = vsel %vm7817, %v7765, %v6462
    %v7831 = vsel %vm7817, %v7766, %v6464
    %v7832 = vsel %vm7817, %v7767, %v6466
    %v7833 = vsel %vm7817, %v7768, %v6468
    %v7834 = vsel %vm7817, %v7769, %v6470
    %v7835 = vsel %vm7817, %v7770, %v6472
    %v7836 = vsel %vm7817, %v7771, %v6474
    %v7837 = vsel %vm7817, %v7772, %v6476
    %v7838 = vsel %vm7817, %v7773, %v6478
    %v7839 = vsel %vm7817, %v7774, %v6480
    %v7840 = vsel %vm7817, %v7775, %v6482
    %v7841 = vsel %vm7817, %v7776, %v6484
    %v7842 = vsel %vm7817, %v7777, %v6486
    %v7843 = vsel %vm7817, %v7778, %v6488
    %v7844 = vsel %vm7817, %v7779, %v6490
    %v7845 = vsel %vm7817, %v7780, %v6492
    %v7846 = vsel %vm7817, %v7781, %v6494
    %v7847 = vsel %vm7817, %v7782, %v6496
    %v7848 = vsel %vm7817, %v7783, %v6498
    %v7849 = vsel %vm7817, %v7784, %v6500
    %v7850 = vsel %vm7817, %v7785, %v6502
    %v7851 = vsel %vm7817, %v7786, %v6504
    %v7852 = vsel %vm7817, %v7787, %v6506
    %v7853 = vsel %vm7817, %v7788, %v6508
    %v7854 = vsel %vm7817, %v7789, %v6510
    %v7855 = vsel %vm7817, %v7790, %v6512
    %v7856 = vsel %vm7817, %v7791, %v6514
    %v7857 = vsel %vm7817, %v7792, %v6516
    %v7858 = vsel %vm7817, %v7793, %v6518
    %v7859 = vsel %vm7817, %v7794, %v6520
    %v7860 = vsel %vm7817, %v7795, %v6522
    %v7861 = vsel %vm7817, %v7796, %v6524
    %v7862 = vsel %vm7817, %v7797, %v6526
    %v7863 = vsel %vm7817, %v7798, %v6528
    %v7864 = vsel %vm7817, %v7799, %v6530
    %v7865 = vsel %vm7817, %v7800, %v6532
    %v7866 = vsel %vm7817, %v7801, %v6534
    %v7867 = vsel %vm7817, %v7802, %v6536
    %v7868 = vsel %vm7817, %v7803, %v6538
    %v7869 = vsel %vm7817, %v7804, %v6540
    %v7870 = vsel %vm7817, %v7805, %v6542
    %v7871 = vsel %vm7817, %v7806, %v6544
    %v7872 = vsel %vm7817, %v7807, %v6546
    %v7873 = vsel %vm7817, %v7808, %v6548
    %v7874 = vsel %vm7817, %v7809, %v6550
    %v7875 = vsel %vm7817, %v7810, %v6552
    %v7876 = vsel %vm7817, %v7811, %v6554
    %v7877 = vsel %vm7817, %v7812, %v6556
    %v7878 = vsel %vm7817, %v7813, %v6558
    %v7879 = vsel %vm7817, %v7814, %v6560
    %v7880 = vsel %vm7817, %v7815, %v6562
    %v7881 = vsel %vm7817, %v7816, %v6564
    %vm7882 = vcmask 64512
    %v7883 = vsel %vm7882, %v7818, %v6791
    %v7884 = vsel %vm7882, %v7819, %v6793
    %v7885 = vsel %vm7882, %v7820, %v6795
    %v7886 = vsel %vm7882, %v7821, %v6797
    %v7887 = vsel %vm7882, %v7822, %v6799
    %v7888 = vsel %vm7882, %v7823, %v6801
    %v7889 = vsel %vm7882, %v7824, %v6803
    %v7890 = vsel %vm7882, %v7825, %v6805
    %v7891 = vsel %vm7882, %v7826, %v6807
    %v7892 = vsel %vm7882, %v7827, %v6809
    %v7893 = vsel %vm7882, %v7828, %v6811
    %v7894 = vsel %vm7882, %v7829, %v6813
    %v7895 = vsel %vm7882, %v7830, %v6815
    %v7896 = vsel %vm7882, %v7831, %v6817
    %v7897 = vsel %vm7882, %v7832, %v6819
    %v7898 = vsel %vm7882, %v7833, %v6821
    %v7899 = vsel %vm7882, %v7834, %v6823
    %v7900 = vsel %vm7882, %v7835, %v6825
    %v7901 = vsel %vm7882, %v7836, %v6827
    %v7902 = vsel %vm7882, %v7837, %v6829
    %v7903 = vsel %vm7882, %v7838, %v6831
    %v7904 = vsel %vm7882, %v7839, %v6833
    %v7905 = vsel %vm7882, %v7840, %v6835
    %v7906 = vsel %vm7882, %v7841, %v6837
    %v7907 = vsel %vm7882, %v7842, %v6839
    %v7908 = vsel %vm7882, %v7843, %v6841
    %v7909 = vsel %vm7882, %v7844, %v6843
    %v7910 = vsel %vm7882, %v7845, %v6845
    %v7911 = vsel %vm7882, %v7846, %v6847
    %v7912 = vsel %vm7882, %v7847, %v6849
    %v7913 = vsel %vm7882, %v7848, %v6851
    %v7914 = vsel %vm7882, %v7849, %v6853
    %v7915 = vsel %vm7882, %v7850, %v6855
    %v7916 = vsel %vm7882, %v7851, %v6857
    %v7917 = vsel %vm7882, %v7852, %v6859
    %v7918 = vsel %vm7882, %v7853, %v6861
    %v7919 = vsel %vm7882, %v7854, %v6863
    %v7920 = vsel %vm7882, %v7855, %v6865
    %v7921 = vsel %vm7882, %v7856, %v6867
    %v7922 = vsel %vm7882, %v7857, %v6869
    %v7923 = vsel %vm7882, %v7858, %v6871
    %v7924 = vsel %vm7882, %v7859, %v6873
    %v7925 = vsel %vm7882, %v7860, %v6875
    %v7926 = vsel %vm7882, %v7861, %v6877
    %v7927 = vsel %vm7882, %v7862, %v6879
    %v7928 = vsel %vm7882, %v7863, %v6881
    %v7929 = vsel %vm7882, %v7864, %v6883
    %v7930 = vsel %vm7882, %v7865, %v6885
    %v7931 = vsel %vm7882, %v7866, %v6887
    %v7932 = vsel %vm7882, %v7867, %v6889
    %v7933 = vsel %vm7882, %v7868, %v6891
    %v7934 = vsel %vm7882, %v7869, %v6893
    %v7935 = vsel %vm7882, %v7870, %v6895
    %v7936 = vsel %vm7882, %v7871, %v6897
    %v7937 = vsel %vm7882, %v7872, %v6899
    %v7938 = vsel %vm7882, %v7873, %v6901
    %v7939 = vsel %vm7882, %v7874, %v6903
    %v7940 = vsel %vm7882, %v7875, %v6905
    %v7941 = vsel %vm7882, %v7876, %v6907
    %v7942 = vsel %vm7882, %v7877, %v6909
    %v7943 = vsel %vm7882, %v7878, %v6911
    %v7944 = vsel %vm7882, %v7879, %v6913
    %v7945 = vsel %vm7882, %v7880, %v6915
    %v7946 = vsel %vm7882, %v7881, %v6917
    %vm7947 = vcmask 80896
    %v7948 = vsel %vm7947, %v7883, %v7143
    %v7949 = vsel %vm7947, %v7884, %v7145
    %v7950 = vsel %vm7947, %v7885, %v7147
    %v7951 = vsel %vm7947, %v7886, %v7149
    %v7952 = vsel %vm7947, %v7887, %v7151
    %v7953 = vsel %vm7947, %v7888, %v7153
    %v7954 = vsel %vm7947, %v7889, %v7155
    %v7955 = vsel %vm7947, %v7890, %v7157
    %v7956 = vsel %vm7947, %v7891, %v7159
    %v7957 = vsel %vm7947, %v7892, %v7161
    %v7958 = vsel %vm7947, %v7893, %v7163
    %v7959 = vsel %vm7947, %v7894, %v7165
    %v7960 = vsel %vm7947, %v7895, %v7167
    %v7961 = vsel %vm7947, %v7896, %v7169
    %v7962 = vsel %vm7947, %v7897, %v7171
    %v7963 = vsel %vm7947, %v7898, %v7173
    %v7964 = vsel %vm7947, %v7899, %v7175
    %v7965 = vsel %vm7947, %v7900, %v7177
    %v7966 = vsel %vm7947, %v7901, %v7179
    %v7967 = vsel %vm7947, %v7902, %v7181
    %v7968 = vsel %vm7947, %v7903, %v7183
    %v7969 = vsel %vm7947, %v7904, %v7185
    %v7970 = vsel %vm7947, %v7905, %v7187
    %v7971 = vsel %vm7947, %v7906, %v7189
    %v7972 = vsel %vm7947, %v7907, %v7191
    %v7973 = vsel %vm7947, %v7908, %v7193
    %v7974 = vsel %vm7947, %v7909, %v7195
    %v7975 = vsel %vm7947, %v7910, %v7197
    %v7976 = vsel %vm7947, %v7911, %v7199
    %v7977 = vsel %vm7947, %v7912, %v7201
    %v7978 = vsel %vm7947, %v7913, %v7203
    %v7979 = vsel %vm7947, %v7914, %v7205
    %v7980 = vsel %vm7947, %v7915, %v7207
    %v7981 = vsel %vm7947, %v7916, %v7209
    %v7982 = vsel %vm7947, %v7917, %v7211
    %v7983 = vsel %vm7947, %v7918, %v7213
    %v7984 = vsel %vm7947, %v7919, %v7215
    %v7985 = vsel %vm7947, %v7920, %v7217
    %v7986 = vsel %vm7947, %v7921, %v7219
    %v7987 = vsel %vm7947, %v7922, %v7221
    %v7988 = vsel %vm7947, %v7923, %v7223
    %v7989 = vsel %vm7947, %v7924, %v7225
    %v7990 = vsel %vm7947, %v7925, %v7227
    %v7991 = vsel %vm7947, %v7926, %v7229
    %v7992 = vsel %vm7947, %v7927, %v7231
    %v7993 = vsel %vm7947, %v7928, %v7233
    %v7994 = vsel %vm7947, %v7929, %v7235
    %v7995 = vsel %vm7947, %v7930, %v7237
    %v7996 = vsel %vm7947, %v7931, %v7239
    %v7997 = vsel %vm7947, %v7932, %v7241
    %v7998 = vsel %vm7947, %v7933, %v7243
    %v7999 = vsel %vm7947, %v7934, %v7245
    %v8000 = vsel %vm7947, %v7935, %v7247
    %v8001 = vsel %vm7947, %v7936, %v7249
    %v8002 = vsel %vm7947, %v7937, %v7251
    %v8003 = vsel %vm7947, %v7938, %v7253
    %v8004 = vsel %vm7947, %v7939, %v7255
    %v8005 = vsel %vm7947, %v7940, %v7257
    %v8006 = vsel %vm7947, %v7941, %v7259
    %v8007 = vsel %vm7947, %v7942, %v7261
    %v8008 = vsel %vm7947, %v7943, %v7263
    %v8009 = vsel %vm7947, %v7944, %v7265
    %v8010 = vsel %vm7947, %v7945, %v7267
    %v8011 = vsel %vm7947, %v7946, %v7269
    %vm8012 = vcmask 97280
    %v8013 = vsel %vm8012, %v7948, %v7496
    %v8014 = vsel %vm8012, %v7949, %v7498
    %v8015 = vsel %vm8012, %v7950, %v7500
    %v8016 = vsel %vm8012, %v7951, %v7502
    %v8017 = vsel %vm8012, %v7952, %v7504
    %v8018 = vsel %vm8012, %v7953, %v7506
    %v8019 = vsel %vm8012, %v7954, %v7508
    %v8020 = vsel %vm8012, %v7955, %v7510
    %v8021 = vsel %vm8012, %v7956, %v7512
    %v8022 = vsel %vm8012, %v7957, %v7514
    %v8023 = vsel %vm8012, %v7958, %v7516
    %v8024 = vsel %vm8012, %v7959, %v7518
    %v8025 = vsel %vm8012, %v7960, %v7520
    %v8026 = vsel %vm8012, %v7961, %v7522
    %v8027 = vsel %vm8012, %v7962, %v7524
    %v8028 = vsel %vm8012, %v7963, %v7526
    %v8029 = vsel %vm8012, %v7964, %v7528
    %v8030 = vsel %vm8012, %v7965, %v7530
    %v8031 = vsel %vm8012, %v7966, %v7532
    %v8032 = vsel %vm8012, %v7967, %v7534
    %v8033 = vsel %vm8012, %v7968, %v7536
    %v8034 = vsel %vm8012, %v7969, %v7538
    %v8035 = vsel %vm8012, %v7970, %v7540
    %v8036 = vsel %vm8012, %v7971, %v7542
    %v8037 = vsel %vm8012, %v7972, %v7544
    %v8038 = vsel %vm8012, %v7973, %v7546
    %v8039 = vsel %vm8012, %v7974, %v7548
    %v8040 = vsel %vm8012, %v7975, %v7550
    %v8041 = vsel %vm8012, %v7976, %v7552
    %v8042 = vsel %vm8012, %v7977, %v7554
    %v8043 = vsel %vm8012, %v7978, %v7556
    %v8044 = vsel %vm8012, %v7979, %v7558
    %v8045 = vsel %vm8012, %v7980, %v7560
    %v8046 = vsel %vm8012, %v7981, %v7562
    %v8047 = vsel %vm8012, %v7982, %v7564
    %v8048 = vsel %vm8012, %v7983, %v7566
    %v8049 = vsel %vm8012, %v7984, %v7568
    %v8050 = vsel %vm8012, %v7985, %v7570
    %v8051 = vsel %vm8012, %v7986, %v7572
    %v8052 = vsel %vm8012, %v7987, %v7574
    %v8053 = vsel %vm8012, %v7988, %v7576
    %v8054 = vsel %vm8012, %v7989, %v7578
    %v8055 = vsel %vm8012, %v7990, %v7580
    %v8056 = vsel %vm8012, %v7991, %v7582
    %v8057 = vsel %vm8012, %v7992, %v7584
    %v8058 = vsel %vm8012, %v7993, %v7586
    %v8059 = vsel %vm8012, %v7994, %v7588
    %v8060 = vsel %vm8012, %v7995, %v7590
    %v8061 = vsel %vm8012, %v7996, %v7592
    %v8062 = vsel %vm8012, %v7997, %v7594
    %v8063 = vsel %vm8012, %v7998, %v7596
    %v8064 = vsel %vm8012, %v7999, %v7598
    %v8065 = vsel %vm8012, %v8000, %v7600
    %v8066 = vsel %vm8012, %v8001, %v7602
    %v8067 = vsel %vm8012, %v8002, %v7604
    %v8068 = vsel %vm8012, %v8003, %v7606
    %v8069 = vsel %vm8012, %v8004, %v7608
    %v8070 = vsel %vm8012, %v8005, %v7610
    %v8071 = vsel %vm8012, %v8006, %v7612
    %v8072 = vsel %vm8012, %v8007, %v7614
    %v8073 = vsel %vm8012, %v8008, %v7616
    %v8074 = vsel %vm8012, %v8009, %v7618
    %v8075 = vsel %vm8012, %v8010, %v7620
    %v8076 = vsel %vm8012, %v8011, %v7622
    %v8077 = vld [vmem:[%s5] sm:$0x3]
    %v8078 = vld [vmem:[%s5 + $0x2] sm:$0x3]
    %v8079 = vld [vmem:[%s5 + $0x4] sm:$0x3]
    %v8080 = vld [vmem:[%s5 + $0x6] sm:$0x3]
    %v8081 = vld [vmem:[%s5 + $0x8] sm:$0x3]
    %v8082 = vld [vmem:[%s5 + $0xa] sm:$0x3]
    %v8083 = vld [vmem:[%s5 + $0xc] sm:$0x3]
    %v8084 = vld [vmem:[%s6] sm:$0x1]
    %v8086 = vlaneseq
    %v8087 = vshrl.u32 %v8086, 7
    %v8088 = vsub.s32 0, %v8087
    %v8089 = vrot.slane %v8084, %v8088
    %v8098 = vcombine.low %v8077, %v8078
    %v8099 = vcombine.low %v8079, %v8080
    %v8101 = vunpack.c.l.s4 1983009808
    %v8102 = vunpack.c.0.s8 %v8101
    %v8103 = vlaneseq
    %v8104 = vshrl.u32 %v8103, 7
    %v8105 = vsub.s32 %v8102, %v8104
    %v8106 = vrot.slane %v8098, %v8105
    %v8108 = vunpack.c.l.s4 1983009808
    %v8109 = vunpack.c.0.s8 %v8108
    %v8110 = vlaneseq
    %v8111 = vshrl.u32 %v8110, 7
    %v8112 = vsub.s32 %v8109, %v8111
    %v8113 = vrot.slane %v8099, %v8112
    %v8114 = vcombine.low %v8106, %v8113
    %v8115 = vcombine.low %v8081, %v8082
    %v8117 = vunpack.c.l.s4 1983009808
    %v8118 = vunpack.c.0.s8 %v8117
    %v8119 = vlaneseq
    %v8120 = vshrl.u32 %v8119, 7
    %v8121 = vsub.s32 %v8118, %v8120
    %v8122 = vrot.slane %v8115, %v8121
    %v8124 = vunpack.c.l.s4 1983009808
    %v8125 = vunpack.c.0.s8 %v8124
    %v8126 = vlaneseq
    %v8127 = vshrl.u32 %v8126, 7
    %v8128 = vsub.s32 %v8125, %v8127
    %v8129 = vrot.slane %v8083, %v8128
    %v8130 = vcombine.low %v8122, %v8129
    %vm8132 = vcmask 113664
    %v8134 = vsel %vm8132, %v8013, 0
    %v8137 = vsel %vm8132, %v8014, 0
    %v8140 = vsel %vm8132, %v8015, 0
    %v8143 = vsel %vm8132, %v8016, 0
    %v8146 = vsel %vm8132, %v8017, 0
    %v8149 = vsel %vm8132, %v8018, 0
    %v8152 = vsel %vm8132, %v8019, 0
    %v8155 = vsel %vm8132, %v8020, 0
    %v8158 = vsel %vm8132, %v8021, 0
    %v8161 = vsel %vm8132, %v8022, 0
    %v8164 = vsel %vm8132, %v8023, 0
    %v8167 = vsel %vm8132, %v8024, 0
    %v8170 = vsel %vm8132, %v8025, 0
    %v8173 = vsel %vm8132, %v8026, 0
    %v8176 = vsel %vm8132, %v8027, 0
    %v8179 = vsel %vm8132, %v8028, 0
    %v8182 = vsel %vm8132, %v8029, 0
    %v8185 = vsel %vm8132, %v8030, 0
    %v8188 = vsel %vm8132, %v8031, 0
    %v8191 = vsel %vm8132, %v8032, 0
    %v8194 = vsel %vm8132, %v8033, 0
    %v8197 = vsel %vm8132, %v8034, 0
    %v8200 = vsel %vm8132, %v8035, 0
    %v8203 = vsel %vm8132, %v8036, 0
    %v8206 = vsel %vm8132, %v8037, 0
    %v8209 = vsel %vm8132, %v8038, 0
    %v8212 = vsel %vm8132, %v8039, 0
    %v8215 = vsel %vm8132, %v8040, 0
    %v8218 = vsel %vm8132, %v8041, 0
    %v8221 = vsel %vm8132, %v8042, 0
    %v8224 = vsel %vm8132, %v8043, 0
    %v8227 = vsel %vm8132, %v8044, 0
    %v8230 = vsel %vm8132, %v8045, 0
    %v8233 = vsel %vm8132, %v8046, 0
    %v8236 = vsel %vm8132, %v8047, 0
    %v8239 = vsel %vm8132, %v8048, 0
    %v8242 = vsel %vm8132, %v8049, 0
    %v8245 = vsel %vm8132, %v8050, 0
    %v8248 = vsel %vm8132, %v8051, 0
    %v8251 = vsel %vm8132, %v8052, 0
    %v8254 = vsel %vm8132, %v8053, 0
    %v8257 = vsel %vm8132, %v8054, 0
    %v8260 = vsel %vm8132, %v8055, 0
    %v8263 = vsel %vm8132, %v8056, 0
    %v8266 = vsel %vm8132, %v8057, 0
    %v8269 = vsel %vm8132, %v8058, 0
    %v8272 = vsel %vm8132, %v8059, 0
    %v8275 = vsel %vm8132, %v8060, 0
    %v8278 = vsel %vm8132, %v8061, 0
    %v8281 = vsel %vm8132, %v8062, 0
    %v8284 = vsel %vm8132, %v8063, 0
    %v8287 = vsel %vm8132, %v8064, 0
    %v8290 = vsel %vm8132, %v8065, 0
    %v8293 = vsel %vm8132, %v8066, 0
    %v8296 = vsel %vm8132, %v8067, 0
    %v8299 = vsel %vm8132, %v8068, 0
    %v8302 = vsel %vm8132, %v8069, 0
    %v8305 = vsel %vm8132, %v8070, 0
    %v8308 = vsel %vm8132, %v8071, 0
    %v8311 = vsel %vm8132, %v8072, 0
    %v8314 = vsel %vm8132, %v8073, 0
    %v8317 = vsel %vm8132, %v8074, 0
    %v8320 = vsel %vm8132, %v8075, 0
    %v8323 = vsel %vm8132, %v8076, 0
    %v8325 = vsel %vm773, %v8130, 0
    %8327 = vmatprep.subr.mxu0 0.0
    %8328 = vmatpush1.msra.mxu0 %v8114
    %8329 = vmatprep.subr.mxu0 0.0
    %8330 = vmatpush1.msra.mxu0 %v8325
    %8331 = vmatprep.subr.mxu0 0.0
    %8332 = vmatpush1.msra.mxu0 0.0
    %8333 = vmatprep.subr.mxu0 0.0
    %8334 = vmatpush1.msra.mxu0 0.0
    %8335 = vmatprep.subr.mxu0 0.0
    %8336 = vmatpush1.msra.mxu0 0.0
    %8337 = vmatprep.subr.mxu0 0.0
    %8338 = vmatpush1.msra.mxu0 0.0
    %8339 = vmatprep.subr.mxu0 0.0
    %8340 = vmatpush1.msra.mxu0 0.0
    %8341 = vmatprep.subr.mxu0 0.0
    %8342 = vmatpush1.msra.mxu0 0.0
    %8343 = vmatprep.subr.mxu0 0.0
    %8344 = vmatpush1.msra.mxu0 0.0
    %8345 = vmatprep.subr.mxu0 0.0
    %8346 = vmatpush1.msra.mxu0 0.0
    %8347 = vmatprep.subr.mxu0 0.0
    %8348 = vmatpush1.msra.mxu0 0.0
    %8349 = vmatprep.subr.mxu0 0.0
    %8350 = vmatpush1.msra.mxu0 0.0
    %8351 = vmatprep.subr.mxu0 0.0
    %8352 = vmatpush1.msra.mxu0 0.0
    %8353 = vmatprep.subr.mxu0 0.0
    %8354 = vmatpush1.msra.mxu0 0.0
    %8355 = vmatprep.subr.mxu0 0.0
    %8356 = vmatpush1.msra.mxu0 0.0
    %8357 = vmatprep.subr.mxu0 0.0
    %8358 = vmatpush1.msra.mxu0 0.0
    %8359 = vmatprep.subr.mxu0 0.0
    %8360 = vmatpush1.msra.mxu0 0.0
    %8361 = vmatprep.subr.mxu0 0.0
    %8362 = vmatpush1.msra.mxu0 0.0
    %8363 = vmatprep.subr.mxu0 0.0
    %8364 = vmatpush1.msra.mxu0 0.0
    %8365 = vmatprep.subr.mxu0 0.0
    %8366 = vmatpush1.msra.mxu0 0.0
    %8367 = vmatprep.subr.mxu0 0.0
    %8368 = vmatpush1.msra.mxu0 0.0
    %8369 = vmatprep.subr.mxu0 0.0
    %8370 = vmatpush1.msra.mxu0 0.0
    %8371 = vmatprep.subr.mxu0 0.0
    %8372 = vmatpush1.msra.mxu0 0.0
    %8373 = vmatprep.subr.mxu0 0.0
    %8374 = vmatpush1.msra.mxu0 0.0
    %8375 = vmatprep.subr.mxu0 0.0
    %8376 = vmatpush1.msra.mxu0 0.0
    %8377 = vmatprep.subr.mxu0 0.0
    %8378 = vmatpush1.msra.mxu0 0.0
    %8379 = vmatprep.subr.mxu0 0.0
    %8380 = vmatpush1.msra.mxu0 0.0
    %8381 = vmatprep.subr.mxu0 0.0
    %8382 = vmatpush1.msra.mxu0 0.0
    %8383 = vmatprep.subr.mxu0 0.0
    %8384 = vmatpush1.msra.mxu0 0.0
    %8385 = vmatprep.subr.mxu0 0.0
    %8386 = vmatpush1.msra.mxu0 0.0
    %8387 = vmatprep.subr.mxu0 0.0
    %8388 = vmatpush1.msra.mxu0 0.0
    %8389 = vmatprep.subr.mxu0 0.0
    %8390 = vmatpush1.msra.mxu0 0.0
    %8391 = vmatprep.mubr.f32.mxu0 0.0
    %8392 = vmatmul.mubr.f32.gmra.mrb[0].mxu0 %v8134
    %v8393 = vpop.f32.mrb[0].mxu0
    %v8394 = vadd.f32 %v8089, %v8393
    %v8395 = vpop.f32.mrb[0].mxu0
    %8396 = vmatprep.mubr.f32.mxu0 0.0
    %8397 = vmatmul.mubr.f32.gmra.mrb[0].mxu0 %v8137
    %v8398 = vpop.f32.mrb[0].mxu0
    %v8399 = vadd.f32 %v8089, %v8398
    %v8400 = vpop.f32.mrb[0].mxu0
    %8401 = vmatprep.mubr.f32.mxu0 0.0
    %8402 = vmatmul.mubr.f32.gmra.mrb[0].mxu0 %v8140
    %v8403 = vpop.f32.mrb[0].mxu0
    %v8404 = vadd.f32 %v8089, %v8403
    %v8405 = vpop.f32.mrb[0].mxu0
    %8406 = vmatprep.mubr.f32.mxu0 0.0
    %8407 = vmatmul.mubr.f32.gmra.mrb[0].mxu0 %v8143
    %v8408 = vpop.f32.mrb[0].mxu0
    %v8409 = vadd.f32 %v8089, %v8408
    %v8410 = vpop.f32.mrb[0].mxu0
    %8411 = vmatprep.mubr.f32.mxu0 0.0
    %8412 = vmatmul.mubr.f32.gmra.mrb[0].mxu0 %v8146
    %v8413 = vpop.f32.mrb[0].mxu0
    %v8414 = vadd.f32 %v8089, %v8413
    %v8415 = vpop.f32.mrb[0].mxu0
    %8416 = vmatprep.mubr.f32.mxu0 0.0
    %8417 = vmatmul.mubr.f32.gmra.mrb[0].mxu0 %v8149
    %v8418 = vpop.f32.mrb[0].mxu0
    %v8419 = vadd.f32 %v8089, %v8418
    %v8420 = vpop.f32.mrb[0].mxu0
    %8421 = vmatprep.mubr.f32.mxu0 0.0
    %8422 = vmatmul.mubr.f32.gmra.mrb[0].mxu0 %v8152
    %v8423 = vpop.f32.mrb[0].mxu0
    %v8424 = vadd.f32 %v8089, %v8423
    %v8425 = vpop.f32.mrb[0].mxu0
    %8426 = vmatprep.mubr.f32.mxu0 0.0
    %8427 = vmatmul.mubr.f32.gmra.mrb[0].mxu0 %v8155
    %v8428 = vpop.f32.mrb[0].mxu0
    %v8429 = vadd.f32 %v8089, %v8428
    %v8430 = vpop.f32.mrb[0].mxu0
    %8431 = vmatprep.mubr.f32.mxu0 0.0
    %8432 = vmatmul.mubr.f32.gmra.mrb[0].mxu0 %v8158
    %v8433 = vpop.f32.mrb[0].mxu0
    %v8434 = vadd.f32 %v8089, %v8433
    %v8435 = vpop.f32.mrb[0].mxu0
    %8436 = vmatprep.mubr.f32.mxu0 0.0
    %8437 = vmatmul.mubr.f32.gmra.mrb[0].mxu0 %v8161
    %v8438 = vpop.f32.mrb[0].mxu0
    %v8439 = vadd.f32 %v8089, %v8438
    %v8440 = vpop.f32.mrb[0].mxu0
    %8441 = vmatprep.mubr.f32.mxu0 0.0
    %8442 = vmatmul.mubr.f32.gmra.mrb[0].mxu0 %v8164
    %v8443 = vpop.f32.mrb[0].mxu0
    %v8444 = vadd.f32 %v8089, %v8443
    %v8445 = vpop.f32.mrb[0].mxu0
    %8446 = vmatprep.mubr.f32.mxu0 0.0
    %8447 = vmatmul.mubr.f32.gmra.mrb[0].mxu0 %v8167
    %v8448 = vpop.f32.mrb[0].mxu0
    %v8449 = vadd.f32 %v8089, %v8448
    %v8450 = vpop.f32.mrb[0].mxu0
    %8451 = vmatprep.mubr.f32.mxu0 0.0
    %8452 = vmatmul.mubr.f32.gmra.mrb[0].mxu0 %v8170
    %v8453 = vpop.f32.mrb[0].mxu0
    %v8454 = vadd.f32 %v8089, %v8453
    %v8455 = vpop.f32.mrb[0].mxu0
    %8456 = vmatprep.mubr.f32.mxu0 0.0
    %8457 = vmatmul.mubr.f32.gmra.mrb[0].mxu0 %v8173
    %v8458 = vpop.f32.mrb[0].mxu0
    %v8459 = vadd.f32 %v8089, %v8458
    %v8460 = vpop.f32.mrb[0].mxu0
    %8461 = vmatprep.mubr.f32.mxu0 0.0
    %8462 = vmatmul.mubr.f32.gmra.mrb[0].mxu0 %v8176
    %v8463 = vpop.f32.mrb[0].mxu0
    %v8464 = vadd.f32 %v8089, %v8463
    %v8465 = vpop.f32.mrb[0].mxu0
    %8466 = vmatprep.mubr.f32.mxu0 0.0
    %8467 = vmatmul.mubr.f32.gmra.mrb[0].mxu0 %v8179
    %v8468 = vpop.f32.mrb[0].mxu0
    %v8469 = vadd.f32 %v8089, %v8468
    %v8470 = vpop.f32.mrb[0].mxu0
    %8471 = vmatprep.mubr.f32.mxu0 0.0
    %8472 = vmatmul.mubr.f32.gmra.mrb[0].mxu0 %v8182
    %v8473 = vpop.f32.mrb[0].mxu0
    %v8474 = vadd.f32 %v8089, %v8473
    %v8475 = vpop.f32.mrb[0].mxu0
    %8476 = vmatprep.mubr.f32.mxu0 0.0
    %8477 = vmatmul.mubr.f32.gmra.mrb[0].mxu0 %v8185
    %v8478 = vpop.f32.mrb[0].mxu0
    %v8479 = vadd.f32 %v8089, %v8478
    %v8480 = vpop.f32.mrb[0].mxu0
    %8481 = vmatprep.mubr.f32.mxu0 0.0
    %8482 = vmatmul.mubr.f32.gmra.mrb[0].mxu0 %v8188
    %v8483 = vpop.f32.mrb[0].mxu0
    %v8484 = vadd.f32 %v8089, %v8483
    %v8485 = vpop.f32.mrb[0].mxu0
    %8486 = vmatprep.mubr.f32.mxu0 0.0
    %8487 = vmatmul.mubr.f32.gmra.mrb[0].mxu0 %v8191
    %v8488 = vpop.f32.mrb[0].mxu0
    %v8489 = vadd.f32 %v8089, %v8488
    %v8490 = vpop.f32.mrb[0].mxu0
    %8491 = vmatprep.mubr.f32.mxu0 0.0
    %8492 = vmatmul.mubr.f32.gmra.mrb[0].mxu0 %v8194
    %v8493 = vpop.f32.mrb[0].mxu0
    %v8494 = vadd.f32 %v8089, %v8493
    %v8495 = vpop.f32.mrb[0].mxu0
    %8496 = vmatprep.mubr.f32.mxu0 0.0
    %8497 = vmatmul.mubr.f32.gmra.mrb[0].mxu0 %v8197
    %v8498 = vpop.f32.mrb[0].mxu0
    %v8499 = vadd.f32 %v8089, %v8498
    %v8500 = vpop.f32.mrb[0].mxu0
    %8501 = vmatprep.mubr.f32.mxu0 0.0
    %8502 = vmatmul.mubr.f32.gmra.mrb[0].mxu0 %v8200
    %v8503 = vpop.f32.mrb[0].mxu0
    %v8504 = vadd.f32 %v8089, %v8503
    %v8505 = vpop.f32.mrb[0].mxu0
    %8506 = vmatprep.mubr.f32.mxu0 0.0
    %8507 = vmatmul.mubr.f32.gmra.mrb[0].mxu0 %v8203
    %v8508 = vpop.f32.mrb[0].mxu0
    %v8509 = vadd.f32 %v8089, %v8508
    %v8510 = vpop.f32.mrb[0].mxu0
    %8511 = vmatprep.mubr.f32.mxu0 0.0
    %8512 = vmatmul.mubr.f32.gmra.mrb[0].mxu0 %v8206
    %v8513 = vpop.f32.mrb[0].mxu0
    %v8514 = vadd.f32 %v8089, %v8513
    %v8515 = vpop.f32.mrb[0].mxu0
    %8516 = vmatprep.mubr.f32.mxu0 0.0
    %8517 = vmatmul.mubr.f32.gmra.mrb[0].mxu0 %v8209
    %v8518 = vpop.f32.mrb[0].mxu0
    %v8519 = vadd.f32 %v8089, %v8518
    %v8520 = vpop.f32.mrb[0].mxu0
    %8521 = vmatprep.mubr.f32.mxu0 0.0
    %8522 = vmatmul.mubr.f32.gmra.mrb[0].mxu0 %v8212
    %v8523 = vpop.f32.mrb[0].mxu0
    %v8524 = vadd.f32 %v8089, %v8523
    %v8525 = vpop.f32.mrb[0].mxu0
    %8526 = vmatprep.mubr.f32.mxu0 0.0
    %8527 = vmatmul.mubr.f32.gmra.mrb[0].mxu0 %v8215
    %v8528 = vpop.f32.mrb[0].mxu0
    %v8529 = vadd.f32 %v8089, %v8528
    %v8530 = vpop.f32.mrb[0].mxu0
    %8531 = vmatprep.mubr.f32.mxu0 0.0
    %8532 = vmatmul.mubr.f32.gmra.mrb[0].mxu0 %v8218
    %v8533 = vpop.f32.mrb[0].mxu0
    %v8534 = vadd.f32 %v8089, %v8533
    %v8535 = vpop.f32.mrb[0].mxu0
    %8536 = vmatprep.mubr.f32.mxu0 0.0
    %8537 = vmatmul.mubr.f32.gmra.mrb[0].mxu0 %v8221
    %v8538 = vpop.f32.mrb[0].mxu0
    %v8539 = vadd.f32 %v8089, %v8538
    %v8540 = vpop.f32.mrb[0].mxu0
    %8541 = vmatprep.mubr.f32.mxu0 0.0
    %8542 = vmatmul.mubr.f32.gmra.mrb[0].mxu0 %v8224
    %v8543 = vpop.f32.mrb[0].mxu0
    %v8544 = vadd.f32 %v8089, %v8543
    %v8545 = vpop.f32.mrb[0].mxu0
    %8546 = vmatprep.mubr.f32.mxu0 0.0
    %8547 = vmatmul.mubr.f32.gmra.mrb[0].mxu0 %v8227
    %v8548 = vpop.f32.mrb[0].mxu0
    %v8549 = vadd.f32 %v8089, %v8548
    %v8550 = vpop.f32.mrb[0].mxu0
    %8551 = vmatprep.mubr.f32.mxu0 0.0
    %8552 = vmatmul.mubr.f32.gmra.mrb[0].mxu0 %v8230
    %v8553 = vpop.f32.mrb[0].mxu0
    %v8554 = vadd.f32 %v8089, %v8553
    %v8555 = vpop.f32.mrb[0].mxu0
    %8556 = vmatprep.mubr.f32.mxu0 0.0
    %8557 = vmatmul.mubr.f32.gmra.mrb[0].mxu0 %v8233
    %v8558 = vpop.f32.mrb[0].mxu0
    %v8559 = vadd.f32 %v8089, %v8558
    %v8560 = vpop.f32.mrb[0].mxu0
    %8561 = vmatprep.mubr.f32.mxu0 0.0
    %8562 = vmatmul.mubr.f32.gmra.mrb[0].mxu0 %v8236
    %v8563 = vpop.f32.mrb[0].mxu0
    %v8564 = vadd.f32 %v8089, %v8563
    %v8565 = vpop.f32.mrb[0].mxu0
    %8566 = vmatprep.mubr.f32.mxu0 0.0
    %8567 = vmatmul.mubr.f32.gmra.mrb[0].mxu0 %v8239
    %v8568 = vpop.f32.mrb[0].mxu0
    %v8569 = vadd.f32 %v8089, %v8568
    %v8570 = vpop.f32.mrb[0].mxu0
    %8571 = vmatprep.mubr.f32.mxu0 0.0
    %8572 = vmatmul.mubr.f32.gmra.mrb[0].mxu0 %v8242
    %v8573 = vpop.f32.mrb[0].mxu0
    %v8574 = vadd.f32 %v8089, %v8573
    %v8575 = vpop.f32.mrb[0].mxu0
    %8576 = vmatprep.mubr.f32.mxu0 0.0
    %8577 = vmatmul.mubr.f32.gmra.mrb[0].mxu0 %v8245
    %v8578 = vpop.f32.mrb[0].mxu0
    %v8579 = vadd.f32 %v8089, %v8578
    %v8580 = vpop.f32.mrb[0].mxu0
    %8581 = vmatprep.mubr.f32.mxu0 0.0
    %8582 = vmatmul.mubr.f32.gmra.mrb[0].mxu0 %v8248
    %v8583 = vpop.f32.mrb[0].mxu0
    %v8584 = vadd.f32 %v8089, %v8583
    %v8585 = vpop.f32.mrb[0].mxu0
    %8586 = vmatprep.mubr.f32.mxu0 0.0
    %8587 = vmatmul.mubr.f32.gmra.mrb[0].mxu0 %v8251
    %v8588 = vpop.f32.mrb[0].mxu0
    %v8589 = vadd.f32 %v8089, %v8588
    %v8590 = vpop.f32.mrb[0].mxu0
    %8591 = vmatprep.mubr.f32.mxu0 0.0
    %8592 = vmatmul.mubr.f32.gmra.mrb[0].mxu0 %v8254
    %v8593 = vpop.f32.mrb[0].mxu0
    %v8594 = vadd.f32 %v8089, %v8593
    %v8595 = vpop.f32.mrb[0].mxu0
    %8596 = vmatprep.mubr.f32.mxu0 0.0
    %8597 = vmatmul.mubr.f32.gmra.mrb[0].mxu0 %v8257
    %v8598 = vpop.f32.mrb[0].mxu0
    %v8599 = vadd.f32 %v8089, %v8598
    %v8600 = vpop.f32.mrb[0].mxu0
    %8601 = vmatprep.mubr.f32.mxu0 0.0
    %8602 = vmatmul.mubr.f32.gmra.mrb[0].mxu0 %v8260
    %v8603 = vpop.f32.mrb[0].mxu0
    %v8604 = vadd.f32 %v8089, %v8603
    %v8605 = vpop.f32.mrb[0].mxu0
    %8606 = vmatprep.mubr.f32.mxu0 0.0
    %8607 = vmatmul.mubr.f32.gmra.mrb[0].mxu0 %v8263
    %v8608 = vpop.f32.mrb[0].mxu0
    %v8609 = vadd.f32 %v8089, %v8608
    %v8610 = vpop.f32.mrb[0].mxu0
    %8611 = vmatprep.mubr.f32.mxu0 0.0
    %8612 = vmatmul.mubr.f32.gmra.mrb[0].mxu0 %v8266
    %v8613 = vpop.f32.mrb[0].mxu0
    %v8614 = vadd.f32 %v8089, %v8613
    %v8615 = vpop.f32.mrb[0].mxu0
    %8616 = vmatprep.mubr.f32.mxu0 0.0
    %8617 = vmatmul.mubr.f32.gmra.mrb[0].mxu0 %v8269
    %v8618 = vpop.f32.mrb[0].mxu0
    %v8619 = vadd.f32 %v8089, %v8618
    %v8620 = vpop.f32.mrb[0].mxu0
    %8621 = vmatprep.mubr.f32.mxu0 0.0
    %8622 = vmatmul.mubr.f32.gmra.mrb[0].mxu0 %v8272
    %v8623 = vpop.f32.mrb[0].mxu0
    %v8624 = vadd.f32 %v8089, %v8623
    %v8625 = vpop.f32.mrb[0].mxu0
    %8626 = vmatprep.mubr.f32.mxu0 0.0
    %8627 = vmatmul.mubr.f32.gmra.mrb[0].mxu0 %v8275
    %v8628 = vpop.f32.mrb[0].mxu0
    %v8629 = vadd.f32 %v8089, %v8628
    %v8630 = vpop.f32.mrb[0].mxu0
    %8631 = vmatprep.mubr.f32.mxu0 0.0
    %8632 = vmatmul.mubr.f32.gmra.mrb[0].mxu0 %v8278
    %v8633 = vpop.f32.mrb[0].mxu0
    %v8634 = vadd.f32 %v8089, %v8633
    %v8635 = vpop.f32.mrb[0].mxu0
    %8636 = vmatprep.mubr.f32.mxu0 0.0
    %8637 = vmatmul.mubr.f32.gmra.mrb[0].mxu0 %v8281
    %v8638 = vpop.f32.mrb[0].mxu0
    %v8639 = vadd.f32 %v8089, %v8638
    %v8640 = vpop.f32.mrb[0].mxu0
    %8641 = vmatprep.mubr.f32.mxu0 0.0
    %8642 = vmatmul.mubr.f32.gmra.mrb[0].mxu0 %v8284
    %v8643 = vpop.f32.mrb[0].mxu0
    %v8644 = vadd.f32 %v8089, %v8643
    %v8645 = vpop.f32.mrb[0].mxu0
    %8646 = vmatprep.mubr.f32.mxu0 0.0
    %8647 = vmatmul.mubr.f32.gmra.mrb[0].mxu0 %v8287
    %v8648 = vpop.f32.mrb[0].mxu0
    %v8649 = vadd.f32 %v8089, %v8648
    %v8650 = vpop.f32.mrb[0].mxu0
    %8651 = vmatprep.mubr.f32.mxu0 0.0
    %8652 = vmatmul.mubr.f32.gmra.mrb[0].mxu0 %v8290
    %v8653 = vpop.f32.mrb[0].mxu0
    %v8654 = vadd.f32 %v8089, %v8653
    %v8655 = vpop.f32.mrb[0].mxu0
    %8656 = vmatprep.mubr.f32.mxu0 0.0
    %8657 = vmatmul.mubr.f32.gmra.mrb[0].mxu0 %v8293
    %v8658 = vpop.f32.mrb[0].mxu0
    %v8659 = vadd.f32 %v8089, %v8658
    %v8660 = vpop.f32.mrb[0].mxu0
    %8661 = vmatprep.mubr.f32.mxu0 0.0
    %8662 = vmatmul.mubr.f32.gmra.mrb[0].mxu0 %v8296
    %v8663 = vpop.f32.mrb[0].mxu0
    %v8664 = vadd.f32 %v8089, %v8663
    %v8665 = vpop.f32.mrb[0].mxu0
    %8666 = vmatprep.mubr.f32.mxu0 0.0
    %8667 = vmatmul.mubr.f32.gmra.mrb[0].mxu0 %v8299
    %v8668 = vpop.f32.mrb[0].mxu0
    %v8669 = vadd.f32 %v8089, %v8668
    %v8670 = vpop.f32.mrb[0].mxu0
    %8671 = vmatprep.mubr.f32.mxu0 0.0
    %8672 = vmatmul.mubr.f32.gmra.mrb[0].mxu0 %v8302
    %v8673 = vpop.f32.mrb[0].mxu0
    %v8674 = vadd.f32 %v8089, %v8673
    %v8675 = vpop.f32.mrb[0].mxu0
    %8676 = vmatprep.mubr.f32.mxu0 0.0
    %8677 = vmatmul.mubr.f32.gmra.mrb[0].mxu0 %v8305
    %v8678 = vpop.f32.mrb[0].mxu0
    %v8679 = vadd.f32 %v8089, %v8678
    %v8680 = vpop.f32.mrb[0].mxu0
    %8681 = vmatprep.mubr.f32.mxu0 0.0
    %8682 = vmatmul.mubr.f32.gmra.mrb[0].mxu0 %v8308
    %v8683 = vpop.f32.mrb[0].mxu0
    %v8684 = vadd.f32 %v8089, %v8683
    %v8685 = vpop.f32.mrb[0].mxu0
    %8686 = vmatprep.mubr.f32.mxu0 0.0
    %8687 = vmatmul.mubr.f32.gmra.mrb[0].mxu0 %v8311
    %v8688 = vpop.f32.mrb[0].mxu0
    %v8689 = vadd.f32 %v8089, %v8688
    %v8690 = vpop.f32.mrb[0].mxu0
    %8691 = vmatprep.mubr.f32.mxu0 0.0
    %8692 = vmatmul.mubr.f32.gmra.mrb[0].mxu0 %v8314
    %v8693 = vpop.f32.mrb[0].mxu0
    %v8694 = vadd.f32 %v8089, %v8693
    %v8695 = vpop.f32.mrb[0].mxu0
    %8696 = vmatprep.mubr.f32.mxu0 0.0
    %8697 = vmatmul.mubr.f32.gmra.mrb[0].mxu0 %v8317
    %v8698 = vpop.f32.mrb[0].mxu0
    %v8699 = vadd.f32 %v8089, %v8698
    %v8700 = vpop.f32.mrb[0].mxu0
    %8701 = vmatprep.mubr.f32.mxu0 0.0
    %8702 = vmatmul.mubr.f32.gmra.mrb[0].mxu0 %v8320
    %v8703 = vpop.f32.mrb[0].mxu0
    %v8704 = vadd.f32 %v8089, %v8703
    %v8705 = vpop.f32.mrb[0].mxu0
    %8706 = vmatprep.mubr.f32.mxu0 0.0
    %8707 = vmatmul.mubr.f32.gmra.mrb[0].mxu0 %v8323
    %v8708 = vpop.f32.mrb[0].mxu0
    %v8709 = vadd.f32 %v8089, %v8708
    %v8710 = vpop.f32.mrb[0].mxu0
    %8711 = vdwg.mxu0
    %8768 = vrot.lane.b32.xlu0 0.0, 4
    %v8769 = vpop.permute.xlu0 %8768
    %8770 = vrot.lane.b32.xlu0 %v8394, 4
    %v8771 = vpop.permute.xlu0 %8770
    %8772 = vrot.lane.b32.xlu0 %v8399, 4
    %v8773 = vpop.permute.xlu0 %8772
    %8774 = vrot.lane.b32.xlu0 %v8404, 4
    %v8775 = vpop.permute.xlu0 %8774
    %8776 = vrot.lane.b32.xlu0 %v8409, 4
    %v8777 = vpop.permute.xlu0 %8776
    %8778 = vrot.lane.b32.xlu0 %v8414, 4
    %v8779 = vpop.permute.xlu0 %8778
    %8780 = vrot.lane.b32.xlu0 %v8419, 4
    %v8781 = vpop.permute.xlu0 %8780
    %8782 = vrot.lane.b32.xlu0 %v8424, 4
    %v8783 = vpop.permute.xlu0 %8782
    %8784 = vrot.lane.b32.xlu0 %v8429, 4
    %v8785 = vpop.permute.xlu0 %8784
    %8786 = vrot.lane.b32.xlu0 %v8434, 4
    %v8787 = vpop.permute.xlu0 %8786
    %8788 = vrot.lane.b32.xlu0 %v8439, 4
    %v8789 = vpop.permute.xlu0 %8788
    %8790 = vrot.lane.b32.xlu0 %v8444, 4
    %v8791 = vpop.permute.xlu0 %8790
    %8792 = vrot.lane.b32.xlu0 %v8449, 4
    %v8793 = vpop.permute.xlu0 %8792
    %8794 = vrot.lane.b32.xlu0 %v8454, 4
    %v8795 = vpop.permute.xlu0 %8794
    %8796 = vrot.lane.b32.xlu0 %v8459, 4
    %v8797 = vpop.permute.xlu0 %8796
    %8798 = vrot.lane.b32.xlu0 %v8464, 4
    %v8799 = vpop.permute.xlu0 %8798
    %8800 = vrot.lane.b32.xlu0 %v8469, 4
    %v8801 = vpop.permute.xlu0 %8800
    %8802 = vrot.lane.b32.xlu0 %v8474, 4
    %v8803 = vpop.permute.xlu0 %8802
    %8804 = vrot.lane.b32.xlu0 %v8479, 4
    %v8805 = vpop.permute.xlu0 %8804
    %8806 = vrot.lane.b32.xlu0 %v8484, 4
    %v8807 = vpop.permute.xlu0 %8806
    %8808 = vrot.lane.b32.xlu0 %v8489, 4
    %v8809 = vpop.permute.xlu0 %8808
    %8810 = vrot.lane.b32.xlu0 %v8494, 4
    %v8811 = vpop.permute.xlu0 %8810
    %8812 = vrot.lane.b32.xlu0 %v8499, 4
    %v8813 = vpop.permute.xlu0 %8812
    %8814 = vrot.lane.b32.xlu0 %v8504, 4
    %v8815 = vpop.permute.xlu0 %8814
    %8816 = vrot.lane.b32.xlu0 %v8509, 4
    %v8817 = vpop.permute.xlu0 %8816
    %8818 = vrot.lane.b32.xlu0 %v8514, 4
    %v8819 = vpop.permute.xlu0 %8818
    %8820 = vrot.lane.b32.xlu0 %v8519, 4
    %v8821 = vpop.permute.xlu0 %8820
    %8822 = vrot.lane.b32.xlu0 %v8524, 4
    %v8823 = vpop.permute.xlu0 %8822
    %8824 = vrot.lane.b32.xlu0 %v8529, 4
    %v8825 = vpop.permute.xlu0 %8824
    %8826 = vrot.lane.b32.xlu0 %v8554, 4
    %v8827 = vpop.permute.xlu0 %8826
    %8828 = vrot.lane.b32.xlu0 %v8559, 4
    %v8829 = vpop.permute.xlu0 %8828
    %8830 = vrot.lane.b32.xlu0 %v8564, 4
    %v8831 = vpop.permute.xlu0 %8830
    %8832 = vrot.lane.b32.xlu0 %v8569, 4
    %v8833 = vpop.permute.xlu0 %8832
    %8834 = vrot.lane.b32.xlu0 %v8574, 4
    %v8835 = vpop.permute.xlu0 %8834
    %8836 = vrot.lane.b32.xlu0 %v8579, 4
    %v8837 = vpop.permute.xlu0 %8836
    %8838 = vrot.lane.b32.xlu0 %v8584, 4
    %v8839 = vpop.permute.xlu0 %8838
    %8840 = vrot.lane.b32.xlu0 %v8589, 4
    %v8841 = vpop.permute.xlu0 %8840
    %8842 = vrot.lane.b32.xlu0 %v8594, 4
    %v8843 = vpop.permute.xlu0 %8842
    %8844 = vrot.lane.b32.xlu0 %v8599, 4
    %v8845 = vpop.permute.xlu0 %8844
    %8846 = vrot.lane.b32.xlu0 %v8604, 4
    %v8847 = vpop.permute.xlu0 %8846
    %8848 = vrot.lane.b32.xlu0 %v8609, 4
    %v8849 = vpop.permute.xlu0 %8848
    %8850 = vrot.lane.b32.xlu0 %v8614, 4
    %v8851 = vpop.permute.xlu0 %8850
    %8852 = vrot.lane.b32.xlu0 %v8619, 4
    %v8853 = vpop.permute.xlu0 %8852
    %8854 = vrot.lane.b32.xlu0 %v8624, 4
    %v8855 = vpop.permute.xlu0 %8854
    %8856 = vrot.lane.b32.xlu0 %v8629, 4
    %v8857 = vpop.permute.xlu0 %8856
    %8858 = vrot.lane.b32.xlu0 %v8634, 4
    %v8859 = vpop.permute.xlu0 %8858
    %8860 = vrot.lane.b32.xlu0 %v8639, 4
    %v8861 = vpop.permute.xlu0 %8860
    %8862 = vrot.lane.b32.xlu0 %v8644, 4
    %v8863 = vpop.permute.xlu0 %8862
    %8864 = vrot.lane.b32.xlu0 %v8649, 4
    %v8865 = vpop.permute.xlu0 %8864
    %8866 = vrot.lane.b32.xlu0 %v8654, 4
    %v8867 = vpop.permute.xlu0 %8866
    %8868 = vrot.lane.b32.xlu0 %v8659, 4
    %v8869 = vpop.permute.xlu0 %8868
    %8870 = vrot.lane.b32.xlu0 %v8664, 4
    %v8871 = vpop.permute.xlu0 %8870
    %8872 = vrot.lane.b32.xlu0 %v8669, 4
    %v8873 = vpop.permute.xlu0 %8872
    %8874 = vrot.lane.b32.xlu0 %v8674, 4
    %v8875 = vpop.permute.xlu0 %8874
    %8876 = vrot.lane.b32.xlu0 %v8679, 4
    %v8877 = vpop.permute.xlu0 %8876
    %8878 = vrot.lane.b32.xlu0 %v8684, 4
    %v8879 = vpop.permute.xlu0 %8878
    %8880 = vrot.lane.b32.xlu0 %v8689, 4
    %v8881 = vpop.permute.xlu0 %8880
    %8943 = vrot.lane.b32.xlu0 0.0, 8
    %v8944 = vpop.permute.xlu0 %8943
    %8945 = vrot.lane.b32.xlu0 %v8394, 8
    %v8946 = vpop.permute.xlu0 %8945
    %8947 = vrot.lane.b32.xlu0 %v8399, 8
    %v8948 = vpop.permute.xlu0 %8947
    %8949 = vrot.lane.b32.xlu0 %v8404, 8
    %v8950 = vpop.permute.xlu0 %8949
    %8951 = vrot.lane.b32.xlu0 %v8409, 8
    %v8952 = vpop.permute.xlu0 %8951
    %8953 = vrot.lane.b32.xlu0 %v8414, 8
    %v8954 = vpop.permute.xlu0 %8953
    %8955 = vrot.lane.b32.xlu0 %v8419, 8
    %v8956 = vpop.permute.xlu0 %8955
    %8957 = vrot.lane.b32.xlu0 %v8424, 8
    %v8958 = vpop.permute.xlu0 %8957
    %8959 = vrot.lane.b32.xlu0 %v8429, 8
    %v8960 = vpop.permute.xlu0 %8959
    %8961 = vrot.lane.b32.xlu0 %v8434, 8
    %v8962 = vpop.permute.xlu0 %8961
    %8963 = vrot.lane.b32.xlu0 %v8439, 8
    %v8964 = vpop.permute.xlu0 %8963
    %8965 = vrot.lane.b32.xlu0 %v8444, 8
    %v8966 = vpop.permute.xlu0 %8965
    %8967 = vrot.lane.b32.xlu0 %v8449, 8
    %v8968 = vpop.permute.xlu0 %8967
    %8969 = vrot.lane.b32.xlu0 %v8454, 8
    %v8970 = vpop.permute.xlu0 %8969
    %8971 = vrot.lane.b32.xlu0 %v8459, 8
    %v8972 = vpop.permute.xlu0 %8971
    %8973 = vrot.lane.b32.xlu0 %v8464, 8
    %v8974 = vpop.permute.xlu0 %8973
    %8975 = vrot.lane.b32.xlu0 %v8469, 8
    %v8976 = vpop.permute.xlu0 %8975
    %8977 = vrot.lane.b32.xlu0 %v8474, 8
    %v8978 = vpop.permute.xlu0 %8977
    %8979 = vrot.lane.b32.xlu0 %v8479, 8
    %v8980 = vpop.permute.xlu0 %8979
    %8981 = vrot.lane.b32.xlu0 %v8484, 8
    %v8982 = vpop.permute.xlu0 %8981
    %8983 = vrot.lane.b32.xlu0 %v8489, 8
    %v8984 = vpop.permute.xlu0 %8983
    %8985 = vrot.lane.b32.xlu0 %v8494, 8
    %v8986 = vpop.permute.xlu0 %8985
    %8987 = vrot.lane.b32.xlu0 %v8499, 8
    %v8988 = vpop.permute.xlu0 %8987
    %8989 = vrot.lane.b32.xlu0 %v8504, 8
    %v8990 = vpop.permute.xlu0 %8989
    %8991 = vrot.lane.b32.xlu0 %v8509, 8
    %v8992 = vpop.permute.xlu0 %8991
    %8993 = vrot.lane.b32.xlu0 %v8514, 8
    %v8994 = vpop.permute.xlu0 %8993
    %8995 = vrot.lane.b32.xlu0 %v8519, 8
    %v8996 = vpop.permute.xlu0 %8995
    %8997 = vrot.lane.b32.xlu0 %v8524, 8
    %v8998 = vpop.permute.xlu0 %8997
    %8999 = vrot.lane.b32.xlu0 %v8529, 8
    %v9000 = vpop.permute.xlu0 %8999
    %9001 = vrot.lane.b32.xlu0 %v8534, 8
    %v9002 = vpop.permute.xlu0 %9001
    %9003 = vrot.lane.b32.xlu0 %v8539, 8
    %v9004 = vpop.permute.xlu0 %9003
    %9005 = vrot.lane.b32.xlu0 %v8554, 8
    %v9006 = vpop.permute.xlu0 %9005
    %9007 = vrot.lane.b32.xlu0 %v8559, 8
    %v9008 = vpop.permute.xlu0 %9007
    %9009 = vrot.lane.b32.xlu0 %v8564, 8
    %v9010 = vpop.permute.xlu0 %9009
    %9011 = vrot.lane.b32.xlu0 %v8569, 8
    %v9012 = vpop.permute.xlu0 %9011
    %9013 = vrot.lane.b32.xlu0 %v8574, 8
    %v9014 = vpop.permute.xlu0 %9013
    %9015 = vrot.lane.b32.xlu0 %v8579, 8
    %v9016 = vpop.permute.xlu0 %9015
    %9017 = vrot.lane.b32.xlu0 %v8584, 8
    %v9018 = vpop.permute.xlu0 %9017
    %9019 = vrot.lane.b32.xlu0 %v8589, 8
    %v9020 = vpop.permute.xlu0 %9019
    %9021 = vrot.lane.b32.xlu0 %v8594, 8
    %v9022 = vpop.permute.xlu0 %9021
    %9023 = vrot.lane.b32.xlu0 %v8599, 8
    %v9024 = vpop.permute.xlu0 %9023
    %9025 = vrot.lane.b32.xlu0 %v8604, 8
    %v9026 = vpop.permute.xlu0 %9025
    %9027 = vrot.lane.b32.xlu0 %v8609, 8
    %v9028 = vpop.permute.xlu0 %9027
    %9029 = vrot.lane.b32.xlu0 %v8614, 8
    %v9030 = vpop.permute.xlu0 %9029
    %9031 = vrot.lane.b32.xlu0 %v8619, 8
    %v9032 = vpop.permute.xlu0 %9031
    %9033 = vrot.lane.b32.xlu0 %v8624, 8
    %v9034 = vpop.permute.xlu0 %9033
    %9035 = vrot.lane.b32.xlu0 %v8629, 8
    %v9036 = vpop.permute.xlu0 %9035
    %9037 = vrot.lane.b32.xlu0 %v8634, 8
    %v9038 = vpop.permute.xlu0 %9037
    %9039 = vrot.lane.b32.xlu0 %v8639, 8
    %v9040 = vpop.permute.xlu0 %9039
    %9041 = vrot.lane.b32.xlu0 %v8644, 8
    %v9042 = vpop.permute.xlu0 %9041
    %9043 = vrot.lane.b32.xlu0 %v8649, 8
    %v9044 = vpop.permute.xlu0 %9043
    %9045 = vrot.lane.b32.xlu0 %v8654, 8
    %v9046 = vpop.permute.xlu0 %9045
    %9047 = vrot.lane.b32.xlu0 %v8659, 8
    %v9048 = vpop.permute.xlu0 %9047
    %9049 = vrot.lane.b32.xlu0 %v8664, 8
    %v9050 = vpop.permute.xlu0 %9049
    %9051 = vrot.lane.b32.xlu0 %v8669, 8
    %v9052 = vpop.permute.xlu0 %9051
    %9053 = vrot.lane.b32.xlu0 %v8674, 8
    %v9054 = vpop.permute.xlu0 %9053
    %9055 = vrot.lane.b32.xlu0 %v8679, 8
    %v9056 = vpop.permute.xlu0 %9055
    %9057 = vrot.lane.b32.xlu0 %v8684, 8
    %v9058 = vpop.permute.xlu0 %9057
    %9059 = vrot.lane.b32.xlu0 %v8689, 8
    %v9060 = vpop.permute.xlu0 %9059
    %9061 = vrot.lane.b32.xlu0 %v8694, 8
    %v9062 = vpop.permute.xlu0 %9061
    %9063 = vrot.lane.b32.xlu0 %v8699, 8
    %v9064 = vpop.permute.xlu0 %9063
    %9130 = vrot.lane.b32.xlu0 %v8394, 12
    %v9131 = vpop.permute.xlu0 %9130
    %9132 = vrot.lane.b32.xlu0 %v8399, 12
    %v9133 = vpop.permute.xlu0 %9132
    %9134 = vrot.lane.b32.xlu0 %v8404, 12
    %v9135 = vpop.permute.xlu0 %9134
    %9136 = vrot.lane.b32.xlu0 %v8409, 12
    %v9137 = vpop.permute.xlu0 %9136
    %9138 = vrot.lane.b32.xlu0 %v8414, 12
    %v9139 = vpop.permute.xlu0 %9138
    %9140 = vrot.lane.b32.xlu0 %v8419, 12
    %v9141 = vpop.permute.xlu0 %9140
    %9142 = vrot.lane.b32.xlu0 %v8424, 12
    %v9143 = vpop.permute.xlu0 %9142
    %9144 = vrot.lane.b32.xlu0 %v8429, 12
    %v9145 = vpop.permute.xlu0 %9144
    %9146 = vrot.lane.b32.xlu0 %v8434, 12
    %v9147 = vpop.permute.xlu0 %9146
    %9148 = vrot.lane.b32.xlu0 %v8439, 12
    %v9149 = vpop.permute.xlu0 %9148
    %9150 = vrot.lane.b32.xlu0 %v8444, 12
    %v9151 = vpop.permute.xlu0 %9150
    %9152 = vrot.lane.b32.xlu0 %v8449, 12
    %v9153 = vpop.permute.xlu0 %9152
    %9154 = vrot.lane.b32.xlu0 %v8454, 12
    %v9155 = vpop.permute.xlu0 %9154
    %9156 = vrot.lane.b32.xlu0 %v8459, 12
    %v9157 = vpop.permute.xlu0 %9156
    %9158 = vrot.lane.b32.xlu0 %v8464, 12
    %v9159 = vpop.permute.xlu0 %9158
    %9160 = vrot.lane.b32.xlu0 %v8469, 12
    %v9161 = vpop.permute.xlu0 %9160
    %9162 = vrot.lane.b32.xlu0 %v8474, 12
    %v9163 = vpop.permute.xlu0 %9162
    %9164 = vrot.lane.b32.xlu0 %v8479, 12
    %v9165 = vpop.permute.xlu0 %9164
    %9166 = vrot.lane.b32.xlu0 %v8484, 12
    %v9167 = vpop.permute.xlu0 %9166
    %9168 = vrot.lane.b32.xlu0 %v8489, 12
    %v9169 = vpop.permute.xlu0 %9168
    %9170 = vrot.lane.b32.xlu0 %v8494, 12
    %v9171 = vpop.permute.xlu0 %9170
    %9172 = vrot.lane.b32.xlu0 %v8499, 12
    %v9173 = vpop.permute.xlu0 %9172
    %9174 = vrot.lane.b32.xlu0 %v8504, 12
    %v9175 = vpop.permute.xlu0 %9174
    %9176 = vrot.lane.b32.xlu0 %v8509, 12
    %v9177 = vpop.permute.xlu0 %9176
    %9178 = vrot.lane.b32.xlu0 %v8514, 12
    %v9179 = vpop.permute.xlu0 %9178
    %9180 = vrot.lane.b32.xlu0 %v8519, 12
    %v9181 = vpop.permute.xlu0 %9180
    %9182 = vrot.lane.b32.xlu0 %v8524, 12
    %v9183 = vpop.permute.xlu0 %9182
    %9184 = vrot.lane.b32.xlu0 %v8529, 12
    %v9185 = vpop.permute.xlu0 %9184
    %9186 = vrot.lane.b32.xlu0 %v8534, 12
    %v9187 = vpop.permute.xlu0 %9186
    %9188 = vrot.lane.b32.xlu0 %v8539, 12
    %v9189 = vpop.permute.xlu0 %9188
    %9190 = vrot.lane.b32.xlu0 %v8544, 12
    %v9191 = vpop.permute.xlu0 %9190
    %9192 = vrot.lane.b32.xlu0 %v8549, 12
    %v9193 = vpop.permute.xlu0 %9192
    %9194 = vrot.lane.b32.xlu0 %v8554, 12
    %v9195 = vpop.permute.xlu0 %9194
    %9196 = vrot.lane.b32.xlu0 %v8559, 12
    %v9197 = vpop.permute.xlu0 %9196
    %9198 = vrot.lane.b32.xlu0 %v8564, 12
    %v9199 = vpop.permute.xlu0 %9198
    %9200 = vrot.lane.b32.xlu0 %v8569, 12
    %v9201 = vpop.permute.xlu0 %9200
    %9202 = vrot.lane.b32.xlu0 %v8574, 12
    %v9203 = vpop.permute.xlu0 %9202
    %9204 = vrot.lane.b32.xlu0 %v8579, 12
    %v9205 = vpop.permute.xlu0 %9204
    %9206 = vrot.lane.b32.xlu0 %v8584, 12
    %v9207 = vpop.permute.xlu0 %9206
    %9208 = vrot.lane.b32.xlu0 %v8589, 12
    %v9209 = vpop.permute.xlu0 %9208
    %9210 = vrot.lane.b32.xlu0 %v8594, 12
    %v9211 = vpop.permute.xlu0 %9210
    %9212 = vrot.lane.b32.xlu0 %v8599, 12
    %v9213 = vpop.permute.xlu0 %9212
    %9214 = vrot.lane.b32.xlu0 %v8604, 12
    %v9215 = vpop.permute.xlu0 %9214
    %9216 = vrot.lane.b32.xlu0 %v8609, 12
    %v9217 = vpop.permute.xlu0 %9216
    %9218 = vrot.lane.b32.xlu0 %v8614, 12
    %v9219 = vpop.permute.xlu0 %9218
    %9220 = vrot.lane.b32.xlu0 %v8619, 12
    %v9221 = vpop.permute.xlu0 %9220
    %9222 = vrot.lane.b32.xlu0 %v8624, 12
    %v9223 = vpop.permute.xlu0 %9222
    %9224 = vrot.lane.b32.xlu0 %v8629, 12
    %v9225 = vpop.permute.xlu0 %9224
    %9226 = vrot.lane.b32.xlu0 %v8634, 12
    %v9227 = vpop.permute.xlu0 %9226
    %9228 = vrot.lane.b32.xlu0 %v8639, 12
    %v9229 = vpop.permute.xlu0 %9228
    %9230 = vrot.lane.b32.xlu0 %v8644, 12
    %v9231 = vpop.permute.xlu0 %9230
    %9232 = vrot.lane.b32.xlu0 %v8649, 12
    %v9233 = vpop.permute.xlu0 %9232
    %9234 = vrot.lane.b32.xlu0 %v8654, 12
    %v9235 = vpop.permute.xlu0 %9234
    %9236 = vrot.lane.b32.xlu0 %v8659, 12
    %v9237 = vpop.permute.xlu0 %9236
    %9238 = vrot.lane.b32.xlu0 %v8664, 12
    %v9239 = vpop.permute.xlu0 %9238
    %9240 = vrot.lane.b32.xlu0 %v8669, 12
    %v9241 = vpop.permute.xlu0 %9240
    %9242 = vrot.lane.b32.xlu0 %v8674, 12
    %v9243 = vpop.permute.xlu0 %9242
    %9244 = vrot.lane.b32.xlu0 %v8679, 12
    %v9245 = vpop.permute.xlu0 %9244
    %9246 = vrot.lane.b32.xlu0 %v8684, 12
    %v9247 = vpop.permute.xlu0 %9246
    %9248 = vrot.lane.b32.xlu0 %v8689, 12
    %v9249 = vpop.permute.xlu0 %9248
    %9250 = vrot.lane.b32.xlu0 %v8694, 12
    %v9251 = vpop.permute.xlu0 %9250
    %9252 = vrot.lane.b32.xlu0 %v8699, 12
    %v9253 = vpop.permute.xlu0 %9252
    %9254 = vrot.lane.b32.xlu0 %v8704, 12
    %v9255 = vpop.permute.xlu0 %9254
    %9256 = vrot.lane.b32.xlu0 %v8709, 12
    %v9257 = vpop.permute.xlu0 %9256
    %9322 = vrot.lane.b32.xlu0 %v8404, 16
    %v9323 = vpop.permute.xlu0 %9322
    %9324 = vrot.lane.b32.xlu0 %v8409, 16
    %v9325 = vpop.permute.xlu0 %9324
    %9326 = vrot.lane.b32.xlu0 %v8414, 16
    %v9327 = vpop.permute.xlu0 %9326
    %9328 = vrot.lane.b32.xlu0 %v8419, 16
    %v9329 = vpop.permute.xlu0 %9328
    %9330 = vrot.lane.b32.xlu0 %v8424, 16
    %v9331 = vpop.permute.xlu0 %9330
    %9332 = vrot.lane.b32.xlu0 %v8429, 16
    %v9333 = vpop.permute.xlu0 %9332
    %9334 = vrot.lane.b32.xlu0 %v8434, 16
    %v9335 = vpop.permute.xlu0 %9334
    %9336 = vrot.lane.b32.xlu0 %v8439, 16
    %v9337 = vpop.permute.xlu0 %9336
    %9338 = vrot.lane.b32.xlu0 %v8444, 16
    %v9339 = vpop.permute.xlu0 %9338
    %9340 = vrot.lane.b32.xlu0 %v8449, 16
    %v9341 = vpop.permute.xlu0 %9340
    %9342 = vrot.lane.b32.xlu0 %v8454, 16
    %v9343 = vpop.permute.xlu0 %9342
    %9344 = vrot.lane.b32.xlu0 %v8459, 16
    %v9345 = vpop.permute.xlu0 %9344
    %9346 = vrot.lane.b32.xlu0 %v8464, 16
    %v9347 = vpop.permute.xlu0 %9346
    %9348 = vrot.lane.b32.xlu0 %v8469, 16
    %v9349 = vpop.permute.xlu0 %9348
    %9350 = vrot.lane.b32.xlu0 %v8474, 16
    %v9351 = vpop.permute.xlu0 %9350
    %9352 = vrot.lane.b32.xlu0 %v8479, 16
    %v9353 = vpop.permute.xlu0 %9352
    %9354 = vrot.lane.b32.xlu0 %v8484, 16
    %v9355 = vpop.permute.xlu0 %9354
    %9356 = vrot.lane.b32.xlu0 %v8489, 16
    %v9357 = vpop.permute.xlu0 %9356
    %9358 = vrot.lane.b32.xlu0 %v8494, 16
    %v9359 = vpop.permute.xlu0 %9358
    %9360 = vrot.lane.b32.xlu0 %v8499, 16
    %v9361 = vpop.permute.xlu0 %9360
    %9362 = vrot.lane.b32.xlu0 %v8504, 16
    %v9363 = vpop.permute.xlu0 %9362
    %9364 = vrot.lane.b32.xlu0 %v8509, 16
    %v9365 = vpop.permute.xlu0 %9364
    %9366 = vrot.lane.b32.xlu0 %v8514, 16
    %v9367 = vpop.permute.xlu0 %9366
    %9368 = vrot.lane.b32.xlu0 %v8519, 16
    %v9369 = vpop.permute.xlu0 %9368
    %9370 = vrot.lane.b32.xlu0 %v8524, 16
    %v9371 = vpop.permute.xlu0 %9370
    %9372 = vrot.lane.b32.xlu0 %v8529, 16
    %v9373 = vpop.permute.xlu0 %9372
    %9374 = vrot.lane.b32.xlu0 %v8534, 16
    %v9375 = vpop.permute.xlu0 %9374
    %9376 = vrot.lane.b32.xlu0 %v8539, 16
    %v9377 = vpop.permute.xlu0 %9376
    %9378 = vrot.lane.b32.xlu0 %v8544, 16
    %v9379 = vpop.permute.xlu0 %9378
    %9380 = vrot.lane.b32.xlu0 %v8549, 16
    %v9381 = vpop.permute.xlu0 %9380
    %9382 = vrot.lane.b32.xlu0 0.0, 16
    %v9383 = vpop.permute.xlu0 %9382
    %9384 = vrot.lane.b32.xlu0 %v8564, 16
    %v9385 = vpop.permute.xlu0 %9384
    %9386 = vrot.lane.b32.xlu0 %v8569, 16
    %v9387 = vpop.permute.xlu0 %9386
    %9388 = vrot.lane.b32.xlu0 %v8574, 16
    %v9389 = vpop.permute.xlu0 %9388
    %9390 = vrot.lane.b32.xlu0 %v8579, 16
    %v9391 = vpop.permute.xlu0 %9390
    %9392 = vrot.lane.b32.xlu0 %v8584, 16
    %v9393 = vpop.permute.xlu0 %9392
    %9394 = vrot.lane.b32.xlu0 %v8589, 16
    %v9395 = vpop.permute.xlu0 %9394
    %9396 = vrot.lane.b32.xlu0 %v8594, 16
    %v9397 = vpop.permute.xlu0 %9396
    %9398 = vrot.lane.b32.xlu0 %v8599, 16
    %v9399 = vpop.permute.xlu0 %9398
    %9400 = vrot.lane.b32.xlu0 %v8604, 16
    %v9401 = vpop.permute.xlu0 %9400
    %9402 = vrot.lane.b32.xlu0 %v8609, 16
    %v9403 = vpop.permute.xlu0 %9402
    %9404 = vrot.lane.b32.xlu0 %v8614, 16
    %v9405 = vpop.permute.xlu0 %9404
    %9406 = vrot.lane.b32.xlu0 %v8619, 16
    %v9407 = vpop.permute.xlu0 %9406
    %9408 = vrot.lane.b32.xlu0 %v8624, 16
    %v9409 = vpop.permute.xlu0 %9408
    %9410 = vrot.lane.b32.xlu0 %v8629, 16
    %v9411 = vpop.permute.xlu0 %9410
    %9412 = vrot.lane.b32.xlu0 %v8634, 16
    %v9413 = vpop.permute.xlu0 %9412
    %9414 = vrot.lane.b32.xlu0 %v8639, 16
    %v9415 = vpop.permute.xlu0 %9414
    %9416 = vrot.lane.b32.xlu0 %v8644, 16
    %v9417 = vpop.permute.xlu0 %9416
    %9418 = vrot.lane.b32.xlu0 %v8649, 16
    %v9419 = vpop.permute.xlu0 %9418
    %9420 = vrot.lane.b32.xlu0 %v8654, 16
    %v9421 = vpop.permute.xlu0 %9420
    %9422 = vrot.lane.b32.xlu0 %v8659, 16
    %v9423 = vpop.permute.xlu0 %9422
    %9424 = vrot.lane.b32.xlu0 %v8664, 16
    %v9425 = vpop.permute.xlu0 %9424
    %9426 = vrot.lane.b32.xlu0 %v8669, 16
    %v9427 = vpop.permute.xlu0 %9426
    %9428 = vrot.lane.b32.xlu0 %v8674, 16
    %v9429 = vpop.permute.xlu0 %9428
    %9430 = vrot.lane.b32.xlu0 %v8679, 16
    %v9431 = vpop.permute.xlu0 %9430
    %9432 = vrot.lane.b32.xlu0 %v8684, 16
    %v9433 = vpop.permute.xlu0 %9432
    %9434 = vrot.lane.b32.xlu0 %v8689, 16
    %v9435 = vpop.permute.xlu0 %9434
    %9436 = vrot.lane.b32.xlu0 %v8694, 16
    %v9437 = vpop.permute.xlu0 %9436
    %9438 = vrot.lane.b32.xlu0 %v8699, 16
    %v9439 = vpop.permute.xlu0 %9438
    %9440 = vrot.lane.b32.xlu0 %v8704, 16
    %v9441 = vpop.permute.xlu0 %9440
    %9442 = vrot.lane.b32.xlu0 %v8709, 16
    %v9443 = vpop.permute.xlu0 %9442
    %9505 = vrot.lane.b32.xlu0 %v8414, 20
    %v9506 = vpop.permute.xlu0 %9505
    %9507 = vrot.lane.b32.xlu0 %v8419, 20
    %v9508 = vpop.permute.xlu0 %9507
    %9509 = vrot.lane.b32.xlu0 %v8424, 20
    %v9510 = vpop.permute.xlu0 %9509
    %9511 = vrot.lane.b32.xlu0 %v8429, 20
    %v9512 = vpop.permute.xlu0 %9511
    %9513 = vrot.lane.b32.xlu0 %v8434, 20
    %v9514 = vpop.permute.xlu0 %9513
    %9515 = vrot.lane.b32.xlu0 %v8439, 20
    %v9516 = vpop.permute.xlu0 %9515
    %9517 = vrot.lane.b32.xlu0 %v8444, 20
    %v9518 = vpop.permute.xlu0 %9517
    %9519 = vrot.lane.b32.xlu0 %v8449, 20
    %v9520 = vpop.permute.xlu0 %9519
    %9521 = vrot.lane.b32.xlu0 %v8454, 20
    %v9522 = vpop.permute.xlu0 %9521
    %9523 = vrot.lane.b32.xlu0 %v8459, 20
    %v9524 = vpop.permute.xlu0 %9523
    %9525 = vrot.lane.b32.xlu0 %v8464, 20
    %v9526 = vpop.permute.xlu0 %9525
    %9527 = vrot.lane.b32.xlu0 %v8469, 20
    %v9528 = vpop.permute.xlu0 %9527
    %9529 = vrot.lane.b32.xlu0 %v8474, 20
    %v9530 = vpop.permute.xlu0 %9529
    %9531 = vrot.lane.b32.xlu0 %v8479, 20
    %v9532 = vpop.permute.xlu0 %9531
    %9533 = vrot.lane.b32.xlu0 %v8484, 20
    %v9534 = vpop.permute.xlu0 %9533
    %9535 = vrot.lane.b32.xlu0 %v8489, 20
    %v9536 = vpop.permute.xlu0 %9535
    %9537 = vrot.lane.b32.xlu0 %v8494, 20
    %v9538 = vpop.permute.xlu0 %9537
    %9539 = vrot.lane.b32.xlu0 %v8499, 20
    %v9540 = vpop.permute.xlu0 %9539
    %9541 = vrot.lane.b32.xlu0 %v8504, 20
    %v9542 = vpop.permute.xlu0 %9541
    %9543 = vrot.lane.b32.xlu0 %v8509, 20
    %v9544 = vpop.permute.xlu0 %9543
    %9545 = vrot.lane.b32.xlu0 %v8514, 20
    %v9546 = vpop.permute.xlu0 %9545
    %9547 = vrot.lane.b32.xlu0 %v8519, 20
    %v9548 = vpop.permute.xlu0 %9547
    %9549 = vrot.lane.b32.xlu0 %v8524, 20
    %v9550 = vpop.permute.xlu0 %9549
    %9551 = vrot.lane.b32.xlu0 %v8529, 20
    %v9552 = vpop.permute.xlu0 %9551
    %9553 = vrot.lane.b32.xlu0 %v8534, 20
    %v9554 = vpop.permute.xlu0 %9553
    %9555 = vrot.lane.b32.xlu0 %v8539, 20
    %v9556 = vpop.permute.xlu0 %9555
    %9557 = vrot.lane.b32.xlu0 %v8544, 20
    %v9558 = vpop.permute.xlu0 %9557
    %9559 = vrot.lane.b32.xlu0 %v8549, 20
    %v9560 = vpop.permute.xlu0 %9559
    %9561 = vrot.lane.b32.xlu0 0.0, 20
    %v9562 = vpop.permute.xlu0 %9561
    %9563 = vrot.lane.b32.xlu0 %v8574, 20
    %v9564 = vpop.permute.xlu0 %9563
    %9565 = vrot.lane.b32.xlu0 %v8579, 20
    %v9566 = vpop.permute.xlu0 %9565
    %9567 = vrot.lane.b32.xlu0 %v8584, 20
    %v9568 = vpop.permute.xlu0 %9567
    %9569 = vrot.lane.b32.xlu0 %v8589, 20
    %v9570 = vpop.permute.xlu0 %9569
    %9571 = vrot.lane.b32.xlu0 %v8594, 20
    %v9572 = vpop.permute.xlu0 %9571
    %9573 = vrot.lane.b32.xlu0 %v8599, 20
    %v9574 = vpop.permute.xlu0 %9573
    %9575 = vrot.lane.b32.xlu0 %v8604, 20
    %v9576 = vpop.permute.xlu0 %9575
    %9577 = vrot.lane.b32.xlu0 %v8609, 20
    %v9578 = vpop.permute.xlu0 %9577
    %9579 = vrot.lane.b32.xlu0 %v8614, 20
    %v9580 = vpop.permute.xlu0 %9579
    %9581 = vrot.lane.b32.xlu0 %v8619, 20
    %v9582 = vpop.permute.xlu0 %9581
    %9583 = vrot.lane.b32.xlu0 %v8624, 20
    %v9584 = vpop.permute.xlu0 %9583
    %9585 = vrot.lane.b32.xlu0 %v8629, 20
    %v9586 = vpop.permute.xlu0 %9585
    %9587 = vrot.lane.b32.xlu0 %v8634, 20
    %v9588 = vpop.permute.xlu0 %9587
    %9589 = vrot.lane.b32.xlu0 %v8639, 20
    %v9590 = vpop.permute.xlu0 %9589
    %9591 = vrot.lane.b32.xlu0 %v8644, 20
    %v9592 = vpop.permute.xlu0 %9591
    %9593 = vrot.lane.b32.xlu0 %v8649, 20
    %v9594 = vpop.permute.xlu0 %9593
    %9595 = vrot.lane.b32.xlu0 %v8654, 20
    %v9596 = vpop.permute.xlu0 %9595
    %9597 = vrot.lane.b32.xlu0 %v8659, 20
    %v9598 = vpop.permute.xlu0 %9597
    %9599 = vrot.lane.b32.xlu0 %v8664, 20
    %v9600 = vpop.permute.xlu0 %9599
    %9601 = vrot.lane.b32.xlu0 %v8669, 20
    %v9602 = vpop.permute.xlu0 %9601
    %9603 = vrot.lane.b32.xlu0 %v8674, 20
    %v9604 = vpop.permute.xlu0 %9603
    %9605 = vrot.lane.b32.xlu0 %v8679, 20
    %v9606 = vpop.permute.xlu0 %9605
    %9607 = vrot.lane.b32.xlu0 %v8684, 20
    %v9608 = vpop.permute.xlu0 %9607
    %9609 = vrot.lane.b32.xlu0 %v8689, 20
    %v9610 = vpop.permute.xlu0 %9609
    %9611 = vrot.lane.b32.xlu0 %v8694, 20
    %v9612 = vpop.permute.xlu0 %9611
    %9613 = vrot.lane.b32.xlu0 %v8699, 20
    %v9614 = vpop.permute.xlu0 %9613
    %9615 = vrot.lane.b32.xlu0 %v8704, 20
    %v9616 = vpop.permute.xlu0 %9615
    %9617 = vrot.lane.b32.xlu0 %v8709, 20
    %v9618 = vpop.permute.xlu0 %9617
    %9676 = vrot.lane.b32.xlu0 %v8424, 24
    %v9677 = vpop.permute.xlu0 %9676
    %9678 = vrot.lane.b32.xlu0 %v8429, 24
    %v9679 = vpop.permute.xlu0 %9678
    %9680 = vrot.lane.b32.xlu0 %v8434, 24
    %v9681 = vpop.permute.xlu0 %9680
    %9682 = vrot.lane.b32.xlu0 %v8439, 24
    %v9683 = vpop.permute.xlu0 %9682
    %9684 = vrot.lane.b32.xlu0 %v8444, 24
    %v9685 = vpop.permute.xlu0 %9684
    %9686 = vrot.lane.b32.xlu0 %v8449, 24
    %v9687 = vpop.permute.xlu0 %9686
    %9688 = vrot.lane.b32.xlu0 %v8454, 24
    %v9689 = vpop.permute.xlu0 %9688
    %9690 = vrot.lane.b32.xlu0 %v8459, 24
    %v9691 = vpop.permute.xlu0 %9690
    %9692 = vrot.lane.b32.xlu0 %v8464, 24
    %v9693 = vpop.permute.xlu0 %9692
    %9694 = vrot.lane.b32.xlu0 %v8469, 24
    %v9695 = vpop.permute.xlu0 %9694
    %9696 = vrot.lane.b32.xlu0 %v8474, 24
    %v9697 = vpop.permute.xlu0 %9696
    %9698 = vrot.lane.b32.xlu0 %v8479, 24
    %v9699 = vpop.permute.xlu0 %9698
    %9700 = vrot.lane.b32.xlu0 %v8484, 24
    %v9701 = vpop.permute.xlu0 %9700
    %9702 = vrot.lane.b32.xlu0 %v8489, 24
    %v9703 = vpop.permute.xlu0 %9702
    %9704 = vrot.lane.b32.xlu0 %v8494, 24
    %v9705 = vpop.permute.xlu0 %9704
    %9706 = vrot.lane.b32.xlu0 %v8499, 24
    %v9707 = vpop.permute.xlu0 %9706
    %9708 = vrot.lane.b32.xlu0 %v8504, 24
    %v9709 = vpop.permute.xlu0 %9708
    %9710 = vrot.lane.b32.xlu0 %v8509, 24
    %v9711 = vpop.permute.xlu0 %9710
    %9712 = vrot.lane.b32.xlu0 %v8514, 24
    %v9713 = vpop.permute.xlu0 %9712
    %9714 = vrot.lane.b32.xlu0 %v8519, 24
    %v9715 = vpop.permute.xlu0 %9714
    %9716 = vrot.lane.b32.xlu0 %v8524, 24
    %v9717 = vpop.permute.xlu0 %9716
    %9718 = vrot.lane.b32.xlu0 %v8529, 24
    %v9719 = vpop.permute.xlu0 %9718
    %9720 = vrot.lane.b32.xlu0 %v8534, 24
    %v9721 = vpop.permute.xlu0 %9720
    %9722 = vrot.lane.b32.xlu0 %v8539, 24
    %v9723 = vpop.permute.xlu0 %9722
    %9724 = vrot.lane.b32.xlu0 %v8544, 24
    %v9725 = vpop.permute.xlu0 %9724
    %9726 = vrot.lane.b32.xlu0 %v8549, 24
    %v9727 = vpop.permute.xlu0 %9726
    %9728 = vrot.lane.b32.xlu0 0.0, 24
    %v9729 = vpop.permute.xlu0 %9728
    %9730 = vrot.lane.b32.xlu0 %v8584, 24
    %v9731 = vpop.permute.xlu0 %9730
    %9732 = vrot.lane.b32.xlu0 %v8589, 24
    %v9733 = vpop.permute.xlu0 %9732
    %9734 = vrot.lane.b32.xlu0 %v8594, 24
    %v9735 = vpop.permute.xlu0 %9734
    %9736 = vrot.lane.b32.xlu0 %v8599, 24
    %v9737 = vpop.permute.xlu0 %9736
    %9738 = vrot.lane.b32.xlu0 %v8604, 24
    %v9739 = vpop.permute.xlu0 %9738
    %9740 = vrot.lane.b32.xlu0 %v8609, 24
    %v9741 = vpop.permute.xlu0 %9740
    %9742 = vrot.lane.b32.xlu0 %v8614, 24
    %v9743 = vpop.permute.xlu0 %9742
    %9744 = vrot.lane.b32.xlu0 %v8619, 24
    %v9745 = vpop.permute.xlu0 %9744
    %9746 = vrot.lane.b32.xlu0 %v8624, 24
    %v9747 = vpop.permute.xlu0 %9746
    %9748 = vrot.lane.b32.xlu0 %v8629, 24
    %v9749 = vpop.permute.xlu0 %9748
    %9750 = vrot.lane.b32.xlu0 %v8634, 24
    %v9751 = vpop.permute.xlu0 %9750
    %9752 = vrot.lane.b32.xlu0 %v8639, 24
    %v9753 = vpop.permute.xlu0 %9752
    %9754 = vrot.lane.b32.xlu0 %v8644, 24
    %v9755 = vpop.permute.xlu0 %9754
    %9756 = vrot.lane.b32.xlu0 %v8649, 24
    %v9757 = vpop.permute.xlu0 %9756
    %9758 = vrot.lane.b32.xlu0 %v8654, 24
    %v9759 = vpop.permute.xlu0 %9758
    %9760 = vrot.lane.b32.xlu0 %v8659, 24
    %v9761 = vpop.permute.xlu0 %9760
    %9762 = vrot.lane.b32.xlu0 %v8664, 24
    %v9763 = vpop.permute.xlu0 %9762
    %9764 = vrot.lane.b32.xlu0 %v8669, 24
    %v9765 = vpop.permute.xlu0 %9764
    %9766 = vrot.lane.b32.xlu0 %v8674, 24
    %v9767 = vpop.permute.xlu0 %9766
    %9768 = vrot.lane.b32.xlu0 %v8679, 24
    %v9769 = vpop.permute.xlu0 %9768
    %9770 = vrot.lane.b32.xlu0 %v8684, 24
    %v9771 = vpop.permute.xlu0 %9770
    %9772 = vrot.lane.b32.xlu0 %v8689, 24
    %v9773 = vpop.permute.xlu0 %9772
    %9774 = vrot.lane.b32.xlu0 %v8694, 24
    %v9775 = vpop.permute.xlu0 %9774
    %9776 = vrot.lane.b32.xlu0 %v8699, 24
    %v9777 = vpop.permute.xlu0 %9776
    %9778 = vrot.lane.b32.xlu0 %v8704, 24
    %v9779 = vpop.permute.xlu0 %9778
    %9780 = vrot.lane.b32.xlu0 %v8709, 24
    %v9781 = vpop.permute.xlu0 %9780
    %v9835 = vsel %vm7752, 0.0, %v8769
    %v9836 = vsel %vm7752, 0.0, %v8771
    %v9837 = vsel %vm7752, 0.0, %v8773
    %v9838 = vsel %vm7752, %v8394, %v8775
    %v9839 = vsel %vm7752, %v8399, %v8777
    %v9840 = vsel %vm7752, %v8404, %v8779
    %v9841 = vsel %vm7752, %v8409, %v8781
    %v9842 = vsel %vm7752, %v8414, %v8783
    %v9843 = vsel %vm7752, %v8419, %v8785
    %v9844 = vsel %vm7752, %v8424, %v8787
    %v9845 = vsel %vm7752, %v8429, %v8789
    %v9846 = vsel %vm7752, %v8434, %v8791
    %v9847 = vsel %vm7752, %v8439, %v8793
    %v9848 = vsel %vm7752, %v8444, %v8795
    %v9849 = vsel %vm7752, %v8449, %v8797
    %v9850 = vsel %vm7752, %v8454, %v8799
    %v9851 = vsel %vm7752, %v8459, %v8801
    %v9852 = vsel %vm7752, %v8464, %v8803
    %v9853 = vsel %vm7752, %v8469, %v8805
    %v9854 = vsel %vm7752, %v8474, %v8807
    %v9855 = vsel %vm7752, %v8479, %v8809
    %v9856 = vsel %vm7752, %v8484, %v8811
    %v9857 = vsel %vm7752, %v8489, %v8813
    %v9858 = vsel %vm7752, %v8494, %v8815
    %v9859 = vsel %vm7752, %v8499, %v8817
    %v9860 = vsel %vm7752, %v8504, %v8819
    %v9861 = vsel %vm7752, %v8509, %v8821
    %v9862 = vsel %vm7752, %v8514, %v8823
    %v9863 = vsel %vm7752, %v8519, %v8825
    %v9864 = vsel %vm7752, 0.0, %v8827
    %v9865 = vsel %vm7752, 0.0, %v8829
    %v9866 = vsel %vm7752, %v8554, %v8831
    %v9867 = vsel %vm7752, %v8559, %v8833
    %v9868 = vsel %vm7752, %v8564, %v8835
    %v9869 = vsel %vm7752, %v8569, %v8837
    %v9870 = vsel %vm7752, %v8574, %v8839
    %v9871 = vsel %vm7752, %v8579, %v8841
    %v9872 = vsel %vm7752, %v8584, %v8843
    %v9873 = vsel %vm7752, %v8589, %v8845
    %v9874 = vsel %vm7752, %v8594, %v8847
    %v9875 = vsel %vm7752, %v8599, %v8849
    %v9876 = vsel %vm7752, %v8604, %v8851
    %v9877 = vsel %vm7752, %v8609, %v8853
    %v9878 = vsel %vm7752, %v8614, %v8855
    %v9879 = vsel %vm7752, %v8619, %v8857
    %v9880 = vsel %vm7752, %v8624, %v8859
    %v9881 = vsel %vm7752, %v8629, %v8861
    %v9882 = vsel %vm7752, %v8634, %v8863
    %v9883 = vsel %vm7752, %v8639, %v8865
    %v9884 = vsel %vm7752, %v8644, %v8867
    %v9885 = vsel %vm7752, %v8649, %v8869
    %v9886 = vsel %vm7752, %v8654, %v8871
    %v9887 = vsel %vm7752, %v8659, %v8873
    %v9888 = vsel %vm7752, %v8664, %v8875
    %v9889 = vsel %vm7752, %v8669, %v8877
    %v9890 = vsel %vm7752, %v8674, %v8879
    %v9891 = vsel %vm7752, %v8679, %v8881
    %v9892 = vsel %vm7882, %v9835, %v8944
    %v9893 = vsel %vm7882, %v9835, %v8946
    %v9894 = vsel %vm7882, %v9835, %v8948
    %v9895 = vsel %vm7882, %v9836, %v8950
    %v9896 = vsel %vm7882, %v9837, %v8952
    %v9897 = vsel %vm7882, %v9838, %v8954
    %v9898 = vsel %vm7882, %v9839, %v8956
    %v9899 = vsel %vm7882, %v9840, %v8958
    %v9900 = vsel %vm7882, %v9841, %v8960
    %v9901 = vsel %vm7882, %v9842, %v8962
    %v9902 = vsel %vm7882, %v9843, %v8964
    %v9903 = vsel %vm7882, %v9844, %v8966
    %v9904 = vsel %vm7882, %v9845, %v8968
    %v9905 = vsel %vm7882, %v9846, %v8970
    %v9906 = vsel %vm7882, %v9847, %v8972
    %v9907 = vsel %vm7882, %v9848, %v8974
    %v9908 = vsel %vm7882, %v9849, %v8976
    %v9909 = vsel %vm7882, %v9850, %v8978
    %v9910 = vsel %vm7882, %v9851, %v8980
    %v9911 = vsel %vm7882, %v9852, %v8982
    %v9912 = vsel %vm7882, %v9853, %v8984
    %v9913 = vsel %vm7882, %v9854, %v8986
    %v9914 = vsel %vm7882, %v9855, %v8988
    %v9915 = vsel %vm7882, %v9856, %v8990
    %v9916 = vsel %vm7882, %v9857, %v8992
    %v9917 = vsel %vm7882, %v9858, %v8994
    %v9918 = vsel %vm7882, %v9859, %v8996
    %v9919 = vsel %vm7882, %v9860, %v8998
    %v9920 = vsel %vm7882, %v9861, %v9000
    %v9921 = vsel %vm7882, %v9862, %v9002
    %v9922 = vsel %vm7882, %v9863, %v9004
    %v9923 = vsel %vm7882, %v9835, %v9006
    %v9924 = vsel %vm7882, %v9835, %v9008
    %v9925 = vsel %vm7882, %v9864, %v9010
    %v9926 = vsel %vm7882, %v9865, %v9012
    %v9927 = vsel %vm7882, %v9866, %v9014
    %v9928 = vsel %vm7882, %v9867, %v9016
    %v9929 = vsel %vm7882, %v9868, %v9018
    %v9930 = vsel %vm7882, %v9869, %v9020
    %v9931 = vsel %vm7882, %v9870, %v9022
    %v9932 = vsel %vm7882, %v9871, %v9024
    %v9933 = vsel %vm7882, %v9872, %v9026
    %v9934 = vsel %vm7882, %v9873, %v9028
    %v9935 = vsel %vm7882, %v9874, %v9030
    %v9936 = vsel %vm7882, %v9875, %v9032
    %v9937 = vsel %vm7882, %v9876, %v9034
    %v9938 = vsel %vm7882, %v9877, %v9036
    %v9939 = vsel %vm7882, %v9878, %v9038
    %v9940 = vsel %vm7882, %v9879, %v9040
    %v9941 = vsel %vm7882, %v9880, %v9042
    %v9942 = vsel %vm7882, %v9881, %v9044
    %v9943 = vsel %vm7882, %v9882, %v9046
    %v9944 = vsel %vm7882, %v9883, %v9048
    %v9945 = vsel %vm7882, %v9884, %v9050
    %v9946 = vsel %vm7882, %v9885, %v9052
    %v9947 = vsel %vm7882, %v9886, %v9054
    %v9948 = vsel %vm7882, %v9887, %v9056
    %v9949 = vsel %vm7882, %v9888, %v9058
    %v9950 = vsel %vm7882, %v9889, %v9060
    %v9951 = vsel %vm7882, %v9890, %v9062
    %v9952 = vsel %vm7882, %v9891, %v9064
    %v9953 = vsel %vm8012, %v9892, %v9131
    %v9954 = vsel %vm8012, %v9892, %v9133
    %v9955 = vsel %vm8012, %v9893, %v9135
    %v9956 = vsel %vm8012, %v9894, %v9137
    %v9957 = vsel %vm8012, %v9895, %v9139
    %v9958 = vsel %vm8012, %v9896, %v9141
    %v9959 = vsel %vm8012, %v9897, %v9143
    %v9960 = vsel %vm8012, %v9898, %v9145
    %v9961 = vsel %vm8012, %v9899, %v9147
    %v9962 = vsel %vm8012, %v9900, %v9149
    %v9963 = vsel %vm8012, %v9901, %v9151
    %v9964 = vsel %vm8012, %v9902, %v9153
    %v9965 = vsel %vm8012, %v9903, %v9155
    %v9966 = vsel %vm8012, %v9904, %v9157
    %v9967 = vsel %vm8012, %v9905, %v9159
    %v9968 = vsel %vm8012, %v9906, %v9161
    %v9969 = vsel %vm8012, %v9907, %v9163
    %v9970 = vsel %vm8012, %v9908, %v9165
    %v9971 = vsel %vm8012, %v9909, %v9167
    %v9972 = vsel %vm8012, %v9910, %v9169
    %v9973 = vsel %vm8012, %v9911, %v9171
    %v9974 = vsel %vm8012, %v9912, %v9173
    %v9975 = vsel %vm8012, %v9913, %v9175
    %v9976 = vsel %vm8012, %v9914, %v9177
    %v9977 = vsel %vm8012, %v9915, %v9179
    %v9978 = vsel %vm8012, %v9916, %v9181
    %v9979 = vsel %vm8012, %v9917, %v9183
    %v9980 = vsel %vm8012, %v9918, %v9185
    %v9981 = vsel %vm8012, %v9919, %v9187
    %v9982 = vsel %vm8012, %v9920, %v9189
    %v9983 = vsel %vm8012, %v9921, %v9191
    %v9984 = vsel %vm8012, %v9922, %v9193
    %v9985 = vsel %vm8012, %v9892, %v9195
    %v9986 = vsel %vm8012, %v9892, %v9197
    %v9987 = vsel %vm8012, %v9923, %v9199
    %v9988 = vsel %vm8012, %v9924, %v9201
    %v9989 = vsel %vm8012, %v9925, %v9203
    %v9990 = vsel %vm8012, %v9926, %v9205
    %v9991 = vsel %vm8012, %v9927, %v9207
    %v9992 = vsel %vm8012, %v9928, %v9209
    %v9993 = vsel %vm8012, %v9929, %v9211
    %v9994 = vsel %vm8012, %v9930, %v9213
    %v9995 = vsel %vm8012, %v9931, %v9215
    %v9996 = vsel %vm8012, %v9932, %v9217
    %v9997 = vsel %vm8012, %v9933, %v9219
    %v9998 = vsel %vm8012, %v9934, %v9221
    %v9999 = vsel %vm8012, %v9935, %v9223
    %v10000 = vsel %vm8012, %v9936, %v9225
    %v10001 = vsel %vm8012, %v9937, %v9227
    %v10002 = vsel %vm8012, %v9938, %v9229
    %v10003 = vsel %vm8012, %v9939, %v9231
    %v10004 = vsel %vm8012, %v9940, %v9233
    %v10005 = vsel %vm8012, %v9941, %v9235
    %v10006 = vsel %vm8012, %v9942, %v9237
    %v10007 = vsel %vm8012, %v9943, %v9239
    %v10008 = vsel %vm8012, %v9944, %v9241
    %v10009 = vsel %vm8012, %v9945, %v9243
    %v10010 = vsel %vm8012, %v9946, %v9245
    %v10011 = vsel %vm8012, %v9947, %v9247
    %v10012 = vsel %vm8012, %v9948, %v9249
    %v10013 = vsel %vm8012, %v9949, %v9251
    %v10014 = vsel %vm8012, %v9950, %v9253
    %v10015 = vsel %vm8012, %v9951, %v9255
    %v10016 = vsel %vm8012, %v9952, %v9257
    %vm10017 = vcmask 130048
    %v10018 = vsel %vm10017, %v9953, %v9323
    %v10019 = vsel %vm10017, %v9954, %v9325
    %v10020 = vsel %vm10017, %v9955, %v9327
    %v10021 = vsel %vm10017, %v9956, %v9329
    %v10022 = vsel %vm10017, %v9957, %v9331
    %v10023 = vsel %vm10017, %v9958, %v9333
    %v10024 = vsel %vm10017, %v9959, %v9335
    %v10025 = vsel %vm10017, %v9960, %v9337
    %v10026 = vsel %vm10017, %v9961, %v9339
    %v10027 = vsel %vm10017, %v9962, %v9341
    %v10028 = vsel %vm10017, %v9963, %v9343
    %v10029 = vsel %vm10017, %v9964, %v9345
    %v10030 = vsel %vm10017, %v9965, %v9347
    %v10031 = vsel %vm10017, %v9966, %v9349
    %v10032 = vsel %vm10017, %v9967, %v9351
    %v10033 = vsel %vm10017, %v9968, %v9353
    %v10034 = vsel %vm10017, %v9969, %v9355
    %v10035 = vsel %vm10017, %v9970, %v9357
    %v10036 = vsel %vm10017, %v9971, %v9359
    %v10037 = vsel %vm10017, %v9972, %v9361
    %v10038 = vsel %vm10017, %v9973, %v9363
    %v10039 = vsel %vm10017, %v9974, %v9365
    %v10040 = vsel %vm10017, %v9975, %v9367
    %v10041 = vsel %vm10017, %v9976, %v9369
    %v10042 = vsel %vm10017, %v9977, %v9371
    %v10043 = vsel %vm10017, %v9978, %v9373
    %v10044 = vsel %vm10017, %v9979, %v9375
    %v10045 = vsel %vm10017, %v9980, %v9377
    %v10046 = vsel %vm10017, %v9981, %v9379
    %v10047 = vsel %vm10017, %v9982, %v9381
    %v10048 = vsel %vm10017, %v9983, %v9383
    %v10049 = vsel %vm10017, %v9984, %v9383
    %v10050 = vsel %vm10017, %v9985, %v9385
    %v10051 = vsel %vm10017, %v9986, %v9387
    %v10052 = vsel %vm10017, %v9987, %v9389
    %v10053 = vsel %vm10017, %v9988, %v9391
    %v10054 = vsel %vm10017, %v9989, %v9393
    %v10055 = vsel %vm10017, %v9990, %v9395
    %v10056 = vsel %vm10017, %v9991, %v9397
    %v10057 = vsel %vm10017, %v9992, %v9399
    %v10058 = vsel %vm10017, %v9993, %v9401
    %v10059 = vsel %vm10017, %v9994, %v9403
    %v10060 = vsel %vm10017, %v9995, %v9405
    %v10061 = vsel %vm10017, %v9996, %v9407
    %v10062 = vsel %vm10017, %v9997, %v9409
    %v10063 = vsel %vm10017, %v9998, %v9411
    %v10064 = vsel %vm10017, %v9999, %v9413
    %v10065 = vsel %vm10017, %v10000, %v9415
    %v10066 = vsel %vm10017, %v10001, %v9417
    %v10067 = vsel %vm10017, %v10002, %v9419
    %v10068 = vsel %vm10017, %v10003, %v9421
    %v10069 = vsel %vm10017, %v10004, %v9423
    %v10070 = vsel %vm10017, %v10005, %v9425
    %v10071 = vsel %vm10017, %v10006, %v9427
    %v10072 = vsel %vm10017, %v10007, %v9429
    %v10073 = vsel %vm10017, %v10008, %v9431
    %v10074 = vsel %vm10017, %v10009, %v9433
    %v10075 = vsel %vm10017, %v10010, %v9435
    %v10076 = vsel %vm10017, %v10011, %v9437
    %v10077 = vsel %vm10017, %v10012, %v9439
    %v10078 = vsel %vm10017, %v10013, %v9441
    %v10079 = vsel %vm10017, %v10014, %v9443
    %v10080 = vsel %vm10017, %v10015, %v9383
    %v10081 = vsel %vm10017, %v10016, %v9383
    %vm10082 = vcmask 162816
    %v10083 = vsel %vm10082, %v10018, %v9506
    %v10084 = vsel %vm10082, %v10019, %v9508
    %v10085 = vsel %vm10082, %v10020, %v9510
    %v10086 = vsel %vm10082, %v10021, %v9512
    %v10087 = vsel %vm10082, %v10022, %v9514
    %v10088 = vsel %vm10082, %v10023, %v9516
    %v10089 = vsel %vm10082, %v10024, %v9518
    %v10090 = vsel %vm10082, %v10025, %v9520
    %v10091 = vsel %vm10082, %v10026, %v9522
    %v10092 = vsel %vm10082, %v10027, %v9524
    %v10093 = vsel %vm10082, %v10028, %v9526
    %v10094 = vsel %vm10082, %v10029, %v9528
    %v10095 = vsel %vm10082, %v10030, %v9530
    %v10096 = vsel %vm10082, %v10031, %v9532
    %v10097 = vsel %vm10082, %v10032, %v9534
    %v10098 = vsel %vm10082, %v10033, %v9536
    %v10099 = vsel %vm10082, %v10034, %v9538
    %v10100 = vsel %vm10082, %v10035, %v9540
    %v10101 = vsel %vm10082, %v10036, %v9542
    %v10102 = vsel %vm10082, %v10037, %v9544
    %v10103 = vsel %vm10082, %v10038, %v9546
    %v10104 = vsel %vm10082, %v10039, %v9548
    %v10105 = vsel %vm10082, %v10040, %v9550
    %v10106 = vsel %vm10082, %v10041, %v9552
    %v10107 = vsel %vm10082, %v10042, %v9554
    %v10108 = vsel %vm10082, %v10043, %v9556
    %v10109 = vsel %vm10082, %v10044, %v9558
    %v10110 = vsel %vm10082, %v10045, %v9560
    %v10111 = vsel %vm10082, %v10046, %v9562
    %v10112 = vsel %vm10082, %v10047, %v9562
    %v10113 = vsel %vm10082, %v10048, %v9562
    %v10114 = vsel %vm10082, %v10049, %v9562
    %v10115 = vsel %vm10082, %v10050, %v9564
    %v10116 = vsel %vm10082, %v10051, %v9566
    %v10117 = vsel %vm10082, %v10052, %v9568
    %v10118 = vsel %vm10082, %v10053, %v9570
    %v10119 = vsel %vm10082, %v10054, %v9572
    %v10120 = vsel %vm10082, %v10055, %v9574
    %v10121 = vsel %vm10082, %v10056, %v9576
    %v10122 = vsel %vm10082, %v10057, %v9578
    %v10123 = vsel %vm10082, %v10058, %v9580
    %v10124 = vsel %vm10082, %v10059, %v9582
    %v10125 = vsel %vm10082, %v10060, %v9584
    %v10126 = vsel %vm10082, %v10061, %v9586
    %v10127 = vsel %vm10082, %v10062, %v9588
    %v10128 = vsel %vm10082, %v10063, %v9590
    %v10129 = vsel %vm10082, %v10064, %v9592
    %v10130 = vsel %vm10082, %v10065, %v9594
    %v10131 = vsel %vm10082, %v10066, %v9596
    %v10132 = vsel %vm10082, %v10067, %v9598
    %v10133 = vsel %vm10082, %v10068, %v9600
    %v10134 = vsel %vm10082, %v10069, %v9602
    %v10135 = vsel %vm10082, %v10070, %v9604
    %v10136 = vsel %vm10082, %v10071, %v9606
    %v10137 = vsel %vm10082, %v10072, %v9608
    %v10138 = vsel %vm10082, %v10073, %v9610
    %v10139 = vsel %vm10082, %v10074, %v9612
    %v10140 = vsel %vm10082, %v10075, %v9614
    %v10141 = vsel %vm10082, %v10076, %v9616
    %v10142 = vsel %vm10082, %v10077, %v9618
    %v10143 = vsel %vm10082, %v10078, %v9562
    %v10144 = vsel %vm10082, %v10079, %v9562
    %v10145 = vsel %vm10082, %v10080, %v9562
    %v10146 = vsel %vm10082, %v10081, %v9562
    %vm10147 = vcmask 195584
    %v10148 = vsel %vm10147, %v10083, %v9677
    %v10149 = vsel %vm10147, %v10084, %v9679
    %v10150 = vsel %vm10147, %v10085, %v9681
    %v10151 = vsel %vm10147, %v10086, %v9683
    %v10152 = vsel %vm10147, %v10087, %v9685
    %v10153 = vsel %vm10147, %v10088, %v9687
    %v10154 = vsel %vm10147, %v10089, %v9689
    %v10155 = vsel %vm10147, %v10090, %v9691
    %v10156 = vsel %vm10147, %v10091, %v9693
    %v10157 = vsel %vm10147, %v10092, %v9695
    %v10158 = vsel %vm10147, %v10093, %v9697
    %v10159 = vsel %vm10147, %v10094, %v9699
    %v10160 = vsel %vm10147, %v10095, %v9701
    %v10161 = vsel %vm10147, %v10096, %v9703
    %v10162 = vsel %vm10147, %v10097, %v9705
    %v10163 = vsel %vm10147, %v10098, %v9707
    %v10164 = vsel %vm10147, %v10099, %v9709
    %v10165 = vsel %vm10147, %v10100, %v9711
    %v10166 = vsel %vm10147, %v10101, %v9713
    %v10167 = vsel %vm10147, %v10102, %v9715
    %v10168 = vsel %vm10147, %v10103, %v9717
    %v10169 = vsel %vm10147, %v10104, %v9719
    %v10170 = vsel %vm10147, %v10105, %v9721
    %v10171 = vsel %vm10147, %v10106, %v9723
    %v10172 = vsel %vm10147, %v10107, %v9725
    %v10173 = vsel %vm10147, %v10108, %v9727
    %v10174 = vsel %vm10147, %v10109, %v9729
    %v10175 = vsel %vm10147, %v10110, %v9729
    %v10176 = vsel %vm10147, %v10111, %v9729
    %v10177 = vsel %vm10147, %v10112, %v9729
    %v10178 = vsel %vm10147, %v10113, %v9729
    %v10179 = vsel %vm10147, %v10114, %v9729
    %v10180 = vsel %vm10147, %v10115, %v9731
    %v10181 = vsel %vm10147, %v10116, %v9733
    %v10182 = vsel %vm10147, %v10117, %v9735
    %v10183 = vsel %vm10147, %v10118, %v9737
    %v10184 = vsel %vm10147, %v10119, %v9739
    %v10185 = vsel %vm10147, %v10120, %v9741
    %v10186 = vsel %vm10147, %v10121, %v9743
    %v10187 = vsel %vm10147, %v10122, %v9745
    %v10188 = vsel %vm10147, %v10123, %v9747
    %v10189 = vsel %vm10147, %v10124, %v9749
    %v10190 = vsel %vm10147, %v10125, %v9751
    %v10191 = vsel %vm10147, %v10126, %v9753
    %v10192 = vsel %vm10147, %v10127, %v9755
    %v10193 = vsel %vm10147, %v10128, %v9757
    %v10194 = vsel %vm10147, %v10129, %v9759
    %v10195 = vsel %vm10147, %v10130, %v9761
    %v10196 = vsel %vm10147, %v10131, %v9763
    %v10197 = vsel %vm10147, %v10132, %v9765
    %v10198 = vsel %vm10147, %v10133, %v9767
    %v10199 = vsel %vm10147, %v10134, %v9769
    %v10200 = vsel %vm10147, %v10135, %v9771
    %v10201 = vsel %vm10147, %v10136, %v9773
    %v10202 = vsel %vm10147, %v10137, %v9775
    %v10203 = vsel %vm10147, %v10138, %v9777
    %v10204 = vsel %vm10147, %v10139, %v9779
    %v10205 = vsel %vm10147, %v10140, %v9781
    %v10206 = vsel %vm10147, %v10141, %v9729
    %v10207 = vsel %vm10147, %v10142, %v9729
    %v10208 = vsel %vm10147, %v10143, %v9729
    %v10209 = vsel %vm10147, %v10144, %v9729
    %v10210 = vsel %vm10147, %v10145, %v9729
    %v10211 = vsel %vm10147, %v10146, %v9729
    %v10212 = vld [vmem:[%s7] sm:$0xf]
    %v10213 = vld [vmem:[%s7 + $0x4] sm:$0xf]
    %v10214 = vld [vmem:[%s7 + $0x8] sm:$0xf]
    %v10215 = vld [vmem:[%s7 + $0xc] sm:$0xf]
    %v10216 = vld [vmem:[%s7 + $0x10] sm:$0xf]
    %v10217 = vld [vmem:[%s7 + $0x14] sm:$0xf]
    %v10218 = vld [vmem:[%s7 + $0x18] sm:$0xf]
    %v10219 = vld [vmem:[%s8] sm:$0x1]
    %v10221 = vlaneseq
    %v10222 = vshrl.u32 %v10221, 7
    %v10223 = vsub.s32 0, %v10222
    %v10224 = vrot.slane %v10219, %v10223
    %v10233 = vcombine.low %v10212, %v10213
    %v10234 = vcombine.low %v10214, %v10215
    %v10235 = vcombine.low %v10216, %v10217
    %vm10239 = vcmask 228352
    %v10241 = vsel %vm10239, %v10148, 0
    %v10244 = vsel %vm10239, %v10149, 0
    %v10247 = vsel %vm10239, %v10150, 0
    %v10250 = vsel %vm10239, %v10151, 0
    %v10253 = vsel %vm10239, %v10152, 0
    %v10256 = vsel %vm10239, %v10153, 0
    %v10259 = vsel %vm10239, %v10154, 0
    %v10262 = vsel %vm10239, %v10155, 0
    %v10265 = vsel %vm10239, %v10156, 0
    %v10268 = vsel %vm10239, %v10157, 0
    %v10271 = vsel %vm10239, %v10158, 0
    %v10274 = vsel %vm10239, %v10159, 0
    %v10277 = vsel %vm10239, %v10160, 0
    %v10280 = vsel %vm10239, %v10161, 0
    %v10283 = vsel %vm10239, %v10162, 0
    %v10286 = vsel %vm10239, %v10163, 0
    %v10289 = vsel %vm10239, %v10164, 0
    %v10292 = vsel %vm10239, %v10165, 0
    %v10295 = vsel %vm10239, %v10166, 0
    %v10298 = vsel %vm10239, %v10167, 0
    %v10301 = vsel %vm10239, %v10168, 0
    %v10304 = vsel %vm10239, %v10169, 0
    %v10307 = vsel %vm10239, %v10170, 0
    %v10310 = vsel %vm10239, %v10171, 0
    %v10313 = vsel %vm10239, %v10172, 0
    %v10316 = vsel %vm10239, %v10173, 0
    %v10319 = vsel %vm10239, %v10174, 0
    %v10322 = vsel %vm10239, %v10175, 0
    %v10325 = vsel %vm10239, %v10176, 0
    %v10328 = vsel %vm10239, %v10177, 0
    %v10331 = vsel %vm10239, %v10178, 0
    %v10334 = vsel %vm10239, %v10179, 0
    %v10337 = vsel %vm10239, %v10180, 0
    %v10340 = vsel %vm10239, %v10181, 0
    %v10343 = vsel %vm10239, %v10182, 0
    %v10346 = vsel %vm10239, %v10183, 0
    %v10349 = vsel %vm10239, %v10184, 0
    %v10352 = vsel %vm10239, %v10185, 0
    %v10355 = vsel %vm10239, %v10186, 0
    %v10358 = vsel %vm10239, %v10187, 0
    %v10361 = vsel %vm10239, %v10188, 0
    %v10364 = vsel %vm10239, %v10189, 0
    %v10367 = vsel %vm10239, %v10190, 0
    %v10370 = vsel %vm10239, %v10191, 0
    %v10373 = vsel %vm10239, %v10192, 0
    %v10376 = vsel %vm10239, %v10193, 0
    %v10379 = vsel %vm10239, %v10194, 0
    %v10382 = vsel %vm10239, %v10195, 0
    %v10385 = vsel %vm10239, %v10196, 0
    %v10388 = vsel %vm10239, %v10197, 0
    %v10391 = vsel %vm10239, %v10198, 0
    %v10394 = vsel %vm10239, %v10199, 0
    %v10397 = vsel %vm10239, %v10200, 0
    %v10400 = vsel %vm10239, %v10201, 0
    %v10403 = vsel %vm10239, %v10202, 0
    %v10406 = vsel %vm10239, %v10203, 0
    %v10409 = vsel %vm10239, %v10204, 0
    %v10412 = vsel %vm10239, %v10205, 0
    %v10415 = vsel %vm10239, %v10206, 0
    %v10418 = vsel %vm10239, %v10207, 0
    %v10421 = vsel %vm10239, %v10208, 0
    %v10424 = vsel %vm10239, %v10209, 0
    %v10427 = vsel %vm10239, %v10210, 0
    %v10430 = vsel %vm10239, %v10211, 0
    %v10432 = vsel %vm6629, %v10218, 0
    %10434 = vmatprep.subr.mxu0 0.0
    %10435 = vmatpush1.msra.mxu0 %v10233
    %10436 = vmatprep.subr.mxu0 0.0
    %10437 = vmatpush1.msra.mxu0 %v10234
    %10438 = vmatprep.subr.mxu0 0.0
    %10439 = vmatpush1.msra.mxu0 %v10235
    %10440 = vmatprep.subr.mxu0 0.0
    %10441 = vmatpush1.msra.mxu0 %v10432
    %10442 = vmatprep.subr.mxu0 0.0
    %10443 = vmatpush1.msra.mxu0 0.0
    %10444 = vmatprep.subr.mxu0 0.0
    %10445 = vmatpush1.msra.mxu0 0.0
    %10446 = vmatprep.subr.mxu0 0.0
    %10447 = vmatpush1.msra.mxu0 0.0
    %10448 = vmatprep.subr.mxu0 0.0
    %10449 = vmatpush1.msra.mxu0 0.0
    %10450 = vmatprep.subr.mxu0 0.0
    %10451 = vmatpush1.msra.mxu0 0.0
    %10452 = vmatprep.subr.mxu0 0.0
    %10453 = vmatpush1.msra.mxu0 0.0
    %10454 = vmatprep.subr.mxu0 0.0
    %10455 = vmatpush1.msra.mxu0 0.0
    %10456 = vmatprep.subr.mxu0 0.0
    %10457 = vmatpush1.msra.mxu0 0.0
    %10458 = vmatprep.subr.mxu0 0.0
    %10459 = vmatpush1.msra.mxu0 0.0
    %10460 = vmatprep.subr.mxu0 0.0
    %10461 = vmatpush1.msra.mxu0 0.0
    %10462 = vmatprep.subr.mxu0 0.0
    %10463 = vmatpush1.msra.mxu0 0.0
    %10464 = vmatprep.subr.mxu0 0.0
    %10465 = vmatpush1.msra.mxu0 0.0
    %10466 = vmatprep.subr.mxu0 0.0
    %10467 = vmatpush1.msra.mxu0 0.0
    %10468 = vmatprep.subr.mxu0 0.0
    %10469 = vmatpush1.msra.mxu0 0.0
    %10470 = vmatprep.subr.mxu0 0.0
    %10471 = vmatpush1.msra.mxu0 0.0
    %10472 = vmatprep.subr.mxu0 0.0
    %10473 = vmatpush1.msra.mxu0 0.0
    %10474 = vmatprep.subr.mxu0 0.0
    %10475 = vmatpush1.msra.mxu0 0.0
    %10476 = vmatprep.subr.mxu0 0.0
    %10477 = vmatpush1.msra.mxu0 0.0
    %10478 = vmatprep.subr.mxu0 0.0
    %10479 = vmatpush1.msra.mxu0 0.0
    %10480 = vmatprep.subr.mxu0 0.0
    %10481 = vmatpush1.msra.mxu0 0.0
    %10482 = vmatprep.subr.mxu0 0.0
    %10483 = vmatpush1.msra.mxu0 0.0
    %10484 = vmatprep.subr.mxu0 0.0
    %10485 = vmatpush1.msra.mxu0 0.0
    %10486 = vmatprep.subr.mxu0 0.0
    %10487 = vmatpush1.msra.mxu0 0.0
    %10488 = vmatprep.subr.mxu0 0.0
    %10489 = vmatpush1.msra.mxu0 0.0
    %10490 = vmatprep.subr.mxu0 0.0
    %10491 = vmatpush1.msra.mxu0 0.0
    %10492 = vmatprep.subr.mxu0 0.0
    %10493 = vmatpush1.msra.mxu0 0.0
    %10494 = vmatprep.subr.mxu0 0.0
    %10495 = vmatpush1.msra.mxu0 0.0
    %10496 = vmatprep.subr.mxu0 0.0
    %10497 = vmatpush1.msra.mxu0 0.0
    %10498 = vmatprep.mubr.f32.mxu0 0.0
    %10499 = vmatmul.mubr.f32.gmra.mrb[0].mxu0 %v10241
    %v10500 = vpop.f32.mrb[0].mxu0
    %v10501 = vadd.f32 %v10224, %v10500
    %v10502 = vpop.f32.mrb[0].mxu0
    %10503 = vmatprep.mubr.f32.mxu0 0.0
    %10504 = vmatmul.mubr.f32.gmra.mrb[0].mxu0 %v10244
    %v10505 = vpop.f32.mrb[0].mxu0
    %v10506 = vadd.f32 %v10224, %v10505
    %v10507 = vpop.f32.mrb[0].mxu0
    %10508 = vmatprep.mubr.f32.mxu0 0.0
    %10509 = vmatmul.mubr.f32.gmra.mrb[0].mxu0 %v10247
    %v10510 = vpop.f32.mrb[0].mxu0
    %v10511 = vadd.f32 %v10224, %v10510
    %v10512 = vpop.f32.mrb[0].mxu0
    %10513 = vmatprep.mubr.f32.mxu0 0.0
    %10514 = vmatmul.mubr.f32.gmra.mrb[0].mxu0 %v10250
    %v10515 = vpop.f32.mrb[0].mxu0
    %v10516 = vadd.f32 %v10224, %v10515
    %v10517 = vpop.f32.mrb[0].mxu0
    %10518 = vmatprep.mubr.f32.mxu0 0.0
    %10519 = vmatmul.mubr.f32.gmra.mrb[0].mxu0 %v10253
    %v10520 = vpop.f32.mrb[0].mxu0
    %v10521 = vadd.f32 %v10224, %v10520
    %v10522 = vpop.f32.mrb[0].mxu0
    %10523 = vmatprep.mubr.f32.mxu0 0.0
    %10524 = vmatmul.mubr.f32.gmra.mrb[0].mxu0 %v10256
    %v10525 = vpop.f32.mrb[0].mxu0
    %v10526 = vadd.f32 %v10224, %v10525
    %v10527 = vpop.f32.mrb[0].mxu0
    %10528 = vmatprep.mubr.f32.mxu0 0.0
    %10529 = vmatmul.mubr.f32.gmra.mrb[0].mxu0 %v10259
    %v10530 = vpop.f32.mrb[0].mxu0
    %v10531 = vadd.f32 %v10224, %v10530
    %v10532 = vpop.f32.mrb[0].mxu0
    %10533 = vmatprep.mubr.f32.mxu0 0.0
    %10534 = vmatmul.mubr.f32.gmra.mrb[0].mxu0 %v10262
    %v10535 = vpop.f32.mrb[0].mxu0
    %v10536 = vadd.f32 %v10224, %v10535
    %v10537 = vpop.f32.mrb[0].mxu0
    %10538 = vmatprep.mubr.f32.mxu0 0.0
    %10539 = vmatmul.mubr.f32.gmra.mrb[0].mxu0 %v10265
    %v10540 = vpop.f32.mrb[0].mxu0
    %v10541 = vadd.f32 %v10224, %v10540
    %v10542 = vpop.f32.mrb[0].mxu0
    %10543 = vmatprep.mubr.f32.mxu0 0.0
    %10544 = vmatmul.mubr.f32.gmra.mrb[0].mxu0 %v10268
    %v10545 = vpop.f32.mrb[0].mxu0
    %v10546 = vadd.f32 %v10224, %v10545
    %v10547 = vpop.f32.mrb[0].mxu0
    %10548 = vmatprep.mubr.f32.mxu0 0.0
    %10549 = vmatmul.mubr.f32.gmra.mrb[0].mxu0 %v10271
    %v10550 = vpop.f32.mrb[0].mxu0
    %v10551 = vadd.f32 %v10224, %v10550
    %v10552 = vpop.f32.mrb[0].mxu0
    %10553 = vmatprep.mubr.f32.mxu0 0.0
    %10554 = vmatmul.mubr.f32.gmra.mrb[0].mxu0 %v10274
    %v10555 = vpop.f32.mrb[0].mxu0
    %v10556 = vadd.f32 %v10224, %v10555
    %v10557 = vpop.f32.mrb[0].mxu0
    %10558 = vmatprep.mubr.f32.mxu0 0.0
    %10559 = vmatmul.mubr.f32.gmra.mrb[0].mxu0 %v10277
    %v10560 = vpop.f32.mrb[0].mxu0
    %v10561 = vadd.f32 %v10224, %v10560
    %v10562 = vpop.f32.mrb[0].mxu0
    %10563 = vmatprep.mubr.f32.mxu0 0.0
    %10564 = vmatmul.mubr.f32.gmra.mrb[0].mxu0 %v10280
    %v10565 = vpop.f32.mrb[0].mxu0
    %v10566 = vadd.f32 %v10224, %v10565
    %v10567 = vpop.f32.mrb[0].mxu0
    %10568 = vmatprep.mubr.f32.mxu0 0.0
    %10569 = vmatmul.mubr.f32.gmra.mrb[0].mxu0 %v10283
    %v10570 = vpop.f32.mrb[0].mxu0
    %v10571 = vadd.f32 %v10224, %v10570
    %v10572 = vpop.f32.mrb[0].mxu0
    %10573 = vmatprep.mubr.f32.mxu0 0.0
    %10574 = vmatmul.mubr.f32.gmra.mrb[0].mxu0 %v10286
    %v10575 = vpop.f32.mrb[0].mxu0
    %v10576 = vadd.f32 %v10224, %v10575
    %v10577 = vpop.f32.mrb[0].mxu0
    %10578 = vmatprep.mubr.f32.mxu0 0.0
    %10579 = vmatmul.mubr.f32.gmra.mrb[0].mxu0 %v10289
    %v10580 = vpop.f32.mrb[0].mxu0
    %v10581 = vadd.f32 %v10224, %v10580
    %v10582 = vpop.f32.mrb[0].mxu0
    %10583 = vmatprep.mubr.f32.mxu0 0.0
    %10584 = vmatmul.mubr.f32.gmra.mrb[0].mxu0 %v10292
    %v10585 = vpop.f32.mrb[0].mxu0
    %v10586 = vadd.f32 %v10224, %v10585
    %v10587 = vpop.f32.mrb[0].mxu0
    %10588 = vmatprep.mubr.f32.mxu0 0.0
    %10589 = vmatmul.mubr.f32.gmra.mrb[0].mxu0 %v10295
    %v10590 = vpop.f32.mrb[0].mxu0
    %v10591 = vadd.f32 %v10224, %v10590
    %v10592 = vpop.f32.mrb[0].mxu0
    %10593 = vmatprep.mubr.f32.mxu0 0.0
    %10594 = vmatmul.mubr.f32.gmra.mrb[0].mxu0 %v10298
    %v10595 = vpop.f32.mrb[0].mxu0
    %v10596 = vadd.f32 %v10224, %v10595
    %v10597 = vpop.f32.mrb[0].mxu0
    %10598 = vmatprep.mubr.f32.mxu0 0.0
    %10599 = vmatmul.mubr.f32.gmra.mrb[0].mxu0 %v10301
    %v10600 = vpop.f32.mrb[0].mxu0
    %v10601 = vadd.f32 %v10224, %v10600
    %v10602 = vpop.f32.mrb[0].mxu0
    %10603 = vmatprep.mubr.f32.mxu0 0.0
    %10604 = vmatmul.mubr.f32.gmra.mrb[0].mxu0 %v10304
    %v10605 = vpop.f32.mrb[0].mxu0
    %v10606 = vadd.f32 %v10224, %v10605
    %v10607 = vpop.f32.mrb[0].mxu0
    %10608 = vmatprep.mubr.f32.mxu0 0.0
    %10609 = vmatmul.mubr.f32.gmra.mrb[0].mxu0 %v10307
    %v10610 = vpop.f32.mrb[0].mxu0
    %v10611 = vadd.f32 %v10224, %v10610
    %v10612 = vpop.f32.mrb[0].mxu0
    %10613 = vmatprep.mubr.f32.mxu0 0.0
    %10614 = vmatmul.mubr.f32.gmra.mrb[0].mxu0 %v10310
    %v10615 = vpop.f32.mrb[0].mxu0
    %v10616 = vadd.f32 %v10224, %v10615
    %v10617 = vpop.f32.mrb[0].mxu0
    %10618 = vmatprep.mubr.f32.mxu0 0.0
    %10619 = vmatmul.mubr.f32.gmra.mrb[0].mxu0 %v10313
    %v10620 = vpop.f32.mrb[0].mxu0
    %v10621 = vadd.f32 %v10224, %v10620
    %v10622 = vpop.f32.mrb[0].mxu0
    %10623 = vmatprep.mubr.f32.mxu0 0.0
    %10624 = vmatmul.mubr.f32.gmra.mrb[0].mxu0 %v10316
    %v10625 = vpop.f32.mrb[0].mxu0
    %v10626 = vadd.f32 %v10224, %v10625
    %v10627 = vpop.f32.mrb[0].mxu0
    %10628 = vmatprep.mubr.f32.mxu0 0.0
    %10629 = vmatmul.mubr.f32.gmra.mrb[0].mxu0 %v10319
    %v10630 = vpop.f32.mrb[0].mxu0
    %v10631 = vadd.f32 %v10224, %v10630
    %v10632 = vpop.f32.mrb[0].mxu0
    %10633 = vmatprep.mubr.f32.mxu0 0.0
    %10634 = vmatmul.mubr.f32.gmra.mrb[0].mxu0 %v10322
    %v10635 = vpop.f32.mrb[0].mxu0
    %v10636 = vadd.f32 %v10224, %v10635
    %v10637 = vpop.f32.mrb[0].mxu0
    %10638 = vmatprep.mubr.f32.mxu0 0.0
    %10639 = vmatmul.mubr.f32.gmra.mrb[0].mxu0 %v10325
    %v10640 = vpop.f32.mrb[0].mxu0
    %v10641 = vadd.f32 %v10224, %v10640
    %v10642 = vpop.f32.mrb[0].mxu0
    %10643 = vmatprep.mubr.f32.mxu0 0.0
    %10644 = vmatmul.mubr.f32.gmra.mrb[0].mxu0 %v10328
    %v10645 = vpop.f32.mrb[0].mxu0
    %v10646 = vadd.f32 %v10224, %v10645
    %v10647 = vpop.f32.mrb[0].mxu0
    %10648 = vmatprep.mubr.f32.mxu0 0.0
    %10649 = vmatmul.mubr.f32.gmra.mrb[0].mxu0 %v10331
    %v10650 = vpop.f32.mrb[0].mxu0
    %v10651 = vadd.f32 %v10224, %v10650
    %v10652 = vpop.f32.mrb[0].mxu0
    %10653 = vmatprep.mubr.f32.mxu0 0.0
    %10654 = vmatmul.mubr.f32.gmra.mrb[0].mxu0 %v10334
    %v10655 = vpop.f32.mrb[0].mxu0
    %v10656 = vadd.f32 %v10224, %v10655
    %v10657 = vpop.f32.mrb[0].mxu0
    %10658 = vmatprep.mubr.f32.mxu0 0.0
    %10659 = vmatmul.mubr.f32.gmra.mrb[0].mxu0 %v10337
    %v10660 = vpop.f32.mrb[0].mxu0
    %v10661 = vadd.f32 %v10224, %v10660
    %v10662 = vpop.f32.mrb[0].mxu0
    %10663 = vmatprep.mubr.f32.mxu0 0.0
    %10664 = vmatmul.mubr.f32.gmra.mrb[0].mxu0 %v10340
    %v10665 = vpop.f32.mrb[0].mxu0
    %v10666 = vadd.f32 %v10224, %v10665
    %v10667 = vpop.f32.mrb[0].mxu0
    %10668 = vmatprep.mubr.f32.mxu0 0.0
    %10669 = vmatmul.mubr.f32.gmra.mrb[0].mxu0 %v10343
    %v10670 = vpop.f32.mrb[0].mxu0
    %v10671 = vadd.f32 %v10224, %v10670
    %v10672 = vpop.f32.mrb[0].mxu0
    %10673 = vmatprep.mubr.f32.mxu0 0.0
    %10674 = vmatmul.mubr.f32.gmra.mrb[0].mxu0 %v10346
    %v10675 = vpop.f32.mrb[0].mxu0
    %v10676 = vadd.f32 %v10224, %v10675
    %v10677 = vpop.f32.mrb[0].mxu0
    %10678 = vmatprep.mubr.f32.mxu0 0.0
    %10679 = vmatmul.mubr.f32.gmra.mrb[0].mxu0 %v10349
    %v10680 = vpop.f32.mrb[0].mxu0
    %v10681 = vadd.f32 %v10224, %v10680
    %v10682 = vpop.f32.mrb[0].mxu0
    %10683 = vmatprep.mubr.f32.mxu0 0.0
    %10684 = vmatmul.mubr.f32.gmra.mrb[0].mxu0 %v10352
    %v10685 = vpop.f32.mrb[0].mxu0
    %v10686 = vadd.f32 %v10224, %v10685
    %v10687 = vpop.f32.mrb[0].mxu0
    %10688 = vmatprep.mubr.f32.mxu0 0.0
    %10689 = vmatmul.mubr.f32.gmra.mrb[0].mxu0 %v10355
    %v10690 = vpop.f32.mrb[0].mxu0
    %v10691 = vadd.f32 %v10224, %v10690
    %v10692 = vpop.f32.mrb[0].mxu0
    %10693 = vmatprep.mubr.f32.mxu0 0.0
    %10694 = vmatmul.mubr.f32.gmra.mrb[0].mxu0 %v10358
    %v10695 = vpop.f32.mrb[0].mxu0
    %v10696 = vadd.f32 %v10224, %v10695
    %v10697 = vpop.f32.mrb[0].mxu0
    %10698 = vmatprep.mubr.f32.mxu0 0.0
    %10699 = vmatmul.mubr.f32.gmra.mrb[0].mxu0 %v10361
    %v10700 = vpop.f32.mrb[0].mxu0
    %v10701 = vadd.f32 %v10224, %v10700
    %v10702 = vpop.f32.mrb[0].mxu0
    %10703 = vmatprep.mubr.f32.mxu0 0.0
    %10704 = vmatmul.mubr.f32.gmra.mrb[0].mxu0 %v10364
    %v10705 = vpop.f32.mrb[0].mxu0
    %v10706 = vadd.f32 %v10224, %v10705
    %v10707 = vpop.f32.mrb[0].mxu0
    %10708 = vmatprep.mubr.f32.mxu0 0.0
    %10709 = vmatmul.mubr.f32.gmra.mrb[0].mxu0 %v10367
    %v10710 = vpop.f32.mrb[0].mxu0
    %v10711 = vadd.f32 %v10224, %v10710
    %v10712 = vpop.f32.mrb[0].mxu0
    %10713 = vmatprep.mubr.f32.mxu0 0.0
    %10714 = vmatmul.mubr.f32.gmra.mrb[0].mxu0 %v10370
    %v10715 = vpop.f32.mrb[0].mxu0
    %v10716 = vadd.f32 %v10224, %v10715
    %v10717 = vpop.f32.mrb[0].mxu0
    %10718 = vmatprep.mubr.f32.mxu0 0.0
    %10719 = vmatmul.mubr.f32.gmra.mrb[0].mxu0 %v10373
    %v10720 = vpop.f32.mrb[0].mxu0
    %v10721 = vadd.f32 %v10224, %v10720
    %v10722 = vpop.f32.mrb[0].mxu0
    %10723 = vmatprep.mubr.f32.mxu0 0.0
    %10724 = vmatmul.mubr.f32.gmra.mrb[0].mxu0 %v10376
    %v10725 = vpop.f32.mrb[0].mxu0
    %v10726 = vadd.f32 %v10224, %v10725
    %v10727 = vpop.f32.mrb[0].mxu0
    %10728 = vmatprep.mubr.f32.mxu0 0.0
    %10729 = vmatmul.mubr.f32.gmra.mrb[0].mxu0 %v10379
    %v10730 = vpop.f32.mrb[0].mxu0
    %v10731 = vadd.f32 %v10224, %v10730
    %v10732 = vpop.f32.mrb[0].mxu0
    %10733 = vmatprep.mubr.f32.mxu0 0.0
    %10734 = vmatmul.mubr.f32.gmra.mrb[0].mxu0 %v10382
    %v10735 = vpop.f32.mrb[0].mxu0
    %v10736 = vadd.f32 %v10224, %v10735
    %v10737 = vpop.f32.mrb[0].mxu0
    %10738 = vmatprep.mubr.f32.mxu0 0.0
    %10739 = vmatmul.mubr.f32.gmra.mrb[0].mxu0 %v10385
    %v10740 = vpop.f32.mrb[0].mxu0
    %v10741 = vadd.f32 %v10224, %v10740
    %v10742 = vpop.f32.mrb[0].mxu0
    %10743 = vmatprep.mubr.f32.mxu0 0.0
    %10744 = vmatmul.mubr.f32.gmra.mrb[0].mxu0 %v10388
    %v10745 = vpop.f32.mrb[0].mxu0
    %v10746 = vadd.f32 %v10224, %v10745
    %v10747 = vpop.f32.mrb[0].mxu0
    %10748 = vmatprep.mubr.f32.mxu0 0.0
    %10749 = vmatmul.mubr.f32.gmra.mrb[0].mxu0 %v10391
    %v10750 = vpop.f32.mrb[0].mxu0
    %v10751 = vadd.f32 %v10224, %v10750
    %v10752 = vpop.f32.mrb[0].mxu0
    %10753 = vmatprep.mubr.f32.mxu0 0.0
    %10754 = vmatmul.mubr.f32.gmra.mrb[0].mxu0 %v10394
    %v10755 = vpop.f32.mrb[0].mxu0
    %v10756 = vadd.f32 %v10224, %v10755
    %v10757 = vpop.f32.mrb[0].mxu0
    %10758 = vmatprep.mubr.f32.mxu0 0.0
    %10759 = vmatmul.mubr.f32.gmra.mrb[0].mxu0 %v10397
    %v10760 = vpop.f32.mrb[0].mxu0
    %v10761 = vadd.f32 %v10224, %v10760
    %v10762 = vpop.f32.mrb[0].mxu0
    %10763 = vmatprep.mubr.f32.mxu0 0.0
    %10764 = vmatmul.mubr.f32.gmra.mrb[0].mxu0 %v10400
    %v10765 = vpop.f32.mrb[0].mxu0
    %v10766 = vadd.f32 %v10224, %v10765
    %v10767 = vpop.f32.mrb[0].mxu0
    %10768 = vmatprep.mubr.f32.mxu0 0.0
    %10769 = vmatmul.mubr.f32.gmra.mrb[0].mxu0 %v10403
    %v10770 = vpop.f32.mrb[0].mxu0
    %v10771 = vadd.f32 %v10224, %v10770
    %v10772 = vpop.f32.mrb[0].mxu0
    %10773 = vmatprep.mubr.f32.mxu0 0.0
    %10774 = vmatmul.mubr.f32.gmra.mrb[0].mxu0 %v10406
    %v10775 = vpop.f32.mrb[0].mxu0
    %v10776 = vadd.f32 %v10224, %v10775
    %v10777 = vpop.f32.mrb[0].mxu0
    %10778 = vmatprep.mubr.f32.mxu0 0.0
    %10779 = vmatmul.mubr.f32.gmra.mrb[0].mxu0 %v10409
    %v10780 = vpop.f32.mrb[0].mxu0
    %v10781 = vadd.f32 %v10224, %v10780
    %v10782 = vpop.f32.mrb[0].mxu0
    %10783 = vmatprep.mubr.f32.mxu0 0.0
    %10784 = vmatmul.mubr.f32.gmra.mrb[0].mxu0 %v10412
    %v10785 = vpop.f32.mrb[0].mxu0
    %v10786 = vadd.f32 %v10224, %v10785
    %v10787 = vpop.f32.mrb[0].mxu0
    %10788 = vmatprep.mubr.f32.mxu0 0.0
    %10789 = vmatmul.mubr.f32.gmra.mrb[0].mxu0 %v10415
    %v10790 = vpop.f32.mrb[0].mxu0
    %v10791 = vadd.f32 %v10224, %v10790
    %v10792 = vpop.f32.mrb[0].mxu0
    %10793 = vmatprep.mubr.f32.mxu0 0.0
    %10794 = vmatmul.mubr.f32.gmra.mrb[0].mxu0 %v10418
    %v10795 = vpop.f32.mrb[0].mxu0
    %v10796 = vadd.f32 %v10224, %v10795
    %v10797 = vpop.f32.mrb[0].mxu0
    %10798 = vmatprep.mubr.f32.mxu0 0.0
    %10799 = vmatmul.mubr.f32.gmra.mrb[0].mxu0 %v10421
    %v10800 = vpop.f32.mrb[0].mxu0
    %v10801 = vadd.f32 %v10224, %v10800
    %v10802 = vpop.f32.mrb[0].mxu0
    %10803 = vmatprep.mubr.f32.mxu0 0.0
    %10804 = vmatmul.mubr.f32.gmra.mrb[0].mxu0 %v10424
    %v10805 = vpop.f32.mrb[0].mxu0
    %v10806 = vadd.f32 %v10224, %v10805
    %v10807 = vpop.f32.mrb[0].mxu0
    %10808 = vmatprep.mubr.f32.mxu0 0.0
    %10809 = vmatmul.mubr.f32.gmra.mrb[0].mxu0 %v10427
    %v10810 = vpop.f32.mrb[0].mxu0
    %v10811 = vadd.f32 %v10224, %v10810
    %v10812 = vpop.f32.mrb[0].mxu0
    %10813 = vmatprep.mubr.f32.mxu0 0.0
    %10814 = vmatmul.mubr.f32.gmra.mrb[0].mxu0 %v10430
    %v10815 = vpop.f32.mrb[0].mxu0
    %v10816 = vadd.f32 %v10224, %v10815
    %v10817 = vpop.f32.mrb[0].mxu0
    %10818 = vdwg.mxu0
    %v10883 = vrot.slane %v10501, 7
    %v10884 = vrot.slane %v10506, 7
    %v10885 = vsel %vm181, %v10883, %v10884
    %v10886 = vrot.slane %v10511, 7
    %v10887 = vrot.slane %v10516, 7
    %v10888 = vsel %vm181, %v10886, %v10887
    %v10889 = vrot.slane %v10521, 7
    %v10890 = vrot.slane %v10526, 7
    %v10891 = vsel %vm181, %v10889, %v10890
    %v10892 = vrot.slane %v10531, 7
    %v10893 = vrot.slane %v10536, 7
    %v10894 = vsel %vm181, %v10892, %v10893
    %v10895 = vrot.slane %v10541, 7
    %v10896 = vrot.slane %v10546, 7
    %v10897 = vsel %vm181, %v10895, %v10896
    %v10898 = vrot.slane %v10551, 7
    %v10899 = vrot.slane %v10556, 7
    %v10900 = vsel %vm181, %v10898, %v10899
    %v10901 = vrot.slane %v10561, 7
    %v10902 = vrot.slane %v10566, 7
    %v10903 = vsel %vm181, %v10901, %v10902
    %v10904 = vrot.slane %v10571, 7
    %v10905 = vrot.slane %v10576, 7
    %v10906 = vsel %vm181, %v10904, %v10905
    %v10907 = vrot.slane %v10581, 7
    %v10908 = vrot.slane %v10586, 7
    %v10909 = vsel %vm181, %v10907, %v10908
    %v10910 = vrot.slane %v10591, 7
    %v10911 = vrot.slane %v10596, 7
    %v10912 = vsel %vm181, %v10910, %v10911
    %v10913 = vrot.slane %v10601, 7
    %v10914 = vrot.slane %v10606, 7
    %v10915 = vsel %vm181, %v10913, %v10914
    %v10916 = vrot.slane %v10611, 7
    %v10917 = vrot.slane %v10616, 7
    %v10918 = vsel %vm181, %v10916, %v10917
    %v10919 = vrot.slane %v10621, 7
    %v10920 = vrot.slane %v10626, 7
    %v10921 = vsel %vm181, %v10919, %v10920
    %v10922 = vrot.slane %v10631, 7
    %v10923 = vrot.slane %v10636, 7
    %v10924 = vsel %vm181, %v10922, %v10923
    %v10925 = vrot.slane %v10641, 7
    %v10926 = vrot.slane %v10646, 7
    %v10927 = vsel %vm181, %v10925, %v10926
    %v10928 = vrot.slane %v10651, 7
    %v10929 = vrot.slane %v10656, 7
    %v10930 = vsel %vm181, %v10928, %v10929
    %v10931 = vrot.slane %v10661, 7
    %v10932 = vrot.slane %v10666, 7
    %v10933 = vsel %vm181, %v10931, %v10932
    %v10934 = vrot.slane %v10671, 7
    %v10935 = vrot.slane %v10676, 7
    %v10936 = vsel %vm181, %v10934, %v10935
    %v10937 = vrot.slane %v10681, 7
    %v10938 = vrot.slane %v10686, 7
    %v10939 = vsel %vm181, %v10937, %v10938
    %v10940 = vrot.slane %v10691, 7
    %v10941 = vrot.slane %v10696, 7
    %v10942 = vsel %vm181, %v10940, %v10941
    %v10943 = vrot.slane %v10701, 7
    %v10944 = vrot.slane %v10706, 7
    %v10945 = vsel %vm181, %v10943, %v10944
    %v10946 = vrot.slane %v10711, 7
    %v10947 = vrot.slane %v10716, 7
    %v10948 = vsel %vm181, %v10946, %v10947
    %v10949 = vrot.slane %v10721, 7
    %v10950 = vrot.slane %v10726, 7
    %v10951 = vsel %vm181, %v10949, %v10950
    %v10952 = vrot.slane %v10731, 7
    %v10953 = vrot.slane %v10736, 7
    %v10954 = vsel %vm181, %v10952, %v10953
    %v10955 = vrot.slane %v10741, 7
    %v10956 = vrot.slane %v10746, 7
    %v10957 = vsel %vm181, %v10955, %v10956
    %v10958 = vrot.slane %v10751, 7
    %v10959 = vrot.slane %v10756, 7
    %v10960 = vsel %vm181, %v10958, %v10959
    %v10961 = vrot.slane %v10761, 7
    %v10962 = vrot.slane %v10766, 7
    %v10963 = vsel %vm181, %v10961, %v10962
    %v10964 = vrot.slane %v10771, 7
    %v10965 = vrot.slane %v10776, 7
    %v10966 = vsel %vm181, %v10964, %v10965
    %v10967 = vrot.slane %v10781, 7
    %v10968 = vrot.slane %v10786, 7
    %v10969 = vsel %vm181, %v10967, %v10968
    %v10970 = vrot.slane %v10791, 7
    %v10971 = vrot.slane %v10796, 7
    %v10972 = vsel %vm181, %v10970, %v10971
    %v10973 = vrot.slane %v10801, 7
    %v10974 = vrot.slane %v10806, 7
    %v10975 = vsel %vm181, %v10973, %v10974
    %v10976 = vrot.slane %v10811, 7
    %v10977 = vrot.slane %v10816, 7
    %v10978 = vsel %vm181, %v10976, %v10977
    %v11073 = vsel %vm181, 0.0, %v10883
    %v11074 = vsel %vm181, 0.0, %v10886
    %v11075 = vsel %vm181, 0.0, %v10889
    %v11076 = vsel %vm181, 0.0, %v10892
    %v11077 = vsel %vm181, 0.0, %v10895
    %v11078 = vsel %vm181, 0.0, %v10898
    %v11079 = vsel %vm181, 0.0, %v10901
    %v11080 = vsel %vm181, 0.0, %v10904
    %v11081 = vsel %vm181, 0.0, %v10907
    %v11082 = vsel %vm181, 0.0, %v10910
    %v11083 = vsel %vm181, 0.0, %v10913
    %v11084 = vsel %vm181, 0.0, %v10916
    %v11085 = vsel %vm181, 0.0, %v10919
    %v11086 = vsel %vm181, 0.0, %v10922
    %v11087 = vsel %vm181, 0.0, %v10925
    %v11088 = vsel %vm181, 0.0, %v10928
    %v11089 = vsel %vm181, 0.0, %v10931
    %v11090 = vsel %vm181, 0.0, %v10934
    %v11091 = vsel %vm181, 0.0, %v10937
    %v11092 = vsel %vm181, 0.0, %v10940
    %v11093 = vsel %vm181, 0.0, %v10943
    %v11094 = vsel %vm181, 0.0, %v10946
    %v11095 = vsel %vm181, 0.0, %v10949
    %v11096 = vsel %vm181, 0.0, %v10952
    %v11097 = vsel %vm181, 0.0, %v10955
    %v11098 = vsel %vm181, 0.0, %v10958
    %v11099 = vsel %vm181, 0.0, %v10961
    %v11100 = vsel %vm181, 0.0, %v10964
    %v11101 = vsel %vm181, 0.0, %v10967
    %v11102 = vsel %vm181, 0.0, %v10970
    %v11103 = vsel %vm181, 0.0, %v10973
    %v11104 = vsel %vm181, 0.0, %v10976
    %v11105 = vsel %vm181, %v10884, 0.0
    %v11106 = vsel %vm181, %v10887, 0.0
    %v11107 = vsel %vm181, %v10890, 0.0
    %v11108 = vsel %vm181, %v10893, 0.0
    %v11109 = vsel %vm181, %v10896, 0.0
    %v11110 = vsel %vm181, %v10899, 0.0
    %v11111 = vsel %vm181, %v10902, 0.0
    %v11112 = vsel %vm181, %v10905, 0.0
    %v11113 = vsel %vm181, %v10908, 0.0
    %v11114 = vsel %vm181, %v10911, 0.0
    %v11115 = vsel %vm181, %v10914, 0.0
    %v11116 = vsel %vm181, %v10917, 0.0
    %v11117 = vsel %vm181, %v10920, 0.0
    %v11118 = vsel %vm181, %v10923, 0.0
    %v11119 = vsel %vm181, %v10926, 0.0
    %v11120 = vsel %vm181, %v10929, 0.0
    %v11121 = vsel %vm181, %v10932, 0.0
    %v11122 = vsel %vm181, %v10935, 0.0
    %v11123 = vsel %vm181, %v10938, 0.0
    %v11124 = vsel %vm181, %v10941, 0.0
    %v11125 = vsel %vm181, %v10944, 0.0
    %v11126 = vsel %vm181, %v10947, 0.0
    %v11127 = vsel %vm181, %v10950, 0.0
    %v11128 = vsel %vm181, %v10953, 0.0
    %v11129 = vsel %vm181, %v10956, 0.0
    %v11130 = vsel %vm181, %v10959, 0.0
    %v11131 = vsel %vm181, %v10962, 0.0
    %v11132 = vsel %vm181, %v10965, 0.0
    %v11133 = vsel %vm181, %v10968, 0.0
    %v11134 = vsel %vm181, %v10971, 0.0
    %v11135 = vsel %vm181, %v10974, 0.0
    %v11136 = vsel %vm181, %v10977, 0.0
    %v11197 = vrot.slane %v11073, 1
    %v11198 = vrot.slane %v10885, 1
    %v11199 = vsel %vm499, %v11197, %v11198
    %v11200 = vrot.slane %v11105, 1
    %v11201 = vsel %vm499, %v11198, %v11200
    %v11202 = vrot.slane %v11074, 1
    %v11203 = vrot.slane %v10888, 1
    %v11204 = vsel %vm499, %v11202, %v11203
    %v11205 = vrot.slane %v11106, 1
    %v11206 = vsel %vm499, %v11203, %v11205
    %v11207 = vrot.slane %v11075, 1
    %v11208 = vrot.slane %v10891, 1
    %v11209 = vsel %vm499, %v11207, %v11208
    %v11210 = vrot.slane %v11107, 1
    %v11211 = vsel %vm499, %v11208, %v11210
    %v11212 = vrot.slane %v11076, 1
    %v11213 = vrot.slane %v10894, 1
    %v11214 = vsel %vm499, %v11212, %v11213
    %v11215 = vrot.slane %v11108, 1
    %v11216 = vsel %vm499, %v11213, %v11215
    %v11217 = vrot.slane %v11077, 1
    %v11218 = vrot.slane %v10897, 1
    %v11219 = vsel %vm499, %v11217, %v11218
    %v11220 = vrot.slane %v11109, 1
    %v11221 = vsel %vm499, %v11218, %v11220
    %v11222 = vrot.slane %v11078, 1
    %v11223 = vrot.slane %v10900, 1
    %v11224 = vsel %vm499, %v11222, %v11223
    %v11225 = vrot.slane %v11110, 1
    %v11226 = vsel %vm499, %v11223, %v11225
    %v11227 = vrot.slane %v11079, 1
    %v11228 = vrot.slane %v10903, 1
    %v11229 = vsel %vm499, %v11227, %v11228
    %v11230 = vrot.slane %v11111, 1
    %v11231 = vsel %vm499, %v11228, %v11230
    %v11232 = vrot.slane %v11080, 1
    %v11233 = vrot.slane %v10906, 1
    %v11234 = vsel %vm499, %v11232, %v11233
    %v11235 = vrot.slane %v11112, 1
    %v11236 = vsel %vm499, %v11233, %v11235
    %v11237 = vrot.slane %v11081, 1
    %v11238 = vrot.slane %v10909, 1
    %v11239 = vsel %vm499, %v11237, %v11238
    %v11240 = vrot.slane %v11113, 1
    %v11241 = vsel %vm499, %v11238, %v11240
    %v11242 = vrot.slane %v11082, 1
    %v11243 = vrot.slane %v10912, 1
    %v11244 = vsel %vm499, %v11242, %v11243
    %v11245 = vrot.slane %v11114, 1
    %v11246 = vsel %vm499, %v11243, %v11245
    %v11247 = vrot.slane %v11083, 1
    %v11248 = vrot.slane %v10915, 1
    %v11249 = vsel %vm499, %v11247, %v11248
    %v11250 = vrot.slane %v11115, 1
    %v11251 = vsel %vm499, %v11248, %v11250
    %v11252 = vrot.slane %v11084, 1
    %v11253 = vrot.slane %v10918, 1
    %v11254 = vsel %vm499, %v11252, %v11253
    %v11255 = vrot.slane %v11116, 1
    %v11256 = vsel %vm499, %v11253, %v11255
    %v11257 = vrot.slane %v11085, 1
    %v11258 = vrot.slane %v10921, 1
    %v11259 = vsel %vm499, %v11257, %v11258
    %v11260 = vrot.slane %v11117, 1
    %v11261 = vsel %vm499, %v11258, %v11260
    %v11262 = vrot.slane %v11086, 1
    %v11263 = vrot.slane %v10924, 1
    %v11264 = vsel %vm499, %v11262, %v11263
    %v11265 = vrot.slane %v11118, 1
    %v11266 = vsel %vm499, %v11263, %v11265
    %v11267 = vrot.slane %v11087, 1
    %v11268 = vrot.slane %v10927, 1
    %v11269 = vsel %vm499, %v11267, %v11268
    %v11270 = vrot.slane %v11119, 1
    %v11271 = vsel %vm499, %v11268, %v11270
    %v11272 = vrot.slane %v11089, 1
    %v11273 = vrot.slane %v10933, 1
    %v11274 = vsel %vm499, %v11272, %v11273
    %v11275 = vrot.slane %v11121, 1
    %v11276 = vsel %vm499, %v11273, %v11275
    %v11277 = vrot.slane %v11090, 1
    %v11278 = vrot.slane %v10936, 1
    %v11279 = vsel %vm499, %v11277, %v11278
    %v11280 = vrot.slane %v11122, 1
    %v11281 = vsel %vm499, %v11278, %v11280
    %v11282 = vrot.slane %v11091, 1
    %v11283 = vrot.slane %v10939, 1
    %v11284 = vsel %vm499, %v11282, %v11283
    %v11285 = vrot.slane %v11123, 1
    %v11286 = vsel %vm499, %v11283, %v11285
    %v11287 = vrot.slane %v11092, 1
    %v11288 = vrot.slane %v10942, 1
    %v11289 = vsel %vm499, %v11287, %v11288
    %v11290 = vrot.slane %v11124, 1
    %v11291 = vsel %vm499, %v11288, %v11290
    %v11292 = vrot.slane %v11093, 1
    %v11293 = vrot.slane %v10945, 1
    %v11294 = vsel %vm499, %v11292, %v11293
    %v11295 = vrot.slane %v11125, 1
    %v11296 = vsel %vm499, %v11293, %v11295
    %v11297 = vrot.slane %v11094, 1
    %v11298 = vrot.slane %v10948, 1
    %v11299 = vsel %vm499, %v11297, %v11298
    %v11300 = vrot.slane %v11126, 1
    %v11301 = vsel %vm499, %v11298, %v11300
    %v11302 = vrot.slane %v11095, 1
    %v11303 = vrot.slane %v10951, 1
    %v11304 = vsel %vm499, %v11302, %v11303
    %v11305 = vrot.slane %v11127, 1
    %v11306 = vsel %vm499, %v11303, %v11305
    %v11307 = vrot.slane %v11096, 1
    %v11308 = vrot.slane %v10954, 1
    %v11309 = vsel %vm499, %v11307, %v11308
    %v11310 = vrot.slane %v11128, 1
    %v11311 = vsel %vm499, %v11308, %v11310
    %v11312 = vrot.slane %v11097, 1
    %v11313 = vrot.slane %v10957, 1
    %v11314 = vsel %vm499, %v11312, %v11313
    %v11315 = vrot.slane %v11129, 1
    %v11316 = vsel %vm499, %v11313, %v11315
    %v11317 = vrot.slane %v11098, 1
    %v11318 = vrot.slane %v10960, 1
    %v11319 = vsel %vm499, %v11317, %v11318
    %v11320 = vrot.slane %v11130, 1
    %v11321 = vsel %vm499, %v11318, %v11320
    %v11322 = vrot.slane %v11099, 1
    %v11323 = vrot.slane %v10963, 1
    %v11324 = vsel %vm499, %v11322, %v11323
    %v11325 = vrot.slane %v11131, 1
    %v11326 = vsel %vm499, %v11323, %v11325
    %v11327 = vrot.slane %v11100, 1
    %v11328 = vrot.slane %v10966, 1
    %v11329 = vsel %vm499, %v11327, %v11328
    %v11330 = vrot.slane %v11132, 1
    %v11331 = vsel %vm499, %v11328, %v11330
    %v11332 = vrot.slane %v11101, 1
    %v11333 = vrot.slane %v10969, 1
    %v11334 = vsel %vm499, %v11332, %v11333
    %v11335 = vrot.slane %v11133, 1
    %v11336 = vsel %vm499, %v11333, %v11335
    %v11337 = vrot.slane %v11102, 1
    %v11338 = vrot.slane %v10972, 1
    %v11339 = vsel %vm499, %v11337, %v11338
    %v11340 = vrot.slane %v11134, 1
    %v11341 = vsel %vm499, %v11338, %v11340
    %v11342 = vrot.slane %v11103, 1
    %v11343 = vrot.slane %v10975, 1
    %v11344 = vsel %vm499, %v11342, %v11343
    %v11345 = vrot.slane %v11135, 1
    %v11346 = vsel %vm499, %v11343, %v11345
    %11347 = vrot.lane.b32.xlu0 %v1840, 8
    %v11348 = vpop.permute.xlu0 %11347
    %11349 = vrot.lane.b32.xlu0 %v11199, 8
    %v11350 = vpop.permute.xlu0 %11349
    %11351 = vrot.lane.b32.xlu0 %v11201, 8
    %v11352 = vpop.permute.xlu0 %11351
    %11353 = vrot.lane.b32.xlu0 %v11204, 8
    %v11354 = vpop.permute.xlu0 %11353
    %11355 = vrot.lane.b32.xlu0 %v11206, 8
    %v11356 = vpop.permute.xlu0 %11355
    %11357 = vrot.lane.b32.xlu0 %v11209, 8
    %v11358 = vpop.permute.xlu0 %11357
    %11359 = vrot.lane.b32.xlu0 %v11211, 8
    %v11360 = vpop.permute.xlu0 %11359
    %11361 = vrot.lane.b32.xlu0 %v11214, 8
    %v11362 = vpop.permute.xlu0 %11361
    %11363 = vrot.lane.b32.xlu0 %v11216, 8
    %v11364 = vpop.permute.xlu0 %11363
    %11365 = vrot.lane.b32.xlu0 %v11219, 8
    %v11366 = vpop.permute.xlu0 %11365
    %11367 = vrot.lane.b32.xlu0 %v11221, 8
    %v11368 = vpop.permute.xlu0 %11367
    %11369 = vrot.lane.b32.xlu0 %v11224, 8
    %v11370 = vpop.permute.xlu0 %11369
    %11371 = vrot.lane.b32.xlu0 %v11226, 8
    %v11372 = vpop.permute.xlu0 %11371
    %11373 = vrot.lane.b32.xlu0 %v11229, 8
    %v11374 = vpop.permute.xlu0 %11373
    %11375 = vrot.lane.b32.xlu0 %v11231, 8
    %v11376 = vpop.permute.xlu0 %11375
    %11377 = vrot.lane.b32.xlu0 %v11234, 8
    %v11378 = vpop.permute.xlu0 %11377
    %11379 = vrot.lane.b32.xlu0 %v11236, 8
    %v11380 = vpop.permute.xlu0 %11379
    %11381 = vrot.lane.b32.xlu0 %v11239, 8
    %v11382 = vpop.permute.xlu0 %11381
    %11383 = vrot.lane.b32.xlu0 %v11241, 8
    %v11384 = vpop.permute.xlu0 %11383
    %11385 = vrot.lane.b32.xlu0 %v11244, 8
    %v11386 = vpop.permute.xlu0 %11385
    %11387 = vrot.lane.b32.xlu0 %v11246, 8
    %v11388 = vpop.permute.xlu0 %11387
    %11389 = vrot.lane.b32.xlu0 %v11249, 8
    %v11390 = vpop.permute.xlu0 %11389
    %11391 = vrot.lane.b32.xlu0 %v11251, 8
    %v11392 = vpop.permute.xlu0 %11391
    %11393 = vrot.lane.b32.xlu0 %v11254, 8
    %v11394 = vpop.permute.xlu0 %11393
    %11395 = vrot.lane.b32.xlu0 %v11256, 8
    %v11396 = vpop.permute.xlu0 %11395
    %11397 = vrot.lane.b32.xlu0 %v11259, 8
    %v11398 = vpop.permute.xlu0 %11397
    %11399 = vrot.lane.b32.xlu0 %v11261, 8
    %v11400 = vpop.permute.xlu0 %11399
    %11401 = vrot.lane.b32.xlu0 %v11264, 8
    %v11402 = vpop.permute.xlu0 %11401
    %11403 = vrot.lane.b32.xlu0 %v11266, 8
    %v11404 = vpop.permute.xlu0 %11403
    %11405 = vrot.lane.b32.xlu0 %v11269, 8
    %v11406 = vpop.permute.xlu0 %11405
    %11407 = vrot.lane.b32.xlu0 %v11271, 8
    %v11408 = vpop.permute.xlu0 %11407
    %11409 = vrot.lane.b32.xlu0 %v11274, 8
    %v11410 = vpop.permute.xlu0 %11409
    %11411 = vrot.lane.b32.xlu0 %v11276, 8
    %v11412 = vpop.permute.xlu0 %11411
    %11413 = vrot.lane.b32.xlu0 %v11279, 8
    %v11414 = vpop.permute.xlu0 %11413
    %11415 = vrot.lane.b32.xlu0 %v11281, 8
    %v11416 = vpop.permute.xlu0 %11415
    %11417 = vrot.lane.b32.xlu0 %v11284, 8
    %v11418 = vpop.permute.xlu0 %11417
    %11419 = vrot.lane.b32.xlu0 %v11286, 8
    %v11420 = vpop.permute.xlu0 %11419
    %11421 = vrot.lane.b32.xlu0 %v11289, 8
    %v11422 = vpop.permute.xlu0 %11421
    %11423 = vrot.lane.b32.xlu0 %v11291, 8
    %v11424 = vpop.permute.xlu0 %11423
    %11425 = vrot.lane.b32.xlu0 %v11294, 8
    %v11426 = vpop.permute.xlu0 %11425
    %11427 = vrot.lane.b32.xlu0 %v11296, 8
    %v11428 = vpop.permute.xlu0 %11427
    %11429 = vrot.lane.b32.xlu0 %v11299, 8
    %v11430 = vpop.permute.xlu0 %11429
    %11431 = vrot.lane.b32.xlu0 %v11301, 8
    %v11432 = vpop.permute.xlu0 %11431
    %11433 = vrot.lane.b32.xlu0 %v11304, 8
    %v11434 = vpop.permute.xlu0 %11433
    %11435 = vrot.lane.b32.xlu0 %v11306, 8
    %v11436 = vpop.permute.xlu0 %11435
    %11437 = vrot.lane.b32.xlu0 %v11309, 8
    %v11438 = vpop.permute.xlu0 %11437
    %11439 = vrot.lane.b32.xlu0 %v11311, 8
    %v11440 = vpop.permute.xlu0 %11439
    %11441 = vrot.lane.b32.xlu0 %v11314, 8
    %v11442 = vpop.permute.xlu0 %11441
    %11443 = vrot.lane.b32.xlu0 %v11316, 8
    %v11444 = vpop.permute.xlu0 %11443
    %11445 = vrot.lane.b32.xlu0 %v11319, 8
    %v11446 = vpop.permute.xlu0 %11445
    %11447 = vrot.lane.b32.xlu0 %v11321, 8
    %v11448 = vpop.permute.xlu0 %11447
    %11449 = vrot.lane.b32.xlu0 %v11324, 8
    %v11450 = vpop.permute.xlu0 %11449
    %11451 = vrot.lane.b32.xlu0 %v11326, 8
    %v11452 = vpop.permute.xlu0 %11451
    %11453 = vrot.lane.b32.xlu0 %v11329, 8
    %v11454 = vpop.permute.xlu0 %11453
    %11455 = vrot.lane.b32.xlu0 %v11331, 8
    %v11456 = vpop.permute.xlu0 %11455
    %11457 = vrot.lane.b32.xlu0 %v11334, 8
    %v11458 = vpop.permute.xlu0 %11457
    %11459 = vrot.lane.b32.xlu0 %v11336, 8
    %v11460 = vpop.permute.xlu0 %11459
    %11461 = vrot.lane.b32.xlu0 %v11339, 8
    %v11462 = vpop.permute.xlu0 %11461
    %11463 = vrot.lane.b32.xlu0 %v11341, 8
    %v11464 = vpop.permute.xlu0 %11463
    %11465 = vrot.lane.b32.xlu0 %v11344, 8
    %v11466 = vpop.permute.xlu0 %11465
    %11467 = vrot.lane.b32.xlu0 %v11346, 8
    %v11468 = vpop.permute.xlu0 %11467
    %v11530 = vrot.slane %v11073, 2
    %v11531 = vrot.slane %v10885, 2
    %v11532 = vsel %vm773, %v11530, %v11531
    %v11533 = vrot.slane %v11105, 2
    %v11534 = vsel %vm773, %v11531, %v11533
    %v11535 = vrot.slane %v11074, 2
    %v11536 = vrot.slane %v10888, 2
    %v11537 = vsel %vm773, %v11535, %v11536
    %v11538 = vrot.slane %v11106, 2
    %v11539 = vsel %vm773, %v11536, %v11538
    %v11540 = vrot.slane %v11075, 2
    %v11541 = vrot.slane %v10891, 2
    %v11542 = vsel %vm773, %v11540, %v11541
    %v11543 = vrot.slane %v11107, 2
    %v11544 = vsel %vm773, %v11541, %v11543
    %v11545 = vrot.slane %v11076, 2
    %v11546 = vrot.slane %v10894, 2
    %v11547 = vsel %vm773, %v11545, %v11546
    %v11548 = vrot.slane %v11108, 2
    %v11549 = vsel %vm773, %v11546, %v11548
    %v11550 = vrot.slane %v11077, 2
    %v11551 = vrot.slane %v10897, 2
    %v11552 = vsel %vm773, %v11550, %v11551
    %v11553 = vrot.slane %v11109, 2
    %v11554 = vsel %vm773, %v11551, %v11553
    %v11555 = vrot.slane %v11078, 2
    %v11556 = vrot.slane %v10900, 2
    %v11557 = vsel %vm773, %v11555, %v11556
    %v11558 = vrot.slane %v11110, 2
    %v11559 = vsel %vm773, %v11556, %v11558
    %v11560 = vrot.slane %v11079, 2
    %v11561 = vrot.slane %v10903, 2
    %v11562 = vsel %vm773, %v11560, %v11561
    %v11563 = vrot.slane %v11111, 2
    %v11564 = vsel %vm773, %v11561, %v11563
    %v11565 = vrot.slane %v11080, 2
    %v11566 = vrot.slane %v10906, 2
    %v11567 = vsel %vm773, %v11565, %v11566
    %v11568 = vrot.slane %v11112, 2
    %v11569 = vsel %vm773, %v11566, %v11568
    %v11570 = vrot.slane %v11081, 2
    %v11571 = vrot.slane %v10909, 2
    %v11572 = vsel %vm773, %v11570, %v11571
    %v11573 = vrot.slane %v11113, 2
    %v11574 = vsel %vm773, %v11571, %v11573
    %v11575 = vrot.slane %v11082, 2
    %v11576 = vrot.slane %v10912, 2
    %v11577 = vsel %vm773, %v11575, %v11576
    %v11578 = vrot.slane %v11114, 2
    %v11579 = vsel %vm773, %v11576, %v11578
    %v11580 = vrot.slane %v11083, 2
    %v11581 = vrot.slane %v10915, 2
    %v11582 = vsel %vm773, %v11580, %v11581
    %v11583 = vrot.slane %v11115, 2
    %v11584 = vsel %vm773, %v11581, %v11583
    %v11585 = vrot.slane %v11084, 2
    %v11586 = vrot.slane %v10918, 2
    %v11587 = vsel %vm773, %v11585, %v11586
    %v11588 = vrot.slane %v11116, 2
    %v11589 = vsel %vm773, %v11586, %v11588
    %v11590 = vrot.slane %v11085, 2
    %v11591 = vrot.slane %v10921, 2
    %v11592 = vsel %vm773, %v11590, %v11591
    %v11593 = vrot.slane %v11117, 2
    %v11594 = vsel %vm773, %v11591, %v11593
    %v11595 = vrot.slane %v11086, 2
    %v11596 = vrot.slane %v10924, 2
    %v11597 = vsel %vm773, %v11595, %v11596
    %v11598 = vrot.slane %v11118, 2
    %v11599 = vsel %vm773, %v11596, %v11598
    %v11600 = vrot.slane %v11087, 2
    %v11601 = vrot.slane %v10927, 2
    %v11602 = vsel %vm773, %v11600, %v11601
    %v11603 = vrot.slane %v11119, 2
    %v11604 = vsel %vm773, %v11601, %v11603
    %v11605 = vrot.slane %v11089, 2
    %v11606 = vrot.slane %v10933, 2
    %v11607 = vsel %vm773, %v11605, %v11606
    %v11608 = vrot.slane %v11121, 2
    %v11609 = vsel %vm773, %v11606, %v11608
    %v11610 = vrot.slane %v11090, 2
    %v11611 = vrot.slane %v10936, 2
    %v11612 = vsel %vm773, %v11610, %v11611
    %v11613 = vrot.slane %v11122, 2
    %v11614 = vsel %vm773, %v11611, %v11613
    %v11615 = vrot.slane %v11091, 2
    %v11616 = vrot.slane %v10939, 2
    %v11617 = vsel %vm773, %v11615, %v11616
    %v11618 = vrot.slane %v11123, 2
    %v11619 = vsel %vm773, %v11616, %v11618
    %v11620 = vrot.slane %v11092, 2
    %v11621 = vrot.slane %v10942, 2
    %v11622 = vsel %vm773, %v11620, %v11621
    %v11623 = vrot.slane %v11124, 2
    %v11624 = vsel %vm773, %v11621, %v11623
    %v11625 = vrot.slane %v11093, 2
    %v11626 = vrot.slane %v10945, 2
    %v11627 = vsel %vm773, %v11625, %v11626
    %v11628 = vrot.slane %v11125, 2
    %v11629 = vsel %vm773, %v11626, %v11628
    %v11630 = vrot.slane %v11094, 2
    %v11631 = vrot.slane %v10948, 2
    %v11632 = vsel %vm773, %v11630, %v11631
    %v11633 = vrot.slane %v11126, 2
    %v11634 = vsel %vm773, %v11631, %v11633
    %v11635 = vrot.slane %v11095, 2
    %v11636 = vrot.slane %v10951, 2
    %v11637 = vsel %vm773, %v11635, %v11636
    %v11638 = vrot.slane %v11127, 2
    %v11639 = vsel %vm773, %v11636, %v11638
    %v11640 = vrot.slane %v11096, 2
    %v11641 = vrot.slane %v10954, 2
    %v11642 = vsel %vm773, %v11640, %v11641
    %v11643 = vrot.slane %v11128, 2
    %v11644 = vsel %vm773, %v11641, %v11643
    %v11645 = vrot.slane %v11097, 2
    %v11646 = vrot.slane %v10957, 2
    %v11647 = vsel %vm773, %v11645, %v11646
    %v11648 = vrot.slane %v11129, 2
    %v11649 = vsel %vm773, %v11646, %v11648
    %v11650 = vrot.slane %v11098, 2
    %v11651 = vrot.slane %v10960, 2
    %v11652 = vsel %vm773, %v11650, %v11651
    %v11653 = vrot.slane %v11130, 2
    %v11654 = vsel %vm773, %v11651, %v11653
    %v11655 = vrot.slane %v11099, 2
    %v11656 = vrot.slane %v10963, 2
    %v11657 = vsel %vm773, %v11655, %v11656
    %v11658 = vrot.slane %v11131, 2
    %v11659 = vsel %vm773, %v11656, %v11658
    %v11660 = vrot.slane %v11100, 2
    %v11661 = vrot.slane %v10966, 2
    %v11662 = vsel %vm773, %v11660, %v11661
    %v11663 = vrot.slane %v11132, 2
    %v11664 = vsel %vm773, %v11661, %v11663
    %v11665 = vrot.slane %v11101, 2
    %v11666 = vrot.slane %v10969, 2
    %v11667 = vsel %vm773, %v11665, %v11666
    %v11668 = vrot.slane %v11133, 2
    %v11669 = vsel %vm773, %v11666, %v11668
    %v11670 = vrot.slane %v11102, 2
    %v11671 = vrot.slane %v10972, 2
    %v11672 = vsel %vm773, %v11670, %v11671
    %v11673 = vrot.slane %v11134, 2
    %v11674 = vsel %vm773, %v11671, %v11673
    %v11675 = vrot.slane %v11103, 2
    %v11676 = vrot.slane %v10975, 2
    %v11677 = vsel %vm773, %v11675, %v11676
    %v11678 = vrot.slane %v11135, 2
    %v11679 = vsel %vm773, %v11676, %v11678
    %11680 = vrot.lane.b32.xlu0 %v2175, 16
    %v11681 = vpop.permute.xlu0 %11680
    %11682 = vrot.lane.b32.xlu0 %v11532, 16
    %v11683 = vpop.permute.xlu0 %11682
    %11684 = vrot.lane.b32.xlu0 %v11534, 16
    %v11685 = vpop.permute.xlu0 %11684
    %11686 = vrot.lane.b32.xlu0 %v11537, 16
    %v11687 = vpop.permute.xlu0 %11686
    %11688 = vrot.lane.b32.xlu0 %v11539, 16
    %v11689 = vpop.permute.xlu0 %11688
    %11690 = vrot.lane.b32.xlu0 %v11542, 16
    %v11691 = vpop.permute.xlu0 %11690
    %11692 = vrot.lane.b32.xlu0 %v11544, 16
    %v11693 = vpop.permute.xlu0 %11692
    %11694 = vrot.lane.b32.xlu0 %v11547, 16
    %v11695 = vpop.permute.xlu0 %11694
    %11696 = vrot.lane.b32.xlu0 %v11549, 16
    %v11697 = vpop.permute.xlu0 %11696
    %11698 = vrot.lane.b32.xlu0 %v11552, 16
    %v11699 = vpop.permute.xlu0 %11698
    %11700 = vrot.lane.b32.xlu0 %v11554, 16
    %v11701 = vpop.permute.xlu0 %11700
    %11702 = vrot.lane.b32.xlu0 %v11557, 16
    %v11703 = vpop.permute.xlu0 %11702
    %11704 = vrot.lane.b32.xlu0 %v11559, 16
    %v11705 = vpop.permute.xlu0 %11704
    %11706 = vrot.lane.b32.xlu0 %v11562, 16
    %v11707 = vpop.permute.xlu0 %11706
    %11708 = vrot.lane.b32.xlu0 %v11564, 16
    %v11709 = vpop.permute.xlu0 %11708
    %11710 = vrot.lane.b32.xlu0 %v11567, 16
    %v11711 = vpop.permute.xlu0 %11710
    %11712 = vrot.lane.b32.xlu0 %v11569, 16
    %v11713 = vpop.permute.xlu0 %11712
    %11714 = vrot.lane.b32.xlu0 %v11572, 16
    %v11715 = vpop.permute.xlu0 %11714
    %11716 = vrot.lane.b32.xlu0 %v11574, 16
    %v11717 = vpop.permute.xlu0 %11716
    %11718 = vrot.lane.b32.xlu0 %v11577, 16
    %v11719 = vpop.permute.xlu0 %11718
    %11720 = vrot.lane.b32.xlu0 %v11579, 16
    %v11721 = vpop.permute.xlu0 %11720
    %11722 = vrot.lane.b32.xlu0 %v11582, 16
    %v11723 = vpop.permute.xlu0 %11722
    %11724 = vrot.lane.b32.xlu0 %v11584, 16
    %v11725 = vpop.permute.xlu0 %11724
    %11726 = vrot.lane.b32.xlu0 %v11587, 16
    %v11727 = vpop.permute.xlu0 %11726
    %11728 = vrot.lane.b32.xlu0 %v11589, 16
    %v11729 = vpop.permute.xlu0 %11728
    %11730 = vrot.lane.b32.xlu0 %v11592, 16
    %v11731 = vpop.permute.xlu0 %11730
    %11732 = vrot.lane.b32.xlu0 %v11594, 16
    %v11733 = vpop.permute.xlu0 %11732
    %11734 = vrot.lane.b32.xlu0 %v11597, 16
    %v11735 = vpop.permute.xlu0 %11734
    %11736 = vrot.lane.b32.xlu0 %v11599, 16
    %v11737 = vpop.permute.xlu0 %11736
    %11738 = vrot.lane.b32.xlu0 %v11602, 16
    %v11739 = vpop.permute.xlu0 %11738
    %11740 = vrot.lane.b32.xlu0 %v11604, 16
    %v11741 = vpop.permute.xlu0 %11740
    %11742 = vrot.lane.b32.xlu0 %v11607, 16
    %v11743 = vpop.permute.xlu0 %11742
    %11744 = vrot.lane.b32.xlu0 %v11609, 16
    %v11745 = vpop.permute.xlu0 %11744
    %11746 = vrot.lane.b32.xlu0 %v11612, 16
    %v11747 = vpop.permute.xlu0 %11746
    %11748 = vrot.lane.b32.xlu0 %v11614, 16
    %v11749 = vpop.permute.xlu0 %11748
    %11750 = vrot.lane.b32.xlu0 %v11617, 16
    %v11751 = vpop.permute.xlu0 %11750
    %11752 = vrot.lane.b32.xlu0 %v11619, 16
    %v11753 = vpop.permute.xlu0 %11752
    %11754 = vrot.lane.b32.xlu0 %v11622, 16
    %v11755 = vpop.permute.xlu0 %11754
    %11756 = vrot.lane.b32.xlu0 %v11624, 16
    %v11757 = vpop.permute.xlu0 %11756
    %11758 = vrot.lane.b32.xlu0 %v11627, 16
    %v11759 = vpop.permute.xlu0 %11758
    %11760 = vrot.lane.b32.xlu0 %v11629, 16
    %v11761 = vpop.permute.xlu0 %11760
    %11762 = vrot.lane.b32.xlu0 %v11632, 16
    %v11763 = vpop.permute.xlu0 %11762
    %11764 = vrot.lane.b32.xlu0 %v11634, 16
    %v11765 = vpop.permute.xlu0 %11764
    %11766 = vrot.lane.b32.xlu0 %v11637, 16
    %v11767 = vpop.permute.xlu0 %11766
    %11768 = vrot.lane.b32.xlu0 %v11639, 16
    %v11769 = vpop.permute.xlu0 %11768
    %11770 = vrot.lane.b32.xlu0 %v11642, 16
    %v11771 = vpop.permute.xlu0 %11770
    %11772 = vrot.lane.b32.xlu0 %v11644, 16
    %v11773 = vpop.permute.xlu0 %11772
    %11774 = vrot.lane.b32.xlu0 %v11647, 16
    %v11775 = vpop.permute.xlu0 %11774
    %11776 = vrot.lane.b32.xlu0 %v11649, 16
    %v11777 = vpop.permute.xlu0 %11776
    %11778 = vrot.lane.b32.xlu0 %v11652, 16
    %v11779 = vpop.permute.xlu0 %11778
    %11780 = vrot.lane.b32.xlu0 %v11654, 16
    %v11781 = vpop.permute.xlu0 %11780
    %11782 = vrot.lane.b32.xlu0 %v11657, 16
    %v11783 = vpop.permute.xlu0 %11782
    %11784 = vrot.lane.b32.xlu0 %v11659, 16
    %v11785 = vpop.permute.xlu0 %11784
    %11786 = vrot.lane.b32.xlu0 %v11662, 16
    %v11787 = vpop.permute.xlu0 %11786
    %11788 = vrot.lane.b32.xlu0 %v11664, 16
    %v11789 = vpop.permute.xlu0 %11788
    %11790 = vrot.lane.b32.xlu0 %v11667, 16
    %v11791 = vpop.permute.xlu0 %11790
    %11792 = vrot.lane.b32.xlu0 %v11669, 16
    %v11793 = vpop.permute.xlu0 %11792
    %11794 = vrot.lane.b32.xlu0 %v11672, 16
    %v11795 = vpop.permute.xlu0 %11794
    %11796 = vrot.lane.b32.xlu0 %v11674, 16
    %v11797 = vpop.permute.xlu0 %11796
    %11798 = vrot.lane.b32.xlu0 %v11677, 16
    %v11799 = vpop.permute.xlu0 %11798
    %11800 = vrot.lane.b32.xlu0 %v11679, 16
    %v11801 = vpop.permute.xlu0 %11800
    %11865 = vrot.lane.b32.xlu0 %v11073, 24
    %v11866 = vpop.permute.xlu0 %11865
    %11867 = vrot.lane.b32.xlu0 %v10885, 24
    %v11868 = vpop.permute.xlu0 %11867
    %11869 = vrot.lane.b32.xlu0 %v11074, 24
    %v11870 = vpop.permute.xlu0 %11869
    %11871 = vrot.lane.b32.xlu0 %v10888, 24
    %v11872 = vpop.permute.xlu0 %11871
    %11873 = vrot.lane.b32.xlu0 %v11075, 24
    %v11874 = vpop.permute.xlu0 %11873
    %11875 = vrot.lane.b32.xlu0 %v10891, 24
    %v11876 = vpop.permute.xlu0 %11875
    %11877 = vrot.lane.b32.xlu0 %v11076, 24
    %v11878 = vpop.permute.xlu0 %11877
    %11879 = vrot.lane.b32.xlu0 %v10894, 24
    %v11880 = vpop.permute.xlu0 %11879
    %11881 = vrot.lane.b32.xlu0 %v11077, 24
    %v11882 = vpop.permute.xlu0 %11881
    %11883 = vrot.lane.b32.xlu0 %v10897, 24
    %v11884 = vpop.permute.xlu0 %11883
    %11885 = vrot.lane.b32.xlu0 %v11078, 24
    %v11886 = vpop.permute.xlu0 %11885
    %11887 = vrot.lane.b32.xlu0 %v10900, 24
    %v11888 = vpop.permute.xlu0 %11887
    %11889 = vrot.lane.b32.xlu0 %v11079, 24
    %v11890 = vpop.permute.xlu0 %11889
    %11891 = vrot.lane.b32.xlu0 %v10903, 24
    %v11892 = vpop.permute.xlu0 %11891
    %11893 = vrot.lane.b32.xlu0 %v11080, 24
    %v11894 = vpop.permute.xlu0 %11893
    %11895 = vrot.lane.b32.xlu0 %v10906, 24
    %v11896 = vpop.permute.xlu0 %11895
    %11897 = vrot.lane.b32.xlu0 %v11081, 24
    %v11898 = vpop.permute.xlu0 %11897
    %11899 = vrot.lane.b32.xlu0 %v10909, 24
    %v11900 = vpop.permute.xlu0 %11899
    %11901 = vrot.lane.b32.xlu0 %v11082, 24
    %v11902 = vpop.permute.xlu0 %11901
    %11903 = vrot.lane.b32.xlu0 %v10912, 24
    %v11904 = vpop.permute.xlu0 %11903
    %11905 = vrot.lane.b32.xlu0 %v11083, 24
    %v11906 = vpop.permute.xlu0 %11905
    %11907 = vrot.lane.b32.xlu0 %v10915, 24
    %v11908 = vpop.permute.xlu0 %11907
    %11909 = vrot.lane.b32.xlu0 %v11084, 24
    %v11910 = vpop.permute.xlu0 %11909
    %11911 = vrot.lane.b32.xlu0 %v10918, 24
    %v11912 = vpop.permute.xlu0 %11911
    %11913 = vrot.lane.b32.xlu0 %v11085, 24
    %v11914 = vpop.permute.xlu0 %11913
    %11915 = vrot.lane.b32.xlu0 %v10921, 24
    %v11916 = vpop.permute.xlu0 %11915
    %11917 = vrot.lane.b32.xlu0 %v11086, 24
    %v11918 = vpop.permute.xlu0 %11917
    %11919 = vrot.lane.b32.xlu0 %v10924, 24
    %v11920 = vpop.permute.xlu0 %11919
    %11921 = vrot.lane.b32.xlu0 %v11087, 24
    %v11922 = vpop.permute.xlu0 %11921
    %11923 = vrot.lane.b32.xlu0 %v10927, 24
    %v11924 = vpop.permute.xlu0 %11923
    %11925 = vrot.lane.b32.xlu0 %v11088, 24
    %v11926 = vpop.permute.xlu0 %11925
    %11927 = vrot.lane.b32.xlu0 %v10930, 24
    %v11928 = vpop.permute.xlu0 %11927
    %11929 = vrot.lane.b32.xlu0 %v11089, 24
    %v11930 = vpop.permute.xlu0 %11929
    %11931 = vrot.lane.b32.xlu0 %v10933, 24
    %v11932 = vpop.permute.xlu0 %11931
    %11933 = vrot.lane.b32.xlu0 %v11090, 24
    %v11934 = vpop.permute.xlu0 %11933
    %11935 = vrot.lane.b32.xlu0 %v10936, 24
    %v11936 = vpop.permute.xlu0 %11935
    %11937 = vrot.lane.b32.xlu0 %v11091, 24
    %v11938 = vpop.permute.xlu0 %11937
    %11939 = vrot.lane.b32.xlu0 %v10939, 24
    %v11940 = vpop.permute.xlu0 %11939
    %11941 = vrot.lane.b32.xlu0 %v11092, 24
    %v11942 = vpop.permute.xlu0 %11941
    %11943 = vrot.lane.b32.xlu0 %v10942, 24
    %v11944 = vpop.permute.xlu0 %11943
    %11945 = vrot.lane.b32.xlu0 %v11093, 24
    %v11946 = vpop.permute.xlu0 %11945
    %11947 = vrot.lane.b32.xlu0 %v10945, 24
    %v11948 = vpop.permute.xlu0 %11947
    %11949 = vrot.lane.b32.xlu0 %v11094, 24
    %v11950 = vpop.permute.xlu0 %11949
    %11951 = vrot.lane.b32.xlu0 %v10948, 24
    %v11952 = vpop.permute.xlu0 %11951
    %11953 = vrot.lane.b32.xlu0 %v11095, 24
    %v11954 = vpop.permute.xlu0 %11953
    %11955 = vrot.lane.b32.xlu0 %v10951, 24
    %v11956 = vpop.permute.xlu0 %11955
    %11957 = vrot.lane.b32.xlu0 %v11096, 24
    %v11958 = vpop.permute.xlu0 %11957
    %11959 = vrot.lane.b32.xlu0 %v10954, 24
    %v11960 = vpop.permute.xlu0 %11959
    %11961 = vrot.lane.b32.xlu0 %v11097, 24
    %v11962 = vpop.permute.xlu0 %11961
    %11963 = vrot.lane.b32.xlu0 %v10957, 24
    %v11964 = vpop.permute.xlu0 %11963
    %11965 = vrot.lane.b32.xlu0 %v11098, 24
    %v11966 = vpop.permute.xlu0 %11965
    %11967 = vrot.lane.b32.xlu0 %v10960, 24
    %v11968 = vpop.permute.xlu0 %11967
    %11969 = vrot.lane.b32.xlu0 %v11099, 24
    %v11970 = vpop.permute.xlu0 %11969
    %11971 = vrot.lane.b32.xlu0 %v10963, 24
    %v11972 = vpop.permute.xlu0 %11971
    %11973 = vrot.lane.b32.xlu0 %v11100, 24
    %v11974 = vpop.permute.xlu0 %11973
    %11975 = vrot.lane.b32.xlu0 %v10966, 24
    %v11976 = vpop.permute.xlu0 %11975
    %11977 = vrot.lane.b32.xlu0 %v11101, 24
    %v11978 = vpop.permute.xlu0 %11977
    %11979 = vrot.lane.b32.xlu0 %v10969, 24
    %v11980 = vpop.permute.xlu0 %11979
    %11981 = vrot.lane.b32.xlu0 %v11102, 24
    %v11982 = vpop.permute.xlu0 %11981
    %11983 = vrot.lane.b32.xlu0 %v10972, 24
    %v11984 = vpop.permute.xlu0 %11983
    %11985 = vrot.lane.b32.xlu0 %v11103, 24
    %v11986 = vpop.permute.xlu0 %11985
    %11987 = vrot.lane.b32.xlu0 %v10975, 24
    %v11988 = vpop.permute.xlu0 %11987
    %11989 = vrot.lane.b32.xlu0 %v11104, 24
    %v11990 = vpop.permute.xlu0 %11989
    %11991 = vrot.lane.b32.xlu0 %v10978, 24
    %v11992 = vpop.permute.xlu0 %11991
    %v12059 = vrot.slane %v11088, 1
    %v12060 = vrot.slane %v10930, 1
    %v12061 = vsel %vm499, %v12059, %v12060
    %v12062 = vrot.slane %v11120, 1
    %v12063 = vsel %vm499, %v12060, %v12062
    %v12064 = vrot.slane %v11104, 1
    %v12065 = vrot.slane %v10978, 1
    %v12066 = vsel %vm499, %v12064, %v12065
    %v12067 = vrot.slane %v11136, 1
    %v12068 = vsel %vm499, %v12065, %v12067
    %12069 = vrot.lane.b32.xlu0 %v11199, 32
    %v12070 = vpop.permute.xlu0 %12069
    %12071 = vrot.lane.b32.xlu0 %v11201, 32
    %v12072 = vpop.permute.xlu0 %12071
    %12073 = vrot.lane.b32.xlu0 %v11204, 32
    %v12074 = vpop.permute.xlu0 %12073
    %12075 = vrot.lane.b32.xlu0 %v11206, 32
    %v12076 = vpop.permute.xlu0 %12075
    %12077 = vrot.lane.b32.xlu0 %v11209, 32
    %v12078 = vpop.permute.xlu0 %12077
    %12079 = vrot.lane.b32.xlu0 %v11211, 32
    %v12080 = vpop.permute.xlu0 %12079
    %12081 = vrot.lane.b32.xlu0 %v11214, 32
    %v12082 = vpop.permute.xlu0 %12081
    %12083 = vrot.lane.b32.xlu0 %v11216, 32
    %v12084 = vpop.permute.xlu0 %12083
    %12085 = vrot.lane.b32.xlu0 %v11219, 32
    %v12086 = vpop.permute.xlu0 %12085
    %12087 = vrot.lane.b32.xlu0 %v11221, 32
    %v12088 = vpop.permute.xlu0 %12087
    %12089 = vrot.lane.b32.xlu0 %v11224, 32
    %v12090 = vpop.permute.xlu0 %12089
    %12091 = vrot.lane.b32.xlu0 %v11226, 32
    %v12092 = vpop.permute.xlu0 %12091
    %12093 = vrot.lane.b32.xlu0 %v11229, 32
    %v12094 = vpop.permute.xlu0 %12093
    %12095 = vrot.lane.b32.xlu0 %v11231, 32
    %v12096 = vpop.permute.xlu0 %12095
    %12097 = vrot.lane.b32.xlu0 %v11234, 32
    %v12098 = vpop.permute.xlu0 %12097
    %12099 = vrot.lane.b32.xlu0 %v11236, 32
    %v12100 = vpop.permute.xlu0 %12099
    %12101 = vrot.lane.b32.xlu0 %v11239, 32
    %v12102 = vpop.permute.xlu0 %12101
    %12103 = vrot.lane.b32.xlu0 %v11241, 32
    %v12104 = vpop.permute.xlu0 %12103
    %12105 = vrot.lane.b32.xlu0 %v11244, 32
    %v12106 = vpop.permute.xlu0 %12105
    %12107 = vrot.lane.b32.xlu0 %v11246, 32
    %v12108 = vpop.permute.xlu0 %12107
    %12109 = vrot.lane.b32.xlu0 %v11249, 32
    %v12110 = vpop.permute.xlu0 %12109
    %12111 = vrot.lane.b32.xlu0 %v11251, 32
    %v12112 = vpop.permute.xlu0 %12111
    %12113 = vrot.lane.b32.xlu0 %v11254, 32
    %v12114 = vpop.permute.xlu0 %12113
    %12115 = vrot.lane.b32.xlu0 %v11256, 32
    %v12116 = vpop.permute.xlu0 %12115
    %12117 = vrot.lane.b32.xlu0 %v11259, 32
    %v12118 = vpop.permute.xlu0 %12117
    %12119 = vrot.lane.b32.xlu0 %v11261, 32
    %v12120 = vpop.permute.xlu0 %12119
    %12121 = vrot.lane.b32.xlu0 %v11264, 32
    %v12122 = vpop.permute.xlu0 %12121
    %12123 = vrot.lane.b32.xlu0 %v11266, 32
    %v12124 = vpop.permute.xlu0 %12123
    %12125 = vrot.lane.b32.xlu0 %v11269, 32
    %v12126 = vpop.permute.xlu0 %12125
    %12127 = vrot.lane.b32.xlu0 %v11271, 32
    %v12128 = vpop.permute.xlu0 %12127
    %12129 = vrot.lane.b32.xlu0 %v12061, 32
    %v12130 = vpop.permute.xlu0 %12129
    %12131 = vrot.lane.b32.xlu0 %v12063, 32
    %v12132 = vpop.permute.xlu0 %12131
    %12133 = vrot.lane.b32.xlu0 %v11274, 32
    %v12134 = vpop.permute.xlu0 %12133
    %12135 = vrot.lane.b32.xlu0 %v11276, 32
    %v12136 = vpop.permute.xlu0 %12135
    %12137 = vrot.lane.b32.xlu0 %v11279, 32
    %v12138 = vpop.permute.xlu0 %12137
    %12139 = vrot.lane.b32.xlu0 %v11281, 32
    %v12140 = vpop.permute.xlu0 %12139
    %12141 = vrot.lane.b32.xlu0 %v11284, 32
    %v12142 = vpop.permute.xlu0 %12141
    %12143 = vrot.lane.b32.xlu0 %v11286, 32
    %v12144 = vpop.permute.xlu0 %12143
    %12145 = vrot.lane.b32.xlu0 %v11289, 32
    %v12146 = vpop.permute.xlu0 %12145
    %12147 = vrot.lane.b32.xlu0 %v11291, 32
    %v12148 = vpop.permute.xlu0 %12147
    %12149 = vrot.lane.b32.xlu0 %v11294, 32
    %v12150 = vpop.permute.xlu0 %12149
    %12151 = vrot.lane.b32.xlu0 %v11296, 32
    %v12152 = vpop.permute.xlu0 %12151
    %12153 = vrot.lane.b32.xlu0 %v11299, 32
    %v12154 = vpop.permute.xlu0 %12153
    %12155 = vrot.lane.b32.xlu0 %v11301, 32
    %v12156 = vpop.permute.xlu0 %12155
    %12157 = vrot.lane.b32.xlu0 %v11304, 32
    %v12158 = vpop.permute.xlu0 %12157
    %12159 = vrot.lane.b32.xlu0 %v11306, 32
    %v12160 = vpop.permute.xlu0 %12159
    %12161 = vrot.lane.b32.xlu0 %v11309, 32
    %v12162 = vpop.permute.xlu0 %12161
    %12163 = vrot.lane.b32.xlu0 %v11311, 32
    %v12164 = vpop.permute.xlu0 %12163
    %12165 = vrot.lane.b32.xlu0 %v11314, 32
    %v12166 = vpop.permute.xlu0 %12165
    %12167 = vrot.lane.b32.xlu0 %v11316, 32
    %v12168 = vpop.permute.xlu0 %12167
    %12169 = vrot.lane.b32.xlu0 %v11319, 32
    %v12170 = vpop.permute.xlu0 %12169
    %12171 = vrot.lane.b32.xlu0 %v11321, 32
    %v12172 = vpop.permute.xlu0 %12171
    %12173 = vrot.lane.b32.xlu0 %v11324, 32
    %v12174 = vpop.permute.xlu0 %12173
    %12175 = vrot.lane.b32.xlu0 %v11326, 32
    %v12176 = vpop.permute.xlu0 %12175
    %12177 = vrot.lane.b32.xlu0 %v11329, 32
    %v12178 = vpop.permute.xlu0 %12177
    %12179 = vrot.lane.b32.xlu0 %v11331, 32
    %v12180 = vpop.permute.xlu0 %12179
    %12181 = vrot.lane.b32.xlu0 %v11334, 32
    %v12182 = vpop.permute.xlu0 %12181
    %12183 = vrot.lane.b32.xlu0 %v11336, 32
    %v12184 = vpop.permute.xlu0 %12183
    %12185 = vrot.lane.b32.xlu0 %v11339, 32
    %v12186 = vpop.permute.xlu0 %12185
    %12187 = vrot.lane.b32.xlu0 %v11341, 32
    %v12188 = vpop.permute.xlu0 %12187
    %12189 = vrot.lane.b32.xlu0 %v11344, 32
    %v12190 = vpop.permute.xlu0 %12189
    %12191 = vrot.lane.b32.xlu0 %v11346, 32
    %v12192 = vpop.permute.xlu0 %12191
    %12193 = vrot.lane.b32.xlu0 %v12066, 32
    %v12194 = vpop.permute.xlu0 %12193
    %12195 = vrot.lane.b32.xlu0 %v12068, 32
    %v12196 = vpop.permute.xlu0 %12195
    %v12261 = vrot.slane %v11088, 2
    %v12262 = vrot.slane %v10930, 2
    %v12263 = vsel %vm773, %v12261, %v12262
    %v12264 = vrot.slane %v11120, 2
    %v12265 = vsel %vm773, %v12262, %v12264
    %v12266 = vrot.slane %v11104, 2
    %v12267 = vrot.slane %v10978, 2
    %v12268 = vsel %vm773, %v12266, %v12267
    %v12269 = vrot.slane %v11136, 2
    %v12270 = vsel %vm773, %v12267, %v12269
    %12271 = vrot.lane.b32.xlu0 %v11532, 40
    %v12272 = vpop.permute.xlu0 %12271
    %12273 = vrot.lane.b32.xlu0 %v11534, 40
    %v12274 = vpop.permute.xlu0 %12273
    %12275 = vrot.lane.b32.xlu0 %v11537, 40
    %v12276 = vpop.permute.xlu0 %12275
    %12277 = vrot.lane.b32.xlu0 %v11539, 40
    %v12278 = vpop.permute.xlu0 %12277
    %12279 = vrot.lane.b32.xlu0 %v11542, 40
    %v12280 = vpop.permute.xlu0 %12279
    %12281 = vrot.lane.b32.xlu0 %v11544, 40
    %v12282 = vpop.permute.xlu0 %12281
    %12283 = vrot.lane.b32.xlu0 %v11547, 40
    %v12284 = vpop.permute.xlu0 %12283
    %12285 = vrot.lane.b32.xlu0 %v11549, 40
    %v12286 = vpop.permute.xlu0 %12285
    %12287 = vrot.lane.b32.xlu0 %v11552, 40
    %v12288 = vpop.permute.xlu0 %12287
    %12289 = vrot.lane.b32.xlu0 %v11554, 40
    %v12290 = vpop.permute.xlu0 %12289
    %12291 = vrot.lane.b32.xlu0 %v11557, 40
    %v12292 = vpop.permute.xlu0 %12291
    %12293 = vrot.lane.b32.xlu0 %v11559, 40
    %v12294 = vpop.permute.xlu0 %12293
    %12295 = vrot.lane.b32.xlu0 %v11562, 40
    %v12296 = vpop.permute.xlu0 %12295
    %12297 = vrot.lane.b32.xlu0 %v11564, 40
    %v12298 = vpop.permute.xlu0 %12297
    %12299 = vrot.lane.b32.xlu0 %v11567, 40
    %v12300 = vpop.permute.xlu0 %12299
    %12301 = vrot.lane.b32.xlu0 %v11569, 40
    %v12302 = vpop.permute.xlu0 %12301
    %12303 = vrot.lane.b32.xlu0 %v11572, 40
    %v12304 = vpop.permute.xlu0 %12303
    %12305 = vrot.lane.b32.xlu0 %v11574, 40
    %v12306 = vpop.permute.xlu0 %12305
    %12307 = vrot.lane.b32.xlu0 %v11577, 40
    %v12308 = vpop.permute.xlu0 %12307
    %12309 = vrot.lane.b32.xlu0 %v11579, 40
    %v12310 = vpop.permute.xlu0 %12309
    %12311 = vrot.lane.b32.xlu0 %v11582, 40
    %v12312 = vpop.permute.xlu0 %12311
    %12313 = vrot.lane.b32.xlu0 %v11584, 40
    %v12314 = vpop.permute.xlu0 %12313
    %12315 = vrot.lane.b32.xlu0 %v11587, 40
    %v12316 = vpop.permute.xlu0 %12315
    %12317 = vrot.lane.b32.xlu0 %v11589, 40
    %v12318 = vpop.permute.xlu0 %12317
    %12319 = vrot.lane.b32.xlu0 %v11592, 40
    %v12320 = vpop.permute.xlu0 %12319
    %12321 = vrot.lane.b32.xlu0 %v11594, 40
    %v12322 = vpop.permute.xlu0 %12321
    %12323 = vrot.lane.b32.xlu0 %v11597, 40
    %v12324 = vpop.permute.xlu0 %12323
    %12325 = vrot.lane.b32.xlu0 %v11599, 40
    %v12326 = vpop.permute.xlu0 %12325
    %12327 = vrot.lane.b32.xlu0 %v11602, 40
    %v12328 = vpop.permute.xlu0 %12327
    %12329 = vrot.lane.b32.xlu0 %v11604, 40
    %v12330 = vpop.permute.xlu0 %12329
    %12331 = vrot.lane.b32.xlu0 %v12263, 40
    %v12332 = vpop.permute.xlu0 %12331
    %12333 = vrot.lane.b32.xlu0 %v12265, 40
    %v12334 = vpop.permute.xlu0 %12333
    %12335 = vrot.lane.b32.xlu0 %v11607, 40
    %v12336 = vpop.permute.xlu0 %12335
    %12337 = vrot.lane.b32.xlu0 %v11609, 40
    %v12338 = vpop.permute.xlu0 %12337
    %12339 = vrot.lane.b32.xlu0 %v11612, 40
    %v12340 = vpop.permute.xlu0 %12339
    %12341 = vrot.lane.b32.xlu0 %v11614, 40
    %v12342 = vpop.permute.xlu0 %12341
    %12343 = vrot.lane.b32.xlu0 %v11617, 40
    %v12344 = vpop.permute.xlu0 %12343
    %12345 = vrot.lane.b32.xlu0 %v11619, 40
    %v12346 = vpop.permute.xlu0 %12345
    %12347 = vrot.lane.b32.xlu0 %v11622, 40
    %v12348 = vpop.permute.xlu0 %12347
    %12349 = vrot.lane.b32.xlu0 %v11624, 40
    %v12350 = vpop.permute.xlu0 %12349
    %12351 = vrot.lane.b32.xlu0 %v11627, 40
    %v12352 = vpop.permute.xlu0 %12351
    %12353 = vrot.lane.b32.xlu0 %v11629, 40
    %v12354 = vpop.permute.xlu0 %12353
    %12355 = vrot.lane.b32.xlu0 %v11632, 40
    %v12356 = vpop.permute.xlu0 %12355
    %12357 = vrot.lane.b32.xlu0 %v11634, 40
    %v12358 = vpop.permute.xlu0 %12357
    %12359 = vrot.lane.b32.xlu0 %v11637, 40
    %v12360 = vpop.permute.xlu0 %12359
    %12361 = vrot.lane.b32.xlu0 %v11639, 40
    %v12362 = vpop.permute.xlu0 %12361
    %12363 = vrot.lane.b32.xlu0 %v11642, 40
    %v12364 = vpop.permute.xlu0 %12363
    %12365 = vrot.lane.b32.xlu0 %v11644, 40
    %v12366 = vpop.permute.xlu0 %12365
    %12367 = vrot.lane.b32.xlu0 %v11647, 40
    %v12368 = vpop.permute.xlu0 %12367
    %12369 = vrot.lane.b32.xlu0 %v11649, 40
    %v12370 = vpop.permute.xlu0 %12369
    %12371 = vrot.lane.b32.xlu0 %v11652, 40
    %v12372 = vpop.permute.xlu0 %12371
    %12373 = vrot.lane.b32.xlu0 %v11654, 40
    %v12374 = vpop.permute.xlu0 %12373
    %12375 = vrot.lane.b32.xlu0 %v11657, 40
    %v12376 = vpop.permute.xlu0 %12375
    %12377 = vrot.lane.b32.xlu0 %v11659, 40
    %v12378 = vpop.permute.xlu0 %12377
    %12379 = vrot.lane.b32.xlu0 %v11662, 40
    %v12380 = vpop.permute.xlu0 %12379
    %12381 = vrot.lane.b32.xlu0 %v11664, 40
    %v12382 = vpop.permute.xlu0 %12381
    %12383 = vrot.lane.b32.xlu0 %v11667, 40
    %v12384 = vpop.permute.xlu0 %12383
    %12385 = vrot.lane.b32.xlu0 %v11669, 40
    %v12386 = vpop.permute.xlu0 %12385
    %12387 = vrot.lane.b32.xlu0 %v11672, 40
    %v12388 = vpop.permute.xlu0 %12387
    %12389 = vrot.lane.b32.xlu0 %v11674, 40
    %v12390 = vpop.permute.xlu0 %12389
    %12391 = vrot.lane.b32.xlu0 %v11677, 40
    %v12392 = vpop.permute.xlu0 %12391
    %12393 = vrot.lane.b32.xlu0 %v11679, 40
    %v12394 = vpop.permute.xlu0 %12393
    %12395 = vrot.lane.b32.xlu0 %v12268, 40
    %v12396 = vpop.permute.xlu0 %12395
    %12397 = vrot.lane.b32.xlu0 %v12270, 40
    %v12398 = vpop.permute.xlu0 %12397
    %12463 = vrot.lane.b32.xlu0 %v11074, 48
    %v12464 = vpop.permute.xlu0 %12463
    %12465 = vrot.lane.b32.xlu0 %v10888, 48
    %v12466 = vpop.permute.xlu0 %12465
    %12467 = vrot.lane.b32.xlu0 %v11075, 48
    %v12468 = vpop.permute.xlu0 %12467
    %12469 = vrot.lane.b32.xlu0 %v10891, 48
    %v12470 = vpop.permute.xlu0 %12469
    %12471 = vrot.lane.b32.xlu0 %v11076, 48
    %v12472 = vpop.permute.xlu0 %12471
    %12473 = vrot.lane.b32.xlu0 %v10894, 48
    %v12474 = vpop.permute.xlu0 %12473
    %12475 = vrot.lane.b32.xlu0 %v11077, 48
    %v12476 = vpop.permute.xlu0 %12475
    %12477 = vrot.lane.b32.xlu0 %v10897, 48
    %v12478 = vpop.permute.xlu0 %12477
    %12479 = vrot.lane.b32.xlu0 %v11078, 48
    %v12480 = vpop.permute.xlu0 %12479
    %12481 = vrot.lane.b32.xlu0 %v10900, 48
    %v12482 = vpop.permute.xlu0 %12481
    %12483 = vrot.lane.b32.xlu0 %v11079, 48
    %v12484 = vpop.permute.xlu0 %12483
    %12485 = vrot.lane.b32.xlu0 %v10903, 48
    %v12486 = vpop.permute.xlu0 %12485
    %12487 = vrot.lane.b32.xlu0 %v11080, 48
    %v12488 = vpop.permute.xlu0 %12487
    %12489 = vrot.lane.b32.xlu0 %v10906, 48
    %v12490 = vpop.permute.xlu0 %12489
    %12491 = vrot.lane.b32.xlu0 %v11081, 48
    %v12492 = vpop.permute.xlu0 %12491
    %12493 = vrot.lane.b32.xlu0 %v10909, 48
    %v12494 = vpop.permute.xlu0 %12493
    %12495 = vrot.lane.b32.xlu0 %v11082, 48
    %v12496 = vpop.permute.xlu0 %12495
    %12497 = vrot.lane.b32.xlu0 %v10912, 48
    %v12498 = vpop.permute.xlu0 %12497
    %12499 = vrot.lane.b32.xlu0 %v11083, 48
    %v12500 = vpop.permute.xlu0 %12499
    %12501 = vrot.lane.b32.xlu0 %v10915, 48
    %v12502 = vpop.permute.xlu0 %12501
    %12503 = vrot.lane.b32.xlu0 %v11084, 48
    %v12504 = vpop.permute.xlu0 %12503
    %12505 = vrot.lane.b32.xlu0 %v10918, 48
    %v12506 = vpop.permute.xlu0 %12505
    %12507 = vrot.lane.b32.xlu0 %v11085, 48
    %v12508 = vpop.permute.xlu0 %12507
    %12509 = vrot.lane.b32.xlu0 %v10921, 48
    %v12510 = vpop.permute.xlu0 %12509
    %12511 = vrot.lane.b32.xlu0 %v11086, 48
    %v12512 = vpop.permute.xlu0 %12511
    %12513 = vrot.lane.b32.xlu0 %v10924, 48
    %v12514 = vpop.permute.xlu0 %12513
    %12515 = vrot.lane.b32.xlu0 %v11087, 48
    %v12516 = vpop.permute.xlu0 %12515
    %12517 = vrot.lane.b32.xlu0 %v10927, 48
    %v12518 = vpop.permute.xlu0 %12517
    %12519 = vrot.lane.b32.xlu0 %v11088, 48
    %v12520 = vpop.permute.xlu0 %12519
    %12521 = vrot.lane.b32.xlu0 %v10930, 48
    %v12522 = vpop.permute.xlu0 %12521
    %12523 = vrot.lane.b32.xlu0 0.0, 48
    %v12524 = vpop.permute.xlu0 %12523
    %12525 = vrot.lane.b32.xlu0 %v11090, 48
    %v12526 = vpop.permute.xlu0 %12525
    %12527 = vrot.lane.b32.xlu0 %v10936, 48
    %v12528 = vpop.permute.xlu0 %12527
    %12529 = vrot.lane.b32.xlu0 %v11091, 48
    %v12530 = vpop.permute.xlu0 %12529
    %12531 = vrot.lane.b32.xlu0 %v10939, 48
    %v12532 = vpop.permute.xlu0 %12531
    %12533 = vrot.lane.b32.xlu0 %v11092, 48
    %v12534 = vpop.permute.xlu0 %12533
    %12535 = vrot.lane.b32.xlu0 %v10942, 48
    %v12536 = vpop.permute.xlu0 %12535
    %12537 = vrot.lane.b32.xlu0 %v11093, 48
    %v12538 = vpop.permute.xlu0 %12537
    %12539 = vrot.lane.b32.xlu0 %v10945, 48
    %v12540 = vpop.permute.xlu0 %12539
    %12541 = vrot.lane.b32.xlu0 %v11094, 48
    %v12542 = vpop.permute.xlu0 %12541
    %12543 = vrot.lane.b32.xlu0 %v10948, 48
    %v12544 = vpop.permute.xlu0 %12543
    %12545 = vrot.lane.b32.xlu0 %v11095, 48
    %v12546 = vpop.permute.xlu0 %12545
    %12547 = vrot.lane.b32.xlu0 %v10951, 48
    %v12548 = vpop.permute.xlu0 %12547
    %12549 = vrot.lane.b32.xlu0 %v11096, 48
    %v12550 = vpop.permute.xlu0 %12549
    %12551 = vrot.lane.b32.xlu0 %v10954, 48
    %v12552 = vpop.permute.xlu0 %12551
    %12553 = vrot.lane.b32.xlu0 %v11097, 48
    %v12554 = vpop.permute.xlu0 %12553
    %12555 = vrot.lane.b32.xlu0 %v10957, 48
    %v12556 = vpop.permute.xlu0 %12555
    %12557 = vrot.lane.b32.xlu0 %v11098, 48
    %v12558 = vpop.permute.xlu0 %12557
    %12559 = vrot.lane.b32.xlu0 %v10960, 48
    %v12560 = vpop.permute.xlu0 %12559
    %12561 = vrot.lane.b32.xlu0 %v11099, 48
    %v12562 = vpop.permute.xlu0 %12561
    %12563 = vrot.lane.b32.xlu0 %v10963, 48
    %v12564 = vpop.permute.xlu0 %12563
    %12565 = vrot.lane.b32.xlu0 %v11100, 48
    %v12566 = vpop.permute.xlu0 %12565
    %12567 = vrot.lane.b32.xlu0 %v10966, 48
    %v12568 = vpop.permute.xlu0 %12567
    %12569 = vrot.lane.b32.xlu0 %v11101, 48
    %v12570 = vpop.permute.xlu0 %12569
    %12571 = vrot.lane.b32.xlu0 %v10969, 48
    %v12572 = vpop.permute.xlu0 %12571
    %12573 = vrot.lane.b32.xlu0 %v11102, 48
    %v12574 = vpop.permute.xlu0 %12573
    %12575 = vrot.lane.b32.xlu0 %v10972, 48
    %v12576 = vpop.permute.xlu0 %12575
    %12577 = vrot.lane.b32.xlu0 %v11103, 48
    %v12578 = vpop.permute.xlu0 %12577
    %12579 = vrot.lane.b32.xlu0 %v10975, 48
    %v12580 = vpop.permute.xlu0 %12579
    %12581 = vrot.lane.b32.xlu0 %v11104, 48
    %v12582 = vpop.permute.xlu0 %12581
    %12583 = vrot.lane.b32.xlu0 %v10978, 48
    %v12584 = vpop.permute.xlu0 %12583
    %12646 = vrot.lane.b32.xlu0 %v11204, 56
    %v12647 = vpop.permute.xlu0 %12646
    %12648 = vrot.lane.b32.xlu0 %v11206, 56
    %v12649 = vpop.permute.xlu0 %12648
    %12650 = vrot.lane.b32.xlu0 %v11209, 56
    %v12651 = vpop.permute.xlu0 %12650
    %12652 = vrot.lane.b32.xlu0 %v11211, 56
    %v12653 = vpop.permute.xlu0 %12652
    %12654 = vrot.lane.b32.xlu0 %v11214, 56
    %v12655 = vpop.permute.xlu0 %12654
    %12656 = vrot.lane.b32.xlu0 %v11216, 56
    %v12657 = vpop.permute.xlu0 %12656
    %12658 = vrot.lane.b32.xlu0 %v11219, 56
    %v12659 = vpop.permute.xlu0 %12658
    %12660 = vrot.lane.b32.xlu0 %v11221, 56
    %v12661 = vpop.permute.xlu0 %12660
    %12662 = vrot.lane.b32.xlu0 %v11224, 56
    %v12663 = vpop.permute.xlu0 %12662
    %12664 = vrot.lane.b32.xlu0 %v11226, 56
    %v12665 = vpop.permute.xlu0 %12664
    %12666 = vrot.lane.b32.xlu0 %v11229, 56
    %v12667 = vpop.permute.xlu0 %12666
    %12668 = vrot.lane.b32.xlu0 %v11231, 56
    %v12669 = vpop.permute.xlu0 %12668
    %12670 = vrot.lane.b32.xlu0 %v11234, 56
    %v12671 = vpop.permute.xlu0 %12670
    %12672 = vrot.lane.b32.xlu0 %v11236, 56
    %v12673 = vpop.permute.xlu0 %12672
    %12674 = vrot.lane.b32.xlu0 %v11239, 56
    %v12675 = vpop.permute.xlu0 %12674
    %12676 = vrot.lane.b32.xlu0 %v11241, 56
    %v12677 = vpop.permute.xlu0 %12676
    %12678 = vrot.lane.b32.xlu0 %v11244, 56
    %v12679 = vpop.permute.xlu0 %12678
    %12680 = vrot.lane.b32.xlu0 %v11246, 56
    %v12681 = vpop.permute.xlu0 %12680
    %12682 = vrot.lane.b32.xlu0 %v11249, 56
    %v12683 = vpop.permute.xlu0 %12682
    %12684 = vrot.lane.b32.xlu0 %v11251, 56
    %v12685 = vpop.permute.xlu0 %12684
    %12686 = vrot.lane.b32.xlu0 %v11254, 56
    %v12687 = vpop.permute.xlu0 %12686
    %12688 = vrot.lane.b32.xlu0 %v11256, 56
    %v12689 = vpop.permute.xlu0 %12688
    %12690 = vrot.lane.b32.xlu0 %v11259, 56
    %v12691 = vpop.permute.xlu0 %12690
    %12692 = vrot.lane.b32.xlu0 %v11261, 56
    %v12693 = vpop.permute.xlu0 %12692
    %12694 = vrot.lane.b32.xlu0 %v11264, 56
    %v12695 = vpop.permute.xlu0 %12694
    %12696 = vrot.lane.b32.xlu0 %v11266, 56
    %v12697 = vpop.permute.xlu0 %12696
    %12698 = vrot.lane.b32.xlu0 %v11269, 56
    %v12699 = vpop.permute.xlu0 %12698
    %12700 = vrot.lane.b32.xlu0 %v11271, 56
    %v12701 = vpop.permute.xlu0 %12700
    %12702 = vrot.lane.b32.xlu0 %v12061, 56
    %v12703 = vpop.permute.xlu0 %12702
    %12704 = vrot.lane.b32.xlu0 %v12063, 56
    %v12705 = vpop.permute.xlu0 %12704
    %12706 = vrot.lane.b32.xlu0 %v1840, 56
    %v12707 = vpop.permute.xlu0 %12706
    %12708 = vrot.lane.b32.xlu0 %v11279, 56
    %v12709 = vpop.permute.xlu0 %12708
    %12710 = vrot.lane.b32.xlu0 %v11281, 56
    %v12711 = vpop.permute.xlu0 %12710
    %12712 = vrot.lane.b32.xlu0 %v11284, 56
    %v12713 = vpop.permute.xlu0 %12712
    %12714 = vrot.lane.b32.xlu0 %v11286, 56
    %v12715 = vpop.permute.xlu0 %12714
    %12716 = vrot.lane.b32.xlu0 %v11289, 56
    %v12717 = vpop.permute.xlu0 %12716
    %12718 = vrot.lane.b32.xlu0 %v11291, 56
    %v12719 = vpop.permute.xlu0 %12718
    %12720 = vrot.lane.b32.xlu0 %v11294, 56
    %v12721 = vpop.permute.xlu0 %12720
    %12722 = vrot.lane.b32.xlu0 %v11296, 56
    %v12723 = vpop.permute.xlu0 %12722
    %12724 = vrot.lane.b32.xlu0 %v11299, 56
    %v12725 = vpop.permute.xlu0 %12724
    %12726 = vrot.lane.b32.xlu0 %v11301, 56
    %v12727 = vpop.permute.xlu0 %12726
    %12728 = vrot.lane.b32.xlu0 %v11304, 56
    %v12729 = vpop.permute.xlu0 %12728
    %12730 = vrot.lane.b32.xlu0 %v11306, 56
    %v12731 = vpop.permute.xlu0 %12730
    %12732 = vrot.lane.b32.xlu0 %v11309, 56
    %v12733 = vpop.permute.xlu0 %12732
    %12734 = vrot.lane.b32.xlu0 %v11311, 56
    %v12735 = vpop.permute.xlu0 %12734
    %12736 = vrot.lane.b32.xlu0 %v11314, 56
    %v12737 = vpop.permute.xlu0 %12736
    %12738 = vrot.lane.b32.xlu0 %v11316, 56
    %v12739 = vpop.permute.xlu0 %12738
    %12740 = vrot.lane.b32.xlu0 %v11319, 56
    %v12741 = vpop.permute.xlu0 %12740
    %12742 = vrot.lane.b32.xlu0 %v11321, 56
    %v12743 = vpop.permute.xlu0 %12742
    %12744 = vrot.lane.b32.xlu0 %v11324, 56
    %v12745 = vpop.permute.xlu0 %12744
    %12746 = vrot.lane.b32.xlu0 %v11326, 56
    %v12747 = vpop.permute.xlu0 %12746
    %12748 = vrot.lane.b32.xlu0 %v11329, 56
    %v12749 = vpop.permute.xlu0 %12748
    %12750 = vrot.lane.b32.xlu0 %v11331, 56
    %v12751 = vpop.permute.xlu0 %12750
    %12752 = vrot.lane.b32.xlu0 %v11334, 56
    %v12753 = vpop.permute.xlu0 %12752
    %12754 = vrot.lane.b32.xlu0 %v11336, 56
    %v12755 = vpop.permute.xlu0 %12754
    %12756 = vrot.lane.b32.xlu0 %v11339, 56
    %v12757 = vpop.permute.xlu0 %12756
    %12758 = vrot.lane.b32.xlu0 %v11341, 56
    %v12759 = vpop.permute.xlu0 %12758
    %12760 = vrot.lane.b32.xlu0 %v11344, 56
    %v12761 = vpop.permute.xlu0 %12760
    %12762 = vrot.lane.b32.xlu0 %v11346, 56
    %v12763 = vpop.permute.xlu0 %12762
    %12764 = vrot.lane.b32.xlu0 %v12066, 56
    %v12765 = vpop.permute.xlu0 %12764
    %12766 = vrot.lane.b32.xlu0 %v12068, 56
    %v12767 = vpop.permute.xlu0 %12766
    %12829 = vrot.lane.b32.xlu0 %v11537, 64
    %v12830 = vpop.permute.xlu0 %12829
    %12831 = vrot.lane.b32.xlu0 %v11539, 64
    %v12832 = vpop.permute.xlu0 %12831
    %12833 = vrot.lane.b32.xlu0 %v11542, 64
    %v12834 = vpop.permute.xlu0 %12833
    %12835 = vrot.lane.b32.xlu0 %v11544, 64
    %v12836 = vpop.permute.xlu0 %12835
    %12837 = vrot.lane.b32.xlu0 %v11547, 64
    %v12838 = vpop.permute.xlu0 %12837
    %12839 = vrot.lane.b32.xlu0 %v11549, 64
    %v12840 = vpop.permute.xlu0 %12839
    %12841 = vrot.lane.b32.xlu0 %v11552, 64
    %v12842 = vpop.permute.xlu0 %12841
    %12843 = vrot.lane.b32.xlu0 %v11554, 64
    %v12844 = vpop.permute.xlu0 %12843
    %12845 = vrot.lane.b32.xlu0 %v11557, 64
    %v12846 = vpop.permute.xlu0 %12845
    %12847 = vrot.lane.b32.xlu0 %v11559, 64
    %v12848 = vpop.permute.xlu0 %12847
    %12849 = vrot.lane.b32.xlu0 %v11562, 64
    %v12850 = vpop.permute.xlu0 %12849
    %12851 = vrot.lane.b32.xlu0 %v11564, 64
    %v12852 = vpop.permute.xlu0 %12851
    %12853 = vrot.lane.b32.xlu0 %v11567, 64
    %v12854 = vpop.permute.xlu0 %12853
    %12855 = vrot.lane.b32.xlu0 %v11569, 64
    %v12856 = vpop.permute.xlu0 %12855
    %12857 = vrot.lane.b32.xlu0 %v11572, 64
    %v12858 = vpop.permute.xlu0 %12857
    %12859 = vrot.lane.b32.xlu0 %v11574, 64
    %v12860 = vpop.permute.xlu0 %12859
    %12861 = vrot.lane.b32.xlu0 %v11577, 64
    %v12862 = vpop.permute.xlu0 %12861
    %12863 = vrot.lane.b32.xlu0 %v11579, 64
    %v12864 = vpop.permute.xlu0 %12863
    %12865 = vrot.lane.b32.xlu0 %v11582, 64
    %v12866 = vpop.permute.xlu0 %12865
    %12867 = vrot.lane.b32.xlu0 %v11584, 64
    %v12868 = vpop.permute.xlu0 %12867
    %12869 = vrot.lane.b32.xlu0 %v11587, 64
    %v12870 = vpop.permute.xlu0 %12869
    %12871 = vrot.lane.b32.xlu0 %v11589, 64
    %v12872 = vpop.permute.xlu0 %12871
    %12873 = vrot.lane.b32.xlu0 %v11592, 64
    %v12874 = vpop.permute.xlu0 %12873
    %12875 = vrot.lane.b32.xlu0 %v11594, 64
    %v12876 = vpop.permute.xlu0 %12875
    %12877 = vrot.lane.b32.xlu0 %v11597, 64
    %v12878 = vpop.permute.xlu0 %12877
    %12879 = vrot.lane.b32.xlu0 %v11599, 64
    %v12880 = vpop.permute.xlu0 %12879
    %12881 = vrot.lane.b32.xlu0 %v11602, 64
    %v12882 = vpop.permute.xlu0 %12881
    %12883 = vrot.lane.b32.xlu0 %v11604, 64
    %v12884 = vpop.permute.xlu0 %12883
    %12885 = vrot.lane.b32.xlu0 %v12263, 64
    %v12886 = vpop.permute.xlu0 %12885
    %12887 = vrot.lane.b32.xlu0 %v12265, 64
    %v12888 = vpop.permute.xlu0 %12887
    %12889 = vrot.lane.b32.xlu0 %v11612, 64
    %v12890 = vpop.permute.xlu0 %12889
    %12891 = vrot.lane.b32.xlu0 %v11614, 64
    %v12892 = vpop.permute.xlu0 %12891
    %12893 = vrot.lane.b32.xlu0 %v11617, 64
    %v12894 = vpop.permute.xlu0 %12893
    %12895 = vrot.lane.b32.xlu0 %v11619, 64
    %v12896 = vpop.permute.xlu0 %12895
    %12897 = vrot.lane.b32.xlu0 %v11622, 64
    %v12898 = vpop.permute.xlu0 %12897
    %12899 = vrot.lane.b32.xlu0 %v11624, 64
    %v12900 = vpop.permute.xlu0 %12899
    %12901 = vrot.lane.b32.xlu0 %v11627, 64
    %v12902 = vpop.permute.xlu0 %12901
    %12903 = vrot.lane.b32.xlu0 %v11629, 64
    %v12904 = vpop.permute.xlu0 %12903
    %12905 = vrot.lane.b32.xlu0 %v11632, 64
    %v12906 = vpop.permute.xlu0 %12905
    %12907 = vrot.lane.b32.xlu0 %v11634, 64
    %v12908 = vpop.permute.xlu0 %12907
    %12909 = vrot.lane.b32.xlu0 %v11637, 64
    %v12910 = vpop.permute.xlu0 %12909
    %12911 = vrot.lane.b32.xlu0 %v11639, 64
    %v12912 = vpop.permute.xlu0 %12911
    %12913 = vrot.lane.b32.xlu0 %v11642, 64
    %v12914 = vpop.permute.xlu0 %12913
    %12915 = vrot.lane.b32.xlu0 %v11644, 64
    %v12916 = vpop.permute.xlu0 %12915
    %12917 = vrot.lane.b32.xlu0 %v11647, 64
    %v12918 = vpop.permute.xlu0 %12917
    %12919 = vrot.lane.b32.xlu0 %v11649, 64
    %v12920 = vpop.permute.xlu0 %12919
    %12921 = vrot.lane.b32.xlu0 %v11652, 64
    %v12922 = vpop.permute.xlu0 %12921
    %12923 = vrot.lane.b32.xlu0 %v11654, 64
    %v12924 = vpop.permute.xlu0 %12923
    %12925 = vrot.lane.b32.xlu0 %v11657, 64
    %v12926 = vpop.permute.xlu0 %12925
    %12927 = vrot.lane.b32.xlu0 %v11659, 64
    %v12928 = vpop.permute.xlu0 %12927
    %12929 = vrot.lane.b32.xlu0 %v11662, 64
    %v12930 = vpop.permute.xlu0 %12929
    %12931 = vrot.lane.b32.xlu0 %v11664, 64
    %v12932 = vpop.permute.xlu0 %12931
    %12933 = vrot.lane.b32.xlu0 %v11667, 64
    %v12934 = vpop.permute.xlu0 %12933
    %12935 = vrot.lane.b32.xlu0 %v11669, 64
    %v12936 = vpop.permute.xlu0 %12935
    %12937 = vrot.lane.b32.xlu0 %v11672, 64
    %v12938 = vpop.permute.xlu0 %12937
    %12939 = vrot.lane.b32.xlu0 %v11674, 64
    %v12940 = vpop.permute.xlu0 %12939
    %12941 = vrot.lane.b32.xlu0 %v11677, 64
    %v12942 = vpop.permute.xlu0 %12941
    %12943 = vrot.lane.b32.xlu0 %v11679, 64
    %v12944 = vpop.permute.xlu0 %12943
    %12945 = vrot.lane.b32.xlu0 %v12268, 64
    %v12946 = vpop.permute.xlu0 %12945
    %12947 = vrot.lane.b32.xlu0 %v12270, 64
    %v12948 = vpop.permute.xlu0 %12947
    %v13009 = vsel %vm7882, 0.0, %v11348
    %v13010 = vsel %vm7882, %v11073, %v11350
    %v13011 = vsel %vm7882, %v10885, %v11352
    %v13012 = vsel %vm7882, %v11074, %v11354
    %v13013 = vsel %vm7882, %v10888, %v11356
    %v13014 = vsel %vm7882, %v11075, %v11358
    %v13015 = vsel %vm7882, %v10891, %v11360
    %v13016 = vsel %vm7882, %v11076, %v11362
    %v13017 = vsel %vm7882, %v10894, %v11364
    %v13018 = vsel %vm7882, %v11077, %v11366
    %v13019 = vsel %vm7882, %v10897, %v11368
    %v13020 = vsel %vm7882, %v11078, %v11370
    %v13021 = vsel %vm7882, %v10900, %v11372
    %v13022 = vsel %vm7882, %v11079, %v11374
    %v13023 = vsel %vm7882, %v10903, %v11376
    %v13024 = vsel %vm7882, %v11080, %v11378
    %v13025 = vsel %vm7882, %v10906, %v11380
    %v13026 = vsel %vm7882, %v11081, %v11382
    %v13027 = vsel %vm7882, %v10909, %v11384
    %v13028 = vsel %vm7882, %v11082, %v11386
    %v13029 = vsel %vm7882, %v10912, %v11388
    %v13030 = vsel %vm7882, %v11083, %v11390
    %v13031 = vsel %vm7882, %v10915, %v11392
    %v13032 = vsel %vm7882, %v11084, %v11394
    %v13033 = vsel %vm7882, %v10918, %v11396
    %v13034 = vsel %vm7882, %v11085, %v11398
    %v13035 = vsel %vm7882, %v10921, %v11400
    %v13036 = vsel %vm7882, %v11086, %v11402
    %v13037 = vsel %vm7882, %v10924, %v11404
    %v13038 = vsel %vm7882, %v11087, %v11406
    %v13039 = vsel %vm7882, %v10927, %v11408
    %v13040 = vsel %vm7882, %v11089, %v11410
    %v13041 = vsel %vm7882, %v10933, %v11412
    %v13042 = vsel %vm7882, %v11090, %v11414
    %v13043 = vsel %vm7882, %v10936, %v11416
    %v13044 = vsel %vm7882, %v11091, %v11418
    %v13045 = vsel %vm7882, %v10939, %v11420
    %v13046 = vsel %vm7882, %v11092, %v11422
    %v13047 = vsel %vm7882, %v10942, %v11424
    %v13048 = vsel %vm7882, %v11093, %v11426
    %v13049 = vsel %vm7882, %v10945, %v11428
    %v13050 = vsel %vm7882, %v11094, %v11430
    %v13051 = vsel %vm7882, %v10948, %v11432
    %v13052 = vsel %vm7882, %v11095, %v11434
    %v13053 = vsel %vm7882, %v10951, %v11436
    %v13054 = vsel %vm7882, %v11096, %v11438
    %v13055 = vsel %vm7882, %v10954, %v11440
    %v13056 = vsel %vm7882, %v11097, %v11442
    %v13057 = vsel %vm7882, %v10957, %v11444
    %v13058 = vsel %vm7882, %v11098, %v11446
    %v13059 = vsel %vm7882, %v10960, %v11448
    %v13060 = vsel %vm7882, %v11099, %v11450
    %v13061 = vsel %vm7882, %v10963, %v11452
    %v13062 = vsel %vm7882, %v11100, %v11454
    %v13063 = vsel %vm7882, %v10966, %v11456
    %v13064 = vsel %vm7882, %v11101, %v11458
    %v13065 = vsel %vm7882, %v10969, %v11460
    %v13066 = vsel %vm7882, %v11102, %v11462
    %v13067 = vsel %vm7882, %v10972, %v11464
    %v13068 = vsel %vm7882, %v11103, %v11466
    %v13069 = vsel %vm7882, %v10975, %v11468
    %v13070 = vsel %vm10017, %v13009, %v11681
    %v13071 = vsel %vm10017, %v13010, %v11683
    %v13072 = vsel %vm10017, %v13011, %v11685
    %v13073 = vsel %vm10017, %v13012, %v11687
    %v13074 = vsel %vm10017, %v13013, %v11689
    %v13075 = vsel %vm10017, %v13014, %v11691
    %v13076 = vsel %vm10017, %v13015, %v11693
    %v13077 = vsel %vm10017, %v13016, %v11695
    %v13078 = vsel %vm10017, %v13017, %v11697
    %v13079 = vsel %vm10017, %v13018, %v11699
    %v13080 = vsel %vm10017, %v13019, %v11701
    %v13081 = vsel %vm10017, %v13020, %v11703
    %v13082 = vsel %vm10017, %v13021, %v11705
    %v13083 = vsel %vm10017, %v13022, %v11707
    %v13084 = vsel %vm10017, %v13023, %v11709
    %v13085 = vsel %vm10017, %v13024, %v11711
    %v13086 = vsel %vm10017, %v13025, %v11713
    %v13087 = vsel %vm10017, %v13026, %v11715
    %v13088 = vsel %vm10017, %v13027, %v11717
    %v13089 = vsel %vm10017, %v13028, %v11719
    %v13090 = vsel %vm10017, %v13029, %v11721
    %v13091 = vsel %vm10017, %v13030, %v11723
    %v13092 = vsel %vm10017, %v13031, %v11725
    %v13093 = vsel %vm10017, %v13032, %v11727
    %v13094 = vsel %vm10017, %v13033, %v11729
    %v13095 = vsel %vm10017, %v13034, %v11731
    %v13096 = vsel %vm10017, %v13035, %v11733
    %v13097 = vsel %vm10017, %v13036, %v11735
    %v13098 = vsel %vm10017, %v13037, %v11737
    %v13099 = vsel %vm10017, %v13038, %v11739
    %v13100 = vsel %vm10017, %v13039, %v11741
    %v13101 = vsel %vm10017, %v13040, %v11743
    %v13102 = vsel %vm10017, %v13041, %v11745
    %v13103 = vsel %vm10017, %v13042, %v11747
    %v13104 = vsel %vm10017, %v13043, %v11749
    %v13105 = vsel %vm10017, %v13044, %v11751
    %v13106 = vsel %vm10017, %v13045, %v11753
    %v13107 = vsel %vm10017, %v13046, %v11755
    %v13108 = vsel %vm10017, %v13047, %v11757
    %v13109 = vsel %vm10017, %v13048, %v11759
    %v13110 = vsel %vm10017, %v13049, %v11761
    %v13111 = vsel %vm10017, %v13050, %v11763
    %v13112 = vsel %vm10017, %v13051, %v11765
    %v13113 = vsel %vm10017, %v13052, %v11767
    %v13114 = vsel %vm10017, %v13053, %v11769
    %v13115 = vsel %vm10017, %v13054, %v11771
    %v13116 = vsel %vm10017, %v13055, %v11773
    %v13117 = vsel %vm10017, %v13056, %v11775
    %v13118 = vsel %vm10017, %v13057, %v11777
    %v13119 = vsel %vm10017, %v13058, %v11779
    %v13120 = vsel %vm10017, %v13059, %v11781
    %v13121 = vsel %vm10017, %v13060, %v11783
    %v13122 = vsel %vm10017, %v13061, %v11785
    %v13123 = vsel %vm10017, %v13062, %v11787
    %v13124 = vsel %vm10017, %v13063, %v11789
    %v13125 = vsel %vm10017, %v13064, %v11791
    %v13126 = vsel %vm10017, %v13065, %v11793
    %v13127 = vsel %vm10017, %v13066, %v11795
    %v13128 = vsel %vm10017, %v13067, %v11797
    %v13129 = vsel %vm10017, %v13068, %v11799
    %v13130 = vsel %vm10017, %v13069, %v11801
    %v13131 = vsel %vm10147, %v13070, %v11866
    %v13132 = vsel %vm10147, %v13070, %v11868
    %v13133 = vsel %vm10147, %v13071, %v11870
    %v13134 = vsel %vm10147, %v13072, %v11872
    %v13135 = vsel %vm10147, %v13073, %v11874
    %v13136 = vsel %vm10147, %v13074, %v11876
    %v13137 = vsel %vm10147, %v13075, %v11878
    %v13138 = vsel %vm10147, %v13076, %v11880
    %v13139 = vsel %vm10147, %v13077, %v11882
    %v13140 = vsel %vm10147, %v13078, %v11884
    %v13141 = vsel %vm10147, %v13079, %v11886
    %v13142 = vsel %vm10147, %v13080, %v11888
    %v13143 = vsel %vm10147, %v13081, %v11890
    %v13144 = vsel %vm10147, %v13082, %v11892
    %v13145 = vsel %vm10147, %v13083, %v11894
    %v13146 = vsel %vm10147, %v13084, %v11896
    %v13147 = vsel %vm10147, %v13085, %v11898
    %v13148 = vsel %vm10147, %v13086, %v11900
    %v13149 = vsel %vm10147, %v13087, %v11902
    %v13150 = vsel %vm10147, %v13088, %v11904
    %v13151 = vsel %vm10147, %v13089, %v11906
    %v13152 = vsel %vm10147, %v13090, %v11908
    %v13153 = vsel %vm10147, %v13091, %v11910
    %v13154 = vsel %vm10147, %v13092, %v11912
    %v13155 = vsel %vm10147, %v13093, %v11914
    %v13156 = vsel %vm10147, %v13094, %v11916
    %v13157 = vsel %vm10147, %v13095, %v11918
    %v13158 = vsel %vm10147, %v13096, %v11920
    %v13159 = vsel %vm10147, %v13097, %v11922
    %v13160 = vsel %vm10147, %v13098, %v11924
    %v13161 = vsel %vm10147, %v13099, %v11926
    %v13162 = vsel %vm10147, %v13100, %v11928
    %v13163 = vsel %vm10147, %v13070, %v11930
    %v13164 = vsel %vm10147, %v13070, %v11932
    %v13165 = vsel %vm10147, %v13101, %v11934
    %v13166 = vsel %vm10147, %v13102, %v11936
    %v13167 = vsel %vm10147, %v13103, %v11938
    %v13168 = vsel %vm10147, %v13104, %v11940
    %v13169 = vsel %vm10147, %v13105, %v11942
    %v13170 = vsel %vm10147, %v13106, %v11944
    %v13171 = vsel %vm10147, %v13107, %v11946
    %v13172 = vsel %vm10147, %v13108, %v11948
    %v13173 = vsel %vm10147, %v13109, %v11950
    %v13174 = vsel %vm10147, %v13110, %v11952
    %v13175 = vsel %vm10147, %v13111, %v11954
    %v13176 = vsel %vm10147, %v13112, %v11956
    %v13177 = vsel %vm10147, %v13113, %v11958
    %v13178 = vsel %vm10147, %v13114, %v11960
    %v13179 = vsel %vm10147, %v13115, %v11962
    %v13180 = vsel %vm10147, %v13116, %v11964
    %v13181 = vsel %vm10147, %v13117, %v11966
    %v13182 = vsel %vm10147, %v13118, %v11968
    %v13183 = vsel %vm10147, %v13119, %v11970
    %v13184 = vsel %vm10147, %v13120, %v11972
    %v13185 = vsel %vm10147, %v13121, %v11974
    %v13186 = vsel %vm10147, %v13122, %v11976
    %v13187 = vsel %vm10147, %v13123, %v11978
    %v13188 = vsel %vm10147, %v13124, %v11980
    %v13189 = vsel %vm10147, %v13125, %v11982
    %v13190 = vsel %vm10147, %v13126, %v11984
    %v13191 = vsel %vm10147, %v13127, %v11986
    %v13192 = vsel %vm10147, %v13128, %v11988
    %v13193 = vsel %vm10147, %v13129, %v11990
    %v13194 = vsel %vm10147, %v13130, %v11992
    %v13195 = vsel %vm3347, %v13131, %v12070
    %v13196 = vsel %vm3347, %v13132, %v12072
    %v13197 = vsel %vm3347, %v13133, %v12074
    %v13198 = vsel %vm3347, %v13134, %v12076
    %v13199 = vsel %vm3347, %v13135, %v12078
    %v13200 = vsel %vm3347, %v13136, %v12080
    %v13201 = vsel %vm3347, %v13137, %v12082
    %v13202 = vsel %vm3347, %v13138, %v12084
    %v13203 = vsel %vm3347, %v13139, %v12086
    %v13204 = vsel %vm3347, %v13140, %v12088
    %v13205 = vsel %vm3347, %v13141, %v12090
    %v13206 = vsel %vm3347, %v13142, %v12092
    %v13207 = vsel %vm3347, %v13143, %v12094
    %v13208 = vsel %vm3347, %v13144, %v12096
    %v13209 = vsel %vm3347, %v13145, %v12098
    %v13210 = vsel %vm3347, %v13146, %v12100
    %v13211 = vsel %vm3347, %v13147, %v12102
    %v13212 = vsel %vm3347, %v13148, %v12104
    %v13213 = vsel %vm3347, %v13149, %v12106
    %v13214 = vsel %vm3347, %v13150, %v12108
    %v13215 = vsel %vm3347, %v13151, %v12110
    %v13216 = vsel %vm3347, %v13152, %v12112
    %v13217 = vsel %vm3347, %v13153, %v12114
    %v13218 = vsel %vm3347, %v13154, %v12116
    %v13219 = vsel %vm3347, %v13155, %v12118
    %v13220 = vsel %vm3347, %v13156, %v12120
    %v13221 = vsel %vm3347, %v13157, %v12122
    %v13222 = vsel %vm3347, %v13158, %v12124
    %v13223 = vsel %vm3347, %v13159, %v12126
    %v13224 = vsel %vm3347, %v13160, %v12128
    %v13225 = vsel %vm3347, %v13161, %v12130
    %v13226 = vsel %vm3347, %v13162, %v12132
    %v13227 = vsel %vm3347, %v13163, %v12134
    %v13228 = vsel %vm3347, %v13164, %v12136
    %v13229 = vsel %vm3347, %v13165, %v12138
    %v13230 = vsel %vm3347, %v13166, %v12140
    %v13231 = vsel %vm3347, %v13167, %v12142
    %v13232 = vsel %vm3347, %v13168, %v12144
    %v13233 = vsel %vm3347, %v13169, %v12146
    %v13234 = vsel %vm3347, %v13170, %v12148
    %v13235 = vsel %vm3347, %v13171, %v12150
    %v13236 = vsel %vm3347, %v13172, %v12152
    %v13237 = vsel %vm3347, %v13173, %v12154
    %v13238 = vsel %vm3347, %v13174, %v12156
    %v13239 = vsel %vm3347, %v13175, %v12158
    %v13240 = vsel %vm3347, %v13176, %v12160
    %v13241 = vsel %vm3347, %v13177, %v12162
    %v13242 = vsel %vm3347, %v13178, %v12164
    %v13243 = vsel %vm3347, %v13179, %v12166
    %v13244 = vsel %vm3347, %v13180, %v12168
    %v13245 = vsel %vm3347, %v13181, %v12170
    %v13246 = vsel %vm3347, %v13182, %v12172
    %v13247 = vsel %vm3347, %v13183, %v12174
    %v13248 = vsel %vm3347, %v13184, %v12176
    %v13249 = vsel %vm3347, %v13185, %v12178
    %v13250 = vsel %vm3347, %v13186, %v12180
    %v13251 = vsel %vm3347, %v13187, %v12182
    %v13252 = vsel %vm3347, %v13188, %v12184
    %v13253 = vsel %vm3347, %v13189, %v12186
    %v13254 = vsel %vm3347, %v13190, %v12188
    %v13255 = vsel %vm3347, %v13191, %v12190
    %v13256 = vsel %vm3347, %v13192, %v12192
    %v13257 = vsel %vm3347, %v13193, %v12194
    %v13258 = vsel %vm3347, %v13194, %v12196
    %vm13259 = vcmask 326656
    %v13260 = vsel %vm13259, %v13195, %v12272
    %v13261 = vsel %vm13259, %v13196, %v12274
    %v13262 = vsel %vm13259, %v13197, %v12276
    %v13263 = vsel %vm13259, %v13198, %v12278
    %v13264 = vsel %vm13259, %v13199, %v12280
    %v13265 = vsel %vm13259, %v13200, %v12282
    %v13266 = vsel %vm13259, %v13201, %v12284
    %v13267 = vsel %vm13259, %v13202, %v12286
    %v13268 = vsel %vm13259, %v13203, %v12288
    %v13269 = vsel %vm13259, %v13204, %v12290
    %v13270 = vsel %vm13259, %v13205, %v12292
    %v13271 = vsel %vm13259, %v13206, %v12294
    %v13272 = vsel %vm13259, %v13207, %v12296
    %v13273 = vsel %vm13259, %v13208, %v12298
    %v13274 = vsel %vm13259, %v13209, %v12300
    %v13275 = vsel %vm13259, %v13210, %v12302
    %v13276 = vsel %vm13259, %v13211, %v12304
    %v13277 = vsel %vm13259, %v13212, %v12306
    %v13278 = vsel %vm13259, %v13213, %v12308
    %v13279 = vsel %vm13259, %v13214, %v12310
    %v13280 = vsel %vm13259, %v13215, %v12312
    %v13281 = vsel %vm13259, %v13216, %v12314
    %v13282 = vsel %vm13259, %v13217, %v12316
    %v13283 = vsel %vm13259, %v13218, %v12318
    %v13284 = vsel %vm13259, %v13219, %v12320
    %v13285 = vsel %vm13259, %v13220, %v12322
    %v13286 = vsel %vm13259, %v13221, %v12324
    %v13287 = vsel %vm13259, %v13222, %v12326
    %v13288 = vsel %vm13259, %v13223, %v12328
    %v13289 = vsel %vm13259, %v13224, %v12330
    %v13290 = vsel %vm13259, %v13225, %v12332
    %v13291 = vsel %vm13259, %v13226, %v12334
    %v13292 = vsel %vm13259, %v13227, %v12336
    %v13293 = vsel %vm13259, %v13228, %v12338
    %v13294 = vsel %vm13259, %v13229, %v12340
    %v13295 = vsel %vm13259, %v13230, %v12342
    %v13296 = vsel %vm13259, %v13231, %v12344
    %v13297 = vsel %vm13259, %v13232, %v12346
    %v13298 = vsel %vm13259, %v13233, %v12348
    %v13299 = vsel %vm13259, %v13234, %v12350
    %v13300 = vsel %vm13259, %v13235, %v12352
    %v13301 = vsel %vm13259, %v13236, %v12354
    %v13302 = vsel %vm13259, %v13237, %v12356
    %v13303 = vsel %vm13259, %v13238, %v12358
    %v13304 = vsel %vm13259, %v13239, %v12360
    %v13305 = vsel %vm13259, %v13240, %v12362
    %v13306 = vsel %vm13259, %v13241, %v12364
    %v13307 = vsel %vm13259, %v13242, %v12366
    %v13308 = vsel %vm13259, %v13243, %v12368
    %v13309 = vsel %vm13259, %v13244, %v12370
    %v13310 = vsel %vm13259, %v13245, %v12372
    %v13311 = vsel %vm13259, %v13246, %v12374
    %v13312 = vsel %vm13259, %v13247, %v12376
    %v13313 = vsel %vm13259, %v13248, %v12378
    %v13314 = vsel %vm13259, %v13249, %v12380
    %v13315 = vsel %vm13259, %v13250, %v12382
    %v13316 = vsel %vm13259, %v13251, %v12384
    %v13317 = vsel %vm13259, %v13252, %v12386
    %v13318 = vsel %vm13259, %v13253, %v12388
    %v13319 = vsel %vm13259, %v13254, %v12390
    %v13320 = vsel %vm13259, %v13255, %v12392
    %v13321 = vsel %vm13259, %v13256, %v12394
    %v13322 = vsel %vm13259, %v13257, %v12396
    %v13323 = vsel %vm13259, %v13258, %v12398
    %vm13324 = vcmask 392192
    %v13325 = vsel %vm13324, %v13260, %v12464
    %v13326 = vsel %vm13324, %v13261, %v12466
    %v13327 = vsel %vm13324, %v13262, %v12468
    %v13328 = vsel %vm13324, %v13263, %v12470
    %v13329 = vsel %vm13324, %v13264, %v12472
    %v13330 = vsel %vm13324, %v13265, %v12474
    %v13331 = vsel %vm13324, %v13266, %v12476
    %v13332 = vsel %vm13324, %v13267, %v12478
    %v13333 = vsel %vm13324, %v13268, %v12480
    %v13334 = vsel %vm13324, %v13269, %v12482
    %v13335 = vsel %vm13324, %v13270, %v12484
    %v13336 = vsel %vm13324, %v13271, %v12486
    %v13337 = vsel %vm13324, %v13272, %v12488
    %v13338 = vsel %vm13324, %v13273, %v12490
    %v13339 = vsel %vm13324, %v13274, %v12492
    %v13340 = vsel %vm13324, %v13275, %v12494
    %v13341 = vsel %vm13324, %v13276, %v12496
    %v13342 = vsel %vm13324, %v13277, %v12498
    %v13343 = vsel %vm13324, %v13278, %v12500
    %v13344 = vsel %vm13324, %v13279, %v12502
    %v13345 = vsel %vm13324, %v13280, %v12504
    %v13346 = vsel %vm13324, %v13281, %v12506
    %v13347 = vsel %vm13324, %v13282, %v12508
    %v13348 = vsel %vm13324, %v13283, %v12510
    %v13349 = vsel %vm13324, %v13284, %v12512
    %v13350 = vsel %vm13324, %v13285, %v12514
    %v13351 = vsel %vm13324, %v13286, %v12516
    %v13352 = vsel %vm13324, %v13287, %v12518
    %v13353 = vsel %vm13324, %v13288, %v12520
    %v13354 = vsel %vm13324, %v13289, %v12522
    %v13355 = vsel %vm13324, %v13290, %v12524
    %v13356 = vsel %vm13324, %v13291, %v12524
    %v13357 = vsel %vm13324, %v13292, %v12526
    %v13358 = vsel %vm13324, %v13293, %v12528
    %v13359 = vsel %vm13324, %v13294, %v12530
    %v13360 = vsel %vm13324, %v13295, %v12532
    %v13361 = vsel %vm13324, %v13296, %v12534
    %v13362 = vsel %vm13324, %v13297, %v12536
    %v13363 = vsel %vm13324, %v13298, %v12538
    %v13364 = vsel %vm13324, %v13299, %v12540
    %v13365 = vsel %vm13324, %v13300, %v12542
    %v13366 = vsel %vm13324, %v13301, %v12544
    %v13367 = vsel %vm13324, %v13302, %v12546
    %v13368 = vsel %vm13324, %v13303, %v12548
    %v13369 = vsel %vm13324, %v13304, %v12550
    %v13370 = vsel %vm13324, %v13305, %v12552
    %v13371 = vsel %vm13324, %v13306, %v12554
    %v13372 = vsel %vm13324, %v13307, %v12556
    %v13373 = vsel %vm13324, %v13308, %v12558
    %v13374 = vsel %vm13324, %v13309, %v12560
    %v13375 = vsel %vm13324, %v13310, %v12562
    %v13376 = vsel %vm13324, %v13311, %v12564
    %v13377 = vsel %vm13324, %v13312, %v12566
    %v13378 = vsel %vm13324, %v13313, %v12568
    %v13379 = vsel %vm13324, %v13314, %v12570
    %v13380 = vsel %vm13324, %v13315, %v12572
    %v13381 = vsel %vm13324, %v13316, %v12574
    %v13382 = vsel %vm13324, %v13317, %v12576
    %v13383 = vsel %vm13324, %v13318, %v12578
    %v13384 = vsel %vm13324, %v13319, %v12580
    %v13385 = vsel %vm13324, %v13320, %v12582
    %v13386 = vsel %vm13324, %v13321, %v12584
    %v13387 = vsel %vm13324, %v13322, %v12524
    %v13388 = vsel %vm13324, %v13323, %v12524
    %vm13389 = vcmask 457728
    %v13390 = vsel %vm13389, %v13325, %v12647
    %v13391 = vsel %vm13389, %v13326, %v12649
    %v13392 = vsel %vm13389, %v13327, %v12651
    %v13393 = vsel %vm13389, %v13328, %v12653
    %v13394 = vsel %vm13389, %v13329, %v12655
    %v13395 = vsel %vm13389, %v13330, %v12657
    %v13396 = vsel %vm13389, %v13331, %v12659
    %v13397 = vsel %vm13389, %v13332, %v12661
    %v13398 = vsel %vm13389, %v13333, %v12663
    %v13399 = vsel %vm13389, %v13334, %v12665
    %v13400 = vsel %vm13389, %v13335, %v12667
    %v13401 = vsel %vm13389, %v13336, %v12669
    %v13402 = vsel %vm13389, %v13337, %v12671
    %v13403 = vsel %vm13389, %v13338, %v12673
    %v13404 = vsel %vm13389, %v13339, %v12675
    %v13405 = vsel %vm13389, %v13340, %v12677
    %v13406 = vsel %vm13389, %v13341, %v12679
    %v13407 = vsel %vm13389, %v13342, %v12681
    %v13408 = vsel %vm13389, %v13343, %v12683
    %v13409 = vsel %vm13389, %v13344, %v12685
    %v13410 = vsel %vm13389, %v13345, %v12687
    %v13411 = vsel %vm13389, %v13346, %v12689
    %v13412 = vsel %vm13389, %v13347, %v12691
    %v13413 = vsel %vm13389, %v13348, %v12693
    %v13414 = vsel %vm13389, %v13349, %v12695
    %v13415 = vsel %vm13389, %v13350, %v12697
    %v13416 = vsel %vm13389, %v13351, %v12699
    %v13417 = vsel %vm13389, %v13352, %v12701
    %v13418 = vsel %vm13389, %v13353, %v12703
    %v13419 = vsel %vm13389, %v13354, %v12705
    %v13420 = vsel %vm13389, %v13355, %v12707
    %v13421 = vsel %vm13389, %v13356, %v12707
    %v13422 = vsel %vm13389, %v13357, %v12709
    %v13423 = vsel %vm13389, %v13358, %v12711
    %v13424 = vsel %vm13389, %v13359, %v12713
    %v13425 = vsel %vm13389, %v13360, %v12715
    %v13426 = vsel %vm13389, %v13361, %v12717
    %v13427 = vsel %vm13389, %v13362, %v12719
    %v13428 = vsel %vm13389, %v13363, %v12721
    %v13429 = vsel %vm13389, %v13364, %v12723
    %v13430 = vsel %vm13389, %v13365, %v12725
    %v13431 = vsel %vm13389, %v13366, %v12727
    %v13432 = vsel %vm13389, %v13367, %v12729
    %v13433 = vsel %vm13389, %v13368, %v12731
    %v13434 = vsel %vm13389, %v13369, %v12733
    %v13435 = vsel %vm13389, %v13370, %v12735
    %v13436 = vsel %vm13389, %v13371, %v12737
    %v13437 = vsel %vm13389, %v13372, %v12739
    %v13438 = vsel %vm13389, %v13373, %v12741
    %v13439 = vsel %vm13389, %v13374, %v12743
    %v13440 = vsel %vm13389, %v13375, %v12745
    %v13441 = vsel %vm13389, %v13376, %v12747
    %v13442 = vsel %vm13389, %v13377, %v12749
    %v13443 = vsel %vm13389, %v13378, %v12751
    %v13444 = vsel %vm13389, %v13379, %v12753
    %v13445 = vsel %vm13389, %v13380, %v12755
    %v13446 = vsel %vm13389, %v13381, %v12757
    %v13447 = vsel %vm13389, %v13382, %v12759
    %v13448 = vsel %vm13389, %v13383, %v12761
    %v13449 = vsel %vm13389, %v13384, %v12763
    %v13450 = vsel %vm13389, %v13385, %v12765
    %v13451 = vsel %vm13389, %v13386, %v12767
    %v13452 = vsel %vm13389, %v13387, %v12707
    %v13453 = vsel %vm13389, %v13388, %v12707
    %v13454 = vsel %vm3409, %v13390, %v12830
    %v13455 = vsel %vm3409, %v13391, %v12832
    %v13456 = vsel %vm3409, %v13392, %v12834
    %v13457 = vsel %vm3409, %v13393, %v12836
    %v13458 = vsel %vm3409, %v13394, %v12838
    %v13459 = vsel %vm3409, %v13395, %v12840
    %v13460 = vsel %vm3409, %v13396, %v12842
    %v13461 = vsel %vm3409, %v13397, %v12844
    %v13462 = vsel %vm3409, %v13398, %v12846
    %v13463 = vsel %vm3409, %v13399, %v12848
    %v13464 = vsel %vm3409, %v13400, %v12850
    %v13465 = vsel %vm3409, %v13401, %v12852
    %v13466 = vsel %vm3409, %v13402, %v12854
    %v13467 = vsel %vm3409, %v13403, %v12856
    %v13468 = vsel %vm3409, %v13404, %v12858
    %v13469 = vsel %vm3409, %v13405, %v12860
    %v13470 = vsel %vm3409, %v13406, %v12862
    %v13471 = vsel %vm3409, %v13407, %v12864
    %v13472 = vsel %vm3409, %v13408, %v12866
    %v13473 = vsel %vm3409, %v13409, %v12868
    %v13474 = vsel %vm3409, %v13410, %v12870
    %v13475 = vsel %vm3409, %v13411, %v12872
    %v13476 = vsel %vm3409, %v13412, %v12874
    %v13477 = vsel %vm3409, %v13413, %v12876
    %v13478 = vsel %vm3409, %v13414, %v12878
    %v13479 = vsel %vm3409, %v13415, %v12880
    %v13480 = vsel %vm3409, %v13416, %v12882
    %v13481 = vsel %vm3409, %v13417, %v12884
    %v13482 = vsel %vm3409, %v13418, %v12886
    %v13483 = vsel %vm3409, %v13419, %v12888
    %v13484 = vsel %vm3409, %v13420, %v2327
    %v13485 = vsel %vm3409, %v13421, %v2327
    %v13486 = vsel %vm3409, %v13422, %v12890
    %v13487 = vsel %vm3409, %v13423, %v12892
    %v13488 = vsel %vm3409, %v13424, %v12894
    %v13489 = vsel %vm3409, %v13425, %v12896
    %v13490 = vsel %vm3409, %v13426, %v12898
    %v13491 = vsel %vm3409, %v13427, %v12900
    %v13492 = vsel %vm3409, %v13428, %v12902
    %v13493 = vsel %vm3409, %v13429, %v12904
    %v13494 = vsel %vm3409, %v13430, %v12906
    %v13495 = vsel %vm3409, %v13431, %v12908
    %v13496 = vsel %vm3409, %v13432, %v12910
    %v13497 = vsel %vm3409, %v13433, %v12912
    %v13498 = vsel %vm3409, %v13434, %v12914
    %v13499 = vsel %vm3409, %v13435, %v12916
    %v13500 = vsel %vm3409, %v13436, %v12918
    %v13501 = vsel %vm3409, %v13437, %v12920
    %v13502 = vsel %vm3409, %v13438, %v12922
    %v13503 = vsel %vm3409, %v13439, %v12924
    %v13504 = vsel %vm3409, %v13440, %v12926
    %v13505 = vsel %vm3409, %v13441, %v12928
    %v13506 = vsel %vm3409, %v13442, %v12930
    %v13507 = vsel %vm3409, %v13443, %v12932
    %v13508 = vsel %vm3409, %v13444, %v12934
    %v13509 = vsel %vm3409, %v13445, %v12936
    %v13510 = vsel %vm3409, %v13446, %v12938
    %v13511 = vsel %vm3409, %v13447, %v12940
    %v13512 = vsel %vm3409, %v13448, %v12942
    %v13513 = vsel %vm3409, %v13449, %v12944
    %v13514 = vsel %vm3409, %v13450, %v12946
    %v13515 = vsel %vm3409, %v13451, %v12948
    %v13516 = vsel %vm3409, %v13452, %v2327
    %v13517 = vsel %vm3409, %v13453, %v2327
    %v13518 = vld [vmem:[%s9] sm:$0xff]
    %v13519 = vld [vmem:[%s9 + $0x8] sm:$0xff]
    %v13520 = vld [vmem:[%s9 + $0x10] sm:$0xff]
    %v13521 = vld [vmem:[%s9 + $0x18] sm:$0xff]
    %v13522 = vld [vmem:[%s9 + $0x20] sm:$0xff]
    %v13523 = vld [vmem:[%s9 + $0x28] sm:$0xff]
    %v13524 = vld [vmem:[%s9 + $0x30] sm:$0xff]
    %v13525 = vld [vmem:[%s9 + $0x38] sm:$0xff]
    %v13526 = vld [vmem:[%s9 + $0x40] sm:$0xff]
    %v13527 = vld [vmem:[%s10] sm:$0x1]
    %v13529 = vlaneseq
    %v13530 = vshrl.u32 %v13529, 7
    %v13531 = vsub.s32 0, %v13530
    %v13532 = vrot.slane %v13527, %v13531
    %vm13534 = vcmask 588800
    %v13536 = vsel %vm13534, %v13454, 0
    %v13539 = vsel %vm13534, %v13455, 0
    %v13542 = vsel %vm13534, %v13456, 0
    %v13545 = vsel %vm13534, %v13457, 0
    %v13548 = vsel %vm13534, %v13458, 0
    %v13551 = vsel %vm13534, %v13459, 0
    %v13554 = vsel %vm13534, %v13460, 0
    %v13557 = vsel %vm13534, %v13461, 0
    %v13560 = vsel %vm13534, %v13462, 0
    %v13563 = vsel %vm13534, %v13463, 0
    %v13566 = vsel %vm13534, %v13464, 0
    %v13569 = vsel %vm13534, %v13465, 0
    %v13572 = vsel %vm13534, %v13466, 0
    %v13575 = vsel %vm13534, %v13467, 0
    %v13578 = vsel %vm13534, %v13468, 0
    %v13581 = vsel %vm13534, %v13469, 0
    %v13584 = vsel %vm13534, %v13470, 0
    %v13587 = vsel %vm13534, %v13471, 0
    %v13590 = vsel %vm13534, %v13472, 0
    %v13593 = vsel %vm13534, %v13473, 0
    %v13596 = vsel %vm13534, %v13474, 0
    %v13599 = vsel %vm13534, %v13475, 0
    %v13602 = vsel %vm13534, %v13476, 0
    %v13605 = vsel %vm13534, %v13477, 0
    %v13608 = vsel %vm13534, %v13478, 0
    %v13611 = vsel %vm13534, %v13479, 0
    %v13614 = vsel %vm13534, %v13480, 0
    %v13617 = vsel %vm13534, %v13481, 0
    %v13620 = vsel %vm13534, %v13482, 0
    %v13623 = vsel %vm13534, %v13483, 0
    %v13626 = vsel %vm13534, %v13484, 0
    %v13629 = vsel %vm13534, %v13485, 0
    %v13632 = vsel %vm13534, %v13486, 0
    %v13635 = vsel %vm13534, %v13487, 0
    %v13638 = vsel %vm13534, %v13488, 0
    %v13641 = vsel %vm13534, %v13489, 0
    %v13644 = vsel %vm13534, %v13490, 0
    %v13647 = vsel %vm13534, %v13491, 0
    %v13650 = vsel %vm13534, %v13492, 0
    %v13653 = vsel %vm13534, %v13493, 0
    %v13656 = vsel %vm13534, %v13494, 0
    %v13659 = vsel %vm13534, %v13495, 0
    %v13662 = vsel %vm13534, %v13496, 0
    %v13665 = vsel %vm13534, %v13497, 0
    %v13668 = vsel %vm13534, %v13498, 0
    %v13671 = vsel %vm13534, %v13499, 0
    %v13674 = vsel %vm13534, %v13500, 0
    %v13677 = vsel %vm13534, %v13501, 0
    %v13680 = vsel %vm13534, %v13502, 0
    %v13683 = vsel %vm13534, %v13503, 0
    %v13686 = vsel %vm13534, %v13504, 0
    %v13689 = vsel %vm13534, %v13505, 0
    %v13692 = vsel %vm13534, %v13506, 0
    %v13695 = vsel %vm13534, %v13507, 0
    %v13698 = vsel %vm13534, %v13508, 0
    %v13701 = vsel %vm13534, %v13509, 0
    %v13704 = vsel %vm13534, %v13510, 0
    %v13707 = vsel %vm13534, %v13511, 0
    %v13710 = vsel %vm13534, %v13512, 0
    %v13713 = vsel %vm13534, %v13513, 0
    %v13716 = vsel %vm13534, %v13514, 0
    %v13719 = vsel %vm13534, %v13515, 0
    %v13722 = vsel %vm13534, %v13516, 0
    %v13725 = vsel %vm13534, %v13517, 0
    %13727 = vmatprep.subr.mxu0 0.0
    %13728 = vmatpush1.msra.mxu0 %v13518
    %13729 = vmatprep.subr.mxu0 0.0
    %13730 = vmatpush1.msra.mxu0 %v13519
    %13731 = vmatprep.subr.mxu0 0.0
    %13732 = vmatpush1.msra.mxu0 %v13520
    %13733 = vmatprep.subr.mxu0 0.0
    %13734 = vmatpush1.msra.mxu0 %v13521
    %13735 = vmatprep.subr.mxu0 0.0
    %13736 = vmatpush1.msra.mxu0 %v13522
    %13737 = vmatprep.subr.mxu0 0.0
    %13738 = vmatpush1.msra.mxu0 %v13523
    %13739 = vmatprep.subr.mxu0 0.0
    %13740 = vmatpush1.msra.mxu0 %v13524
    %13741 = vmatprep.subr.mxu0 0.0
    %13742 = vmatpush1.msra.mxu0 %v13525
    %13743 = vmatprep.subr.mxu0 0.0
    %13744 = vmatpush1.msra.mxu0 %v13526
    %13745 = vmatprep.subr.mxu0 0.0
    %13746 = vmatpush1.msra.mxu0 0.0
    %13747 = vmatprep.subr.mxu0 0.0
    %13748 = vmatpush1.msra.mxu0 0.0
    %13749 = vmatprep.subr.mxu0 0.0
    %13750 = vmatpush1.msra.mxu0 0.0
    %13751 = vmatprep.subr.mxu0 0.0
    %13752 = vmatpush1.msra.mxu0 0.0
    %13753 = vmatprep.subr.mxu0 0.0
    %13754 = vmatpush1.msra.mxu0 0.0
    %13755 = vmatprep.subr.mxu0 0.0
    %13756 = vmatpush1.msra.mxu0 0.0
    %13757 = vmatprep.subr.mxu0 0.0
    %13758 = vmatpush1.msra.mxu0 0.0
    %13759 = vmatprep.subr.mxu0 0.0
    %13760 = vmatpush1.msra.mxu0 0.0
    %13761 = vmatprep.subr.mxu0 0.0
    %13762 = vmatpush1.msra.mxu0 0.0
    %13763 = vmatprep.subr.mxu0 0.0
    %13764 = vmatpush1.msra.mxu0 0.0
    %13765 = vmatprep.subr.mxu0 0.0
    %13766 = vmatpush1.msra.mxu0 0.0
    %13767 = vmatprep.subr.mxu0 0.0
    %13768 = vmatpush1.msra.mxu0 0.0
    %13769 = vmatprep.subr.mxu0 0.0
    %13770 = vmatpush1.msra.mxu0 0.0
    %13771 = vmatprep.subr.mxu0 0.0
    %13772 = vmatpush1.msra.mxu0 0.0
    %13773 = vmatprep.subr.mxu0 0.0
    %13774 = vmatpush1.msra.mxu0 0.0
    %13775 = vmatprep.subr.mxu0 0.0
    %13776 = vmatpush1.msra.mxu0 0.0
    %13777 = vmatprep.subr.mxu0 0.0
    %13778 = vmatpush1.msra.mxu0 0.0
    %13779 = vmatprep.subr.mxu0 0.0
    %13780 = vmatpush1.msra.mxu0 0.0
    %13781 = vmatprep.subr.mxu0 0.0
    %13782 = vmatpush1.msra.mxu0 0.0
    %13783 = vmatprep.subr.mxu0 0.0
    %13784 = vmatpush1.msra.mxu0 0.0
    %13785 = vmatprep.subr.mxu0 0.0
    %13786 = vmatpush1.msra.mxu0 0.0
    %13787 = vmatprep.subr.mxu0 0.0
    %13788 = vmatpush1.msra.mxu0 0.0
    %13789 = vmatprep.subr.mxu0 0.0
    %13790 = vmatpush1.msra.mxu0 0.0
    %13791 = vmatprep.mubr.f32.mxu0 0.0
    %13792 = vmatmul.mubr.f32.gmra.mrb[0].mxu0 %v13536
    %v13793 = vpop.f32.mrb[0].mxu0
    %v13794 = vadd.f32 %v13532, %v13793
    %v13795 = vpop.f32.mrb[0].mxu0
    %13796 = vmatprep.mubr.f32.mxu0 0.0
    %13797 = vmatmul.mubr.f32.gmra.mrb[0].mxu0 %v13539
    %v13798 = vpop.f32.mrb[0].mxu0
    %v13799 = vadd.f32 %v13532, %v13798
    %v13800 = vpop.f32.mrb[0].mxu0
    %13801 = vmatprep.mubr.f32.mxu0 0.0
    %13802 = vmatmul.mubr.f32.gmra.mrb[0].mxu0 %v13542
    %v13803 = vpop.f32.mrb[0].mxu0
    %v13804 = vadd.f32 %v13532, %v13803
    %v13805 = vpop.f32.mrb[0].mxu0
    %13806 = vmatprep.mubr.f32.mxu0 0.0
    %13807 = vmatmul.mubr.f32.gmra.mrb[0].mxu0 %v13545
    %v13808 = vpop.f32.mrb[0].mxu0
    %v13809 = vadd.f32 %v13532, %v13808
    %v13810 = vpop.f32.mrb[0].mxu0
    %13811 = vmatprep.mubr.f32.mxu0 0.0
    %13812 = vmatmul.mubr.f32.gmra.mrb[0].mxu0 %v13548
    %v13813 = vpop.f32.mrb[0].mxu0
    %v13814 = vadd.f32 %v13532, %v13813
    %v13815 = vpop.f32.mrb[0].mxu0
    %13816 = vmatprep.mubr.f32.mxu0 0.0
    %13817 = vmatmul.mubr.f32.gmra.mrb[0].mxu0 %v13551
    %v13818 = vpop.f32.mrb[0].mxu0
    %v13819 = vadd.f32 %v13532, %v13818
    %v13820 = vpop.f32.mrb[0].mxu0
    %13821 = vmatprep.mubr.f32.mxu0 0.0
    %13822 = vmatmul.mubr.f32.gmra.mrb[0].mxu0 %v13554
    %v13823 = vpop.f32.mrb[0].mxu0
    %v13824 = vadd.f32 %v13532, %v13823
    %v13825 = vpop.f32.mrb[0].mxu0
    %13826 = vmatprep.mubr.f32.mxu0 0.0
    %13827 = vmatmul.mubr.f32.gmra.mrb[0].mxu0 %v13557
    %v13828 = vpop.f32.mrb[0].mxu0
    %v13829 = vadd.f32 %v13532, %v13828
    %v13830 = vpop.f32.mrb[0].mxu0
    %13831 = vmatprep.mubr.f32.mxu0 0.0
    %13832 = vmatmul.mubr.f32.gmra.mrb[0].mxu0 %v13560
    %v13833 = vpop.f32.mrb[0].mxu0
    %v13834 = vadd.f32 %v13532, %v13833
    %v13835 = vpop.f32.mrb[0].mxu0
    %13836 = vmatprep.mubr.f32.mxu0 0.0
    %13837 = vmatmul.mubr.f32.gmra.mrb[0].mxu0 %v13563
    %v13838 = vpop.f32.mrb[0].mxu0
    %v13839 = vadd.f32 %v13532, %v13838
    %v13840 = vpop.f32.mrb[0].mxu0
    %13841 = vmatprep.mubr.f32.mxu0 0.0
    %13842 = vmatmul.mubr.f32.gmra.mrb[0].mxu0 %v13566
    %v13843 = vpop.f32.mrb[0].mxu0
    %v13844 = vadd.f32 %v13532, %v13843
    %v13845 = vpop.f32.mrb[0].mxu0
    %13846 = vmatprep.mubr.f32.mxu0 0.0
    %13847 = vmatmul.mubr.f32.gmra.mrb[0].mxu0 %v13569
    %v13848 = vpop.f32.mrb[0].mxu0
    %v13849 = vadd.f32 %v13532, %v13848
    %v13850 = vpop.f32.mrb[0].mxu0
    %13851 = vmatprep.mubr.f32.mxu0 0.0
    %13852 = vmatmul.mubr.f32.gmra.mrb[0].mxu0 %v13572
    %v13853 = vpop.f32.mrb[0].mxu0
    %v13854 = vadd.f32 %v13532, %v13853
    %v13855 = vpop.f32.mrb[0].mxu0
    %13856 = vmatprep.mubr.f32.mxu0 0.0
    %13857 = vmatmul.mubr.f32.gmra.mrb[0].mxu0 %v13575
    %v13858 = vpop.f32.mrb[0].mxu0
    %v13859 = vadd.f32 %v13532, %v13858
    %v13860 = vpop.f32.mrb[0].mxu0
    %13861 = vmatprep.mubr.f32.mxu0 0.0
    %13862 = vmatmul.mubr.f32.gmra.mrb[0].mxu0 %v13578
    %v13863 = vpop.f32.mrb[0].mxu0
    %v13864 = vadd.f32 %v13532, %v13863
    %v13865 = vpop.f32.mrb[0].mxu0
    %13866 = vmatprep.mubr.f32.mxu0 0.0
    %13867 = vmatmul.mubr.f32.gmra.mrb[0].mxu0 %v13581
    %v13868 = vpop.f32.mrb[0].mxu0
    %v13869 = vadd.f32 %v13532, %v13868
    %v13870 = vpop.f32.mrb[0].mxu0
    %13871 = vmatprep.mubr.f32.mxu0 0.0
    %13872 = vmatmul.mubr.f32.gmra.mrb[0].mxu0 %v13584
    %v13873 = vpop.f32.mrb[0].mxu0
    %v13874 = vadd.f32 %v13532, %v13873
    %v13875 = vpop.f32.mrb[0].mxu0
    %13876 = vmatprep.mubr.f32.mxu0 0.0
    %13877 = vmatmul.mubr.f32.gmra.mrb[0].mxu0 %v13587
    %v13878 = vpop.f32.mrb[0].mxu0
    %v13879 = vadd.f32 %v13532, %v13878
    %v13880 = vpop.f32.mrb[0].mxu0
    %13881 = vmatprep.mubr.f32.mxu0 0.0
    %13882 = vmatmul.mubr.f32.gmra.mrb[0].mxu0 %v13590
    %v13883 = vpop.f32.mrb[0].mxu0
    %v13884 = vadd.f32 %v13532, %v13883
    %v13885 = vpop.f32.mrb[0].mxu0
    %13886 = vmatprep.mubr.f32.mxu0 0.0
    %13887 = vmatmul.mubr.f32.gmra.mrb[0].mxu0 %v13593
    %v13888 = vpop.f32.mrb[0].mxu0
    %v13889 = vadd.f32 %v13532, %v13888
    %v13890 = vpop.f32.mrb[0].mxu0
    %13891 = vmatprep.mubr.f32.mxu0 0.0
    %13892 = vmatmul.mubr.f32.gmra.mrb[0].mxu0 %v13596
    %v13893 = vpop.f32.mrb[0].mxu0
    %v13894 = vadd.f32 %v13532, %v13893
    %v13895 = vpop.f32.mrb[0].mxu0
    %13896 = vmatprep.mubr.f32.mxu0 0.0
    %13897 = vmatmul.mubr.f32.gmra.mrb[0].mxu0 %v13599
    %v13898 = vpop.f32.mrb[0].mxu0
    %v13899 = vadd.f32 %v13532, %v13898
    %v13900 = vpop.f32.mrb[0].mxu0
    %13901 = vmatprep.mubr.f32.mxu0 0.0
    %13902 = vmatmul.mubr.f32.gmra.mrb[0].mxu0 %v13602
    %v13903 = vpop.f32.mrb[0].mxu0
    %v13904 = vadd.f32 %v13532, %v13903
    %v13905 = vpop.f32.mrb[0].mxu0
    %13906 = vmatprep.mubr.f32.mxu0 0.0
    %13907 = vmatmul.mubr.f32.gmra.mrb[0].mxu0 %v13605
    %v13908 = vpop.f32.mrb[0].mxu0
    %v13909 = vadd.f32 %v13532, %v13908
    %v13910 = vpop.f32.mrb[0].mxu0
    %13911 = vmatprep.mubr.f32.mxu0 0.0
    %13912 = vmatmul.mubr.f32.gmra.mrb[0].mxu0 %v13608
    %v13913 = vpop.f32.mrb[0].mxu0
    %v13914 = vadd.f32 %v13532, %v13913
    %v13915 = vpop.f32.mrb[0].mxu0
    %13916 = vmatprep.mubr.f32.mxu0 0.0
    %13917 = vmatmul.mubr.f32.gmra.mrb[0].mxu0 %v13611
    %v13918 = vpop.f32.mrb[0].mxu0
    %v13919 = vadd.f32 %v13532, %v13918
    %v13920 = vpop.f32.mrb[0].mxu0
    %13921 = vmatprep.mubr.f32.mxu0 0.0
    %13922 = vmatmul.mubr.f32.gmra.mrb[0].mxu0 %v13614
    %v13923 = vpop.f32.mrb[0].mxu0
    %v13924 = vadd.f32 %v13532, %v13923
    %v13925 = vpop.f32.mrb[0].mxu0
    %13926 = vmatprep.mubr.f32.mxu0 0.0
    %13927 = vmatmul.mubr.f32.gmra.mrb[0].mxu0 %v13617
    %v13928 = vpop.f32.mrb[0].mxu0
    %v13929 = vadd.f32 %v13532, %v13928
    %v13930 = vpop.f32.mrb[0].mxu0
    %13931 = vmatprep.mubr.f32.mxu0 0.0
    %13932 = vmatmul.mubr.f32.gmra.mrb[0].mxu0 %v13620
    %v13933 = vpop.f32.mrb[0].mxu0
    %v13934 = vadd.f32 %v13532, %v13933
    %v13935 = vpop.f32.mrb[0].mxu0
    %13936 = vmatprep.mubr.f32.mxu0 0.0
    %13937 = vmatmul.mubr.f32.gmra.mrb[0].mxu0 %v13623
    %v13938 = vpop.f32.mrb[0].mxu0
    %v13939 = vadd.f32 %v13532, %v13938
    %v13940 = vpop.f32.mrb[0].mxu0
    %13941 = vmatprep.mubr.f32.mxu0 0.0
    %13942 = vmatmul.mubr.f32.gmra.mrb[0].mxu0 %v13626
    %v13943 = vpop.f32.mrb[0].mxu0
    %v13944 = vadd.f32 %v13532, %v13943
    %v13945 = vpop.f32.mrb[0].mxu0
    %13946 = vmatprep.mubr.f32.mxu0 0.0
    %13947 = vmatmul.mubr.f32.gmra.mrb[0].mxu0 %v13629
    %v13948 = vpop.f32.mrb[0].mxu0
    %v13949 = vadd.f32 %v13532, %v13948
    %v13950 = vpop.f32.mrb[0].mxu0
    %13951 = vmatprep.mubr.f32.mxu0 0.0
    %13952 = vmatmul.mubr.f32.gmra.mrb[0].mxu0 %v13632
    %v13953 = vpop.f32.mrb[0].mxu0
    %v13954 = vadd.f32 %v13532, %v13953
    %v13955 = vpop.f32.mrb[0].mxu0
    %13956 = vmatprep.mubr.f32.mxu0 0.0
    %13957 = vmatmul.mubr.f32.gmra.mrb[0].mxu0 %v13635
    %v13958 = vpop.f32.mrb[0].mxu0
    %v13959 = vadd.f32 %v13532, %v13958
    %v13960 = vpop.f32.mrb[0].mxu0
    %13961 = vmatprep.mubr.f32.mxu0 0.0
    %13962 = vmatmul.mubr.f32.gmra.mrb[0].mxu0 %v13638
    %v13963 = vpop.f32.mrb[0].mxu0
    %v13964 = vadd.f32 %v13532, %v13963
    %v13965 = vpop.f32.mrb[0].mxu0
    %13966 = vmatprep.mubr.f32.mxu0 0.0
    %13967 = vmatmul.mubr.f32.gmra.mrb[0].mxu0 %v13641
    %v13968 = vpop.f32.mrb[0].mxu0
    %v13969 = vadd.f32 %v13532, %v13968
    %v13970 = vpop.f32.mrb[0].mxu0
    %13971 = vmatprep.mubr.f32.mxu0 0.0
    %13972 = vmatmul.mubr.f32.gmra.mrb[0].mxu0 %v13644
    %v13973 = vpop.f32.mrb[0].mxu0
    %v13974 = vadd.f32 %v13532, %v13973
    %v13975 = vpop.f32.mrb[0].mxu0
    %13976 = vmatprep.mubr.f32.mxu0 0.0
    %13977 = vmatmul.mubr.f32.gmra.mrb[0].mxu0 %v13647
    %v13978 = vpop.f32.mrb[0].mxu0
    %v13979 = vadd.f32 %v13532, %v13978
    %v13980 = vpop.f32.mrb[0].mxu0
    %13981 = vmatprep.mubr.f32.mxu0 0.0
    %13982 = vmatmul.mubr.f32.gmra.mrb[0].mxu0 %v13650
    %v13983 = vpop.f32.mrb[0].mxu0
    %v13984 = vadd.f32 %v13532, %v13983
    %v13985 = vpop.f32.mrb[0].mxu0
    %13986 = vmatprep.mubr.f32.mxu0 0.0
    %13987 = vmatmul.mubr.f32.gmra.mrb[0].mxu0 %v13653
    %v13988 = vpop.f32.mrb[0].mxu0
    %v13989 = vadd.f32 %v13532, %v13988
    %v13990 = vpop.f32.mrb[0].mxu0
    %13991 = vmatprep.mubr.f32.mxu0 0.0
    %13992 = vmatmul.mubr.f32.gmra.mrb[0].mxu0 %v13656
    %v13993 = vpop.f32.mrb[0].mxu0
    %v13994 = vadd.f32 %v13532, %v13993
    %v13995 = vpop.f32.mrb[0].mxu0
    %13996 = vmatprep.mubr.f32.mxu0 0.0
    %13997 = vmatmul.mubr.f32.gmra.mrb[0].mxu0 %v13659
    %v13998 = vpop.f32.mrb[0].mxu0
    %v13999 = vadd.f32 %v13532, %v13998
    %v14000 = vpop.f32.mrb[0].mxu0
    %14001 = vmatprep.mubr.f32.mxu0 0.0
    %14002 = vmatmul.mubr.f32.gmra.mrb[0].mxu0 %v13662
    %v14003 = vpop.f32.mrb[0].mxu0
    %v14004 = vadd.f32 %v13532, %v14003
    %v14005 = vpop.f32.mrb[0].mxu0
    %14006 = vmatprep.mubr.f32.mxu0 0.0
    %14007 = vmatmul.mubr.f32.gmra.mrb[0].mxu0 %v13665
    %v14008 = vpop.f32.mrb[0].mxu0
    %v14009 = vadd.f32 %v13532, %v14008
    %v14010 = vpop.f32.mrb[0].mxu0
    %14011 = vmatprep.mubr.f32.mxu0 0.0
    %14012 = vmatmul.mubr.f32.gmra.mrb[0].mxu0 %v13668
    %v14013 = vpop.f32.mrb[0].mxu0
    %v14014 = vadd.f32 %v13532, %v14013
    %v14015 = vpop.f32.mrb[0].mxu0
    %14016 = vmatprep.mubr.f32.mxu0 0.0
    %14017 = vmatmul.mubr.f32.gmra.mrb[0].mxu0 %v13671
    %v14018 = vpop.f32.mrb[0].mxu0
    %v14019 = vadd.f32 %v13532, %v14018
    %v14020 = vpop.f32.mrb[0].mxu0
    %14021 = vmatprep.mubr.f32.mxu0 0.0
    %14022 = vmatmul.mubr.f32.gmra.mrb[0].mxu0 %v13674
    %v14023 = vpop.f32.mrb[0].mxu0
    %v14024 = vadd.f32 %v13532, %v14023
    %v14025 = vpop.f32.mrb[0].mxu0
    %14026 = vmatprep.mubr.f32.mxu0 0.0
    %14027 = vmatmul.mubr.f32.gmra.mrb[0].mxu0 %v13677
    %v14028 = vpop.f32.mrb[0].mxu0
    %v14029 = vadd.f32 %v13532, %v14028
    %v14030 = vpop.f32.mrb[0].mxu0
    %14031 = vmatprep.mubr.f32.mxu0 0.0
    %14032 = vmatmul.mubr.f32.gmra.mrb[0].mxu0 %v13680
    %v14033 = vpop.f32.mrb[0].mxu0
    %v14034 = vadd.f32 %v13532, %v14033
    %v14035 = vpop.f32.mrb[0].mxu0
    %14036 = vmatprep.mubr.f32.mxu0 0.0
    %14037 = vmatmul.mubr.f32.gmra.mrb[0].mxu0 %v13683
    %v14038 = vpop.f32.mrb[0].mxu0
    %v14039 = vadd.f32 %v13532, %v14038
    %v14040 = vpop.f32.mrb[0].mxu0
    %14041 = vmatprep.mubr.f32.mxu0 0.0
    %14042 = vmatmul.mubr.f32.gmra.mrb[0].mxu0 %v13686
    %v14043 = vpop.f32.mrb[0].mxu0
    %v14044 = vadd.f32 %v13532, %v14043
    %v14045 = vpop.f32.mrb[0].mxu0
    %14046 = vmatprep.mubr.f32.mxu0 0.0
    %14047 = vmatmul.mubr.f32.gmra.mrb[0].mxu0 %v13689
    %v14048 = vpop.f32.mrb[0].mxu0
    %v14049 = vadd.f32 %v13532, %v14048
    %v14050 = vpop.f32.mrb[0].mxu0
    %14051 = vmatprep.mubr.f32.mxu0 0.0
    %14052 = vmatmul.mubr.f32.gmra.mrb[0].mxu0 %v13692
    %v14053 = vpop.f32.mrb[0].mxu0
    %v14054 = vadd.f32 %v13532, %v14053
    %v14055 = vpop.f32.mrb[0].mxu0
    %14056 = vmatprep.mubr.f32.mxu0 0.0
    %14057 = vmatmul.mubr.f32.gmra.mrb[0].mxu0 %v13695
    %v14058 = vpop.f32.mrb[0].mxu0
    %v14059 = vadd.f32 %v13532, %v14058
    %v14060 = vpop.f32.mrb[0].mxu0
    %14061 = vmatprep.mubr.f32.mxu0 0.0
    %14062 = vmatmul.mubr.f32.gmra.mrb[0].mxu0 %v13698
    %v14063 = vpop.f32.mrb[0].mxu0
    %v14064 = vadd.f32 %v13532, %v14063
    %v14065 = vpop.f32.mrb[0].mxu0
    %14066 = vmatprep.mubr.f32.mxu0 0.0
    %14067 = vmatmul.mubr.f32.gmra.mrb[0].mxu0 %v13701
    %v14068 = vpop.f32.mrb[0].mxu0
    %v14069 = vadd.f32 %v13532, %v14068
    %v14070 = vpop.f32.mrb[0].mxu0
    %14071 = vmatprep.mubr.f32.mxu0 0.0
    %14072 = vmatmul.mubr.f32.gmra.mrb[0].mxu0 %v13704
    %v14073 = vpop.f32.mrb[0].mxu0
    %v14074 = vadd.f32 %v13532, %v14073
    %v14075 = vpop.f32.mrb[0].mxu0
    %14076 = vmatprep.mubr.f32.mxu0 0.0
    %14077 = vmatmul.mubr.f32.gmra.mrb[0].mxu0 %v13707
    %v14078 = vpop.f32.mrb[0].mxu0
    %v14079 = vadd.f32 %v13532, %v14078
    %v14080 = vpop.f32.mrb[0].mxu0
    %14081 = vmatprep.mubr.f32.mxu0 0.0
    %14082 = vmatmul.mubr.f32.gmra.mrb[0].mxu0 %v13710
    %v14083 = vpop.f32.mrb[0].mxu0
    %v14084 = vadd.f32 %v13532, %v14083
    %v14085 = vpop.f32.mrb[0].mxu0
    %14086 = vmatprep.mubr.f32.mxu0 0.0
    %14087 = vmatmul.mubr.f32.gmra.mrb[0].mxu0 %v13713
    %v14088 = vpop.f32.mrb[0].mxu0
    %v14089 = vadd.f32 %v13532, %v14088
    %v14090 = vpop.f32.mrb[0].mxu0
    %14091 = vmatprep.mubr.f32.mxu0 0.0
    %14092 = vmatmul.mubr.f32.gmra.mrb[0].mxu0 %v13716
    %v14093 = vpop.f32.mrb[0].mxu0
    %v14094 = vadd.f32 %v13532, %v14093
    %v14095 = vpop.f32.mrb[0].mxu0
    %14096 = vmatprep.mubr.f32.mxu0 0.0
    %14097 = vmatmul.mubr.f32.gmra.mrb[0].mxu0 %v13719
    %v14098 = vpop.f32.mrb[0].mxu0
    %v14099 = vadd.f32 %v13532, %v14098
    %v14100 = vpop.f32.mrb[0].mxu0
    %14101 = vmatprep.mubr.f32.mxu0 0.0
    %14102 = vmatmul.mubr.f32.gmra.mrb[0].mxu0 %v13722
    %v14103 = vpop.f32.mrb[0].mxu0
    %v14104 = vadd.f32 %v13532, %v14103
    %v14105 = vpop.f32.mrb[0].mxu0
    %14106 = vmatprep.mubr.f32.mxu0 0.0
    %14107 = vmatmul.mubr.f32.gmra.mrb[0].mxu0 %v13725
    %v14108 = vpop.f32.mrb[0].mxu0
    %v14109 = vadd.f32 %v13532, %v14108
    %v14110 = vpop.f32.mrb[0].mxu0
    %14111 = vdwg.mxu0
    %14176 = vrot.lane.b32.xlu0 %v13794, 16
    %v14177 = vpop.permute.xlu0 %14176
    %14178 = vrot.lane.b32.xlu0 %v13799, 16
    %v14179 = vpop.permute.xlu0 %14178
    %14180 = vrot.lane.b32.xlu0 %v13804, 16
    %v14181 = vpop.permute.xlu0 %14180
    %14182 = vrot.lane.b32.xlu0 %v13809, 16
    %v14183 = vpop.permute.xlu0 %14182
    %14184 = vrot.lane.b32.xlu0 %v13814, 16
    %v14185 = vpop.permute.xlu0 %14184
    %14186 = vrot.lane.b32.xlu0 %v13819, 16
    %v14187 = vpop.permute.xlu0 %14186
    %14188 = vrot.lane.b32.xlu0 %v13824, 16
    %v14189 = vpop.permute.xlu0 %14188
    %14190 = vrot.lane.b32.xlu0 %v13829, 16
    %v14191 = vpop.permute.xlu0 %14190
    %14192 = vrot.lane.b32.xlu0 %v13834, 16
    %v14193 = vpop.permute.xlu0 %14192
    %14194 = vrot.lane.b32.xlu0 %v13839, 16
    %v14195 = vpop.permute.xlu0 %14194
    %14196 = vrot.lane.b32.xlu0 %v13844, 16
    %v14197 = vpop.permute.xlu0 %14196
    %14198 = vrot.lane.b32.xlu0 %v13849, 16
    %v14199 = vpop.permute.xlu0 %14198
    %14200 = vrot.lane.b32.xlu0 %v13854, 16
    %v14201 = vpop.permute.xlu0 %14200
    %14202 = vrot.lane.b32.xlu0 %v13859, 16
    %v14203 = vpop.permute.xlu0 %14202
    %14204 = vrot.lane.b32.xlu0 %v13864, 16
    %v14205 = vpop.permute.xlu0 %14204
    %14206 = vrot.lane.b32.xlu0 %v13869, 16
    %v14207 = vpop.permute.xlu0 %14206
    %14208 = vrot.lane.b32.xlu0 %v13874, 16
    %v14209 = vpop.permute.xlu0 %14208
    %14210 = vrot.lane.b32.xlu0 %v13879, 16
    %v14211 = vpop.permute.xlu0 %14210
    %14212 = vrot.lane.b32.xlu0 %v13884, 16
    %v14213 = vpop.permute.xlu0 %14212
    %14214 = vrot.lane.b32.xlu0 %v13889, 16
    %v14215 = vpop.permute.xlu0 %14214
    %14216 = vrot.lane.b32.xlu0 %v13894, 16
    %v14217 = vpop.permute.xlu0 %14216
    %14218 = vrot.lane.b32.xlu0 %v13899, 16
    %v14219 = vpop.permute.xlu0 %14218
    %14220 = vrot.lane.b32.xlu0 %v13904, 16
    %v14221 = vpop.permute.xlu0 %14220
    %14222 = vrot.lane.b32.xlu0 %v13909, 16
    %v14223 = vpop.permute.xlu0 %14222
    %14224 = vrot.lane.b32.xlu0 %v13914, 16
    %v14225 = vpop.permute.xlu0 %14224
    %14226 = vrot.lane.b32.xlu0 %v13919, 16
    %v14227 = vpop.permute.xlu0 %14226
    %14228 = vrot.lane.b32.xlu0 %v13924, 16
    %v14229 = vpop.permute.xlu0 %14228
    %14230 = vrot.lane.b32.xlu0 %v13929, 16
    %v14231 = vpop.permute.xlu0 %14230
    %14232 = vrot.lane.b32.xlu0 %v13934, 16
    %v14233 = vpop.permute.xlu0 %14232
    %14234 = vrot.lane.b32.xlu0 %v13939, 16
    %v14235 = vpop.permute.xlu0 %14234
    %14236 = vrot.lane.b32.xlu0 %v13944, 16
    %v14237 = vpop.permute.xlu0 %14236
    %14238 = vrot.lane.b32.xlu0 %v13949, 16
    %v14239 = vpop.permute.xlu0 %14238
    %14240 = vrot.lane.b32.xlu0 %v13954, 16
    %v14241 = vpop.permute.xlu0 %14240
    %14242 = vrot.lane.b32.xlu0 %v13959, 16
    %v14243 = vpop.permute.xlu0 %14242
    %14244 = vrot.lane.b32.xlu0 %v13964, 16
    %v14245 = vpop.permute.xlu0 %14244
    %14246 = vrot.lane.b32.xlu0 %v13969, 16
    %v14247 = vpop.permute.xlu0 %14246
    %14248 = vrot.lane.b32.xlu0 %v13974, 16
    %v14249 = vpop.permute.xlu0 %14248
    %14250 = vrot.lane.b32.xlu0 %v13979, 16
    %v14251 = vpop.permute.xlu0 %14250
    %14252 = vrot.lane.b32.xlu0 %v13984, 16
    %v14253 = vpop.permute.xlu0 %14252
    %14254 = vrot.lane.b32.xlu0 %v13989, 16
    %v14255 = vpop.permute.xlu0 %14254
    %14256 = vrot.lane.b32.xlu0 %v13994, 16
    %v14257 = vpop.permute.xlu0 %14256
    %14258 = vrot.lane.b32.xlu0 %v13999, 16
    %v14259 = vpop.permute.xlu0 %14258
    %14260 = vrot.lane.b32.xlu0 %v14004, 16
    %v14261 = vpop.permute.xlu0 %14260
    %14262 = vrot.lane.b32.xlu0 %v14009, 16
    %v14263 = vpop.permute.xlu0 %14262
    %14264 = vrot.lane.b32.xlu0 %v14014, 16
    %v14265 = vpop.permute.xlu0 %14264
    %14266 = vrot.lane.b32.xlu0 %v14019, 16
    %v14267 = vpop.permute.xlu0 %14266
    %14268 = vrot.lane.b32.xlu0 %v14024, 16
    %v14269 = vpop.permute.xlu0 %14268
    %14270 = vrot.lane.b32.xlu0 %v14029, 16
    %v14271 = vpop.permute.xlu0 %14270
    %14272 = vrot.lane.b32.xlu0 %v14034, 16
    %v14273 = vpop.permute.xlu0 %14272
    %14274 = vrot.lane.b32.xlu0 %v14039, 16
    %v14275 = vpop.permute.xlu0 %14274
    %14276 = vrot.lane.b32.xlu0 %v14044, 16
    %v14277 = vpop.permute.xlu0 %14276
    %14278 = vrot.lane.b32.xlu0 %v14049, 16
    %v14279 = vpop.permute.xlu0 %14278
    %14280 = vrot.lane.b32.xlu0 %v14054, 16
    %v14281 = vpop.permute.xlu0 %14280
    %14282 = vrot.lane.b32.xlu0 %v14059, 16
    %v14283 = vpop.permute.xlu0 %14282
    %14284 = vrot.lane.b32.xlu0 %v14064, 16
    %v14285 = vpop.permute.xlu0 %14284
    %14286 = vrot.lane.b32.xlu0 %v14069, 16
    %v14287 = vpop.permute.xlu0 %14286
    %14288 = vrot.lane.b32.xlu0 %v14074, 16
    %v14289 = vpop.permute.xlu0 %14288
    %14290 = vrot.lane.b32.xlu0 %v14079, 16
    %v14291 = vpop.permute.xlu0 %14290
    %14292 = vrot.lane.b32.xlu0 %v14084, 16
    %v14293 = vpop.permute.xlu0 %14292
    %14294 = vrot.lane.b32.xlu0 %v14089, 16
    %v14295 = vpop.permute.xlu0 %14294
    %14296 = vrot.lane.b32.xlu0 %v14094, 16
    %v14297 = vpop.permute.xlu0 %14296
    %14298 = vrot.lane.b32.xlu0 %v14099, 16
    %v14299 = vpop.permute.xlu0 %14298
    %14300 = vrot.lane.b32.xlu0 %v14104, 16
    %v14301 = vpop.permute.xlu0 %14300
    %14302 = vrot.lane.b32.xlu0 %v14109, 16
    %v14303 = vpop.permute.xlu0 %14302
    %v14368 = vsel %vm10017, %v4345, %v14177
    %v14369 = vsel %vm10017, %v4350, %v14179
    %v14370 = vsel %vm10017, %v4355, %v14181
    %v14371 = vsel %vm10017, %v4360, %v14183
    %v14372 = vsel %vm10017, %v4365, %v14185
    %v14373 = vsel %vm10017, %v4370, %v14187
    %v14374 = vsel %vm10017, %v4375, %v14189
    %v14375 = vsel %vm10017, %v4380, %v14191
    %v14376 = vsel %vm10017, %v4385, %v14193
    %v14377 = vsel %vm10017, %v4390, %v14195
    %v14378 = vsel %vm10017, %v4395, %v14197
    %v14379 = vsel %vm10017, %v4400, %v14199
    %v14380 = vsel %vm10017, %v4405, %v14201
    %v14381 = vsel %vm10017, %v4410, %v14203
    %v14382 = vsel %vm10017, %v4415, %v14205
    %v14383 = vsel %vm10017, %v4420, %v14207
    %v14384 = vsel %vm10017, %v4425, %v14209
    %v14385 = vsel %vm10017, %v4430, %v14211
    %v14386 = vsel %vm10017, %v4435, %v14213
    %v14387 = vsel %vm10017, %v4440, %v14215
    %v14388 = vsel %vm10017, %v4445, %v14217
    %v14389 = vsel %vm10017, %v4450, %v14219
    %v14390 = vsel %vm10017, %v4455, %v14221
    %v14391 = vsel %vm10017, %v4460, %v14223
    %v14392 = vsel %vm10017, %v4465, %v14225
    %v14393 = vsel %vm10017, %v4470, %v14227
    %v14394 = vsel %vm10017, %v4475, %v14229
    %v14395 = vsel %vm10017, %v4480, %v14231
    %v14396 = vsel %vm10017, %v4485, %v14233
    %v14397 = vsel %vm10017, %v4490, %v14235
    %v14398 = vsel %vm10017, %v4495, %v14237
    %v14399 = vsel %vm10017, %v4500, %v14239
    %v14400 = vsel %vm10017, %v4505, %v14241
    %v14401 = vsel %vm10017, %v4510, %v14243
    %v14402 = vsel %vm10017, %v4515, %v14245
    %v14403 = vsel %vm10017, %v4520, %v14247
    %v14404 = vsel %vm10017, %v4525, %v14249
    %v14405 = vsel %vm10017, %v4530, %v14251
    %v14406 = vsel %vm10017, %v4535, %v14253
    %v14407 = vsel %vm10017, %v4540, %v14255
    %v14408 = vsel %vm10017, %v4545, %v14257
    %v14409 = vsel %vm10017, %v4550, %v14259
    %v14410 = vsel %vm10017, %v4555, %v14261
    %v14411 = vsel %vm10017, %v4560, %v14263
    %v14412 = vsel %vm10017, %v4565, %v14265
    %v14413 = vsel %vm10017, %v4570, %v14267
    %v14414 = vsel %vm10017, %v4575, %v14269
    %v14415 = vsel %vm10017, %v4580, %v14271
    %v14416 = vsel %vm10017, %v4585, %v14273
    %v14417 = vsel %vm10017, %v4590, %v14275
    %v14418 = vsel %vm10017, %v4595, %v14277
    %v14419 = vsel %vm10017, %v4600, %v14279
    %v14420 = vsel %vm10017, %v4605, %v14281
    %v14421 = vsel %vm10017, %v4610, %v14283
    %v14422 = vsel %vm10017, %v4615, %v14285
    %v14423 = vsel %vm10017, %v4620, %v14287
    %v14424 = vsel %vm10017, %v4625, %v14289
    %v14425 = vsel %vm10017, %v4630, %v14291
    %v14426 = vsel %vm10017, %v4635, %v14293
    %v14427 = vsel %vm10017, %v4640, %v14295
    %v14428 = vsel %vm10017, %v4645, %v14297
    %v14429 = vsel %vm10017, %v4650, %v14299
    %v14430 = vsel %vm10017, %v4655, %v14301
    %v14431 = vsel %vm10017, %v4660, %v14303
    %14432 = vst.msk [vmem:[#allocation5] sm:$0xff] %vm3347, %v14368
    %14433 = vst.msk [vmem:[#allocation5 + $0x8] sm:$0xff] %vm3347, %v14369
    %14434 = vst.msk [vmem:[#allocation5 + $0x10] sm:$0xff] %vm3347, %v14370
    %14435 = vst.msk [vmem:[#allocation5 + $0x18] sm:$0xff] %vm3347, %v14371
    %14436 = vst.msk [vmem:[#allocation5 + $0x20] sm:$0xff] %vm3347, %v14372
    %14437 = vst.msk [vmem:[#allocation5 + $0x28] sm:$0xff] %vm3347, %v14373
    %14438 = vst.msk [vmem:[#allocation5 + $0x30] sm:$0xff] %vm3347, %v14374
    %14439 = vst.msk [vmem:[#allocation5 + $0x38] sm:$0xff] %vm3347, %v14375
    %14440 = vst.msk [vmem:[#allocation5 + $0x40] sm:$0xff] %vm3347, %v14376
    %14441 = vst.msk [vmem:[#allocation5 + $0x48] sm:$0xff] %vm3347, %v14377
    %14442 = vst.msk [vmem:[#allocation5 + $0x50] sm:$0xff] %vm3347, %v14378
    %14443 = vst.msk [vmem:[#allocation5 + $0x58] sm:$0xff] %vm3347, %v14379
    %14444 = vst.msk [vmem:[#allocation5 + $0x60] sm:$0xff] %vm3347, %v14380
    %14445 = vst.msk [vmem:[#allocation5 + $0x68] sm:$0xff] %vm3347, %v14381
    %14446 = vst.msk [vmem:[#allocation5 + $0x70] sm:$0xff] %vm3347, %v14382
    %14447 = vst.msk [vmem:[#allocation5 + $0x78] sm:$0xff] %vm3347, %v14383
    %14448 = vst.msk [vmem:[#allocation5 + $0x80] sm:$0xff] %vm3347, %v14384
    %14449 = vst.msk [vmem:[#allocation5 + $0x88] sm:$0xff] %vm3347, %v14385
    %14450 = vst.msk [vmem:[#allocation5 + $0x90] sm:$0xff] %vm3347, %v14386
    %14451 = vst.msk [vmem:[#allocation5 + $0x98] sm:$0xff] %vm3347, %v14387
    %14452 = vst.msk [vmem:[#allocation5 + $0xa0] sm:$0xff] %vm3347, %v14388
    %14453 = vst.msk [vmem:[#allocation5 + $0xa8] sm:$0xff] %vm3347, %v14389
    %14454 = vst.msk [vmem:[#allocation5 + $0xb0] sm:$0xff] %vm3347, %v14390
    %14455 = vst.msk [vmem:[#allocation5 + $0xb8] sm:$0xff] %vm3347, %v14391
    %14456 = vst.msk [vmem:[#allocation5 + $0xc0] sm:$0xff] %vm3347, %v14392
    %14457 = vst.msk [vmem:[#allocation5 + $0xc8] sm:$0xff] %vm3347, %v14393
    %14458 = vst.msk [vmem:[#allocation5 + $0xd0] sm:$0xff] %vm3347, %v14394
    %14459 = vst.msk [vmem:[#allocation5 + $0xd8] sm:$0xff] %vm3347, %v14395
    %14460 = vst.msk [vmem:[#allocation5 + $0xe0] sm:$0xff] %vm3347, %v14396
    %14461 = vst.msk [vmem:[#allocation5 + $0xe8] sm:$0xff] %vm3347, %v14397
    %14462 = vst.msk [vmem:[#allocation5 + $0xf0] sm:$0xff] %vm3347, %v14398
    %14463 = vst.msk [vmem:[#allocation5 + $0xf8] sm:$0xff] %vm3347, %v14399
    %14464 = vst.msk [vmem:[#allocation5 + $0x100] sm:$0xff] %vm3347, %v14400
    %14465 = vst.msk [vmem:[#allocation5 + $0x108] sm:$0xff] %vm3347, %v14401
    %14466 = vst.msk [vmem:[#allocation5 + $0x110] sm:$0xff] %vm3347, %v14402
    %14467 = vst.msk [vmem:[#allocation5 + $0x118] sm:$0xff] %vm3347, %v14403
    %14468 = vst.msk [vmem:[#allocation5 + $0x120] sm:$0xff] %vm3347, %v14404
    %14469 = vst.msk [vmem:[#allocation5 + $0x128] sm:$0xff] %vm3347, %v14405
    %14470 = vst.msk [vmem:[#allocation5 + $0x130] sm:$0xff] %vm3347, %v14406
    %14471 = vst.msk [vmem:[#allocation5 + $0x138] sm:$0xff] %vm3347, %v14407
    %14472 = vst.msk [vmem:[#allocation5 + $0x140] sm:$0xff] %vm3347, %v14408
    %14473 = vst.msk [vmem:[#allocation5 + $0x148] sm:$0xff] %vm3347, %v14409
    %14474 = vst.msk [vmem:[#allocation5 + $0x150] sm:$0xff] %vm3347, %v14410
    %14475 = vst.msk [vmem:[#allocation5 + $0x158] sm:$0xff] %vm3347, %v14411
    %14476 = vst.msk [vmem:[#allocation5 + $0x160] sm:$0xff] %vm3347, %v14412
    %14477 = vst.msk [vmem:[#allocation5 + $0x168] sm:$0xff] %vm3347, %v14413
    %14478 = vst.msk [vmem:[#allocation5 + $0x170] sm:$0xff] %vm3347, %v14414
    %14479 = vst.msk [vmem:[#allocation5 + $0x178] sm:$0xff] %vm3347, %v14415
    %14480 = vst.msk [vmem:[#allocation5 + $0x180] sm:$0xff] %vm3347, %v14416
    %14481 = vst.msk [vmem:[#allocation5 + $0x188] sm:$0xff] %vm3347, %v14417
    %14482 = vst.msk [vmem:[#allocation5 + $0x190] sm:$0xff] %vm3347, %v14418
    %14483 = vst.msk [vmem:[#allocation5 + $0x198] sm:$0xff] %vm3347, %v14419
    %14484 = vst.msk [vmem:[#allocation5 + $0x1a0] sm:$0xff] %vm3347, %v14420
    %14485 = vst.msk [vmem:[#allocation5 + $0x1a8] sm:$0xff] %vm3347, %v14421
    %14486 = vst.msk [vmem:[#allocation5 + $0x1b0] sm:$0xff] %vm3347, %v14422
    %14487 = vst.msk [vmem:[#allocation5 + $0x1b8] sm:$0xff] %vm3347, %v14423
    %14488 = vst.msk [vmem:[#allocation5 + $0x1c0] sm:$0xff] %vm3347, %v14424
    %14489 = vst.msk [vmem:[#allocation5 + $0x1c8] sm:$0xff] %vm3347, %v14425
    %14490 = vst.msk [vmem:[#allocation5 + $0x1d0] sm:$0xff] %vm3347, %v14426
    %14491 = vst.msk [vmem:[#allocation5 + $0x1d8] sm:$0xff] %vm3347, %v14427
    %14492 = vst.msk [vmem:[#allocation5 + $0x1e0] sm:$0xff] %vm3347, %v14428
    %14493 = vst.msk [vmem:[#allocation5 + $0x1e8] sm:$0xff] %vm3347, %v14429
    %14494 = vst.msk [vmem:[#allocation5 + $0x1f0] sm:$0xff] %vm3347, %v14430
    %14495 = vst.msk [vmem:[#allocation5 + $0x1f8] sm:$0xff] %vm3347, %v14431
    // Predicated region
    $region50: #{tpu_custom_call.1} parent=1 // pred_check
      _
    $region51: #{tpu_custom_call.1} parent=1 // pred_check_branch
      %14497 = sbr.rel (0) target = $region53
    $region52: #{tpu_custom_call.1} parent=1 // pred_region
      %s14499 = ssub.s32 8192, 8192
      %14500 = vsyncadd [#allocation4], %s14499
      %s14501 = sshll.u32 [#allocation5], 4
      %s14502 = int_to_ptr.vmem [resolvable:$true] %s14501
      %14507 = dma.vmem_to_hbm [thread:$0]  %s14502, 8192, %s11, [#allocation4], 128, 128, 8
    $region53: #{tpu_custom_call.1} parent=1 // pred_fallthru
      _
    // Predicated region
    $region54: #{tpu_custom_call.1} parent=1 // pred_check
      _
    $region55: #{tpu_custom_call.1} parent=1 // pred_check_branch
      %14509 = sbr.rel (0) target = $region57
    $region56: #{tpu_custom_call.1} parent=1 // pred_region
      %14510 = dma.done [#allocation4], 8192
    $region57: #{tpu_custom_call.1} parent=1 // pred_fallthru
      _
    %14511 = vsyncpa [#allocation3], 1
    %14512 = vsyncpa [#allocation4], 1

</llo_original>
